<compile_context>
chip_gen: v5e
topology: v5e:2x2
jax: 0.10.0
libtpu: 0.0.40
codegen_flags: <defaults>
</compile_context>

<pallas_src>
import functools

import numpy as np

import jax
import jax.numpy as jnp
from jax.experimental import pallas as pl
from jax.experimental.pallas import tpu as pltpu

LANE = 128


def _round_up(n, m):
    return ((n + m - 1) // m) * m


# ---------------------------------------------------------------------------
# Fused Pallas kernel: conv1 -> conv2 -> conv3 -> residual+ReLU -> GAP -> fc1
# One grid step == one image.  All activations stay as (H*W, C_pad) values in
# VMEM/vregs; nothing intermediate touches HBM.
# ---------------------------------------------------------------------------
def _fused_resnet_kernel(x_ref, w1_ref, b1_ref, w2_ref, b2_ref,
                         w3_ref, b3_ref, fcw_ref, fcb_ref, out_ref,
                         *, spatial, cp):
    f32 = jnp.float32
    bf16 = jnp.bfloat16
    m = spatial * spatial

    # Column-boundary masks, built once from a 2-D iota and reused by all
    # three convs.  Row-boundary (dy) crossings are handled exactly by the
    # zero fill of the shifted slices below, so only dx needs masking.
    col = jax.lax.broadcasted_iota(jnp.int32, (m, 1), 0) % spatial
    left_ok = col >= 1                   # tap dx == -1 is valid
    right_ok = col < spatial - 1         # tap dx == +1 is valid

    def shift9(h):
        """(m, cp) bf16 -> (m, 9*cp) bf16: the 9 zero-padded spatial shifts of
        the flattened activation concatenated along lanes.  Pure slice/concat
        + VPU masking: no MXU permutation matmuls, no O(M^2) constants."""
        pieces = []
        for t in range(9):
            dy, dx = t // 3 - 1, t % 3 - 1
            off = dy * spatial + dx      # shifted[r] = h[r + off] (0 outside)
            if off > 0:
                sh = jnp.concatenate(
                    [h[off:, :], jnp.zeros((off, cp), bf16)], axis=0)
            elif off < 0:
                sh = jnp.concatenate(
                    [jnp.zeros((-off, cp), bf16), h[:m + off, :]], axis=0)
            else:
                sh = h
            if dx == -1:
                sh = jnp.where(left_ok, sh, jnp.zeros_like(sh))
            elif dx == 1:
                sh = jnp.where(right_ok, sh, jnp.zeros_like(sh))
            pieces.append(sh)
        return jnp.concatenate(pieces, axis=1)       # (m, 9*cp)

    def conv3x3(h_bf16, w_ref, b_ref, relu):
        # One fused K = 9*cp matmul per conv: bf16 operands, f32 accumulation.
        acc = jnp.dot(shift9(h_bf16), w_ref[...], preferred_element_type=f32)
        acc = acc + b_ref[...]                        # (1, cp) broadcast
        if relu:
            acc = jnp.maximum(acc, 0.0)
        return acc                                    # (m, cp) f32

    # Input arrives unpadded (m, cin); pad channels to 128 lanes in VMEM only
    # (no inflated HBM copy, no inflated DMA).
    x0 = x_ref[0]                                     # (m, cin) bf16
    cin = x0.shape[-1]
    x0 = jnp.concatenate(
        [x0, jnp.zeros((m, cp - cin), x0.dtype)], axis=1)   # (m, cp) bf16

    # --- backbone (`self.model(x)` stand-in) ---
    h1 = conv3x3(x0, w1_ref, b1_ref, relu=True).astype(bf16)   # bf16 residual
    h2 = conv3x3(h1, w2_ref, b2_ref, relu=True).astype(bf16)
    r3 = conv3x3(h2, w3_ref, b3_ref, relu=False)               # f32
    h = jnp.maximum(r3 + h1.astype(f32), 0.0)                  # residual+ReLU

    # Global average pool: plain sum; the 1/(H*W) factor is folded into fc1_w.
    feat = jnp.sum(h, axis=0, keepdims=True)                   # (1, cp) f32

    # --- head (`self.fc1(out)`) ---
    logits = jnp.dot(feat.astype(bf16), fcw_ref[...],
                     preferred_element_type=f32) + fcb_ref[...]  # (1, ncls_p)
    out_ref[0] = logits.astype(out_ref.dtype)


# ---------------------------------------------------------------------------
# One-time parameter preparation (outside the hot path)
# ---------------------------------------------------------------------------
def init_params(key, in_channels, hidden_size, num_classes):
    """PyTorch-layout params: conv weights HWIO, fc1 weight (classes, hidden)."""
    ks = jax.random.split(key, 5)

    def conv_w(k, cin, cout):
        scale = 1.0 / np.sqrt(9.0 * cin)
        return jax.random.normal(k, (3, 3, cin, cout), jnp.float32) * scale

    fc_scale = 1.0 / np.sqrt(float(hidden_size))
    return {
        "conv1_w": conv_w(ks[0], in_channels, hidden_size),
        "conv1_b": jnp.zeros((hidden_size,), jnp.float32),
        "conv2_w": conv_w(ks[1], hidden_size, hidden_size),
        "conv2_b": jnp.zeros((hidden_size,), jnp.float32),
        "conv3_w": conv_w(ks[2], hidden_size, hidden_size),
        "conv3_b": jnp.zeros((hidden_size,), jnp.float32),
        "fc1_w": jax.random.normal(ks[3], (num_classes, hidden_size),
                                   jnp.float32) * fc_scale,
        "fc1_b": jax.random.normal(ks[4], (num_classes,),
                                   jnp.float32) * fc_scale,
    }


def prepare_kernel_params(params, in_channels, hidden_size, num_classes,
                          spatial):
    """Pad channel dims to 128 lanes, fuse the 9 taps into (9*Cp, Cp) bf16
    conv weights, pre-transpose fc1 and fold the GAP 1/(H*W) into it."""
    cp = _round_up(hidden_size, LANE)
    ncls_p = _round_up(num_classes, LANE)

    def conv(w, b, cin):
        wp = jnp.zeros((9, cp, cp), jnp.float32)
        wp = wp.at[:, :cin, :hidden_size].set(w.reshape(9, cin, hidden_size))
        bp = jnp.zeros((1, cp), jnp.float32).at[0, :hidden_size].set(b)
        return wp.reshape(9 * cp, cp).astype(jnp.bfloat16), bp

    w1, b1 = conv(params["conv1_w"], params["conv1_b"], in_channels)
    w2, b2 = conv(params["conv2_w"], params["conv2_b"], hidden_size)
    w3, b3 = conv(params["conv3_w"], params["conv3_b"], hidden_size)

    inv_hw = 1.0 / float(spatial * spatial)          # GAP folded into fc1_w
    fcw = jnp.zeros((cp, ncls_p), jnp.float32)
    fcw = fcw.at[:hidden_size, :num_classes].set(params["fc1_w"].T * inv_hw)
    fcb = jnp.zeros((1, ncls_p), jnp.float32).at[0, :num_classes].set(
        params["fc1_b"])

    return {
        "conv1_w": w1, "conv1_b": b1,
        "conv2_w": w2, "conv2_b": b2,
        "conv3_w": w3, "conv3_b": b3,
        "fc1_w": fcw.astype(jnp.bfloat16), "fc1_b": fcb,
    }


# ---------------------------------------------------------------------------
# Forward pass
# ---------------------------------------------------------------------------
def resnet_model_forward(kparams, x_nchw, *, num_classes):
    B, cin, H, W = x_nchw.shape
    assert H == W
    m = H * W
    cp = kparams["conv1_w"].shape[1]
    ncls_p = kparams["fc1_w"].shape[1]

    # NCHW -> (B, H*W, cin) bf16.  No channel padding in HBM: the DMA moves
    # only the real cin channels; lane padding happens inside the kernel.
    x = jnp.transpose(x_nchw, (0, 2, 3, 1)).reshape(B, m, cin)
    x = x.astype(jnp.bfloat16)

    kern = functools.partial(_fused_resnet_kernel, spatial=H, cp=cp)
    out = pl.pallas_call(
        kern,
        out_shape=jax.ShapeDtypeStruct((B, 1, ncls_p), jnp.float32),
        grid=(B,),
        in_specs=[
            pl.BlockSpec((1, m, cin), lambda b: (b, 0, 0)),    # x (1 image)
            pl.BlockSpec((9 * cp, cp), lambda b: (0, 0)),      # w1 (fused taps)
            pl.BlockSpec((1, cp), lambda b: (0, 0)),           # b1
            pl.BlockSpec((9 * cp, cp), lambda b: (0, 0)),      # w2
            pl.BlockSpec((1, cp), lambda b: (0, 0)),           # b2
            pl.BlockSpec((9 * cp, cp), lambda b: (0, 0)),      # w3
            pl.BlockSpec((1, cp), lambda b: (0, 0)),           # b3
            pl.BlockSpec((cp, ncls_p), lambda b: (0, 0)),      # fc1_w (GAP folded)
            pl.BlockSpec((1, ncls_p), lambda b: (0, 0)),       # fc1_b
        ],
        out_specs=pl.BlockSpec((1, 1, ncls_p), lambda b: (b, 0, 0)),
        compiler_params=pltpu.CompilerParams(
            dimension_semantics=("parallel",),       # megacore batch split
            vmem_limit_bytes=32 * 1024 * 1024),      # explicit VMEM budget
    )(x,
      kparams["conv1_w"], kparams["conv1_b"],
      kparams["conv2_w"], kparams["conv2_b"],
      kparams["conv3_w"], kparams["conv3_b"],
      kparams["fc1_w"], kparams["fc1_b"])

    return out[:, 0, :num_classes]                   # slice off lane padding


# ---------------------------------------------------------------------------
# Pure-JAX f32 reference (for correctness check only)
# ---------------------------------------------------------------------------
def _reference_forward(params, x_nchw):
    x = jnp.transpose(x_nchw, (0, 2, 3, 1)).astype(jnp.float32)

    def conv3x3(x_nhwc, w, b, relu):
        B, H, W, _ = x_nhwc.shape
        xp = jnp.pad(x_nhwc, ((0, 0), (1, 1), (1, 1), (0, 0)))
        acc = jnp.zeros((B, H, W, w.shape[-1]), jnp.float32) + b
        for dy in range(3):
            for dx in range(3):
                acc = acc + jnp.einsum(
                    "bhwc,co->bhwo", xp[:, dy:dy + H, dx:dx + W, :], w[dy, dx])
        return jnp.maximum(acc, 0.0) if relu else acc

    h1 = conv3x3(x, params["conv1_w"], params["conv1_b"], True)
    h2 = conv3x3(h1, params["conv2_w"], params["conv2_b"], True)
    r3 = conv3x3(h2, params["conv3_w"], params["conv3_b"], False)
    h = jnp.maximum(r3 + h1, 0.0)
    feat = jnp.mean(h, axis=(1, 2))
    return feat @ params["fc1_w"].T + params["fc1_b"]


# ---------------------------------------------------------------------------
if __name__ == "__main__":
    B, C_IN, S = 2, 4, 16
    HIDDEN, NUM_CLASSES = 32, 10

    key = jax.random.PRNGKey(0)
    kx, kp = jax.random.split(key)
    x = jax.random.normal(kx, (B, C_IN, S, S), jnp.float32)   # NCHW (PyTorch)

    params = init_params(kp, C_IN, HIDDEN, NUM_CLASSES)
    kparams = prepare_kernel_params(params, C_IN, HIDDEN, NUM_CLASSES, S)

    fwd = jax.jit(resnet_model_forward, static_argnames="num_classes")
    out = jax.block_until_ready(fwd(kparams, x, num_classes=NUM_CLASSES))

    assert out.shape == (B, NUM_CLASSES), out.shape
    assert bool(jnp.all(jnp.isfinite(out)))

    ref = _reference_forward(params, x)
    max_err = float(jnp.max(jnp.abs(out - ref)))
    assert max_err < 0.1, f"max abs err vs f32 reference: {max_err}"

    print("KERNEL_OK")
</pallas_src>

<mosaic_0001>
module attributes {stable_mosaic.version = 11 : i64} {
  func.func @_fused_resnet_kernel(%arg0: i32, %arg1: memref<1x256x4xbf16, #tpu.memory_space<vmem>>, %arg2: memref<1152x128xbf16, #tpu.memory_space<vmem>>, %arg3: memref<1x128xf32, #tpu.memory_space<vmem>>, %arg4: memref<1152x128xbf16, #tpu.memory_space<vmem>>, %arg5: memref<1x128xf32, #tpu.memory_space<vmem>>, %arg6: memref<1152x128xbf16, #tpu.memory_space<vmem>>, %arg7: memref<1x128xf32, #tpu.memory_space<vmem>>, %arg8: memref<128x128xbf16, #tpu.memory_space<vmem>>, %arg9: memref<1x128xf32, #tpu.memory_space<vmem>>, %arg10: memref<1x1x128xf32, #tpu.memory_space<vmem>>) attributes {dimension_semantics = [#tpu.dimension_semantics<parallel>], iteration_bounds = array<i64: 2>, scalar_prefetch = 0 : i64, scratch_operands = 0 : i64, tpu.core_type = #tpu.core_type<tc>, window_params = [{transform_indices = @transform_0, window_bounds = array<i64: 1, 256, 4>}, {pipeline_mode = #tpu.pipeline_mode<synchronous>, transform_indices = @transform_1, window_bounds = array<i64: 1152, 128>}, {pipeline_mode = #tpu.pipeline_mode<synchronous>, transform_indices = @transform_2, window_bounds = array<i64: 1, 128>}, {pipeline_mode = #tpu.pipeline_mode<synchronous>, transform_indices = @transform_3, window_bounds = array<i64: 1152, 128>}, {pipeline_mode = #tpu.pipeline_mode<synchronous>, transform_indices = @transform_4, window_bounds = array<i64: 1, 128>}, {pipeline_mode = #tpu.pipeline_mode<synchronous>, transform_indices = @transform_5, window_bounds = array<i64: 1152, 128>}, {pipeline_mode = #tpu.pipeline_mode<synchronous>, transform_indices = @transform_6, window_bounds = array<i64: 1, 128>}, {pipeline_mode = #tpu.pipeline_mode<synchronous>, transform_indices = @transform_7, window_bounds = array<i64: 128, 128>}, {pipeline_mode = #tpu.pipeline_mode<synchronous>, transform_indices = @transform_8, window_bounds = array<i64: 1, 128>}, {transform_indices = @transform_9, window_bounds = array<i64: 1, 1, 128>}]} {
    %0 = tpu.iota {dimensions = array<i32: 0>} : vector<256x1xi32>
    %c16_i32 = arith.constant 16 : i32
    %c0_i32 = arith.constant 0 : i32
    %1 = arith.cmpi eq, %c16_i32, %c0_i32 : i32
    %c1_i32 = arith.constant 1 : i32
    %2 = arith.select %1, %c1_i32, %c16_i32 : i32
    %3 = vector.broadcast %2 : i32 to vector<256x1xi32>
    %4 = arith.remsi %0, %3 : vector<256x1xi32>
    %c0_i32_0 = arith.constant 0 : i32
    %5 = vector.broadcast %c0_i32_0 : i32 to vector<256x1xi32>
    %6 = arith.cmpi ne, %4, %5 : vector<256x1xi32>
    %c0_i32_1 = arith.constant 0 : i32
    %7 = vector.broadcast %c0_i32_1 : i32 to vector<256x1xi32>
    %8 = arith.cmpi slt, %4, %7 : vector<256x1xi32>
    %c0_i32_2 = arith.constant 0 : i32
    %9 = arith.cmpi slt, %2, %c0_i32_2 : i32
    %10 = vector.broadcast %9 : i1 to vector<256x1xi1>
    %11 = vector.broadcast %10 : vector<256x1xi1> to vector<256x1xi1>
    %12 = arith.xori %8, %11 : vector<256x1xi1>
    %13 = arith.andi %12, %6 : vector<256x1xi1>
    %14 = vector.broadcast %2 : i32 to vector<256x1xi32>
    %15 = arith.addi %4, %14 : vector<256x1xi32>
    %16 = arith.select %13, %15, %4 : vector<256x1xi1>, vector<256x1xi32>
    %c1_i32_3 = arith.constant 1 : i32
    %17 = vector.broadcast %c1_i32_3 : i32 to vector<256x1xi32>
    %18 = arith.cmpi sge, %16, %17 : vector<256x1xi32>
    %c15_i32 = arith.constant 15 : i32
    %19 = vector.broadcast %c15_i32 : i32 to vector<256x1xi32>
    %20 = arith.cmpi slt, %16, %19 : vector<256x1xi32>
    %c0 = arith.constant 0 : index
    %c0_4 = arith.constant 0 : index
    %c0_5 = arith.constant 0 : index
    %21 = vector.load %arg1[%c0, %c0_4, %c0_5] : memref<1x256x4xbf16, #tpu.memory_space<vmem>>, vector<1x256x4xbf16>
    %22 = vector.shape_cast %21 : vector<1x256x4xbf16> to vector<256x4xbf16>
    %cst = arith.constant 0.000000e+00 : bf16
    %23 = vector.broadcast %cst : bf16 to vector<256x124xbf16>
    %24 = tpu.concatenate %22, %23 in 1 : vector<256x4xbf16>, vector<256x124xbf16> -> vector<256x128xbf16>
    %cst_6 = arith.constant 0.000000e+00 : bf16
    %25 = vector.broadcast %cst_6 : bf16 to vector<17x128xbf16>
    %26 = vector.extract_strided_slice %24 {offsets = [0, 0], sizes = [239, 128], strides = [1, 1]} : vector<256x128xbf16> to vector<239x128xbf16>
    %27 = tpu.concatenate %25, %26 in 0 : vector<17x128xbf16>, vector<239x128xbf16> -> vector<256x128xbf16>
    %cst_7 = arith.constant 0.000000e+00 : bf16
    %28 = vector.broadcast %cst_7 : bf16 to vector<256x128xbf16>
    %29 = vector.shape_cast %18 : vector<256x1xi1> to vector<256x1xi1>
    %30 = vector.broadcast %29 : vector<256x1xi1> to vector<256x128xi1>
    %31 = arith.select %30, %27, %28 : vector<256x128xi1>, vector<256x128xbf16>
    %cst_8 = arith.constant 0.000000e+00 : bf16
    %32 = vector.broadcast %cst_8 : bf16 to vector<16x128xbf16>
    %33 = vector.extract_strided_slice %24 {offsets = [0, 0], sizes = [240, 128], strides = [1, 1]} : vector<256x128xbf16> to vector<240x128xbf16>
    %34 = tpu.concatenate %32, %33 in 0 : vector<16x128xbf16>, vector<240x128xbf16> -> vector<256x128xbf16>
    %cst_9 = arith.constant 0.000000e+00 : bf16
    %35 = vector.broadcast %cst_9 : bf16 to vector<15x128xbf16>
    %36 = vector.extract_strided_slice %24 {offsets = [0, 0], sizes = [241, 128], strides = [1, 1]} : vector<256x128xbf16> to vector<241x128xbf16>
    %37 = tpu.concatenate %35, %36 in 0 : vector<15x128xbf16>, vector<241x128xbf16> -> vector<256x128xbf16>
    %cst_10 = arith.constant 0.000000e+00 : bf16
    %38 = vector.broadcast %cst_10 : bf16 to vector<256x128xbf16>
    %39 = vector.shape_cast %20 : vector<256x1xi1> to vector<256x1xi1>
    %40 = vector.broadcast %39 : vector<256x1xi1> to vector<256x128xi1>
    %41 = arith.select %40, %37, %38 : vector<256x128xi1>, vector<256x128xbf16>
    %cst_11 = arith.constant 0.000000e+00 : bf16
    %42 = vector.broadcast %cst_11 : bf16 to vector<1x128xbf16>
    %43 = vector.extract_strided_slice %24 {offsets = [0, 0], sizes = [255, 128], strides = [1, 1]} : vector<256x128xbf16> to vector<255x128xbf16>
    %44 = tpu.concatenate %42, %43 in 0 : vector<1x128xbf16>, vector<255x128xbf16> -> vector<256x128xbf16>
    %cst_12 = arith.constant 0.000000e+00 : bf16
    %45 = vector.broadcast %cst_12 : bf16 to vector<256x128xbf16>
    %46 = vector.shape_cast %18 : vector<256x1xi1> to vector<256x1xi1>
    %47 = vector.broadcast %46 : vector<256x1xi1> to vector<256x128xi1>
    %48 = arith.select %47, %44, %45 : vector<256x128xi1>, vector<256x128xbf16>
    %49 = vector.extract_strided_slice %24 {offsets = [1, 0], sizes = [255, 128], strides = [1, 1]} : vector<256x128xbf16> to vector<255x128xbf16>
    %cst_13 = arith.constant 0.000000e+00 : bf16
    %50 = vector.broadcast %cst_13 : bf16 to vector<1x128xbf16>
    %51 = tpu.concatenate %49, %50 in 0 : vector<255x128xbf16>, vector<1x128xbf16> -> vector<256x128xbf16>
    %cst_14 = arith.constant 0.000000e+00 : bf16
    %52 = vector.broadcast %cst_14 : bf16 to vector<256x128xbf16>
    %53 = vector.shape_cast %20 : vector<256x1xi1> to vector<256x1xi1>
    %54 = vector.broadcast %53 : vector<256x1xi1> to vector<256x128xi1>
    %55 = arith.select %54, %51, %52 : vector<256x128xi1>, vector<256x128xbf16>
    %56 = vector.extract_strided_slice %24 {offsets = [15, 0], sizes = [241, 128], strides = [1, 1]} : vector<256x128xbf16> to vector<241x128xbf16>
    %cst_15 = arith.constant 0.000000e+00 : bf16
    %57 = vector.broadcast %cst_15 : bf16 to vector<15x128xbf16>
    %58 = tpu.concatenate %56, %57 in 0 : vector<241x128xbf16>, vector<15x128xbf16> -> vector<256x128xbf16>
    %cst_16 = arith.constant 0.000000e+00 : bf16
    %59 = vector.broadcast %cst_16 : bf16 to vector<256x128xbf16>
    %60 = vector.shape_cast %18 : vector<256x1xi1> to vector<256x1xi1>
    %61 = vector.broadcast %60 : vector<256x1xi1> to vector<256x128xi1>
    %62 = arith.select %61, %58, %59 : vector<256x128xi1>, vector<256x128xbf16>
    %63 = vector.extract_strided_slice %24 {offsets = [16, 0], sizes = [240, 128], strides = [1, 1]} : vector<256x128xbf16> to vector<240x128xbf16>
    %cst_17 = arith.constant 0.000000e+00 : bf16
    %64 = vector.broadcast %cst_17 : bf16 to vector<16x128xbf16>
    %65 = tpu.concatenate %63, %64 in 0 : vector<240x128xbf16>, vector<16x128xbf16> -> vector<256x128xbf16>
    %66 = vector.extract_strided_slice %24 {offsets = [17, 0], sizes = [239, 128], strides = [1, 1]} : vector<256x128xbf16> to vector<239x128xbf16>
    %cst_18 = arith.constant 0.000000e+00 : bf16
    %67 = vector.broadcast %cst_18 : bf16 to vector<17x128xbf16>
    %68 = tpu.concatenate %66, %67 in 0 : vector<239x128xbf16>, vector<17x128xbf16> -> vector<256x128xbf16>
    %cst_19 = arith.constant 0.000000e+00 : bf16
    %69 = vector.broadcast %cst_19 : bf16 to vector<256x128xbf16>
    %70 = vector.shape_cast %20 : vector<256x1xi1> to vector<256x1xi1>
    %71 = vector.broadcast %70 : vector<256x1xi1> to vector<256x128xi1>
    %72 = arith.select %71, %68, %69 : vector<256x128xi1>, vector<256x128xbf16>
    %73 = tpu.concatenate %31, %34, %41, %48, %24, %55, %62, %65, %72 in 1 : vector<256x128xbf16>, vector<256x128xbf16>, vector<256x128xbf16>, vector<256x128xbf16>, vector<256x128xbf16>, vector<256x128xbf16>, vector<256x128xbf16>, vector<256x128xbf16>, vector<256x128xbf16> -> vector<256x1152xbf16>
    %c0_20 = arith.constant 0 : index
    %c0_21 = arith.constant 0 : index
    %74 = vector.load %arg2[%c0_20, %c0_21] : memref<1152x128xbf16, #tpu.memory_space<vmem>>, vector<1152x128xbf16>
    %cst_22 = arith.constant dense<0.000000e+00> : vector<256x128xf32>
    %75 = tpu.matmul %73, %74, %cst_22 {dimension_numbers = #tpu.dot_dimension_numbers<[1], [0], [0], [1], [0, 0, 1, 1], [], []>} : vector<256x1152xbf16>, vector<1152x128xbf16>, vector<256x128xf32> -> vector<256x128xf32>
    %c0_23 = arith.constant 0 : index
    %c0_24 = arith.constant 0 : index
    %76 = vector.load %arg3[%c0_23, %c0_24] : memref<1x128xf32, #tpu.memory_space<vmem>>, vector<1x128xf32>
    %77 = vector.broadcast %76 : vector<1x128xf32> to vector<256x128xf32>
    %78 = arith.addf %75, %77 : vector<256x128xf32>
    %cst_25 = arith.constant 0.000000e+00 : f32
    %79 = vector.broadcast %cst_25 : f32 to vector<256x128xf32>
    %80 = arith.maximumf %78, %79 : vector<256x128xf32>
    %81 = arith.truncf %80 : vector<256x128xf32> to vector<256x128xbf16>
    %cst_26 = arith.constant 0.000000e+00 : bf16
    %82 = vector.broadcast %cst_26 : bf16 to vector<17x128xbf16>
    %83 = vector.extract_strided_slice %81 {offsets = [0, 0], sizes = [239, 128], strides = [1, 1]} : vector<256x128xbf16> to vector<239x128xbf16>
    %84 = tpu.concatenate %82, %83 in 0 : vector<17x128xbf16>, vector<239x128xbf16> -> vector<256x128xbf16>
    %cst_27 = arith.constant 0.000000e+00 : bf16
    %85 = vector.broadcast %cst_27 : bf16 to vector<256x128xbf16>
    %86 = vector.shape_cast %18 : vector<256x1xi1> to vector<256x1xi1>
    %87 = vector.broadcast %86 : vector<256x1xi1> to vector<256x128xi1>
    %88 = arith.select %87, %84, %85 : vector<256x128xi1>, vector<256x128xbf16>
    %cst_28 = arith.constant 0.000000e+00 : bf16
    %89 = vector.broadcast %cst_28 : bf16 to vector<16x128xbf16>
    %90 = vector.extract_strided_slice %81 {offsets = [0, 0], sizes = [240, 128], strides = [1, 1]} : vector<256x128xbf16> to vector<240x128xbf16>
    %91 = tpu.concatenate %89, %90 in 0 : vector<16x128xbf16>, vector<240x128xbf16> -> vector<256x128xbf16>
    %cst_29 = arith.constant 0.000000e+00 : bf16
    %92 = vector.broadcast %cst_29 : bf16 to vector<15x128xbf16>
    %93 = vector.extract_strided_slice %81 {offsets = [0, 0], sizes = [241, 128], strides = [1, 1]} : vector<256x128xbf16> to vector<241x128xbf16>
    %94 = tpu.concatenate %92, %93 in 0 : vector<15x128xbf16>, vector<241x128xbf16> -> vector<256x128xbf16>
    %cst_30 = arith.constant 0.000000e+00 : bf16
    %95 = vector.broadcast %cst_30 : bf16 to vector<256x128xbf16>
    %96 = vector.shape_cast %20 : vector<256x1xi1> to vector<256x1xi1>
    %97 = vector.broadcast %96 : vector<256x1xi1> to vector<256x128xi1>
    %98 = arith.select %97, %94, %95 : vector<256x128xi1>, vector<256x128xbf16>
    %cst_31 = arith.constant 0.000000e+00 : bf16
    %99 = vector.broadcast %cst_31 : bf16 to vector<1x128xbf16>
    %100 = vector.extract_strided_slice %81 {offsets = [0, 0], sizes = [255, 128], strides = [1, 1]} : vector<256x128xbf16> to vector<255x128xbf16>
    %101 = tpu.concatenate %99, %100 in 0 : vector<1x128xbf16>, vector<255x128xbf16> -> vector<256x128xbf16>
    %cst_32 = arith.constant 0.000000e+00 : bf16
    %102 = vector.broadcast %cst_32 : bf16 to vector<256x128xbf16>
    %103 = vector.shape_cast %18 : vector<256x1xi1> to vector<256x1xi1>
    %104 = vector.broadcast %103 : vector<256x1xi1> to vector<256x128xi1>
    %105 = arith.select %104, %101, %102 : vector<256x128xi1>, vector<256x128xbf16>
    %106 = vector.extract_strided_slice %81 {offsets = [1, 0], sizes = [255, 128], strides = [1, 1]} : vector<256x128xbf16> to vector<255x128xbf16>
    %cst_33 = arith.constant 0.000000e+00 : bf16
    %107 = vector.broadcast %cst_33 : bf16 to vector<1x128xbf16>
    %108 = tpu.concatenate %106, %107 in 0 : vector<255x128xbf16>, vector<1x128xbf16> -> vector<256x128xbf16>
    %cst_34 = arith.constant 0.000000e+00 : bf16
    %109 = vector.broadcast %cst_34 : bf16 to vector<256x128xbf16>
    %110 = vector.shape_cast %20 : vector<256x1xi1> to vector<256x1xi1>
    %111 = vector.broadcast %110 : vector<256x1xi1> to vector<256x128xi1>
    %112 = arith.select %111, %108, %109 : vector<256x128xi1>, vector<256x128xbf16>
    %113 = vector.extract_strided_slice %81 {offsets = [15, 0], sizes = [241, 128], strides = [1, 1]} : vector<256x128xbf16> to vector<241x128xbf16>
    %cst_35 = arith.constant 0.000000e+00 : bf16
    %114 = vector.broadcast %cst_35 : bf16 to vector<15x128xbf16>
    %115 = tpu.concatenate %113, %114 in 0 : vector<241x128xbf16>, vector<15x128xbf16> -> vector<256x128xbf16>
    %cst_36 = arith.constant 0.000000e+00 : bf16
    %116 = vector.broadcast %cst_36 : bf16 to vector<256x128xbf16>
    %117 = vector.shape_cast %18 : vector<256x1xi1> to vector<256x1xi1>
    %118 = vector.broadcast %117 : vector<256x1xi1> to vector<256x128xi1>
    %119 = arith.select %118, %115, %116 : vector<256x128xi1>, vector<256x128xbf16>
    %120 = vector.extract_strided_slice %81 {offsets = [16, 0], sizes = [240, 128], strides = [1, 1]} : vector<256x128xbf16> to vector<240x128xbf16>
    %cst_37 = arith.constant 0.000000e+00 : bf16
    %121 = vector.broadcast %cst_37 : bf16 to vector<16x128xbf16>
    %122 = tpu.concatenate %120, %121 in 0 : vector<240x128xbf16>, vector<16x128xbf16> -> vector<256x128xbf16>
    %123 = vector.extract_strided_slice %81 {offsets = [17, 0], sizes = [239, 128], strides = [1, 1]} : vector<256x128xbf16> to vector<239x128xbf16>
    %cst_38 = arith.constant 0.000000e+00 : bf16
    %124 = vector.broadcast %cst_38 : bf16 to vector<17x128xbf16>
    %125 = tpu.concatenate %123, %124 in 0 : vector<239x128xbf16>, vector<17x128xbf16> -> vector<256x128xbf16>
    %cst_39 = arith.constant 0.000000e+00 : bf16
    %126 = vector.broadcast %cst_39 : bf16 to vector<256x128xbf16>
    %127 = vector.shape_cast %20 : vector<256x1xi1> to vector<256x1xi1>
    %128 = vector.broadcast %127 : vector<256x1xi1> to vector<256x128xi1>
    %129 = arith.select %128, %125, %126 : vector<256x128xi1>, vector<256x128xbf16>
    %130 = tpu.concatenate %88, %91, %98, %105, %81, %112, %119, %122, %129 in 1 : vector<256x128xbf16>, vector<256x128xbf16>, vector<256x128xbf16>, vector<256x128xbf16>, vector<256x128xbf16>, vector<256x128xbf16>, vector<256x128xbf16>, vector<256x128xbf16>, vector<256x128xbf16> -> vector<256x1152xbf16>
    %c0_40 = arith.constant 0 : index
    %c0_41 = arith.constant 0 : index
    %131 = vector.load %arg4[%c0_40, %c0_41] : memref<1152x128xbf16, #tpu.memory_space<vmem>>, vector<1152x128xbf16>
    %cst_42 = arith.constant dense<0.000000e+00> : vector<256x128xf32>
    %132 = tpu.matmul %130, %131, %cst_42 {dimension_numbers = #tpu.dot_dimension_numbers<[1], [0], [0], [1], [0, 0, 1, 1], [], []>} : vector<256x1152xbf16>, vector<1152x128xbf16>, vector<256x128xf32> -> vector<256x128xf32>
    %c0_43 = arith.constant 0 : index
    %c0_44 = arith.constant 0 : index
    %133 = vector.load %arg5[%c0_43, %c0_44] : memref<1x128xf32, #tpu.memory_space<vmem>>, vector<1x128xf32>
    %134 = vector.broadcast %133 : vector<1x128xf32> to vector<256x128xf32>
    %135 = arith.addf %132, %134 : vector<256x128xf32>
    %cst_45 = arith.constant 0.000000e+00 : f32
    %136 = vector.broadcast %cst_45 : f32 to vector<256x128xf32>
    %137 = arith.maximumf %135, %136 : vector<256x128xf32>
    %138 = arith.truncf %137 : vector<256x128xf32> to vector<256x128xbf16>
    %cst_46 = arith.constant 0.000000e+00 : bf16
    %139 = vector.broadcast %cst_46 : bf16 to vector<17x128xbf16>
    %140 = vector.extract_strided_slice %138 {offsets = [0, 0], sizes = [239, 128], strides = [1, 1]} : vector<256x128xbf16> to vector<239x128xbf16>
    %141 = tpu.concatenate %139, %140 in 0 : vector<17x128xbf16>, vector<239x128xbf16> -> vector<256x128xbf16>
    %cst_47 = arith.constant 0.000000e+00 : bf16
    %142 = vector.broadcast %cst_47 : bf16 to vector<256x128xbf16>
    %143 = vector.shape_cast %18 : vector<256x1xi1> to vector<256x1xi1>
    %144 = vector.broadcast %143 : vector<256x1xi1> to vector<256x128xi1>
    %145 = arith.select %144, %141, %142 : vector<256x128xi1>, vector<256x128xbf16>
    %cst_48 = arith.constant 0.000000e+00 : bf16
    %146 = vector.broadcast %cst_48 : bf16 to vector<16x128xbf16>
    %147 = vector.extract_strided_slice %138 {offsets = [0, 0], sizes = [240, 128], strides = [1, 1]} : vector<256x128xbf16> to vector<240x128xbf16>
    %148 = tpu.concatenate %146, %147 in 0 : vector<16x128xbf16>, vector<240x128xbf16> -> vector<256x128xbf16>
    %cst_49 = arith.constant 0.000000e+00 : bf16
    %149 = vector.broadcast %cst_49 : bf16 to vector<15x128xbf16>
    %150 = vector.extract_strided_slice %138 {offsets = [0, 0], sizes = [241, 128], strides = [1, 1]} : vector<256x128xbf16> to vector<241x128xbf16>
    %151 = tpu.concatenate %149, %150 in 0 : vector<15x128xbf16>, vector<241x128xbf16> -> vector<256x128xbf16>
    %cst_50 = arith.constant 0.000000e+00 : bf16
    %152 = vector.broadcast %cst_50 : bf16 to vector<256x128xbf16>
    %153 = vector.shape_cast %20 : vector<256x1xi1> to vector<256x1xi1>
    %154 = vector.broadcast %153 : vector<256x1xi1> to vector<256x128xi1>
    %155 = arith.select %154, %151, %152 : vector<256x128xi1>, vector<256x128xbf16>
    %cst_51 = arith.constant 0.000000e+00 : bf16
    %156 = vector.broadcast %cst_51 : bf16 to vector<1x128xbf16>
    %157 = vector.extract_strided_slice %138 {offsets = [0, 0], sizes = [255, 128], strides = [1, 1]} : vector<256x128xbf16> to vector<255x128xbf16>
    %158 = tpu.concatenate %156, %157 in 0 : vector<1x128xbf16>, vector<255x128xbf16> -> vector<256x128xbf16>
    %cst_52 = arith.constant 0.000000e+00 : bf16
    %159 = vector.broadcast %cst_52 : bf16 to vector<256x128xbf16>
    %160 = vector.shape_cast %18 : vector<256x1xi1> to vector<256x1xi1>
    %161 = vector.broadcast %160 : vector<256x1xi1> to vector<256x128xi1>
    %162 = arith.select %161, %158, %159 : vector<256x128xi1>, vector<256x128xbf16>
    %163 = vector.extract_strided_slice %138 {offsets = [1, 0], sizes = [255, 128], strides = [1, 1]} : vector<256x128xbf16> to vector<255x128xbf16>
    %cst_53 = arith.constant 0.000000e+00 : bf16
    %164 = vector.broadcast %cst_53 : bf16 to vector<1x128xbf16>
    %165 = tpu.concatenate %163, %164 in 0 : vector<255x128xbf16>, vector<1x128xbf16> -> vector<256x128xbf16>
    %cst_54 = arith.constant 0.000000e+00 : bf16
    %166 = vector.broadcast %cst_54 : bf16 to vector<256x128xbf16>
    %167 = vector.shape_cast %20 : vector<256x1xi1> to vector<256x1xi1>
    %168 = vector.broadcast %167 : vector<256x1xi1> to vector<256x128xi1>
    %169 = arith.select %168, %165, %166 : vector<256x128xi1>, vector<256x128xbf16>
    %170 = vector.extract_strided_slice %138 {offsets = [15, 0], sizes = [241, 128], strides = [1, 1]} : vector<256x128xbf16> to vector<241x128xbf16>
    %cst_55 = arith.constant 0.000000e+00 : bf16
    %171 = vector.broadcast %cst_55 : bf16 to vector<15x128xbf16>
    %172 = tpu.concatenate %170, %171 in 0 : vector<241x128xbf16>, vector<15x128xbf16> -> vector<256x128xbf16>
    %cst_56 = arith.constant 0.000000e+00 : bf16
    %173 = vector.broadcast %cst_56 : bf16 to vector<256x128xbf16>
    %174 = vector.shape_cast %18 : vector<256x1xi1> to vector<256x1xi1>
    %175 = vector.broadcast %174 : vector<256x1xi1> to vector<256x128xi1>
    %176 = arith.select %175, %172, %173 : vector<256x128xi1>, vector<256x128xbf16>
    %177 = vector.extract_strided_slice %138 {offsets = [16, 0], sizes = [240, 128], strides = [1, 1]} : vector<256x128xbf16> to vector<240x128xbf16>
    %cst_57 = arith.constant 0.000000e+00 : bf16
    %178 = vector.broadcast %cst_57 : bf16 to vector<16x128xbf16>
    %179 = tpu.concatenate %177, %178 in 0 : vector<240x128xbf16>, vector<16x128xbf16> -> vector<256x128xbf16>
    %180 = vector.extract_strided_slice %138 {offsets = [17, 0], sizes = [239, 128], strides = [1, 1]} : vector<256x128xbf16> to vector<239x128xbf16>
    %cst_58 = arith.constant 0.000000e+00 : bf16
    %181 = vector.broadcast %cst_58 : bf16 to vector<17x128xbf16>
    %182 = tpu.concatenate %180, %181 in 0 : vector<239x128xbf16>, vector<17x128xbf16> -> vector<256x128xbf16>
    %cst_59 = arith.constant 0.000000e+00 : bf16
    %183 = vector.broadcast %cst_59 : bf16 to vector<256x128xbf16>
    %184 = vector.shape_cast %20 : vector<256x1xi1> to vector<256x1xi1>
    %185 = vector.broadcast %184 : vector<256x1xi1> to vector<256x128xi1>
    %186 = arith.select %185, %182, %183 : vector<256x128xi1>, vector<256x128xbf16>
    %187 = tpu.concatenate %145, %148, %155, %162, %138, %169, %176, %179, %186 in 1 : vector<256x128xbf16>, vector<256x128xbf16>, vector<256x128xbf16>, vector<256x128xbf16>, vector<256x128xbf16>, vector<256x128xbf16>, vector<256x128xbf16>, vector<256x128xbf16>, vector<256x128xbf16> -> vector<256x1152xbf16>
    %c0_60 = arith.constant 0 : index
    %c0_61 = arith.constant 0 : index
    %188 = vector.load %arg6[%c0_60, %c0_61] : memref<1152x128xbf16, #tpu.memory_space<vmem>>, vector<1152x128xbf16>
    %cst_62 = arith.constant dense<0.000000e+00> : vector<256x128xf32>
    %189 = tpu.matmul %187, %188, %cst_62 {dimension_numbers = #tpu.dot_dimension_numbers<[1], [0], [0], [1], [0, 0, 1, 1], [], []>} : vector<256x1152xbf16>, vector<1152x128xbf16>, vector<256x128xf32> -> vector<256x128xf32>
    %c0_63 = arith.constant 0 : index
    %c0_64 = arith.constant 0 : index
    %190 = vector.load %arg7[%c0_63, %c0_64] : memref<1x128xf32, #tpu.memory_space<vmem>>, vector<1x128xf32>
    %191 = vector.broadcast %190 : vector<1x128xf32> to vector<256x128xf32>
    %192 = arith.addf %189, %191 : vector<256x128xf32>
    %193 = arith.extf %81 : vector<256x128xbf16> to vector<256x128xf32>
    %194 = arith.addf %192, %193 : vector<256x128xf32>
    %cst_65 = arith.constant 0.000000e+00 : f32
    %195 = vector.broadcast %cst_65 : f32 to vector<256x128xf32>
    %196 = arith.maximumf %194, %195 : vector<256x128xf32>
    %cst_66 = arith.constant dense<0.000000e+00> : vector<128xf32>
    %197 = vector.multi_reduction <add>, %196, %cst_66 [0] : vector<256x128xf32> to vector<128xf32>
    %198 = vector.shape_cast %197 : vector<128xf32> to vector<1x128xf32>
    %199 = arith.truncf %198 : vector<1x128xf32> to vector<1x128xbf16>
    %c0_67 = arith.constant 0 : index
    %c0_68 = arith.constant 0 : index
    %200 = vector.load %arg8[%c0_67, %c0_68] : memref<128x128xbf16, #tpu.memory_space<vmem>>, vector<128x128xbf16>
    %cst_69 = arith.constant dense<0.000000e+00> : vector<1x128xf32>
    %201 = tpu.matmul %199, %200, %cst_69 {dimension_numbers = #tpu.dot_dimension_numbers<[1], [0], [0], [1], [0, 0, 1, 1], [], []>} : vector<1x128xbf16>, vector<128x128xbf16>, vector<1x128xf32> -> vector<1x128xf32>
    %c0_70 = arith.constant 0 : index
    %c0_71 = arith.constant 0 : index
    %202 = vector.load %arg9[%c0_70, %c0_71] : memref<1x128xf32, #tpu.memory_space<vmem>>, vector<1x128xf32>
    %203 = arith.addf %201, %202 : vector<1x128xf32>
    %c0_72 = arith.constant 0 : index
    %c0_73 = arith.constant 0 : index
    %c0_74 = arith.constant 0 : index
    %204 = vector.load %arg10[%c0_72, %c0_73, %c0_74] : memref<1x1x128xf32, #tpu.memory_space<vmem>>, vector<1x1x128xf32>
    %205 = vector.shape_cast %204 : vector<1x1x128xf32> to vector<1x128xf32>
    %206 = vector.shape_cast %203 : vector<1x128xf32> to vector<1x1x128xf32>
    tpu.vector_store %arg10[%c0_72, %c0_73, %c0_74], %206 {strides = array<i32>} : memref<1x1x128xf32, #tpu.memory_space<vmem>>, vector<1x1x128xf32>,
    return
  }
  func.func @transform_0(%arg0: i32) -> (i32, i32, i32) {
    %c0_i32 = arith.constant 0 : i32
    %c0_i32_0 = arith.constant 0 : i32
    %c0_i32_1 = arith.constant 0 : i32
    return %arg0, %c0_i32, %c0_i32_0 : i32, i32, i32
  }
  func.func @transform_1(%arg0: i32) -> (i32, i32) {
    %c0_i32 = arith.constant 0 : i32
    %c0_i32_0 = arith.constant 0 : i32
    %c0_i32_1 = arith.constant 0 : i32
    return %c0_i32, %c0_i32_0 : i32, i32
  }
  func.func @transform_2(%arg0: i32) -> (i32, i32) {
    %c0_i32 = arith.constant 0 : i32
    %c0_i32_0 = arith.constant 0 : i32
    %c0_i32_1 = arith.constant 0 : i32
    return %c0_i32, %c0_i32_0 : i32, i32
  }
  func.func @transform_3(%arg0: i32) -> (i32, i32) {
    %c0_i32 = arith.constant 0 : i32
    %c0_i32_0 = arith.constant 0 : i32
    %c0_i32_1 = arith.constant 0 : i32
    return %c0_i32, %c0_i32_0 : i32, i32
  }
  func.func @transform_4(%arg0: i32) -> (i32, i32) {
    %c0_i32 = arith.constant 0 : i32
    %c0_i32_0 = arith.constant 0 : i32
    %c0_i32_1 = arith.constant 0 : i32
    return %c0_i32, %c0_i32_0 : i32, i32
  }
  func.func @transform_5(%arg0: i32) -> (i32, i32) {
    %c0_i32 = arith.constant 0 : i32
    %c0_i32_0 = arith.constant 0 : i32
    %c0_i32_1 = arith.constant 0 : i32
    return %c0_i32, %c0_i32_0 : i32, i32
  }
  func.func @transform_6(%arg0: i32) -> (i32, i32) {
    %c0_i32 = arith.constant 0 : i32
    %c0_i32_0 = arith.constant 0 : i32
    %c0_i32_1 = arith.constant 0 : i32
    return %c0_i32, %c0_i32_0 : i32, i32
  }
  func.func @transform_7(%arg0: i32) -> (i32, i32) {
    %c0_i32 = arith.constant 0 : i32
    %c0_i32_0 = arith.constant 0 : i32
    %c0_i32_1 = arith.constant 0 : i32
    return %c0_i32, %c0_i32_0 : i32, i32
  }
  func.func @transform_8(%arg0: i32) -> (i32, i32) {
    %c0_i32 = arith.constant 0 : i32
    %c0_i32_0 = arith.constant 0 : i32
    %c0_i32_1 = arith.constant 0 : i32
    return %c0_i32, %c0_i32_0 : i32, i32
  }
  func.func @transform_9(%arg0: i32) -> (i32, i32, i32) {
    %c0_i32 = arith.constant 0 : i32
    %c0_i32_0 = arith.constant 0 : i32
    %c0_i32_1 = arith.constant 0 : i32
    return %arg0, %c0_i32, %c0_i32_0 : i32, i32, i32
  }
}

</mosaic_0001>

<llo_original>
// kernel: resnet_model_forward.1
$region0: #{resnet_model_forward.1}
  #allocation0 [shape = 'u32[]', space=smem, size = 0x4, offset = 0x4, fixed_abs, tag = 'smem constant byte address 0x4 - core index']
  #allocation1 [shape = 'u32[72,128]{1,0:T(1,128)}', space=vmem, size = 0x9000, scoped, tag = 'internal scratch']
  %s0 = inlined_call_operand.vmem [shape: bf16[2,256,4], index: 0, kind: input, shape index: {}]
  %s1 = inlined_call_operand.hbm [shape: bf16[1152,128], index: 1, kind: input, shape index: {}]
  %s2 = inlined_call_operand.vmem [shape: f32[1,128], index: 2, kind: input, shape index: {}]
  %s3 = inlined_call_operand.hbm [shape: bf16[1152,128], index: 3, kind: input, shape index: {}]
  %s4 = inlined_call_operand.vmem [shape: f32[1,128], index: 4, kind: input, shape index: {}]
  %s5 = inlined_call_operand.hbm [shape: bf16[1152,128], index: 5, kind: input, shape index: {}]
  %s6 = inlined_call_operand.vmem [shape: f32[1,128], index: 6, kind: input, shape index: {}]
  %s7 = inlined_call_operand.vmem [shape: bf16[128,128], index: 7, kind: input, shape index: {}]
  %s8 = inlined_call_operand.vmem [shape: f32[1,128], index: 8, kind: input, shape index: {}]
  %s9 = inlined_call_operand.hbm [shape: f32[2,1,128], index: 9, kind: output, shape index: {}]
  %s10 = sld [smem:[#allocation0]]
  $region81: #{resnet_model_forward.1} parent=0
    _
  %s12 = ssub.s32 1, %s10
  %s13 = scalar_select 0, %s12, %s10
  $region1: #{resnet_model_forward.1} parent=0
    #allocation2 [shape = 'u8[294912]{0}', space=vmem, size = 0x48000, scoped, tag = 'input window, operand 1, single buffered']
    #allocation3 [shape = 's32[2]{0}', space=sflag, size = 0x8, scoped, tag = 'scoped memory for resnet_model_forward.1']
    #allocation4 [shape = 's32[2]{0}', space=sflag, size = 0x8, scoped, tag = 'scoped memory for resnet_model_forward.1']
    #allocation5 [shape = 'u8[294912]{0}', space=vmem, size = 0x48000, scoped, tag = 'input window, operand 3, single buffered']
    #allocation6 [shape = 's32[1]{0}', space=sflag, size = 0x4, scoped, tag = 'scoped memory for resnet_model_forward.1']
    #allocation7 [shape = 'u8[294912]{0}', space=vmem, size = 0x48000, scoped, tag = 'input window, operand 5, single buffered']
    #allocation8 [shape = 'u8[1024]{0}', space=vmem, size = 0x400, scoped, tag = 'output window, operand 0']
    %14 = vsyncpa [#allocation3], 0
    %15 = vsyncpa [#allocation6], 0
    %16 = vsyncpa [#allocation4], 0
    %s17 = scalar_lea.sflag [#allocation4], 1
    %18 = vsyncpa %s17, 0
    loop: start=0, step=1, limit=4
    $region2: #{resnet_model_forward.1} parent=1 // loop_pre_header
      _
    $region3: #{resnet_model_forward.1} parent=1 // loop_header
      %s20 = sphi 0, %s24
      %p21 = scmp.ge.s32.totalorder %s20, 4
      %s30 = sphi 0, %s32
      %s33 = sphi 0, %s30
      %s34 = sphi 0, %s33
      %s50 = sphi 0, %s34
      %s54 = sphi 0, %s54
      %s56 = sphi 0, %s54
      %s57 = sphi 0, %s56
      %s71 = sphi 0, %s57
      %s75 = sphi 0, %s75
      %s77 = sphi 0, %s75
      %s78 = sphi 0, %s77
      %s92 = sphi 0, %s78
      %s96 = sphi 0, %s96
      %s98 = sphi 0, %s96
      %s99 = sphi 0, %s98
      %s113 = sphi 0, %s99
      %s117 = sphi 0, %s117
      %s119 = sphi 0, %s117
      %s120 = sphi 0, %s119
      %s134 = sphi 0, %s120
      %s138 = sphi 0, %s138
      %s140 = sphi 0, %s138
      %s141 = sphi 0, %s140
      %s155 = sphi 0, %s141
      %s159 = sphi 0, %s159
      %s161 = sphi 0, %s159
      %s162 = sphi 0, %s161
      %s176 = sphi 0, %s162
      %s180 = sphi 0, %s180
      %s182 = sphi 0, %s180
      %s183 = sphi 0, %s182
      %s197 = sphi 0, %s183
      %s201 = sphi 0, %s201
      %s203 = sphi 0, %s201
      %s204 = sphi 0, %s203
      %s218 = sphi 0, %s204
      %s224 = sphi 0, %s226
      %s227 = sphi 0, %s224
      %s228 = sphi 0, %s227
      %s244 = sphi 0, %s228
    $region4: #{resnet_model_forward.1} parent=1 // loop_header_branch
      %23 = sbr.rel (%p21) target = $region8
    $region5: #{resnet_model_forward.1} parent=1 // loop_body
      %s25 = ssub.s32 %s20, 1
      %s26 = ssub.s32 %s20, 2
      %s27 = sadd.s32 %s20, 1
      %s28 = ssub.s32 %s20, %s27
      %p29 = scmp.eq.s32.totalorder %s28, 0
      %s31 = sadd.s32 %s30, 1
      %s32 = scalar_select %p29, %s30, %s31
      %p35 = pneg %p29
      %p36 = scmp.eq.s32.totalorder %s20, 1
      %p37 = por %p35, %p36
      %p38 = scmp.ne.s32.totalorder %s30, %s33
      %p39 = scmp.eq.s32.totalorder %s20, 0
      %p40 = por %p38, %p39
      %p41 = scmp.ne.s32.totalorder %s30, %s33
      %p42 = scmp.eq.s32.totalorder %s25, 1
      %p43 = por %p41, %p42
      %p44 = scmp.ne.s32.totalorder %s33, %s34
      %p45 = scmp.eq.s32.totalorder %s25, 0
      %p46 = por %p44, %p45
      %p47 = scmp.ne.s32.totalorder %s33, %s34
      %p48 = scmp.eq.s32.totalorder %s26, 1
      %p49 = por %p47, %p48
      %p51 = scmp.ne.s32.totalorder %s34, %s50
      %p52 = scmp.eq.s32.totalorder %s26, 0
      %p53 = por %p51, %p52
      %s55 = sadd.s32 %s54, 1
      %p58 = scmp.eq.s32.totalorder %s20, 1
      %p59 = scmp.ne.s32.totalorder %s54, %s56
      %p60 = scmp.eq.s32.totalorder %s20, 0
      %p61 = por %p59, %p60
      %p62 = scmp.ne.s32.totalorder %s54, %s56
      %p63 = scmp.eq.s32.totalorder %s25, 1
      %p64 = por %p62, %p63
      %p65 = scmp.ne.s32.totalorder %s56, %s57
      %p66 = scmp.eq.s32.totalorder %s25, 0
      %p67 = por %p65, %p66
      %p68 = scmp.ne.s32.totalorder %s56, %s57
      %p69 = scmp.eq.s32.totalorder %s26, 1
      %p70 = por %p68, %p69
      %p72 = scmp.ne.s32.totalorder %s57, %s71
      %p73 = scmp.eq.s32.totalorder %s26, 0
      %p74 = por %p72, %p73
      %s76 = sadd.s32 %s75, 1
      %p79 = scmp.eq.s32.totalorder %s20, 1
      %p80 = scmp.ne.s32.totalorder %s75, %s77
      %p81 = scmp.eq.s32.totalorder %s20, 0
      %p82 = por %p80, %p81
      %p83 = scmp.ne.s32.totalorder %s75, %s77
      %p84 = scmp.eq.s32.totalorder %s25, 1
      %p85 = por %p83, %p84
      %p86 = scmp.ne.s32.totalorder %s77, %s78
      %p87 = scmp.eq.s32.totalorder %s25, 0
      %p88 = por %p86, %p87
      %p89 = scmp.ne.s32.totalorder %s77, %s78
      %p90 = scmp.eq.s32.totalorder %s26, 1
      %p91 = por %p89, %p90
      %p93 = scmp.ne.s32.totalorder %s78, %s92
      %p94 = scmp.eq.s32.totalorder %s26, 0
      %p95 = por %p93, %p94
      %s97 = sadd.s32 %s96, 1
      %p100 = scmp.eq.s32.totalorder %s20, 1
      %p101 = scmp.ne.s32.totalorder %s96, %s98
      %p102 = scmp.eq.s32.totalorder %s20, 0
      %p103 = por %p101, %p102
      %p104 = scmp.ne.s32.totalorder %s96, %s98
      %p105 = scmp.eq.s32.totalorder %s25, 1
      %p106 = por %p104, %p105
      %p107 = scmp.ne.s32.totalorder %s98, %s99
      %p108 = scmp.eq.s32.totalorder %s25, 0
      %p109 = por %p107, %p108
      %p110 = scmp.ne.s32.totalorder %s98, %s99
      %p111 = scmp.eq.s32.totalorder %s26, 1
      %p112 = por %p110, %p111
      %p114 = scmp.ne.s32.totalorder %s99, %s113
      %p115 = scmp.eq.s32.totalorder %s26, 0
      %p116 = por %p114, %p115
      %s118 = sadd.s32 %s117, 1
      %p121 = scmp.eq.s32.totalorder %s20, 1
      %p122 = scmp.ne.s32.totalorder %s117, %s119
      %p123 = scmp.eq.s32.totalorder %s20, 0
      %p124 = por %p122, %p123
      %p125 = scmp.ne.s32.totalorder %s117, %s119
      %p126 = scmp.eq.s32.totalorder %s25, 1
      %p127 = por %p125, %p126
      %p128 = scmp.ne.s32.totalorder %s119, %s120
      %p129 = scmp.eq.s32.totalorder %s25, 0
      %p130 = por %p128, %p129
      %p131 = scmp.ne.s32.totalorder %s119, %s120
      %p132 = scmp.eq.s32.totalorder %s26, 1
      %p133 = por %p131, %p132
      %p135 = scmp.ne.s32.totalorder %s120, %s134
      %p136 = scmp.eq.s32.totalorder %s26, 0
      %p137 = por %p135, %p136
      %s139 = sadd.s32 %s138, 1
      %p142 = scmp.eq.s32.totalorder %s20, 1
      %p143 = scmp.ne.s32.totalorder %s138, %s140
      %p144 = scmp.eq.s32.totalorder %s20, 0
      %p145 = por %p143, %p144
      %p146 = scmp.ne.s32.totalorder %s138, %s140
      %p147 = scmp.eq.s32.totalorder %s25, 1
      %p148 = por %p146, %p147
      %p149 = scmp.ne.s32.totalorder %s140, %s141
      %p150 = scmp.eq.s32.totalorder %s25, 0
      %p151 = por %p149, %p150
      %p152 = scmp.ne.s32.totalorder %s140, %s141
      %p153 = scmp.eq.s32.totalorder %s26, 1
      %p154 = por %p152, %p153
      %p156 = scmp.ne.s32.totalorder %s141, %s155
      %p157 = scmp.eq.s32.totalorder %s26, 0
      %p158 = por %p156, %p157
      %s160 = sadd.s32 %s159, 1
      %p163 = scmp.eq.s32.totalorder %s20, 1
      %p164 = scmp.ne.s32.totalorder %s159, %s161
      %p165 = scmp.eq.s32.totalorder %s20, 0
      %p166 = por %p164, %p165
      %p167 = scmp.ne.s32.totalorder %s159, %s161
      %p168 = scmp.eq.s32.totalorder %s25, 1
      %p169 = por %p167, %p168
      %p170 = scmp.ne.s32.totalorder %s161, %s162
      %p171 = scmp.eq.s32.totalorder %s25, 0
      %p172 = por %p170, %p171
      %p173 = scmp.ne.s32.totalorder %s161, %s162
      %p174 = scmp.eq.s32.totalorder %s26, 1
      %p175 = por %p173, %p174
      %p177 = scmp.ne.s32.totalorder %s162, %s176
      %p178 = scmp.eq.s32.totalorder %s26, 0
      %p179 = por %p177, %p178
      %s181 = sadd.s32 %s180, 1
      %p184 = scmp.eq.s32.totalorder %s20, 1
      %p185 = scmp.ne.s32.totalorder %s180, %s182
      %p186 = scmp.eq.s32.totalorder %s20, 0
      %p187 = por %p185, %p186
      %p188 = scmp.ne.s32.totalorder %s180, %s182
      %p189 = scmp.eq.s32.totalorder %s25, 1
      %p190 = por %p188, %p189
      %p191 = scmp.ne.s32.totalorder %s182, %s183
      %p192 = scmp.eq.s32.totalorder %s25, 0
      %p193 = por %p191, %p192
      %p194 = scmp.ne.s32.totalorder %s182, %s183
      %p195 = scmp.eq.s32.totalorder %s26, 1
      %p196 = por %p194, %p195
      %p198 = scmp.ne.s32.totalorder %s183, %s197
      %p199 = scmp.eq.s32.totalorder %s26, 0
      %p200 = por %p198, %p199
      %s202 = sadd.s32 %s201, 1
      %p205 = scmp.eq.s32.totalorder %s20, 1
      %p206 = scmp.ne.s32.totalorder %s201, %s203
      %p207 = scmp.eq.s32.totalorder %s20, 0
      %p208 = por %p206, %p207
      %p209 = scmp.ne.s32.totalorder %s201, %s203
      %p210 = scmp.eq.s32.totalorder %s25, 1
      %p211 = por %p209, %p210
      %p212 = scmp.ne.s32.totalorder %s203, %s204
      %p213 = scmp.eq.s32.totalorder %s25, 0
      %p214 = por %p212, %p213
      %p215 = scmp.ne.s32.totalorder %s203, %s204
      %p216 = scmp.eq.s32.totalorder %s26, 1
      %p217 = por %p215, %p216
      %p219 = scmp.ne.s32.totalorder %s204, %s218
      %p220 = scmp.eq.s32.totalorder %s26, 0
      %p221 = por %p219, %p220
      %s222 = ssub.s32 %s20, %s27
      %p223 = scmp.eq.s32.totalorder %s222, 0
      %s225 = sadd.s32 %s224, 1
      %s226 = scalar_select %p223, %s224, %s225
      %p229 = pneg %p223
      %p230 = scmp.eq.s32.totalorder %s20, 1
      %p231 = por %p229, %p230
      %p232 = scmp.ne.s32.totalorder %s224, %s227
      %p233 = scmp.eq.s32.totalorder %s20, 0
      %p234 = por %p232, %p233
      %p235 = scmp.ne.s32.totalorder %s224, %s227
      %p236 = scmp.eq.s32.totalorder %s25, 1
      %p237 = por %p235, %p236
      %p238 = scmp.ne.s32.totalorder %s227, %s228
      %p239 = scmp.eq.s32.totalorder %s25, 0
      %p240 = por %p238, %p239
      %p241 = scmp.ne.s32.totalorder %s227, %s228
      %p242 = scmp.eq.s32.totalorder %s26, 1
      %p243 = por %p241, %p242
      %p245 = scmp.ne.s32.totalorder %s228, %s244
      %p246 = scmp.eq.s32.totalorder %s26, 0
      %p247 = por %p245, %p246
      %p248 = scmp.le.s32.totalorder 1, %s20
      %p249 = scmp.lt.s32.totalorder %s20, 3
      %p250 = pnand %p248, %p249
      %p251 = pneg %p250
      // Predicated region
      $region9: #{resnet_model_forward.1} parent=5 // pred_check
        _
      $region10: #{resnet_model_forward.1} parent=5 // pred_check_branch
        %253 = sbr.rel (%p250) target = $region12
      $region11: #{resnet_model_forward.1} parent=5 // pred_region
        %s254 = ssub.s32 %s20, 1
        // Predicated region
        $region13: #{resnet_model_forward.1} parent=11 // pred_check
          %p255 = pneg %p67
        $region14: #{resnet_model_forward.1} parent=11 // pred_check_branch
          %257 = sbr.rel (%p255) target = $region16
        $region15: #{resnet_model_forward.1} parent=11 // pred_region
          %259 = vsyncadd [#allocation3], 0
          %s260 = sshll.u32 %s1, 4
          %s261 = int_to_ptr.hbm [resolvable:$true] %s260
          %s262 = sshll.u32 [#allocation2], 4
          %s263 = int_to_ptr.vmem [resolvable:$true] %s262
          %268 = dma.hbm_to_vmem [thread:$0]  %s261, 9216, %s263, [#allocation3], 64, 64, 4
        $region16: #{resnet_model_forward.1} parent=11 // pred_fallthru
          _
        // Predicated region
        $region17: #{resnet_model_forward.1} parent=11 // pred_check
          %p269 = pneg %p88
        $region18: #{resnet_model_forward.1} parent=11 // pred_check_branch
          %271 = sbr.rel (%p269) target = $region20
        $region19: #{resnet_model_forward.1} parent=11 // pred_region
          _
        $region20: #{resnet_model_forward.1} parent=11 // pred_fallthru
          _
        // Predicated region
        $region21: #{resnet_model_forward.1} parent=11 // pred_check
          %p272 = pneg %p109
        $region22: #{resnet_model_forward.1} parent=11 // pred_check_branch
          %274 = sbr.rel (%p272) target = $region24
        $region23: #{resnet_model_forward.1} parent=11 // pred_region
          %276 = vsyncadd [#allocation6], 0
          %s277 = sshll.u32 %s3, 4
          %s278 = int_to_ptr.hbm [resolvable:$true] %s277
          %s279 = sshll.u32 [#allocation5], 4
          %s280 = int_to_ptr.vmem [resolvable:$true] %s279
          %285 = dma.hbm_to_vmem [thread:$0]  %s278, 9216, %s280, [#allocation6], 64, 64, 4
        $region24: #{resnet_model_forward.1} parent=11 // pred_fallthru
          _
        // Predicated region
        $region25: #{resnet_model_forward.1} parent=11 // pred_check
          %p286 = pneg %p130
        $region26: #{resnet_model_forward.1} parent=11 // pred_check_branch
          %288 = sbr.rel (%p286) target = $region28
        $region27: #{resnet_model_forward.1} parent=11 // pred_region
          _
        $region28: #{resnet_model_forward.1} parent=11 // pred_fallthru
          _
        // Predicated region
        $region29: #{resnet_model_forward.1} parent=11 // pred_check
          %p289 = pneg %p151
        $region30: #{resnet_model_forward.1} parent=11 // pred_check_branch
          %291 = sbr.rel (%p289) target = $region32
        $region31: #{resnet_model_forward.1} parent=11 // pred_region
          %293 = vsyncadd [#allocation6], 0
          %s294 = sshll.u32 %s5, 4
          %s295 = int_to_ptr.hbm [resolvable:$true] %s294
          %s296 = sshll.u32 [#allocation7], 4
          %s297 = int_to_ptr.vmem [resolvable:$true] %s296
          %302 = dma.hbm_to_vmem [thread:$0]  %s295, 9216, %s297, [#allocation6], 64, 64, 4
        $region32: #{resnet_model_forward.1} parent=11 // pred_fallthru
          _
        // Predicated region
        $region33: #{resnet_model_forward.1} parent=11 // pred_check
          %p303 = pneg %p172
        $region34: #{resnet_model_forward.1} parent=11 // pred_check_branch
          %305 = sbr.rel (%p303) target = $region36
        $region35: #{resnet_model_forward.1} parent=11 // pred_region
          _
        $region36: #{resnet_model_forward.1} parent=11 // pred_fallthru
          _
        // Predicated region
        $region37: #{resnet_model_forward.1} parent=11 // pred_check
          %p306 = pneg %p193
        $region38: #{resnet_model_forward.1} parent=11 // pred_check_branch
          %308 = sbr.rel (%p306) target = $region40
        $region39: #{resnet_model_forward.1} parent=11 // pred_region
          _
        $region40: #{resnet_model_forward.1} parent=11 // pred_fallthru
          _
        // Predicated region
        $region41: #{resnet_model_forward.1} parent=11 // pred_check
          %p309 = pneg %p214
        $region42: #{resnet_model_forward.1} parent=11 // pred_check_branch
          %311 = sbr.rel (%p309) target = $region44
        $region43: #{resnet_model_forward.1} parent=11 // pred_region
          _
        $region44: #{resnet_model_forward.1} parent=11 // pred_fallthru
          _
      $region12: #{resnet_model_forward.1} parent=5 // pred_fallthru
        _
      %p312 = scmp.lt.s32.totalorder %s20, 2
      // Predicated region
      $region45: #{resnet_model_forward.1} parent=5 // pred_check
        %p313 = pneg %p312
      $region46: #{resnet_model_forward.1} parent=5 // pred_check_branch
        %315 = sbr.rel (%p313) target = $region48
      $region47: #{resnet_model_forward.1} parent=5 // pred_region
        // Predicated region
        $region49: #{resnet_model_forward.1} parent=47 // pred_check
          %p316 = pneg %p40
        $region50: #{resnet_model_forward.1} parent=47 // pred_check_branch
          %318 = sbr.rel (%p316) target = $region52
        $region51: #{resnet_model_forward.1} parent=47 // pred_region
          %p319 = scmp.lt.s32.totalorder %s20, 1
          %s320 = scalar_select %p319, %s20, 1
          %s321 = smul.addr %s320, 32
          %s322 = smul.addr %s321, 4
          %s323 = scalar_lea.vmem %s0, %s322
        $region52: #{resnet_model_forward.1} parent=47 // pred_fallthru
          _
      $region48: #{resnet_model_forward.1} parent=5 // pred_fallthru
        _
      %p324 = scmp.le.s32.totalorder 1, %s20
      %p325 = scmp.lt.s32.totalorder %s20, 3
      %p326 = pnand %p324, %p325
      %p327 = pneg %p326
      // Predicated region
      $region53: #{resnet_model_forward.1} parent=5 // pred_check
        _
      $region54: #{resnet_model_forward.1} parent=5 // pred_check_branch
        %329 = sbr.rel (%p326) target = $region56
      $region55: #{resnet_model_forward.1} parent=5 // pred_region
        %s330 = ssub.s32 %s20, 1
        // Predicated region
        $region57: #{resnet_model_forward.1} parent=55 // pred_check
          %p331 = pneg %p67
        $region58: #{resnet_model_forward.1} parent=55 // pred_check_branch
          %333 = sbr.rel (%p331) target = $region60
        $region59: #{resnet_model_forward.1} parent=55 // pred_region
          %335 = dma.done [#allocation3], 9216
        $region60: #{resnet_model_forward.1} parent=55 // pred_fallthru
          _
        // Predicated region
        $region61: #{resnet_model_forward.1} parent=55 // pred_check
          %p336 = pneg %p109
        $region62: #{resnet_model_forward.1} parent=55 // pred_check_branch
          %338 = sbr.rel (%p336) target = $region64
        $region63: #{resnet_model_forward.1} parent=55 // pred_region
          %340 = dma.done [#allocation6], 9216
        $region64: #{resnet_model_forward.1} parent=55 // pred_fallthru
          _
        // Predicated region
        $region65: #{resnet_model_forward.1} parent=55 // pred_check
          %p341 = pneg %p151
        $region66: #{resnet_model_forward.1} parent=55 // pred_check_branch
          %343 = sbr.rel (%p341) target = $region68
        $region67: #{resnet_model_forward.1} parent=55 // pred_region
          %345 = dma.done [#allocation6], 9216
        $region68: #{resnet_model_forward.1} parent=55 // pred_fallthru
          _
        %p346 = scmp.lt.s32.totalorder %s25, 1
        %s347 = scalar_select %p346, %s25, 1
        %s348 = smul.addr %s347, 32
        %s349 = smul.addr %s348, 4
        %s350 = scalar_lea.vmem %s0, %s349
        %p351 = pneg %p46
        %p352 = pneg %p43
        %p353 = pneg %p67
        %p354 = pneg %p64
        %p355 = pneg %p88
        %p356 = pneg %p85
        %p357 = pneg %p109
        %p358 = pneg %p106
        %p359 = pneg %p130
        %p360 = pneg %p127
        %p361 = pneg %p151
        %p362 = pneg %p148
        %p363 = pneg %p172
        %p364 = pneg %p169
        %p365 = pneg %p193
        %p366 = pneg %p190
        %p367 = pneg %p214
        %p368 = pneg %p211
        %p369 = pneg %p240
        %p370 = pneg %p237
        %s371 = sand.u32 %s227, 1
        %s372 = scalar_lea.sflag [#allocation4], %s371
        %s373 = sand.u32 %s227, 1
        %s374 = scalar_lea.vmem [#allocation8], %s373
        %p375 = scmp.lt.s32.totalorder %s25, 1
        %s376 = scalar_select %p375, %s25, 1
        %s377 = smul.addr %s376, 32
        %s378 = smul.addr %s377, 4
        %s379 = scalar_lea.vmem %s0, %s378
        %v383 = vlaneseq
        %v384 = vshrl.u32 %v383, 7
        %v385 = vadd.s32 %v384, 8
        %v386 = vadd.s32 %v384, 16
        %v387 = vadd.s32 %v384, 24
        %v388 = vadd.s32 %v384, 32
        %v389 = vadd.s32 %v384, 40
        %v390 = vadd.s32 %v384, 48
        %v391 = vadd.s32 %v384, 56
        %v392 = vadd.s32 %v384, 64
        %v393 = vadd.s32 %v384, 72
        %v394 = vadd.s32 %v384, 80
        %v395 = vadd.s32 %v384, 88
        %v396 = vadd.s32 %v384, 96
        %v397 = vadd.s32 %v384, 104
        %v398 = vadd.s32 %v384, 112
        %v399 = vadd.s32 %v384, 120
        %v400 = vadd.s32 %v384, 128
        %v401 = vadd.s32 %v384, 136
        %v402 = vadd.s32 %v384, 144
        %v403 = vadd.s32 %v384, 152
        %v404 = vadd.s32 %v384, 160
        %v405 = vadd.s32 %v384, 168
        %v406 = vadd.s32 %v384, 176
        %v407 = vadd.s32 %v384, 184
        %v408 = vadd.s32 %v384, 192
        %v409 = vadd.s32 %v384, 200
        %v410 = vadd.s32 %v384, 208
        %v411 = vadd.s32 %v384, 216
        %v412 = vadd.s32 %v384, 224
        %v413 = vadd.s32 %v384, 232
        %v414 = vadd.s32 %v384, 240
        %v415 = vadd.s32 %v384, 248
        %vm416 = vcmp.lt.s32.totalorder %v384, 0
        %v417 = vsub.s32 0, %v384
        %v418 = vsel %vm416, %v417, %v384
        %v419 = vshrl.u32 %v418, 4
        %v420 = vand.u32 %v418, 15
        %v421 = vsub.s32 0, %v420
        %v422 = vsel %vm416, %v421, %v420
        %vm423 = vcmp.lt.s32.totalorder %v385, 0
        %v424 = vsub.s32 0, %v385
        %v425 = vsel %vm423, %v424, %v385
        %v426 = vshrl.u32 %v425, 4
        %v427 = vand.u32 %v425, 15
        %v428 = vsub.s32 0, %v427
        %v429 = vsel %vm423, %v428, %v427
        %vm430 = vcmp.lt.s32.totalorder %v386, 0
        %v431 = vsub.s32 0, %v386
        %v432 = vsel %vm430, %v431, %v386
        %v433 = vshrl.u32 %v432, 4
        %v434 = vand.u32 %v432, 15
        %v435 = vsub.s32 0, %v434
        %v436 = vsel %vm430, %v435, %v434
        %vm437 = vcmp.lt.s32.totalorder %v387, 0
        %v438 = vsub.s32 0, %v387
        %v439 = vsel %vm437, %v438, %v387
        %v440 = vshrl.u32 %v439, 4
        %v441 = vand.u32 %v439, 15
        %v442 = vsub.s32 0, %v441
        %v443 = vsel %vm437, %v442, %v441
        %vm444 = vcmp.lt.s32.totalorder %v388, 0
        %v445 = vsub.s32 0, %v388
        %v446 = vsel %vm444, %v445, %v388
        %v447 = vshrl.u32 %v446, 4
        %v448 = vand.u32 %v446, 15
        %v449 = vsub.s32 0, %v448
        %v450 = vsel %vm444, %v449, %v448
        %vm451 = vcmp.lt.s32.totalorder %v389, 0
        %v452 = vsub.s32 0, %v389
        %v453 = vsel %vm451, %v452, %v389
        %v454 = vshrl.u32 %v453, 4
        %v455 = vand.u32 %v453, 15
        %v456 = vsub.s32 0, %v455
        %v457 = vsel %vm451, %v456, %v455
        %vm458 = vcmp.lt.s32.totalorder %v390, 0
        %v459 = vsub.s32 0, %v390
        %v460 = vsel %vm458, %v459, %v390
        %v461 = vshrl.u32 %v460, 4
        %v462 = vand.u32 %v460, 15
        %v463 = vsub.s32 0, %v462
        %v464 = vsel %vm458, %v463, %v462
        %vm465 = vcmp.lt.s32.totalorder %v391, 0
        %v466 = vsub.s32 0, %v391
        %v467 = vsel %vm465, %v466, %v391
        %v468 = vshrl.u32 %v467, 4
        %v469 = vand.u32 %v467, 15
        %v470 = vsub.s32 0, %v469
        %v471 = vsel %vm465, %v470, %v469
        %vm472 = vcmp.lt.s32.totalorder %v392, 0
        %v473 = vsub.s32 0, %v392
        %v474 = vsel %vm472, %v473, %v392
        %v475 = vshrl.u32 %v474, 4
        %v476 = vand.u32 %v474, 15
        %v477 = vsub.s32 0, %v476
        %v478 = vsel %vm472, %v477, %v476
        %vm479 = vcmp.lt.s32.totalorder %v393, 0
        %v480 = vsub.s32 0, %v393
        %v481 = vsel %vm479, %v480, %v393
        %v482 = vshrl.u32 %v481, 4
        %v483 = vand.u32 %v481, 15
        %v484 = vsub.s32 0, %v483
        %v485 = vsel %vm479, %v484, %v483
        %vm486 = vcmp.lt.s32.totalorder %v394, 0
        %v487 = vsub.s32 0, %v394
        %v488 = vsel %vm486, %v487, %v394
        %v489 = vshrl.u32 %v488, 4
        %v490 = vand.u32 %v488, 15
        %v491 = vsub.s32 0, %v490
        %v492 = vsel %vm486, %v491, %v490
        %vm493 = vcmp.lt.s32.totalorder %v395, 0
        %v494 = vsub.s32 0, %v395
        %v495 = vsel %vm493, %v494, %v395
        %v496 = vshrl.u32 %v495, 4
        %v497 = vand.u32 %v495, 15
        %v498 = vsub.s32 0, %v497
        %v499 = vsel %vm493, %v498, %v497
        %vm500 = vcmp.lt.s32.totalorder %v396, 0
        %v501 = vsub.s32 0, %v396
        %v502 = vsel %vm500, %v501, %v396
        %v503 = vshrl.u32 %v502, 4
        %v504 = vand.u32 %v502, 15
        %v505 = vsub.s32 0, %v504
        %v506 = vsel %vm500, %v505, %v504
        %vm507 = vcmp.lt.s32.totalorder %v397, 0
        %v508 = vsub.s32 0, %v397
        %v509 = vsel %vm507, %v508, %v397
        %v510 = vshrl.u32 %v509, 4
        %v511 = vand.u32 %v509, 15
        %v512 = vsub.s32 0, %v511
        %v513 = vsel %vm507, %v512, %v511
        %vm514 = vcmp.lt.s32.totalorder %v398, 0
        %v515 = vsub.s32 0, %v398
        %v516 = vsel %vm514, %v515, %v398
        %v517 = vshrl.u32 %v516, 4
        %v518 = vand.u32 %v516, 15
        %v519 = vsub.s32 0, %v518
        %v520 = vsel %vm514, %v519, %v518
        %vm521 = vcmp.lt.s32.totalorder %v399, 0
        %v522 = vsub.s32 0, %v399
        %v523 = vsel %vm521, %v522, %v399
        %v524 = vshrl.u32 %v523, 4
        %v525 = vand.u32 %v523, 15
        %v526 = vsub.s32 0, %v525
        %v527 = vsel %vm521, %v526, %v525
        %vm528 = vcmp.lt.s32.totalorder %v400, 0
        %v529 = vsub.s32 0, %v400
        %v530 = vsel %vm528, %v529, %v400
        %v531 = vshrl.u32 %v530, 4
        %v532 = vand.u32 %v530, 15
        %v533 = vsub.s32 0, %v532
        %v534 = vsel %vm528, %v533, %v532
        %vm535 = vcmp.lt.s32.totalorder %v401, 0
        %v536 = vsub.s32 0, %v401
        %v537 = vsel %vm535, %v536, %v401
        %v538 = vshrl.u32 %v537, 4
        %v539 = vand.u32 %v537, 15
        %v540 = vsub.s32 0, %v539
        %v541 = vsel %vm535, %v540, %v539
        %vm542 = vcmp.lt.s32.totalorder %v402, 0
        %v543 = vsub.s32 0, %v402
        %v544 = vsel %vm542, %v543, %v402
        %v545 = vshrl.u32 %v544, 4
        %v546 = vand.u32 %v544, 15
        %v547 = vsub.s32 0, %v546
        %v548 = vsel %vm542, %v547, %v546
        %vm549 = vcmp.lt.s32.totalorder %v403, 0
        %v550 = vsub.s32 0, %v403
        %v551 = vsel %vm549, %v550, %v403
        %v552 = vshrl.u32 %v551, 4
        %v553 = vand.u32 %v551, 15
        %v554 = vsub.s32 0, %v553
        %v555 = vsel %vm549, %v554, %v553
        %vm556 = vcmp.lt.s32.totalorder %v404, 0
        %v557 = vsub.s32 0, %v404
        %v558 = vsel %vm556, %v557, %v404
        %v559 = vshrl.u32 %v558, 4
        %v560 = vand.u32 %v558, 15
        %v561 = vsub.s32 0, %v560
        %v562 = vsel %vm556, %v561, %v560
        %vm563 = vcmp.lt.s32.totalorder %v405, 0
        %v564 = vsub.s32 0, %v405
        %v565 = vsel %vm563, %v564, %v405
        %v566 = vshrl.u32 %v565, 4
        %v567 = vand.u32 %v565, 15
        %v568 = vsub.s32 0, %v567
        %v569 = vsel %vm563, %v568, %v567
        %vm570 = vcmp.lt.s32.totalorder %v406, 0
        %v571 = vsub.s32 0, %v406
        %v572 = vsel %vm570, %v571, %v406
        %v573 = vshrl.u32 %v572, 4
        %v574 = vand.u32 %v572, 15
        %v575 = vsub.s32 0, %v574
        %v576 = vsel %vm570, %v575, %v574
        %vm577 = vcmp.lt.s32.totalorder %v407, 0
        %v578 = vsub.s32 0, %v407
        %v579 = vsel %vm577, %v578, %v407
        %v580 = vshrl.u32 %v579, 4
        %v581 = vand.u32 %v579, 15
        %v582 = vsub.s32 0, %v581
        %v583 = vsel %vm577, %v582, %v581
        %vm584 = vcmp.lt.s32.totalorder %v408, 0
        %v585 = vsub.s32 0, %v408
        %v586 = vsel %vm584, %v585, %v408
        %v587 = vshrl.u32 %v586, 4
        %v588 = vand.u32 %v586, 15
        %v589 = vsub.s32 0, %v588
        %v590 = vsel %vm584, %v589, %v588
        %vm591 = vcmp.lt.s32.totalorder %v409, 0
        %v592 = vsub.s32 0, %v409
        %v593 = vsel %vm591, %v592, %v409
        %v594 = vshrl.u32 %v593, 4
        %v595 = vand.u32 %v593, 15
        %v596 = vsub.s32 0, %v595
        %v597 = vsel %vm591, %v596, %v595
        %vm598 = vcmp.lt.s32.totalorder %v410, 0
        %v599 = vsub.s32 0, %v410
        %v600 = vsel %vm598, %v599, %v410
        %v601 = vshrl.u32 %v600, 4
        %v602 = vand.u32 %v600, 15
        %v603 = vsub.s32 0, %v602
        %v604 = vsel %vm598, %v603, %v602
        %vm605 = vcmp.lt.s32.totalorder %v411, 0
        %v606 = vsub.s32 0, %v411
        %v607 = vsel %vm605, %v606, %v411
        %v608 = vshrl.u32 %v607, 4
        %v609 = vand.u32 %v607, 15
        %v610 = vsub.s32 0, %v609
        %v611 = vsel %vm605, %v610, %v609
        %vm612 = vcmp.lt.s32.totalorder %v412, 0
        %v613 = vsub.s32 0, %v412
        %v614 = vsel %vm612, %v613, %v412
        %v615 = vshrl.u32 %v614, 4
        %v616 = vand.u32 %v614, 15
        %v617 = vsub.s32 0, %v616
        %v618 = vsel %vm612, %v617, %v616
        %vm619 = vcmp.lt.s32.totalorder %v413, 0
        %v620 = vsub.s32 0, %v413
        %v621 = vsel %vm619, %v620, %v413
        %v622 = vshrl.u32 %v621, 4
        %v623 = vand.u32 %v621, 15
        %v624 = vsub.s32 0, %v623
        %v625 = vsel %vm619, %v624, %v623
        %vm626 = vcmp.lt.s32.totalorder %v414, 0
        %v627 = vsub.s32 0, %v414
        %v628 = vsel %vm626, %v627, %v414
        %v629 = vshrl.u32 %v628, 4
        %v630 = vand.u32 %v628, 15
        %v631 = vsub.s32 0, %v630
        %v632 = vsel %vm626, %v631, %v630
        %vm633 = vcmp.lt.s32.totalorder %v415, 0
        %v634 = vsub.s32 0, %v415
        %v635 = vsel %vm633, %v634, %v415
        %v636 = vshrl.u32 %v635, 4
        %v637 = vand.u32 %v635, 15
        %v638 = vsub.s32 0, %v637
        %v639 = vsel %vm633, %v638, %v637
        %vm640 = vcmp.ne.s32.totalorder %v422, 0
        %vm641 = vcmp.ne.s32.totalorder %v429, 0
        %vm642 = vcmp.ne.s32.totalorder %v436, 0
        %vm643 = vcmp.ne.s32.totalorder %v443, 0
        %vm644 = vcmp.ne.s32.totalorder %v450, 0
        %vm645 = vcmp.ne.s32.totalorder %v457, 0
        %vm646 = vcmp.ne.s32.totalorder %v464, 0
        %vm647 = vcmp.ne.s32.totalorder %v471, 0
        %vm648 = vcmp.ne.s32.totalorder %v478, 0
        %vm649 = vcmp.ne.s32.totalorder %v485, 0
        %vm650 = vcmp.ne.s32.totalorder %v492, 0
        %vm651 = vcmp.ne.s32.totalorder %v499, 0
        %vm652 = vcmp.ne.s32.totalorder %v506, 0
        %vm653 = vcmp.ne.s32.totalorder %v513, 0
        %vm654 = vcmp.ne.s32.totalorder %v520, 0
        %vm655 = vcmp.ne.s32.totalorder %v527, 0
        %vm656 = vcmp.ne.s32.totalorder %v534, 0
        %vm657 = vcmp.ne.s32.totalorder %v541, 0
        %vm658 = vcmp.ne.s32.totalorder %v548, 0
        %vm659 = vcmp.ne.s32.totalorder %v555, 0
        %vm660 = vcmp.ne.s32.totalorder %v562, 0
        %vm661 = vcmp.ne.s32.totalorder %v569, 0
        %vm662 = vcmp.ne.s32.totalorder %v576, 0
        %vm663 = vcmp.ne.s32.totalorder %v583, 0
        %vm664 = vcmp.ne.s32.totalorder %v590, 0
        %vm665 = vcmp.ne.s32.totalorder %v597, 0
        %vm666 = vcmp.ne.s32.totalorder %v604, 0
        %vm667 = vcmp.ne.s32.totalorder %v611, 0
        %vm668 = vcmp.ne.s32.totalorder %v618, 0
        %vm669 = vcmp.ne.s32.totalorder %v625, 0
        %vm670 = vcmp.ne.s32.totalorder %v632, 0
        %vm671 = vcmp.ne.s32.totalorder %v639, 0
        %vm672 = vcmp.lt.s32.totalorder %v422, 0
        %vm673 = vcmp.lt.s32.totalorder %v429, 0
        %vm674 = vcmp.lt.s32.totalorder %v436, 0
        %vm675 = vcmp.lt.s32.totalorder %v443, 0
        %vm676 = vcmp.lt.s32.totalorder %v450, 0
        %vm677 = vcmp.lt.s32.totalorder %v457, 0
        %vm678 = vcmp.lt.s32.totalorder %v464, 0
        %vm679 = vcmp.lt.s32.totalorder %v471, 0
        %vm680 = vcmp.lt.s32.totalorder %v478, 0
        %vm681 = vcmp.lt.s32.totalorder %v485, 0
        %vm682 = vcmp.lt.s32.totalorder %v492, 0
        %vm683 = vcmp.lt.s32.totalorder %v499, 0
        %vm684 = vcmp.lt.s32.totalorder %v506, 0
        %vm685 = vcmp.lt.s32.totalorder %v513, 0
        %vm686 = vcmp.lt.s32.totalorder %v520, 0
        %vm687 = vcmp.lt.s32.totalorder %v527, 0
        %vm688 = vcmp.lt.s32.totalorder %v534, 0
        %vm689 = vcmp.lt.s32.totalorder %v541, 0
        %vm690 = vcmp.lt.s32.totalorder %v548, 0
        %vm691 = vcmp.lt.s32.totalorder %v555, 0
        %vm692 = vcmp.lt.s32.totalorder %v562, 0
        %vm693 = vcmp.lt.s32.totalorder %v569, 0
        %vm694 = vcmp.lt.s32.totalorder %v576, 0
        %vm695 = vcmp.lt.s32.totalorder %v583, 0
        %vm696 = vcmp.lt.s32.totalorder %v590, 0
        %vm697 = vcmp.lt.s32.totalorder %v597, 0
        %vm698 = vcmp.lt.s32.totalorder %v604, 0
        %vm699 = vcmp.lt.s32.totalorder %v611, 0
        %vm700 = vcmp.lt.s32.totalorder %v618, 0
        %vm701 = vcmp.lt.s32.totalorder %v625, 0
        %vm702 = vcmp.lt.s32.totalorder %v632, 0
        %vm703 = vcmp.lt.s32.totalorder %v639, 0
        %vm704 = vmand %vm672, %vm640
        %vm705 = vmand %vm673, %vm641
        %vm706 = vmand %vm674, %vm642
        %vm707 = vmand %vm675, %vm643
        %vm708 = vmand %vm676, %vm644
        %vm709 = vmand %vm677, %vm645
        %vm710 = vmand %vm678, %vm646
        %vm711 = vmand %vm679, %vm647
        %vm712 = vmand %vm680, %vm648
        %vm713 = vmand %vm681, %vm649
        %vm714 = vmand %vm682, %vm650
        %vm715 = vmand %vm683, %vm651
        %vm716 = vmand %vm684, %vm652
        %vm717 = vmand %vm685, %vm653
        %vm718 = vmand %vm686, %vm654
        %vm719 = vmand %vm687, %vm655
        %vm720 = vmand %vm688, %vm656
        %vm721 = vmand %vm689, %vm657
        %vm722 = vmand %vm690, %vm658
        %vm723 = vmand %vm691, %vm659
        %vm724 = vmand %vm692, %vm660
        %vm725 = vmand %vm693, %vm661
        %vm726 = vmand %vm694, %vm662
        %vm727 = vmand %vm695, %vm663
        %vm728 = vmand %vm696, %vm664
        %vm729 = vmand %vm697, %vm665
        %vm730 = vmand %vm698, %vm666
        %vm731 = vmand %vm699, %vm667
        %vm732 = vmand %vm700, %vm668
        %vm733 = vmand %vm701, %vm669
        %vm734 = vmand %vm702, %vm670
        %vm735 = vmand %vm703, %vm671
        %v736 = vadd.s32 %v422, 16
        %v737 = vadd.s32 %v429, 16
        %v738 = vadd.s32 %v436, 16
        %v739 = vadd.s32 %v443, 16
        %v740 = vadd.s32 %v450, 16
        %v741 = vadd.s32 %v457, 16
        %v742 = vadd.s32 %v464, 16
        %v743 = vadd.s32 %v471, 16
        %v744 = vadd.s32 %v478, 16
        %v745 = vadd.s32 %v485, 16
        %v746 = vadd.s32 %v492, 16
        %v747 = vadd.s32 %v499, 16
        %v748 = vadd.s32 %v506, 16
        %v749 = vadd.s32 %v513, 16
        %v750 = vadd.s32 %v520, 16
        %v751 = vadd.s32 %v527, 16
        %v752 = vadd.s32 %v534, 16
        %v753 = vadd.s32 %v541, 16
        %v754 = vadd.s32 %v548, 16
        %v755 = vadd.s32 %v555, 16
        %v756 = vadd.s32 %v562, 16
        %v757 = vadd.s32 %v569, 16
        %v758 = vadd.s32 %v576, 16
        %v759 = vadd.s32 %v583, 16
        %v760 = vadd.s32 %v590, 16
        %v761 = vadd.s32 %v597, 16
        %v762 = vadd.s32 %v604, 16
        %v763 = vadd.s32 %v611, 16
        %v764 = vadd.s32 %v618, 16
        %v765 = vadd.s32 %v625, 16
        %v766 = vadd.s32 %v632, 16
        %v767 = vadd.s32 %v639, 16
        %v768 = vsel %vm704, %v736, %v422
        %v769 = vsel %vm705, %v737, %v429
        %v770 = vsel %vm706, %v738, %v436
        %v771 = vsel %vm707, %v739, %v443
        %v772 = vsel %vm708, %v740, %v450
        %v773 = vsel %vm709, %v741, %v457
        %v774 = vsel %vm710, %v742, %v464
        %v775 = vsel %vm711, %v743, %v471
        %v776 = vsel %vm712, %v744, %v478
        %v777 = vsel %vm713, %v745, %v485
        %v778 = vsel %vm714, %v746, %v492
        %v779 = vsel %vm715, %v747, %v499
        %v780 = vsel %vm716, %v748, %v506
        %v781 = vsel %vm717, %v749, %v513
        %v782 = vsel %vm718, %v750, %v520
        %v783 = vsel %vm719, %v751, %v527
        %v784 = vsel %vm720, %v752, %v534
        %v785 = vsel %vm721, %v753, %v541
        %v786 = vsel %vm722, %v754, %v548
        %v787 = vsel %vm723, %v755, %v555
        %v788 = vsel %vm724, %v756, %v562
        %v789 = vsel %vm725, %v757, %v569
        %v790 = vsel %vm726, %v758, %v576
        %v791 = vsel %vm727, %v759, %v583
        %v792 = vsel %vm728, %v760, %v590
        %v793 = vsel %vm729, %v761, %v597
        %v794 = vsel %vm730, %v762, %v604
        %v795 = vsel %vm731, %v763, %v611
        %v796 = vsel %vm732, %v764, %v618
        %v797 = vsel %vm733, %v765, %v625
        %v798 = vsel %vm734, %v766, %v632
        %v799 = vsel %vm735, %v767, %v639
        %vm800 = vcmp.ge.s32.totalorder %v768, 1
        %vm801 = vcmp.ge.s32.totalorder %v769, 1
        %vm802 = vcmp.ge.s32.totalorder %v770, 1
        %vm803 = vcmp.ge.s32.totalorder %v771, 1
        %vm804 = vcmp.ge.s32.totalorder %v772, 1
        %vm805 = vcmp.ge.s32.totalorder %v773, 1
        %vm806 = vcmp.ge.s32.totalorder %v774, 1
        %vm807 = vcmp.ge.s32.totalorder %v775, 1
        %vm808 = vcmp.ge.s32.totalorder %v776, 1
        %vm809 = vcmp.ge.s32.totalorder %v777, 1
        %vm810 = vcmp.ge.s32.totalorder %v778, 1
        %vm811 = vcmp.ge.s32.totalorder %v779, 1
        %vm812 = vcmp.ge.s32.totalorder %v780, 1
        %vm813 = vcmp.ge.s32.totalorder %v781, 1
        %vm814 = vcmp.ge.s32.totalorder %v782, 1
        %vm815 = vcmp.ge.s32.totalorder %v783, 1
        %vm816 = vcmp.ge.s32.totalorder %v784, 1
        %vm817 = vcmp.ge.s32.totalorder %v785, 1
        %vm818 = vcmp.ge.s32.totalorder %v786, 1
        %vm819 = vcmp.ge.s32.totalorder %v787, 1
        %vm820 = vcmp.ge.s32.totalorder %v788, 1
        %vm821 = vcmp.ge.s32.totalorder %v789, 1
        %vm822 = vcmp.ge.s32.totalorder %v790, 1
        %vm823 = vcmp.ge.s32.totalorder %v791, 1
        %vm824 = vcmp.ge.s32.totalorder %v792, 1
        %vm825 = vcmp.ge.s32.totalorder %v793, 1
        %vm826 = vcmp.ge.s32.totalorder %v794, 1
        %vm827 = vcmp.ge.s32.totalorder %v795, 1
        %vm828 = vcmp.ge.s32.totalorder %v796, 1
        %vm829 = vcmp.ge.s32.totalorder %v797, 1
        %vm830 = vcmp.ge.s32.totalorder %v798, 1
        %vm831 = vcmp.ge.s32.totalorder %v799, 1
        %vm832 = vcmp.lt.s32.totalorder %v768, 15
        %vm833 = vcmp.lt.s32.totalorder %v769, 15
        %vm834 = vcmp.lt.s32.totalorder %v770, 15
        %vm835 = vcmp.lt.s32.totalorder %v771, 15
        %vm836 = vcmp.lt.s32.totalorder %v772, 15
        %vm837 = vcmp.lt.s32.totalorder %v773, 15
        %vm838 = vcmp.lt.s32.totalorder %v774, 15
        %vm839 = vcmp.lt.s32.totalorder %v775, 15
        %vm840 = vcmp.lt.s32.totalorder %v776, 15
        %vm841 = vcmp.lt.s32.totalorder %v777, 15
        %vm842 = vcmp.lt.s32.totalorder %v778, 15
        %vm843 = vcmp.lt.s32.totalorder %v779, 15
        %vm844 = vcmp.lt.s32.totalorder %v780, 15
        %vm845 = vcmp.lt.s32.totalorder %v781, 15
        %vm846 = vcmp.lt.s32.totalorder %v782, 15
        %vm847 = vcmp.lt.s32.totalorder %v783, 15
        %vm848 = vcmp.lt.s32.totalorder %v784, 15
        %vm849 = vcmp.lt.s32.totalorder %v785, 15
        %vm850 = vcmp.lt.s32.totalorder %v786, 15
        %vm851 = vcmp.lt.s32.totalorder %v787, 15
        %vm852 = vcmp.lt.s32.totalorder %v788, 15
        %vm853 = vcmp.lt.s32.totalorder %v789, 15
        %vm854 = vcmp.lt.s32.totalorder %v790, 15
        %vm855 = vcmp.lt.s32.totalorder %v791, 15
        %vm856 = vcmp.lt.s32.totalorder %v792, 15
        %vm857 = vcmp.lt.s32.totalorder %v793, 15
        %vm858 = vcmp.lt.s32.totalorder %v794, 15
        %vm859 = vcmp.lt.s32.totalorder %v795, 15
        %vm860 = vcmp.lt.s32.totalorder %v796, 15
        %vm861 = vcmp.lt.s32.totalorder %v797, 15
        %vm862 = vcmp.lt.s32.totalorder %v798, 15
        %vm863 = vcmp.lt.s32.totalorder %v799, 15
        %v864 = vld [vmem:[%s379] sm:$0xf]
        %v865 = vld [vmem:[%s379 + $0x4] sm:$0xf]
        %v866 = vld [vmem:[%s379 + $0x8] sm:$0xf]
        %v867 = vld [vmem:[%s379 + $0xc] sm:$0xf]
        %v868 = vld [vmem:[%s379 + $0x10] sm:$0xf]
        %v869 = vld [vmem:[%s379 + $0x14] sm:$0xf]
        %v870 = vld [vmem:[%s379 + $0x18] sm:$0xf]
        %v871 = vld [vmem:[%s379 + $0x1c] sm:$0xf]
        %v872 = vld [vmem:[%s379 + $0x20] sm:$0xf]
        %v873 = vld [vmem:[%s379 + $0x24] sm:$0xf]
        %v874 = vld [vmem:[%s379 + $0x28] sm:$0xf]
        %v875 = vld [vmem:[%s379 + $0x2c] sm:$0xf]
        %v876 = vld [vmem:[%s379 + $0x30] sm:$0xf]
        %v877 = vld [vmem:[%s379 + $0x34] sm:$0xf]
        %v878 = vld [vmem:[%s379 + $0x38] sm:$0xf]
        %v879 = vld [vmem:[%s379 + $0x3c] sm:$0xf]
        %v880 = vld [vmem:[%s379 + $0x40] sm:$0xf]
        %v881 = vld [vmem:[%s379 + $0x44] sm:$0xf]
        %v882 = vld [vmem:[%s379 + $0x48] sm:$0xf]
        %v883 = vld [vmem:[%s379 + $0x4c] sm:$0xf]
        %v884 = vld [vmem:[%s379 + $0x50] sm:$0xf]
        %v885 = vld [vmem:[%s379 + $0x54] sm:$0xf]
        %v886 = vld [vmem:[%s379 + $0x58] sm:$0xf]
        %v887 = vld [vmem:[%s379 + $0x5c] sm:$0xf]
        %v888 = vld [vmem:[%s379 + $0x60] sm:$0xf]
        %v889 = vld [vmem:[%s379 + $0x64] sm:$0xf]
        %v890 = vld [vmem:[%s379 + $0x68] sm:$0xf]
        %v891 = vld [vmem:[%s379 + $0x6c] sm:$0xf]
        %v892 = vld [vmem:[%s379 + $0x70] sm:$0xf]
        %v893 = vld [vmem:[%s379 + $0x74] sm:$0xf]
        %v894 = vld [vmem:[%s379 + $0x78] sm:$0xf]
        %v895 = vld [vmem:[%s379 + $0x7c] sm:$0xf]
        %v928 = vunpack.c.l.b16 %v864
        %v929 = vunpack.c.l.b16 %v865
        %v930 = vunpack.c.l.b16 %v866
        %v931 = vunpack.c.l.b16 %v867
        %v932 = vunpack.c.l.b16 %v868
        %v933 = vunpack.c.l.b16 %v869
        %v934 = vunpack.c.l.b16 %v870
        %v935 = vunpack.c.l.b16 %v871
        %v936 = vunpack.c.l.b16 %v872
        %v937 = vunpack.c.l.b16 %v873
        %v938 = vunpack.c.l.b16 %v874
        %v939 = vunpack.c.l.b16 %v875
        %v940 = vunpack.c.l.b16 %v876
        %v941 = vunpack.c.l.b16 %v877
        %v942 = vunpack.c.l.b16 %v878
        %v943 = vunpack.c.l.b16 %v879
        %v944 = vunpack.c.l.b16 %v880
        %v945 = vunpack.c.l.b16 %v881
        %v946 = vunpack.c.l.b16 %v882
        %v947 = vunpack.c.l.b16 %v883
        %v948 = vunpack.c.l.b16 %v884
        %v949 = vunpack.c.l.b16 %v885
        %v950 = vunpack.c.l.b16 %v886
        %v951 = vunpack.c.l.b16 %v887
        %v952 = vunpack.c.l.b16 %v888
        %v953 = vunpack.c.l.b16 %v889
        %v954 = vunpack.c.l.b16 %v890
        %v955 = vunpack.c.l.b16 %v891
        %v956 = vunpack.c.l.b16 %v892
        %v957 = vunpack.c.l.b16 %v893
        %v958 = vunpack.c.l.b16 %v894
        %v959 = vunpack.c.l.b16 %v895
        %v960 = vpack.c.b16 %v929, %v928
        %v961 = vpack.c.b16 %v931, %v930
        %v962 = vpack.c.b16 %v933, %v932
        %v963 = vpack.c.b16 %v935, %v934
        %v964 = vpack.c.b16 %v937, %v936
        %v965 = vpack.c.b16 %v939, %v938
        %v966 = vpack.c.b16 %v941, %v940
        %v967 = vpack.c.b16 %v943, %v942
        %v968 = vpack.c.b16 %v945, %v944
        %v969 = vpack.c.b16 %v947, %v946
        %v970 = vpack.c.b16 %v949, %v948
        %v971 = vpack.c.b16 %v951, %v950
        %v972 = vpack.c.b16 %v953, %v952
        %v973 = vpack.c.b16 %v955, %v954
        %v974 = vpack.c.b16 %v957, %v956
        %v975 = vpack.c.b16 %v959, %v958
        %vm976 = vcmask 31744
        %v979 = vsel %vm976, %v960, 0
        %v982 = vsel %vm976, %v961, 0
        %v985 = vsel %vm976, %v962, 0
        %v988 = vsel %vm976, %v963, 0
        %v991 = vsel %vm976, %v964, 0
        %v994 = vsel %vm976, %v965, 0
        %v997 = vsel %vm976, %v966, 0
        %v1000 = vsel %vm976, %v967, 0
        %v1003 = vsel %vm976, %v968, 0
        %v1006 = vsel %vm976, %v969, 0
        %v1009 = vsel %vm976, %v970, 0
        %v1012 = vsel %vm976, %v971, 0
        %v1015 = vsel %vm976, %v972, 0
        %v1018 = vsel %vm976, %v973, 0
        %v1021 = vsel %vm976, %v974, 0
        %v1024 = vsel %vm976, %v975, 0
        %vm1026 = vsmask.f32 256
        %v1027 = vshrl.u32 %v979, 16
        %v1029 = vrot.slane %v1027, 7
        %v1030 = vshll.u32 %v979, 16
        %v1032 = vor.u32 %v1029, %v1030
        %v1033 = vshrl.u32 %v982, 16
        %v1035 = vrot.slane %v1033, 7
        %v1036 = vshll.u32 %v982, 16
        %v1038 = vor.u32 %v1035, %v1036
        %v1039 = vsel %vm1026, %v1029, %v1038
        %v1040 = vshrl.u32 %v985, 16
        %v1042 = vrot.slane %v1040, 7
        %v1043 = vshll.u32 %v985, 16
        %v1045 = vor.u32 %v1042, %v1043
        %v1046 = vsel %vm1026, %v1035, %v1045
        %v1047 = vshrl.u32 %v988, 16
        %v1049 = vrot.slane %v1047, 7
        %v1050 = vshll.u32 %v988, 16
        %v1052 = vor.u32 %v1049, %v1050
        %v1053 = vsel %vm1026, %v1042, %v1052
        %v1054 = vshrl.u32 %v991, 16
        %v1056 = vrot.slane %v1054, 7
        %v1057 = vshll.u32 %v991, 16
        %v1059 = vor.u32 %v1056, %v1057
        %v1060 = vsel %vm1026, %v1049, %v1059
        %v1061 = vshrl.u32 %v994, 16
        %v1063 = vrot.slane %v1061, 7
        %v1064 = vshll.u32 %v994, 16
        %v1066 = vor.u32 %v1063, %v1064
        %v1067 = vsel %vm1026, %v1056, %v1066
        %v1068 = vshrl.u32 %v997, 16
        %v1070 = vrot.slane %v1068, 7
        %v1071 = vshll.u32 %v997, 16
        %v1073 = vor.u32 %v1070, %v1071
        %v1074 = vsel %vm1026, %v1063, %v1073
        %v1075 = vshrl.u32 %v1000, 16
        %v1077 = vrot.slane %v1075, 7
        %v1078 = vshll.u32 %v1000, 16
        %v1080 = vor.u32 %v1077, %v1078
        %v1081 = vsel %vm1026, %v1070, %v1080
        %v1082 = vshrl.u32 %v1003, 16
        %v1084 = vrot.slane %v1082, 7
        %v1085 = vshll.u32 %v1003, 16
        %v1087 = vor.u32 %v1084, %v1085
        %v1088 = vsel %vm1026, %v1077, %v1087
        %v1089 = vshrl.u32 %v1006, 16
        %v1091 = vrot.slane %v1089, 7
        %v1092 = vshll.u32 %v1006, 16
        %v1094 = vor.u32 %v1091, %v1092
        %v1095 = vsel %vm1026, %v1084, %v1094
        %v1096 = vshrl.u32 %v1009, 16
        %v1098 = vrot.slane %v1096, 7
        %v1099 = vshll.u32 %v1009, 16
        %v1101 = vor.u32 %v1098, %v1099
        %v1102 = vsel %vm1026, %v1091, %v1101
        %v1103 = vshrl.u32 %v1012, 16
        %v1105 = vrot.slane %v1103, 7
        %v1106 = vshll.u32 %v1012, 16
        %v1108 = vor.u32 %v1105, %v1106
        %v1109 = vsel %vm1026, %v1098, %v1108
        %v1110 = vshrl.u32 %v1015, 16
        %v1112 = vrot.slane %v1110, 7
        %v1113 = vshll.u32 %v1015, 16
        %v1115 = vor.u32 %v1112, %v1113
        %v1116 = vsel %vm1026, %v1105, %v1115
        %v1117 = vshrl.u32 %v1018, 16
        %v1119 = vrot.slane %v1117, 7
        %v1120 = vshll.u32 %v1018, 16
        %v1122 = vor.u32 %v1119, %v1120
        %v1123 = vsel %vm1026, %v1112, %v1122
        %v1124 = vshrl.u32 %v1021, 16
        %v1126 = vrot.slane %v1124, 7
        %v1127 = vshll.u32 %v1021, 16
        %v1129 = vor.u32 %v1126, %v1127
        %v1130 = vsel %vm1026, %v1119, %v1129
        %vm1146 = vcmask 1040384
        %vm1147 = vmand %vm1146, %vm1026
        %v1148 = vsel %vm1147, 0, %v1032
        %v1149 = vsel %vm800, 1, 0
        %v1150 = vsel %vm801, 1, 0
        %v1151 = vsel %vm802, 1, 0
        %v1152 = vsel %vm803, 1, 0
        %v1153 = vsel %vm804, 1, 0
        %v1154 = vsel %vm805, 1, 0
        %v1155 = vsel %vm806, 1, 0
        %v1156 = vsel %vm807, 1, 0
        %v1157 = vsel %vm808, 1, 0
        %v1158 = vsel %vm809, 1, 0
        %v1159 = vsel %vm810, 1, 0
        %v1160 = vsel %vm811, 1, 0
        %v1161 = vsel %vm812, 1, 0
        %v1162 = vsel %vm813, 1, 0
        %v1163 = vsel %vm814, 1, 0
        %v1164 = vsel %vm815, 1, 0
        %v1165 = vsel %vm816, 1, 0
        %v1166 = vsel %vm817, 1, 0
        %v1167 = vsel %vm818, 1, 0
        %v1168 = vsel %vm819, 1, 0
        %v1169 = vsel %vm820, 1, 0
        %v1170 = vsel %vm821, 1, 0
        %v1171 = vsel %vm822, 1, 0
        %v1172 = vsel %vm823, 1, 0
        %v1173 = vsel %vm824, 1, 0
        %v1174 = vsel %vm825, 1, 0
        %v1175 = vsel %vm826, 1, 0
        %v1176 = vsel %vm827, 1, 0
        %v1177 = vsel %vm828, 1, 0
        %v1178 = vsel %vm829, 1, 0
        %v1179 = vsel %vm830, 1, 0
        %v1180 = vsel %vm831, 1, 0
        %vm1181 = vcmp.eq.s32.totalorder %v1149, 1
        %vm1182 = vcmp.eq.s32.totalorder %v1150, 1
        %vm1183 = vcmp.eq.s32.totalorder %v1151, 1
        %vm1184 = vcmp.eq.s32.totalorder %v1152, 1
        %vm1185 = vcmp.eq.s32.totalorder %v1153, 1
        %vm1186 = vcmp.eq.s32.totalorder %v1154, 1
        %vm1187 = vcmp.eq.s32.totalorder %v1155, 1
        %vm1188 = vcmp.eq.s32.totalorder %v1156, 1
        %vm1189 = vcmp.eq.s32.totalorder %v1157, 1
        %vm1190 = vcmp.eq.s32.totalorder %v1158, 1
        %vm1191 = vcmp.eq.s32.totalorder %v1159, 1
        %vm1192 = vcmp.eq.s32.totalorder %v1160, 1
        %vm1193 = vcmp.eq.s32.totalorder %v1161, 1
        %vm1194 = vcmp.eq.s32.totalorder %v1162, 1
        %vm1195 = vcmp.eq.s32.totalorder %v1163, 1
        %vm1196 = vcmp.eq.s32.totalorder %v1164, 1
        %vm1197 = vcmp.eq.s32.totalorder %v1165, 1
        %vm1198 = vcmp.eq.s32.totalorder %v1166, 1
        %vm1199 = vcmp.eq.s32.totalorder %v1167, 1
        %vm1200 = vcmp.eq.s32.totalorder %v1168, 1
        %vm1201 = vcmp.eq.s32.totalorder %v1169, 1
        %vm1202 = vcmp.eq.s32.totalorder %v1170, 1
        %vm1203 = vcmp.eq.s32.totalorder %v1171, 1
        %vm1204 = vcmp.eq.s32.totalorder %v1172, 1
        %vm1205 = vcmp.eq.s32.totalorder %v1173, 1
        %vm1206 = vcmp.eq.s32.totalorder %v1174, 1
        %vm1207 = vcmp.eq.s32.totalorder %v1175, 1
        %vm1208 = vcmp.eq.s32.totalorder %v1176, 1
        %vm1209 = vcmp.eq.s32.totalorder %v1177, 1
        %vm1210 = vcmp.eq.s32.totalorder %v1178, 1
        %vm1211 = vcmp.eq.s32.totalorder %v1179, 1
        %vm1212 = vcmp.eq.s32.totalorder %v1180, 1
        %vm1213 = vmpackc.low %vm1183, %vm1183
        %vm1214 = vmpackc.low %vm1184, %vm1184
        %vm1215 = vmpackc.low %vm1185, %vm1185
        %vm1216 = vmpackc.low %vm1186, %vm1186
        %vm1217 = vmpackc.low %vm1187, %vm1187
        %vm1218 = vmpackc.low %vm1188, %vm1188
        %vm1219 = vmpackc.low %vm1189, %vm1189
        %vm1220 = vmpackc.low %vm1190, %vm1190
        %vm1221 = vmpackc.low %vm1191, %vm1191
        %vm1222 = vmpackc.low %vm1192, %vm1192
        %vm1223 = vmpackc.low %vm1193, %vm1193
        %vm1224 = vmpackc.low %vm1194, %vm1194
        %vm1225 = vmpackc.low %vm1195, %vm1195
        %vm1226 = vmpackc.low %vm1196, %vm1196
        %vm1227 = vmpackc.low %vm1197, %vm1197
        %vm1228 = vmpackc.low %vm1198, %vm1198
        %vm1229 = vmpackc.low %vm1199, %vm1199
        %vm1230 = vmpackc.low %vm1200, %vm1200
        %vm1231 = vmpackc.low %vm1201, %vm1201
        %vm1232 = vmpackc.low %vm1202, %vm1202
        %vm1233 = vmpackc.low %vm1203, %vm1203
        %vm1234 = vmpackc.low %vm1204, %vm1204
        %vm1235 = vmpackc.low %vm1205, %vm1205
        %vm1236 = vmpackc.low %vm1206, %vm1206
        %vm1237 = vmpackc.low %vm1207, %vm1207
        %vm1238 = vmpackc.low %vm1208, %vm1208
        %vm1239 = vmpackc.low %vm1209, %vm1209
        %vm1240 = vmpackc.low %vm1210, %vm1210
        %vm1241 = vmpackc.low %vm1211, %vm1211
        %vm1242 = vmpackc.low %vm1212, %vm1212
        %v1243 = vsel %vm1213, 65537, 0
        %v1244 = vsel %vm1214, 65537, 0
        %v1245 = vsel %vm1215, 65537, 0
        %v1246 = vsel %vm1216, 65537, 0
        %v1247 = vsel %vm1217, 65537, 0
        %v1248 = vsel %vm1218, 65537, 0
        %v1249 = vsel %vm1219, 65537, 0
        %v1250 = vsel %vm1220, 65537, 0
        %v1251 = vsel %vm1221, 65537, 0
        %v1252 = vsel %vm1222, 65537, 0
        %v1253 = vsel %vm1223, 65537, 0
        %v1254 = vsel %vm1224, 65537, 0
        %v1255 = vsel %vm1225, 65537, 0
        %v1256 = vsel %vm1226, 65537, 0
        %v1257 = vsel %vm1227, 65537, 0
        %v1258 = vsel %vm1228, 65537, 0
        %v1259 = vsel %vm1229, 65537, 0
        %v1260 = vsel %vm1230, 65537, 0
        %v1261 = vsel %vm1231, 65537, 0
        %v1262 = vsel %vm1232, 65537, 0
        %v1263 = vsel %vm1233, 65537, 0
        %v1264 = vsel %vm1234, 65537, 0
        %v1265 = vsel %vm1235, 65537, 0
        %v1266 = vsel %vm1236, 65537, 0
        %v1267 = vsel %vm1237, 65537, 0
        %v1268 = vsel %vm1238, 65537, 0
        %v1269 = vsel %vm1239, 65537, 0
        %v1270 = vsel %vm1240, 65537, 0
        %v1271 = vsel %vm1241, 65537, 0
        %v1272 = vsel %vm1242, 65537, 0
        %v1273 = vunpack.c.l.b16 %v1243
        %v1274 = vunpack.c.l.b16 %v1244
        %v1275 = vunpack.c.l.b16 %v1245
        %v1276 = vunpack.c.l.b16 %v1246
        %v1277 = vunpack.c.l.b16 %v1247
        %v1278 = vunpack.c.l.b16 %v1248
        %v1279 = vunpack.c.l.b16 %v1249
        %v1280 = vunpack.c.l.b16 %v1250
        %v1281 = vunpack.c.l.b16 %v1251
        %v1282 = vunpack.c.l.b16 %v1252
        %v1283 = vunpack.c.l.b16 %v1253
        %v1284 = vunpack.c.l.b16 %v1254
        %v1285 = vunpack.c.l.b16 %v1255
        %v1286 = vunpack.c.l.b16 %v1256
        %v1287 = vunpack.c.l.b16 %v1257
        %v1288 = vunpack.c.l.b16 %v1258
        %v1289 = vunpack.c.l.b16 %v1259
        %v1290 = vunpack.c.l.b16 %v1260
        %v1291 = vunpack.c.l.b16 %v1261
        %v1292 = vunpack.c.l.b16 %v1262
        %v1293 = vunpack.c.l.b16 %v1263
        %v1294 = vunpack.c.l.b16 %v1264
        %v1295 = vunpack.c.l.b16 %v1265
        %v1296 = vunpack.c.l.b16 %v1266
        %v1297 = vunpack.c.l.b16 %v1267
        %v1298 = vunpack.c.l.b16 %v1268
        %v1299 = vunpack.c.l.b16 %v1269
        %v1300 = vunpack.c.l.b16 %v1270
        %v1301 = vunpack.c.l.b16 %v1271
        %v1302 = vunpack.c.l.b16 %v1272
        %v1303 = vpack.c.b16 %v1274, %v1273
        %v1304 = vpack.c.b16 %v1276, %v1275
        %v1305 = vpack.c.b16 %v1278, %v1277
        %v1306 = vpack.c.b16 %v1280, %v1279
        %v1307 = vpack.c.b16 %v1282, %v1281
        %v1308 = vpack.c.b16 %v1284, %v1283
        %v1309 = vpack.c.b16 %v1286, %v1285
        %v1310 = vpack.c.b16 %v1288, %v1287
        %v1311 = vpack.c.b16 %v1290, %v1289
        %v1312 = vpack.c.b16 %v1292, %v1291
        %v1313 = vpack.c.b16 %v1294, %v1293
        %v1314 = vpack.c.b16 %v1296, %v1295
        %v1315 = vpack.c.b16 %v1298, %v1297
        %v1316 = vpack.c.b16 %v1300, %v1299
        %v1317 = vpack.c.b16 %v1302, %v1301
        %v1318 = vunpack.c.l.b16 %v1303
        %v1319 = vunpack.c.h.b16 %v1303
        %v1320 = vunpack.c.l.b16 0
        %v1321 = vunpack.c.h.b16 0
        %vm1322 = vcmp.ne.s32.totalorder %v1318, %v1320
        %vm1323 = vcmp.ne.s32.totalorder %v1319, %v1321
        %vm1324 = vmpackc.low %vm1323, %vm1322
        %v1325 = vunpack.c.l.b16 %v1304
        %v1326 = vunpack.c.h.b16 %v1304
        %v1327 = vunpack.c.l.b16 0
        %v1328 = vunpack.c.h.b16 0
        %vm1329 = vcmp.ne.s32.totalorder %v1325, %v1327
        %vm1330 = vcmp.ne.s32.totalorder %v1326, %v1328
        %vm1331 = vmpackc.low %vm1330, %vm1329
        %v1332 = vunpack.c.l.b16 %v1305
        %v1333 = vunpack.c.h.b16 %v1305
        %v1334 = vunpack.c.l.b16 0
        %v1335 = vunpack.c.h.b16 0
        %vm1336 = vcmp.ne.s32.totalorder %v1332, %v1334
        %vm1337 = vcmp.ne.s32.totalorder %v1333, %v1335
        %vm1338 = vmpackc.low %vm1337, %vm1336
        %v1339 = vunpack.c.l.b16 %v1306
        %v1340 = vunpack.c.h.b16 %v1306
        %v1341 = vunpack.c.l.b16 0
        %v1342 = vunpack.c.h.b16 0
        %vm1343 = vcmp.ne.s32.totalorder %v1339, %v1341
        %vm1344 = vcmp.ne.s32.totalorder %v1340, %v1342
        %vm1345 = vmpackc.low %vm1344, %vm1343
        %v1346 = vunpack.c.l.b16 %v1307
        %v1347 = vunpack.c.h.b16 %v1307
        %v1348 = vunpack.c.l.b16 0
        %v1349 = vunpack.c.h.b16 0
        %vm1350 = vcmp.ne.s32.totalorder %v1346, %v1348
        %vm1351 = vcmp.ne.s32.totalorder %v1347, %v1349
        %vm1352 = vmpackc.low %vm1351, %vm1350
        %v1353 = vunpack.c.l.b16 %v1308
        %v1354 = vunpack.c.h.b16 %v1308
        %v1355 = vunpack.c.l.b16 0
        %v1356 = vunpack.c.h.b16 0
        %vm1357 = vcmp.ne.s32.totalorder %v1353, %v1355
        %vm1358 = vcmp.ne.s32.totalorder %v1354, %v1356
        %vm1359 = vmpackc.low %vm1358, %vm1357
        %v1360 = vunpack.c.l.b16 %v1309
        %v1361 = vunpack.c.h.b16 %v1309
        %v1362 = vunpack.c.l.b16 0
        %v1363 = vunpack.c.h.b16 0
        %vm1364 = vcmp.ne.s32.totalorder %v1360, %v1362
        %vm1365 = vcmp.ne.s32.totalorder %v1361, %v1363
        %vm1366 = vmpackc.low %vm1365, %vm1364
        %v1367 = vunpack.c.l.b16 %v1310
        %v1368 = vunpack.c.h.b16 %v1310
        %v1369 = vunpack.c.l.b16 0
        %v1370 = vunpack.c.h.b16 0
        %vm1371 = vcmp.ne.s32.totalorder %v1367, %v1369
        %vm1372 = vcmp.ne.s32.totalorder %v1368, %v1370
        %vm1373 = vmpackc.low %vm1372, %vm1371
        %v1374 = vunpack.c.l.b16 %v1311
        %v1375 = vunpack.c.h.b16 %v1311
        %v1376 = vunpack.c.l.b16 0
        %v1377 = vunpack.c.h.b16 0
        %vm1378 = vcmp.ne.s32.totalorder %v1374, %v1376
        %vm1379 = vcmp.ne.s32.totalorder %v1375, %v1377
        %vm1380 = vmpackc.low %vm1379, %vm1378
        %v1381 = vunpack.c.l.b16 %v1312
        %v1382 = vunpack.c.h.b16 %v1312
        %v1383 = vunpack.c.l.b16 0
        %v1384 = vunpack.c.h.b16 0
        %vm1385 = vcmp.ne.s32.totalorder %v1381, %v1383
        %vm1386 = vcmp.ne.s32.totalorder %v1382, %v1384
        %vm1387 = vmpackc.low %vm1386, %vm1385
        %v1388 = vunpack.c.l.b16 %v1313
        %v1389 = vunpack.c.h.b16 %v1313
        %v1390 = vunpack.c.l.b16 0
        %v1391 = vunpack.c.h.b16 0
        %vm1392 = vcmp.ne.s32.totalorder %v1388, %v1390
        %vm1393 = vcmp.ne.s32.totalorder %v1389, %v1391
        %vm1394 = vmpackc.low %vm1393, %vm1392
        %v1395 = vunpack.c.l.b16 %v1314
        %v1396 = vunpack.c.h.b16 %v1314
        %v1397 = vunpack.c.l.b16 0
        %v1398 = vunpack.c.h.b16 0
        %vm1399 = vcmp.ne.s32.totalorder %v1395, %v1397
        %vm1400 = vcmp.ne.s32.totalorder %v1396, %v1398
        %vm1401 = vmpackc.low %vm1400, %vm1399
        %v1402 = vunpack.c.l.b16 %v1315
        %v1403 = vunpack.c.h.b16 %v1315
        %v1404 = vunpack.c.l.b16 0
        %v1405 = vunpack.c.h.b16 0
        %vm1406 = vcmp.ne.s32.totalorder %v1402, %v1404
        %vm1407 = vcmp.ne.s32.totalorder %v1403, %v1405
        %vm1408 = vmpackc.low %vm1407, %vm1406
        %v1409 = vunpack.c.l.b16 %v1316
        %v1410 = vunpack.c.h.b16 %v1316
        %v1411 = vunpack.c.l.b16 0
        %v1412 = vunpack.c.h.b16 0
        %vm1413 = vcmp.ne.s32.totalorder %v1409, %v1411
        %vm1414 = vcmp.ne.s32.totalorder %v1410, %v1412
        %vm1415 = vmpackc.low %vm1414, %vm1413
        %v1416 = vunpack.c.l.b16 %v1317
        %v1417 = vunpack.c.h.b16 %v1317
        %v1418 = vunpack.c.l.b16 0
        %v1419 = vunpack.c.h.b16 0
        %vm1420 = vcmp.ne.s32.totalorder %v1416, %v1418
        %vm1421 = vcmp.ne.s32.totalorder %v1417, %v1419
        %vm1422 = vmpackc.low %vm1421, %vm1420
        %v1423 = vsel %vm1324, %v1148, 0
        %v1424 = vsel %vm1331, %v1039, 0
        %v1425 = vsel %vm1338, %v1046, 0
        %v1426 = vsel %vm1345, %v1053, 0
        %v1427 = vsel %vm1352, %v1060, 0
        %v1428 = vsel %vm1359, %v1067, 0
        %v1429 = vsel %vm1366, %v1074, 0
        %v1430 = vsel %vm1373, %v1081, 0
        %v1431 = vsel %vm1380, %v1088, 0
        %v1432 = vsel %vm1387, %v1095, 0
        %v1433 = vsel %vm1394, %v1102, 0
        %v1434 = vsel %vm1401, %v1109, 0
        %v1435 = vsel %vm1408, %v1116, 0
        %v1436 = vsel %vm1415, %v1123, 0
        %v1437 = vsel %vm1422, %v1130, 0
        %vm1438 = vsmask.f32 7424
        %v1439 = vrot.slane %v1030, 1
        %v1440 = vor.u32 %v1027, %v1439
        %v1441 = vrot.slane %v1036, 1
        %v1442 = vsel %vm1438, %v1440, %v1441
        %v1443 = vor.u32 %v1033, %v1441
        %v1444 = vrot.slane %v1043, 1
        %v1445 = vsel %vm1438, %v1443, %v1444
        %v1446 = vor.u32 %v1040, %v1444
        %v1447 = vrot.slane %v1050, 1
        %v1448 = vsel %vm1438, %v1446, %v1447
        %v1449 = vor.u32 %v1047, %v1447
        %v1450 = vrot.slane %v1057, 1
        %v1451 = vsel %vm1438, %v1449, %v1450
        %v1452 = vor.u32 %v1054, %v1450
        %v1453 = vrot.slane %v1064, 1
        %v1454 = vsel %vm1438, %v1452, %v1453
        %v1455 = vor.u32 %v1061, %v1453
        %v1456 = vrot.slane %v1071, 1
        %v1457 = vsel %vm1438, %v1455, %v1456
        %v1458 = vor.u32 %v1068, %v1456
        %v1459 = vrot.slane %v1078, 1
        %v1460 = vsel %vm1438, %v1458, %v1459
        %v1461 = vor.u32 %v1075, %v1459
        %v1462 = vrot.slane %v1085, 1
        %v1463 = vsel %vm1438, %v1461, %v1462
        %v1464 = vor.u32 %v1082, %v1462
        %v1465 = vrot.slane %v1092, 1
        %v1466 = vsel %vm1438, %v1464, %v1465
        %v1467 = vor.u32 %v1089, %v1465
        %v1468 = vrot.slane %v1099, 1
        %v1469 = vsel %vm1438, %v1467, %v1468
        %v1470 = vor.u32 %v1096, %v1468
        %v1471 = vrot.slane %v1106, 1
        %v1472 = vsel %vm1438, %v1470, %v1471
        %v1473 = vor.u32 %v1103, %v1471
        %v1474 = vrot.slane %v1113, 1
        %v1475 = vsel %vm1438, %v1473, %v1474
        %v1476 = vor.u32 %v1110, %v1474
        %v1477 = vrot.slane %v1120, 1
        %v1478 = vsel %vm1438, %v1476, %v1477
        %v1479 = vor.u32 %v1117, %v1477
        %v1480 = vrot.slane %v1127, 1
        %v1481 = vsel %vm1438, %v1479, %v1480
        %v1482 = vor.u32 %v1124, %v1480
        %v1483 = vshll.u32 %v1024, 16
        %v1485 = vrot.slane %v1483, 1
        %v1486 = vsel %vm1438, %v1482, %v1485
        %vm1503 = vcmask 1047552
        %vm1504 = vmand %vm1503, %vm1438
        %v1505 = vsel %vm1504, 0, %v1439
        %v1506 = vsel %vm832, 1, 0
        %v1507 = vsel %vm833, 1, 0
        %v1508 = vsel %vm834, 1, 0
        %v1509 = vsel %vm835, 1, 0
        %v1510 = vsel %vm836, 1, 0
        %v1511 = vsel %vm837, 1, 0
        %v1512 = vsel %vm838, 1, 0
        %v1513 = vsel %vm839, 1, 0
        %v1514 = vsel %vm840, 1, 0
        %v1515 = vsel %vm841, 1, 0
        %v1516 = vsel %vm842, 1, 0
        %v1517 = vsel %vm843, 1, 0
        %v1518 = vsel %vm844, 1, 0
        %v1519 = vsel %vm845, 1, 0
        %v1520 = vsel %vm846, 1, 0
        %v1521 = vsel %vm847, 1, 0
        %v1522 = vsel %vm848, 1, 0
        %v1523 = vsel %vm849, 1, 0
        %v1524 = vsel %vm850, 1, 0
        %v1525 = vsel %vm851, 1, 0
        %v1526 = vsel %vm852, 1, 0
        %v1527 = vsel %vm853, 1, 0
        %v1528 = vsel %vm854, 1, 0
        %v1529 = vsel %vm855, 1, 0
        %v1530 = vsel %vm856, 1, 0
        %v1531 = vsel %vm857, 1, 0
        %v1532 = vsel %vm858, 1, 0
        %v1533 = vsel %vm859, 1, 0
        %v1534 = vsel %vm860, 1, 0
        %v1535 = vsel %vm861, 1, 0
        %v1536 = vsel %vm862, 1, 0
        %v1537 = vsel %vm863, 1, 0
        %vm1538 = vcmp.eq.s32.totalorder %v1506, 1
        %vm1539 = vcmp.eq.s32.totalorder %v1507, 1
        %vm1540 = vcmp.eq.s32.totalorder %v1508, 1
        %vm1541 = vcmp.eq.s32.totalorder %v1509, 1
        %vm1542 = vcmp.eq.s32.totalorder %v1510, 1
        %vm1543 = vcmp.eq.s32.totalorder %v1511, 1
        %vm1544 = vcmp.eq.s32.totalorder %v1512, 1
        %vm1545 = vcmp.eq.s32.totalorder %v1513, 1
        %vm1546 = vcmp.eq.s32.totalorder %v1514, 1
        %vm1547 = vcmp.eq.s32.totalorder %v1515, 1
        %vm1548 = vcmp.eq.s32.totalorder %v1516, 1
        %vm1549 = vcmp.eq.s32.totalorder %v1517, 1
        %vm1550 = vcmp.eq.s32.totalorder %v1518, 1
        %vm1551 = vcmp.eq.s32.totalorder %v1519, 1
        %vm1552 = vcmp.eq.s32.totalorder %v1520, 1
        %vm1553 = vcmp.eq.s32.totalorder %v1521, 1
        %vm1554 = vcmp.eq.s32.totalorder %v1522, 1
        %vm1555 = vcmp.eq.s32.totalorder %v1523, 1
        %vm1556 = vcmp.eq.s32.totalorder %v1524, 1
        %vm1557 = vcmp.eq.s32.totalorder %v1525, 1
        %vm1558 = vcmp.eq.s32.totalorder %v1526, 1
        %vm1559 = vcmp.eq.s32.totalorder %v1527, 1
        %vm1560 = vcmp.eq.s32.totalorder %v1528, 1
        %vm1561 = vcmp.eq.s32.totalorder %v1529, 1
        %vm1562 = vcmp.eq.s32.totalorder %v1530, 1
        %vm1563 = vcmp.eq.s32.totalorder %v1531, 1
        %vm1564 = vcmp.eq.s32.totalorder %v1532, 1
        %vm1565 = vcmp.eq.s32.totalorder %v1533, 1
        %vm1566 = vcmp.eq.s32.totalorder %v1534, 1
        %vm1567 = vcmp.eq.s32.totalorder %v1535, 1
        %vm1568 = vcmp.eq.s32.totalorder %v1536, 1
        %vm1569 = vcmp.eq.s32.totalorder %v1537, 1
        %vm1570 = vmpackc.low %vm1538, %vm1538
        %vm1571 = vmpackc.low %vm1539, %vm1539
        %vm1572 = vmpackc.low %vm1540, %vm1540
        %vm1573 = vmpackc.low %vm1541, %vm1541
        %vm1574 = vmpackc.low %vm1542, %vm1542
        %vm1575 = vmpackc.low %vm1543, %vm1543
        %vm1576 = vmpackc.low %vm1544, %vm1544
        %vm1577 = vmpackc.low %vm1545, %vm1545
        %vm1578 = vmpackc.low %vm1546, %vm1546
        %vm1579 = vmpackc.low %vm1547, %vm1547
        %vm1580 = vmpackc.low %vm1548, %vm1548
        %vm1581 = vmpackc.low %vm1549, %vm1549
        %vm1582 = vmpackc.low %vm1550, %vm1550
        %vm1583 = vmpackc.low %vm1551, %vm1551
        %vm1584 = vmpackc.low %vm1552, %vm1552
        %vm1585 = vmpackc.low %vm1553, %vm1553
        %vm1586 = vmpackc.low %vm1554, %vm1554
        %vm1587 = vmpackc.low %vm1555, %vm1555
        %vm1588 = vmpackc.low %vm1556, %vm1556
        %vm1589 = vmpackc.low %vm1557, %vm1557
        %vm1590 = vmpackc.low %vm1558, %vm1558
        %vm1591 = vmpackc.low %vm1559, %vm1559
        %vm1592 = vmpackc.low %vm1560, %vm1560
        %vm1593 = vmpackc.low %vm1561, %vm1561
        %vm1594 = vmpackc.low %vm1562, %vm1562
        %vm1595 = vmpackc.low %vm1563, %vm1563
        %vm1596 = vmpackc.low %vm1564, %vm1564
        %vm1597 = vmpackc.low %vm1565, %vm1565
        %vm1598 = vmpackc.low %vm1566, %vm1566
        %vm1599 = vmpackc.low %vm1567, %vm1567
        %vm1600 = vmpackc.low %vm1568, %vm1568
        %vm1601 = vmpackc.low %vm1569, %vm1569
        %v1602 = vsel %vm1570, 65537, 0
        %v1603 = vsel %vm1571, 65537, 0
        %v1604 = vsel %vm1572, 65537, 0
        %v1605 = vsel %vm1573, 65537, 0
        %v1606 = vsel %vm1574, 65537, 0
        %v1607 = vsel %vm1575, 65537, 0
        %v1608 = vsel %vm1576, 65537, 0
        %v1609 = vsel %vm1577, 65537, 0
        %v1610 = vsel %vm1578, 65537, 0
        %v1611 = vsel %vm1579, 65537, 0
        %v1612 = vsel %vm1580, 65537, 0
        %v1613 = vsel %vm1581, 65537, 0
        %v1614 = vsel %vm1582, 65537, 0
        %v1615 = vsel %vm1583, 65537, 0
        %v1616 = vsel %vm1584, 65537, 0
        %v1617 = vsel %vm1585, 65537, 0
        %v1618 = vsel %vm1586, 65537, 0
        %v1619 = vsel %vm1587, 65537, 0
        %v1620 = vsel %vm1588, 65537, 0
        %v1621 = vsel %vm1589, 65537, 0
        %v1622 = vsel %vm1590, 65537, 0
        %v1623 = vsel %vm1591, 65537, 0
        %v1624 = vsel %vm1592, 65537, 0
        %v1625 = vsel %vm1593, 65537, 0
        %v1626 = vsel %vm1594, 65537, 0
        %v1627 = vsel %vm1595, 65537, 0
        %v1628 = vsel %vm1596, 65537, 0
        %v1629 = vsel %vm1597, 65537, 0
        %v1630 = vsel %vm1598, 65537, 0
        %v1631 = vsel %vm1599, 65537, 0
        %v1632 = vsel %vm1600, 65537, 0
        %v1633 = vsel %vm1601, 65537, 0
        %v1634 = vunpack.c.l.b16 %v1602
        %v1635 = vunpack.c.l.b16 %v1603
        %v1636 = vunpack.c.l.b16 %v1604
        %v1637 = vunpack.c.l.b16 %v1605
        %v1638 = vunpack.c.l.b16 %v1606
        %v1639 = vunpack.c.l.b16 %v1607
        %v1640 = vunpack.c.l.b16 %v1608
        %v1641 = vunpack.c.l.b16 %v1609
        %v1642 = vunpack.c.l.b16 %v1610
        %v1643 = vunpack.c.l.b16 %v1611
        %v1644 = vunpack.c.l.b16 %v1612
        %v1645 = vunpack.c.l.b16 %v1613
        %v1646 = vunpack.c.l.b16 %v1614
        %v1647 = vunpack.c.l.b16 %v1615
        %v1648 = vunpack.c.l.b16 %v1616
        %v1649 = vunpack.c.l.b16 %v1617
        %v1650 = vunpack.c.l.b16 %v1618
        %v1651 = vunpack.c.l.b16 %v1619
        %v1652 = vunpack.c.l.b16 %v1620
        %v1653 = vunpack.c.l.b16 %v1621
        %v1654 = vunpack.c.l.b16 %v1622
        %v1655 = vunpack.c.l.b16 %v1623
        %v1656 = vunpack.c.l.b16 %v1624
        %v1657 = vunpack.c.l.b16 %v1625
        %v1658 = vunpack.c.l.b16 %v1626
        %v1659 = vunpack.c.l.b16 %v1627
        %v1660 = vunpack.c.l.b16 %v1628
        %v1661 = vunpack.c.l.b16 %v1629
        %v1662 = vunpack.c.l.b16 %v1630
        %v1663 = vunpack.c.l.b16 %v1631
        %v1664 = vunpack.c.l.b16 %v1632
        %v1665 = vunpack.c.l.b16 %v1633
        %v1666 = vpack.c.b16 %v1635, %v1634
        %v1667 = vpack.c.b16 %v1637, %v1636
        %v1668 = vpack.c.b16 %v1639, %v1638
        %v1669 = vpack.c.b16 %v1641, %v1640
        %v1670 = vpack.c.b16 %v1643, %v1642
        %v1671 = vpack.c.b16 %v1645, %v1644
        %v1672 = vpack.c.b16 %v1647, %v1646
        %v1673 = vpack.c.b16 %v1649, %v1648
        %v1674 = vpack.c.b16 %v1651, %v1650
        %v1675 = vpack.c.b16 %v1653, %v1652
        %v1676 = vpack.c.b16 %v1655, %v1654
        %v1677 = vpack.c.b16 %v1657, %v1656
        %v1678 = vpack.c.b16 %v1659, %v1658
        %v1679 = vpack.c.b16 %v1661, %v1660
        %v1680 = vpack.c.b16 %v1663, %v1662
        %v1681 = vpack.c.b16 %v1665, %v1664
        %v1682 = vunpack.c.l.b16 %v1666
        %v1683 = vunpack.c.h.b16 %v1666
        %v1684 = vunpack.c.l.b16 0
        %v1685 = vunpack.c.h.b16 0
        %vm1686 = vcmp.ne.s32.totalorder %v1682, %v1684
        %vm1687 = vcmp.ne.s32.totalorder %v1683, %v1685
        %vm1688 = vmpackc.low %vm1687, %vm1686
        %v1689 = vunpack.c.l.b16 %v1667
        %v1690 = vunpack.c.h.b16 %v1667
        %v1691 = vunpack.c.l.b16 0
        %v1692 = vunpack.c.h.b16 0
        %vm1693 = vcmp.ne.s32.totalorder %v1689, %v1691
        %vm1694 = vcmp.ne.s32.totalorder %v1690, %v1692
        %vm1695 = vmpackc.low %vm1694, %vm1693
        %v1696 = vunpack.c.l.b16 %v1668
        %v1697 = vunpack.c.h.b16 %v1668
        %v1698 = vunpack.c.l.b16 0
        %v1699 = vunpack.c.h.b16 0
        %vm1700 = vcmp.ne.s32.totalorder %v1696, %v1698
        %vm1701 = vcmp.ne.s32.totalorder %v1697, %v1699
        %vm1702 = vmpackc.low %vm1701, %vm1700
        %v1703 = vunpack.c.l.b16 %v1669
        %v1704 = vunpack.c.h.b16 %v1669
        %v1705 = vunpack.c.l.b16 0
        %v1706 = vunpack.c.h.b16 0
        %vm1707 = vcmp.ne.s32.totalorder %v1703, %v1705
        %vm1708 = vcmp.ne.s32.totalorder %v1704, %v1706
        %vm1709 = vmpackc.low %vm1708, %vm1707
        %v1710 = vunpack.c.l.b16 %v1670
        %v1711 = vunpack.c.h.b16 %v1670
        %v1712 = vunpack.c.l.b16 0
        %v1713 = vunpack.c.h.b16 0
        %vm1714 = vcmp.ne.s32.totalorder %v1710, %v1712
        %vm1715 = vcmp.ne.s32.totalorder %v1711, %v1713
        %vm1716 = vmpackc.low %vm1715, %vm1714
        %v1717 = vunpack.c.l.b16 %v1671
        %v1718 = vunpack.c.h.b16 %v1671
        %v1719 = vunpack.c.l.b16 0
        %v1720 = vunpack.c.h.b16 0
        %vm1721 = vcmp.ne.s32.totalorder %v1717, %v1719
        %vm1722 = vcmp.ne.s32.totalorder %v1718, %v1720
        %vm1723 = vmpackc.low %vm1722, %vm1721
        %v1724 = vunpack.c.l.b16 %v1672
        %v1725 = vunpack.c.h.b16 %v1672
        %v1726 = vunpack.c.l.b16 0
        %v1727 = vunpack.c.h.b16 0
        %vm1728 = vcmp.ne.s32.totalorder %v1724, %v1726
        %vm1729 = vcmp.ne.s32.totalorder %v1725, %v1727
        %vm1730 = vmpackc.low %vm1729, %vm1728
        %v1731 = vunpack.c.l.b16 %v1673
        %v1732 = vunpack.c.h.b16 %v1673
        %v1733 = vunpack.c.l.b16 0
        %v1734 = vunpack.c.h.b16 0
        %vm1735 = vcmp.ne.s32.totalorder %v1731, %v1733
        %vm1736 = vcmp.ne.s32.totalorder %v1732, %v1734
        %vm1737 = vmpackc.low %vm1736, %vm1735
        %v1738 = vunpack.c.l.b16 %v1674
        %v1739 = vunpack.c.h.b16 %v1674
        %v1740 = vunpack.c.l.b16 0
        %v1741 = vunpack.c.h.b16 0
        %vm1742 = vcmp.ne.s32.totalorder %v1738, %v1740
        %vm1743 = vcmp.ne.s32.totalorder %v1739, %v1741
        %vm1744 = vmpackc.low %vm1743, %vm1742
        %v1745 = vunpack.c.l.b16 %v1675
        %v1746 = vunpack.c.h.b16 %v1675
        %v1747 = vunpack.c.l.b16 0
        %v1748 = vunpack.c.h.b16 0
        %vm1749 = vcmp.ne.s32.totalorder %v1745, %v1747
        %vm1750 = vcmp.ne.s32.totalorder %v1746, %v1748
        %vm1751 = vmpackc.low %vm1750, %vm1749
        %v1752 = vunpack.c.l.b16 %v1676
        %v1753 = vunpack.c.h.b16 %v1676
        %v1754 = vunpack.c.l.b16 0
        %v1755 = vunpack.c.h.b16 0
        %vm1756 = vcmp.ne.s32.totalorder %v1752, %v1754
        %vm1757 = vcmp.ne.s32.totalorder %v1753, %v1755
        %vm1758 = vmpackc.low %vm1757, %vm1756
        %v1759 = vunpack.c.l.b16 %v1677
        %v1760 = vunpack.c.h.b16 %v1677
        %v1761 = vunpack.c.l.b16 0
        %v1762 = vunpack.c.h.b16 0
        %vm1763 = vcmp.ne.s32.totalorder %v1759, %v1761
        %vm1764 = vcmp.ne.s32.totalorder %v1760, %v1762
        %vm1765 = vmpackc.low %vm1764, %vm1763
        %v1766 = vunpack.c.l.b16 %v1678
        %v1767 = vunpack.c.h.b16 %v1678
        %v1768 = vunpack.c.l.b16 0
        %v1769 = vunpack.c.h.b16 0
        %vm1770 = vcmp.ne.s32.totalorder %v1766, %v1768
        %vm1771 = vcmp.ne.s32.totalorder %v1767, %v1769
        %vm1772 = vmpackc.low %vm1771, %vm1770
        %v1773 = vunpack.c.l.b16 %v1679
        %v1774 = vunpack.c.h.b16 %v1679
        %v1775 = vunpack.c.l.b16 0
        %v1776 = vunpack.c.h.b16 0
        %vm1777 = vcmp.ne.s32.totalorder %v1773, %v1775
        %vm1778 = vcmp.ne.s32.totalorder %v1774, %v1776
        %vm1779 = vmpackc.low %vm1778, %vm1777
        %v1780 = vunpack.c.l.b16 %v1680
        %v1781 = vunpack.c.h.b16 %v1680
        %v1782 = vunpack.c.l.b16 0
        %v1783 = vunpack.c.h.b16 0
        %vm1784 = vcmp.ne.s32.totalorder %v1780, %v1782
        %vm1785 = vcmp.ne.s32.totalorder %v1781, %v1783
        %vm1786 = vmpackc.low %vm1785, %vm1784
        %v1787 = vunpack.c.l.b16 %v1681
        %v1788 = vunpack.c.h.b16 %v1681
        %v1789 = vunpack.c.l.b16 0
        %v1790 = vunpack.c.h.b16 0
        %vm1791 = vcmp.ne.s32.totalorder %v1787, %v1789
        %vm1792 = vcmp.ne.s32.totalorder %v1788, %v1790
        %vm1793 = vmpackc.low %vm1792, %vm1791
        %v1794 = vsel %vm1688, %v1505, 0
        %v1795 = vsel %vm1695, %v1442, 0
        %v1796 = vsel %vm1702, %v1445, 0
        %v1797 = vsel %vm1709, %v1448, 0
        %v1798 = vsel %vm1716, %v1451, 0
        %v1799 = vsel %vm1723, %v1454, 0
        %v1800 = vsel %vm1730, %v1457, 0
        %v1801 = vsel %vm1737, %v1460, 0
        %v1802 = vsel %vm1744, %v1463, 0
        %v1803 = vsel %vm1751, %v1466, 0
        %v1804 = vsel %vm1758, %v1469, 0
        %v1805 = vsel %vm1765, %v1472, 0
        %v1806 = vsel %vm1772, %v1475, 0
        %v1807 = vsel %vm1779, %v1478, 0
        %v1808 = vsel %vm1786, %v1481, 0
        %v1809 = vsel %vm1793, %v1486, 0
        %v1810 = vshrl.u32 %v1024, 16
        %v1812 = vrot.slane %v1810, 7
        %v1813 = vor.u32 %v1812, %v1483
        %v1814 = vsel %vm1026, %v1126, %v1813
        %vm1816 = vmpackc.low %vm1181, %vm1181
        %vm1817 = vmpackc.low %vm1182, %vm1182
        %v1818 = vsel %vm1816, 65537, 0
        %v1819 = vsel %vm1817, 65537, 0
        %v1820 = vunpack.c.l.b16 %v1818
        %v1821 = vunpack.c.l.b16 %v1819
        %v1822 = vpack.c.b16 %v1821, %v1820
        %v1823 = vunpack.c.l.b16 %v1822
        %v1824 = vunpack.c.h.b16 %v1822
        %v1825 = vunpack.c.l.b16 0
        %v1826 = vunpack.c.h.b16 0
        %vm1827 = vcmp.ne.s32.totalorder %v1823, %v1825
        %vm1828 = vcmp.ne.s32.totalorder %v1824, %v1826
        %vm1829 = vmpackc.low %vm1828, %vm1827
        %v1830 = vsel %vm1829, %v1148, 0
        %v1831 = vsel %vm1324, %v1039, 0
        %v1832 = vsel %vm1331, %v1046, 0
        %v1833 = vsel %vm1338, %v1053, 0
        %v1834 = vsel %vm1345, %v1060, 0
        %v1835 = vsel %vm1352, %v1067, 0
        %v1836 = vsel %vm1359, %v1074, 0
        %v1837 = vsel %vm1366, %v1081, 0
        %v1838 = vsel %vm1373, %v1088, 0
        %v1839 = vsel %vm1380, %v1095, 0
        %v1840 = vsel %vm1387, %v1102, 0
        %v1841 = vsel %vm1394, %v1109, 0
        %v1842 = vsel %vm1401, %v1116, 0
        %v1843 = vsel %vm1408, %v1123, 0
        %v1844 = vsel %vm1415, %v1130, 0
        %v1845 = vsel %vm1422, %v1814, 0
        %v1846 = vor.u32 %v1810, %v1485
        %v1848 = vsel %vm1504, %v1846, 0
        %v1849 = vsel %vm1688, %v1442, 0
        %v1850 = vsel %vm1695, %v1445, 0
        %v1851 = vsel %vm1702, %v1448, 0
        %v1852 = vsel %vm1709, %v1451, 0
        %v1853 = vsel %vm1716, %v1454, 0
        %v1854 = vsel %vm1723, %v1457, 0
        %v1855 = vsel %vm1730, %v1460, 0
        %v1856 = vsel %vm1737, %v1463, 0
        %v1857 = vsel %vm1744, %v1466, 0
        %v1858 = vsel %vm1751, %v1469, 0
        %v1859 = vsel %vm1758, %v1472, 0
        %v1860 = vsel %vm1765, %v1475, 0
        %v1861 = vsel %vm1772, %v1478, 0
        %v1862 = vsel %vm1779, %v1481, 0
        %v1863 = vsel %vm1786, %v1486, 0
        %v1864 = vsel %vm1793, %v1848, 0
        %v1866 = vsel %vm1147, %v1812, 0
        %v1867 = vsel %vm1829, %v1039, 0
        %v1868 = vsel %vm1324, %v1046, 0
        %v1869 = vsel %vm1331, %v1053, 0
        %v1870 = vsel %vm1338, %v1060, 0
        %v1871 = vsel %vm1345, %v1067, 0
        %v1872 = vsel %vm1352, %v1074, 0
        %v1873 = vsel %vm1359, %v1081, 0
        %v1874 = vsel %vm1366, %v1088, 0
        %v1875 = vsel %vm1373, %v1095, 0
        %v1876 = vsel %vm1380, %v1102, 0
        %v1877 = vsel %vm1387, %v1109, 0
        %v1878 = vsel %vm1394, %v1116, 0
        %v1879 = vsel %vm1401, %v1123, 0
        %v1880 = vsel %vm1408, %v1130, 0
        %v1881 = vsel %vm1415, %v1814, 0
        %v1882 = vsel %vm1422, %v1866, 0
        %v1883 = vsel %vm1688, %v1445, 0
        %v1884 = vsel %vm1695, %v1448, 0
        %v1885 = vsel %vm1702, %v1451, 0
        %v1886 = vsel %vm1709, %v1454, 0
        %v1887 = vsel %vm1716, %v1457, 0
        %v1888 = vsel %vm1723, %v1460, 0
        %v1889 = vsel %vm1730, %v1463, 0
        %v1890 = vsel %vm1737, %v1466, 0
        %v1891 = vsel %vm1744, %v1469, 0
        %v1892 = vsel %vm1751, %v1472, 0
        %v1893 = vsel %vm1758, %v1475, 0
        %v1894 = vsel %vm1765, %v1478, 0
        %v1895 = vsel %vm1772, %v1481, 0
        %v1896 = vsel %vm1779, %v1486, 0
        %v1897 = vsel %vm1786, %v1848, 0
        %v1898 = vld [vmem:[#allocation2] sm:$0xf]
        %v1899 = vld [vmem:[#allocation2 + $0x4] sm:$0xf]
        %v1900 = vld [vmem:[#allocation2 + $0x8] sm:$0xf]
        %v1901 = vld [vmem:[#allocation2 + $0xc] sm:$0xf]
        %v1902 = vld [vmem:[#allocation2 + $0x10] sm:$0xf]
        %v1903 = vld [vmem:[#allocation2 + $0x14] sm:$0xf]
        %v1904 = vld [vmem:[#allocation2 + $0x18] sm:$0xf]
        %v1905 = vld [vmem:[#allocation2 + $0x1c] sm:$0xf]
        %v1906 = vld [vmem:[#allocation2 + $0x20] sm:$0xf]
        %v1907 = vld [vmem:[#allocation2 + $0x24] sm:$0xf]
        %v1908 = vld [vmem:[#allocation2 + $0x28] sm:$0xf]
        %v1909 = vld [vmem:[#allocation2 + $0x2c] sm:$0xf]
        %v1910 = vld [vmem:[#allocation2 + $0x30] sm:$0xf]
        %v1911 = vld [vmem:[#allocation2 + $0x34] sm:$0xf]
        %v1912 = vld [vmem:[#allocation2 + $0x38] sm:$0xf]
        %v1913 = vld [vmem:[#allocation2 + $0x3c] sm:$0xf]
        %v1914 = vld [vmem:[#allocation2 + $0x40] sm:$0xf]
        %v1915 = vld [vmem:[#allocation2 + $0x44] sm:$0xf]
        %v1916 = vld [vmem:[#allocation2 + $0x48] sm:$0xf]
        %v1917 = vld [vmem:[#allocation2 + $0x4c] sm:$0xf]
        %v1918 = vld [vmem:[#allocation2 + $0x50] sm:$0xf]
        %v1919 = vld [vmem:[#allocation2 + $0x54] sm:$0xf]
        %v1920 = vld [vmem:[#allocation2 + $0x58] sm:$0xf]
        %v1921 = vld [vmem:[#allocation2 + $0x5c] sm:$0xf]
        %v1922 = vld [vmem:[#allocation2 + $0x60] sm:$0xf]
        %v1923 = vld [vmem:[#allocation2 + $0x64] sm:$0xf]
        %v1924 = vld [vmem:[#allocation2 + $0x68] sm:$0xf]
        %v1925 = vld [vmem:[#allocation2 + $0x6c] sm:$0xf]
        %v1926 = vld [vmem:[#allocation2 + $0x70] sm:$0xf]
        %v1927 = vld [vmem:[#allocation2 + $0x74] sm:$0xf]
        %v1928 = vld [vmem:[#allocation2 + $0x78] sm:$0xf]
        %v1929 = vld [vmem:[#allocation2 + $0x7c] sm:$0xf]
        %v1930 = vld [vmem:[#allocation2 + $0x80] sm:$0xf]
        %v1931 = vld [vmem:[#allocation2 + $0x84] sm:$0xf]
        %v1932 = vld [vmem:[#allocation2 + $0x88] sm:$0xf]
        %v1933 = vld [vmem:[#allocation2 + $0x8c] sm:$0xf]
        %v1934 = vld [vmem:[#allocation2 + $0x90] sm:$0xf]
        %v1935 = vld [vmem:[#allocation2 + $0x94] sm:$0xf]
        %v1936 = vld [vmem:[#allocation2 + $0x98] sm:$0xf]
        %v1937 = vld [vmem:[#allocation2 + $0x9c] sm:$0xf]
        %v1938 = vld [vmem:[#allocation2 + $0xa0] sm:$0xf]
        %v1939 = vld [vmem:[#allocation2 + $0xa4] sm:$0xf]
        %v1940 = vld [vmem:[#allocation2 + $0xa8] sm:$0xf]
        %v1941 = vld [vmem:[#allocation2 + $0xac] sm:$0xf]
        %v1942 = vld [vmem:[#allocation2 + $0xb0] sm:$0xf]
        %v1943 = vld [vmem:[#allocation2 + $0xb4] sm:$0xf]
        %v1944 = vld [vmem:[#allocation2 + $0xb8] sm:$0xf]
        %v1945 = vld [vmem:[#allocation2 + $0xbc] sm:$0xf]
        %v1946 = vld [vmem:[#allocation2 + $0xc0] sm:$0xf]
        %v1947 = vld [vmem:[#allocation2 + $0xc4] sm:$0xf]
        %v1948 = vld [vmem:[#allocation2 + $0xc8] sm:$0xf]
        %v1949 = vld [vmem:[#allocation2 + $0xcc] sm:$0xf]
        %v1950 = vld [vmem:[#allocation2 + $0xd0] sm:$0xf]
        %v1951 = vld [vmem:[#allocation2 + $0xd4] sm:$0xf]
        %v1952 = vld [vmem:[#allocation2 + $0xd8] sm:$0xf]
        %v1953 = vld [vmem:[#allocation2 + $0xdc] sm:$0xf]
        %v1954 = vld [vmem:[#allocation2 + $0xe0] sm:$0xf]
        %v1955 = vld [vmem:[#allocation2 + $0xe4] sm:$0xf]
        %v1956 = vld [vmem:[#allocation2 + $0xe8] sm:$0xf]
        %v1957 = vld [vmem:[#allocation2 + $0xec] sm:$0xf]
        %v1958 = vld [vmem:[#allocation2 + $0xf0] sm:$0xf]
        %v1959 = vld [vmem:[#allocation2 + $0xf4] sm:$0xf]
        %v1960 = vld [vmem:[#allocation2 + $0xf8] sm:$0xf]
        %v1961 = vld [vmem:[#allocation2 + $0xfc] sm:$0xf]
        %v1962 = vld [vmem:[#allocation2 + $0x100] sm:$0xf]
        %v1963 = vld [vmem:[#allocation2 + $0x104] sm:$0xf]
        %v1964 = vld [vmem:[#allocation2 + $0x108] sm:$0xf]
        %v1965 = vld [vmem:[#allocation2 + $0x10c] sm:$0xf]
        %v1966 = vld [vmem:[#allocation2 + $0x110] sm:$0xf]
        %v1967 = vld [vmem:[#allocation2 + $0x114] sm:$0xf]
        %v1968 = vld [vmem:[#allocation2 + $0x118] sm:$0xf]
        %v1969 = vld [vmem:[#allocation2 + $0x11c] sm:$0xf]
        %v1970 = vld [vmem:[#allocation2 + $0x120] sm:$0xf]
        %v1971 = vld [vmem:[#allocation2 + $0x124] sm:$0xf]
        %v1972 = vld [vmem:[#allocation2 + $0x128] sm:$0xf]
        %v1973 = vld [vmem:[#allocation2 + $0x12c] sm:$0xf]
        %v1974 = vld [vmem:[#allocation2 + $0x130] sm:$0xf]
        %v1975 = vld [vmem:[#allocation2 + $0x134] sm:$0xf]
        %v1976 = vld [vmem:[#allocation2 + $0x138] sm:$0xf]
        %v1977 = vld [vmem:[#allocation2 + $0x13c] sm:$0xf]
        %v1978 = vld [vmem:[#allocation2 + $0x140] sm:$0xf]
        %v1979 = vld [vmem:[#allocation2 + $0x144] sm:$0xf]
        %v1980 = vld [vmem:[#allocation2 + $0x148] sm:$0xf]
        %v1981 = vld [vmem:[#allocation2 + $0x14c] sm:$0xf]
        %v1982 = vld [vmem:[#allocation2 + $0x150] sm:$0xf]
        %v1983 = vld [vmem:[#allocation2 + $0x154] sm:$0xf]
        %v1984 = vld [vmem:[#allocation2 + $0x158] sm:$0xf]
        %v1985 = vld [vmem:[#allocation2 + $0x15c] sm:$0xf]
        %v1986 = vld [vmem:[#allocation2 + $0x160] sm:$0xf]
        %v1987 = vld [vmem:[#allocation2 + $0x164] sm:$0xf]
        %v1988 = vld [vmem:[#allocation2 + $0x168] sm:$0xf]
        %v1989 = vld [vmem:[#allocation2 + $0x16c] sm:$0xf]
        %v1990 = vld [vmem:[#allocation2 + $0x170] sm:$0xf]
        %v1991 = vld [vmem:[#allocation2 + $0x174] sm:$0xf]
        %v1992 = vld [vmem:[#allocation2 + $0x178] sm:$0xf]
        %v1993 = vld [vmem:[#allocation2 + $0x17c] sm:$0xf]
        %v1994 = vld [vmem:[#allocation2 + $0x180] sm:$0xf]
        %v1995 = vld [vmem:[#allocation2 + $0x184] sm:$0xf]
        %v1996 = vld [vmem:[#allocation2 + $0x188] sm:$0xf]
        %v1997 = vld [vmem:[#allocation2 + $0x18c] sm:$0xf]
        %v1998 = vld [vmem:[#allocation2 + $0x190] sm:$0xf]
        %v1999 = vld [vmem:[#allocation2 + $0x194] sm:$0xf]
        %v2000 = vld [vmem:[#allocation2 + $0x198] sm:$0xf]
        %v2001 = vld [vmem:[#allocation2 + $0x19c] sm:$0xf]
        %v2002 = vld [vmem:[#allocation2 + $0x1a0] sm:$0xf]
        %v2003 = vld [vmem:[#allocation2 + $0x1a4] sm:$0xf]
        %v2004 = vld [vmem:[#allocation2 + $0x1a8] sm:$0xf]
        %v2005 = vld [vmem:[#allocation2 + $0x1ac] sm:$0xf]
        %v2006 = vld [vmem:[#allocation2 + $0x1b0] sm:$0xf]
        %v2007 = vld [vmem:[#allocation2 + $0x1b4] sm:$0xf]
        %v2008 = vld [vmem:[#allocation2 + $0x1b8] sm:$0xf]
        %v2009 = vld [vmem:[#allocation2 + $0x1bc] sm:$0xf]
        %v2010 = vld [vmem:[#allocation2 + $0x1c0] sm:$0xf]
        %v2011 = vld [vmem:[#allocation2 + $0x1c4] sm:$0xf]
        %v2012 = vld [vmem:[#allocation2 + $0x1c8] sm:$0xf]
        %v2013 = vld [vmem:[#allocation2 + $0x1cc] sm:$0xf]
        %v2014 = vld [vmem:[#allocation2 + $0x1d0] sm:$0xf]
        %v2015 = vld [vmem:[#allocation2 + $0x1d4] sm:$0xf]
        %v2016 = vld [vmem:[#allocation2 + $0x1d8] sm:$0xf]
        %v2017 = vld [vmem:[#allocation2 + $0x1dc] sm:$0xf]
        %v2018 = vld [vmem:[#allocation2 + $0x1e0] sm:$0xf]
        %v2019 = vld [vmem:[#allocation2 + $0x1e4] sm:$0xf]
        %v2020 = vld [vmem:[#allocation2 + $0x1e8] sm:$0xf]
        %v2021 = vld [vmem:[#allocation2 + $0x1ec] sm:$0xf]
        %v2022 = vld [vmem:[#allocation2 + $0x1f0] sm:$0xf]
        %v2023 = vld [vmem:[#allocation2 + $0x1f4] sm:$0xf]
        %v2024 = vld [vmem:[#allocation2 + $0x1f8] sm:$0xf]
        %v2025 = vld [vmem:[#allocation2 + $0x1fc] sm:$0xf]
        %v2026 = vld [vmem:[#allocation2 + $0x200] sm:$0xf]
        %v2027 = vld [vmem:[#allocation2 + $0x204] sm:$0xf]
        %v2028 = vld [vmem:[#allocation2 + $0x208] sm:$0xf]
        %v2029 = vld [vmem:[#allocation2 + $0x20c] sm:$0xf]
        %v2030 = vld [vmem:[#allocation2 + $0x210] sm:$0xf]
        %v2031 = vld [vmem:[#allocation2 + $0x214] sm:$0xf]
        %v2032 = vld [vmem:[#allocation2 + $0x218] sm:$0xf]
        %v2033 = vld [vmem:[#allocation2 + $0x21c] sm:$0xf]
        %v2034 = vld [vmem:[#allocation2 + $0x220] sm:$0xf]
        %v2035 = vld [vmem:[#allocation2 + $0x224] sm:$0xf]
        %v2036 = vld [vmem:[#allocation2 + $0x228] sm:$0xf]
        %v2037 = vld [vmem:[#allocation2 + $0x22c] sm:$0xf]
        %v2038 = vld [vmem:[#allocation2 + $0x230] sm:$0xf]
        %v2039 = vld [vmem:[#allocation2 + $0x234] sm:$0xf]
        %v2040 = vld [vmem:[#allocation2 + $0x238] sm:$0xf]
        %v2041 = vld [vmem:[#allocation2 + $0x23c] sm:$0xf]
        %v2042 = vld [vmem:[%s2] sm:$0x1]
        %v2044 = vperm.slane %v2042, 0
        %v2190 = vunpack.c.l.b16 %v1898
        %v2191 = vunpack.c.l.b16 %v1899
        %v2192 = vunpack.c.l.b16 %v1900
        %v2193 = vunpack.c.l.b16 %v1901
        %v2194 = vunpack.c.l.b16 %v1902
        %v2195 = vunpack.c.l.b16 %v1903
        %v2196 = vunpack.c.l.b16 %v1904
        %v2197 = vunpack.c.l.b16 %v1905
        %v2198 = vunpack.c.l.b16 %v1906
        %v2199 = vunpack.c.l.b16 %v1907
        %v2200 = vunpack.c.l.b16 %v1908
        %v2201 = vunpack.c.l.b16 %v1909
        %v2202 = vunpack.c.l.b16 %v1910
        %v2203 = vunpack.c.l.b16 %v1911
        %v2204 = vunpack.c.l.b16 %v1912
        %v2205 = vunpack.c.l.b16 %v1913
        %v2206 = vunpack.c.l.b16 %v1914
        %v2207 = vunpack.c.l.b16 %v1915
        %v2208 = vunpack.c.l.b16 %v1916
        %v2209 = vunpack.c.l.b16 %v1917
        %v2210 = vunpack.c.l.b16 %v1918
        %v2211 = vunpack.c.l.b16 %v1919
        %v2212 = vunpack.c.l.b16 %v1920
        %v2213 = vunpack.c.l.b16 %v1921
        %v2214 = vunpack.c.l.b16 %v1922
        %v2215 = vunpack.c.l.b16 %v1923
        %v2216 = vunpack.c.l.b16 %v1924
        %v2217 = vunpack.c.l.b16 %v1925
        %v2218 = vunpack.c.l.b16 %v1926
        %v2219 = vunpack.c.l.b16 %v1927
        %v2220 = vunpack.c.l.b16 %v1928
        %v2221 = vunpack.c.l.b16 %v1929
        %v2222 = vunpack.c.l.b16 %v1930
        %v2223 = vunpack.c.l.b16 %v1931
        %v2224 = vunpack.c.l.b16 %v1932
        %v2225 = vunpack.c.l.b16 %v1933
        %v2226 = vunpack.c.l.b16 %v1934
        %v2227 = vunpack.c.l.b16 %v1935
        %v2228 = vunpack.c.l.b16 %v1936
        %v2229 = vunpack.c.l.b16 %v1937
        %v2230 = vunpack.c.l.b16 %v1938
        %v2231 = vunpack.c.l.b16 %v1939
        %v2232 = vunpack.c.l.b16 %v1940
        %v2233 = vunpack.c.l.b16 %v1941
        %v2234 = vunpack.c.l.b16 %v1942
        %v2235 = vunpack.c.l.b16 %v1943
        %v2236 = vunpack.c.l.b16 %v1944
        %v2237 = vunpack.c.l.b16 %v1945
        %v2238 = vunpack.c.l.b16 %v1946
        %v2239 = vunpack.c.l.b16 %v1947
        %v2240 = vunpack.c.l.b16 %v1948
        %v2241 = vunpack.c.l.b16 %v1949
        %v2242 = vunpack.c.l.b16 %v1950
        %v2243 = vunpack.c.l.b16 %v1951
        %v2244 = vunpack.c.l.b16 %v1952
        %v2245 = vunpack.c.l.b16 %v1953
        %v2246 = vunpack.c.l.b16 %v1954
        %v2247 = vunpack.c.l.b16 %v1955
        %v2248 = vunpack.c.l.b16 %v1956
        %v2249 = vunpack.c.l.b16 %v1957
        %v2250 = vunpack.c.l.b16 %v1958
        %v2251 = vunpack.c.l.b16 %v1959
        %v2252 = vunpack.c.l.b16 %v1960
        %v2253 = vunpack.c.l.b16 %v1961
        %v2254 = vunpack.c.l.b16 %v1962
        %v2255 = vunpack.c.l.b16 %v1963
        %v2256 = vunpack.c.l.b16 %v1964
        %v2257 = vunpack.c.l.b16 %v1965
        %v2258 = vunpack.c.l.b16 %v1966
        %v2259 = vunpack.c.l.b16 %v1967
        %v2260 = vunpack.c.l.b16 %v1968
        %v2261 = vunpack.c.l.b16 %v1969
        %v2262 = vunpack.c.l.b16 %v1970
        %v2263 = vunpack.c.l.b16 %v1971
        %v2264 = vunpack.c.l.b16 %v1972
        %v2265 = vunpack.c.l.b16 %v1973
        %v2266 = vunpack.c.l.b16 %v1974
        %v2267 = vunpack.c.l.b16 %v1975
        %v2268 = vunpack.c.l.b16 %v1976
        %v2269 = vunpack.c.l.b16 %v1977
        %v2270 = vunpack.c.l.b16 %v1978
        %v2271 = vunpack.c.l.b16 %v1979
        %v2272 = vunpack.c.l.b16 %v1980
        %v2273 = vunpack.c.l.b16 %v1981
        %v2274 = vunpack.c.l.b16 %v1982
        %v2275 = vunpack.c.l.b16 %v1983
        %v2276 = vunpack.c.l.b16 %v1984
        %v2277 = vunpack.c.l.b16 %v1985
        %v2278 = vunpack.c.l.b16 %v1986
        %v2279 = vunpack.c.l.b16 %v1987
        %v2280 = vunpack.c.l.b16 %v1988
        %v2281 = vunpack.c.l.b16 %v1989
        %v2282 = vunpack.c.l.b16 %v1990
        %v2283 = vunpack.c.l.b16 %v1991
        %v2284 = vunpack.c.l.b16 %v1992
        %v2285 = vunpack.c.l.b16 %v1993
        %v2286 = vunpack.c.l.b16 %v1994
        %v2287 = vunpack.c.l.b16 %v1995
        %v2288 = vunpack.c.l.b16 %v1996
        %v2289 = vunpack.c.l.b16 %v1997
        %v2290 = vunpack.c.l.b16 %v1998
        %v2291 = vunpack.c.l.b16 %v1999
        %v2292 = vunpack.c.l.b16 %v2000
        %v2293 = vunpack.c.l.b16 %v2001
        %v2294 = vunpack.c.l.b16 %v2002
        %v2295 = vunpack.c.l.b16 %v2003
        %v2296 = vunpack.c.l.b16 %v2004
        %v2297 = vunpack.c.l.b16 %v2005
        %v2298 = vunpack.c.l.b16 %v2006
        %v2299 = vunpack.c.l.b16 %v2007
        %v2300 = vunpack.c.l.b16 %v2008
        %v2301 = vunpack.c.l.b16 %v2009
        %v2302 = vunpack.c.l.b16 %v2010
        %v2303 = vunpack.c.l.b16 %v2011
        %v2304 = vunpack.c.l.b16 %v2012
        %v2305 = vunpack.c.l.b16 %v2013
        %v2306 = vunpack.c.l.b16 %v2014
        %v2307 = vunpack.c.l.b16 %v2015
        %v2308 = vunpack.c.l.b16 %v2016
        %v2309 = vunpack.c.l.b16 %v2017
        %v2310 = vunpack.c.l.b16 %v2018
        %v2311 = vunpack.c.l.b16 %v2019
        %v2312 = vunpack.c.l.b16 %v2020
        %v2313 = vunpack.c.l.b16 %v2021
        %v2314 = vunpack.c.l.b16 %v2022
        %v2315 = vunpack.c.l.b16 %v2023
        %v2316 = vunpack.c.l.b16 %v2024
        %v2317 = vunpack.c.l.b16 %v2025
        %v2318 = vunpack.c.l.b16 %v2026
        %v2319 = vunpack.c.l.b16 %v2027
        %v2320 = vunpack.c.l.b16 %v2028
        %v2321 = vunpack.c.l.b16 %v2029
        %v2322 = vunpack.c.l.b16 %v2030
        %v2323 = vunpack.c.l.b16 %v2031
        %v2324 = vunpack.c.l.b16 %v2032
        %v2325 = vunpack.c.l.b16 %v2033
        %v2326 = vunpack.c.l.b16 %v2034
        %v2327 = vunpack.c.l.b16 %v2035
        %v2328 = vunpack.c.l.b16 %v2036
        %v2329 = vunpack.c.l.b16 %v2037
        %v2330 = vunpack.c.l.b16 %v2038
        %v2331 = vunpack.c.l.b16 %v2039
        %v2332 = vunpack.c.l.b16 %v2040
        %v2333 = vunpack.c.l.b16 %v2041
        %v2334 = vpack.c.b16 %v2191, %v2190
        %v2335 = vpack.c.b16 %v2193, %v2192
        %v2336 = vpack.c.b16 %v2195, %v2194
        %v2337 = vpack.c.b16 %v2197, %v2196
        %v2338 = vpack.c.b16 %v2199, %v2198
        %v2339 = vpack.c.b16 %v2201, %v2200
        %v2340 = vpack.c.b16 %v2203, %v2202
        %v2341 = vpack.c.b16 %v2205, %v2204
        %v2342 = vpack.c.b16 %v2207, %v2206
        %v2343 = vpack.c.b16 %v2209, %v2208
        %v2344 = vpack.c.b16 %v2211, %v2210
        %v2345 = vpack.c.b16 %v2213, %v2212
        %v2346 = vpack.c.b16 %v2215, %v2214
        %v2347 = vpack.c.b16 %v2217, %v2216
        %v2348 = vpack.c.b16 %v2219, %v2218
        %v2349 = vpack.c.b16 %v2221, %v2220
        %v2350 = vpack.c.b16 %v2223, %v2222
        %v2351 = vpack.c.b16 %v2225, %v2224
        %v2352 = vpack.c.b16 %v2227, %v2226
        %v2353 = vpack.c.b16 %v2229, %v2228
        %v2354 = vpack.c.b16 %v2231, %v2230
        %v2355 = vpack.c.b16 %v2233, %v2232
        %v2356 = vpack.c.b16 %v2235, %v2234
        %v2357 = vpack.c.b16 %v2237, %v2236
        %v2358 = vpack.c.b16 %v2239, %v2238
        %v2359 = vpack.c.b16 %v2241, %v2240
        %v2360 = vpack.c.b16 %v2243, %v2242
        %v2361 = vpack.c.b16 %v2245, %v2244
        %v2362 = vpack.c.b16 %v2247, %v2246
        %v2363 = vpack.c.b16 %v2249, %v2248
        %v2364 = vpack.c.b16 %v2251, %v2250
        %v2365 = vpack.c.b16 %v2253, %v2252
        %v2366 = vpack.c.b16 %v2255, %v2254
        %v2367 = vpack.c.b16 %v2257, %v2256
        %v2368 = vpack.c.b16 %v2259, %v2258
        %v2369 = vpack.c.b16 %v2261, %v2260
        %v2370 = vpack.c.b16 %v2263, %v2262
        %v2371 = vpack.c.b16 %v2265, %v2264
        %v2372 = vpack.c.b16 %v2267, %v2266
        %v2373 = vpack.c.b16 %v2269, %v2268
        %v2374 = vpack.c.b16 %v2271, %v2270
        %v2375 = vpack.c.b16 %v2273, %v2272
        %v2376 = vpack.c.b16 %v2275, %v2274
        %v2377 = vpack.c.b16 %v2277, %v2276
        %v2378 = vpack.c.b16 %v2279, %v2278
        %v2379 = vpack.c.b16 %v2281, %v2280
        %v2380 = vpack.c.b16 %v2283, %v2282
        %v2381 = vpack.c.b16 %v2285, %v2284
        %v2382 = vpack.c.b16 %v2287, %v2286
        %v2383 = vpack.c.b16 %v2289, %v2288
        %v2384 = vpack.c.b16 %v2291, %v2290
        %v2385 = vpack.c.b16 %v2293, %v2292
        %v2386 = vpack.c.b16 %v2295, %v2294
        %v2387 = vpack.c.b16 %v2297, %v2296
        %v2388 = vpack.c.b16 %v2299, %v2298
        %v2389 = vpack.c.b16 %v2301, %v2300
        %v2390 = vpack.c.b16 %v2303, %v2302
        %v2391 = vpack.c.b16 %v2305, %v2304
        %v2392 = vpack.c.b16 %v2307, %v2306
        %v2393 = vpack.c.b16 %v2309, %v2308
        %v2394 = vpack.c.b16 %v2311, %v2310
        %v2395 = vpack.c.b16 %v2313, %v2312
        %v2396 = vpack.c.b16 %v2315, %v2314
        %v2397 = vpack.c.b16 %v2317, %v2316
        %v2398 = vpack.c.b16 %v2319, %v2318
        %v2399 = vpack.c.b16 %v2321, %v2320
        %v2400 = vpack.c.b16 %v2323, %v2322
        %v2401 = vpack.c.b16 %v2325, %v2324
        %v2402 = vpack.c.b16 %v2327, %v2326
        %v2403 = vpack.c.b16 %v2329, %v2328
        %v2404 = vpack.c.b16 %v2331, %v2330
        %v2405 = vpack.c.b16 %v2333, %v2332
        %2478 = vmatpush.bf16.msra.mxu0 %v2341
        %2479 = vmatpush.bf16.msra.mxu0 %v2340
        %2480 = vmatpush.bf16.msra.mxu0 %v2339
        %2481 = vmatpush.bf16.msra.mxu0 %v2338
        %2482 = vmatpush.bf16.msra.mxu0 %v2337
        %2483 = vmatpush.bf16.msra.mxu0 %v2336
        %2484 = vmatpush.bf16.msra.mxu0 %v2335
        %2485 = vmatpush.bf16.msra.mxu0 %v2334
        %2486 = vmatmul.bf16.gmra.mxu0 0
        %v2487 = vpop.f32.mrf.mxu0
        %v2488 = vadd.f32 %v2044, %v2487
        %v2489 = vpop.f32.mrf.mxu0
        %v2490 = vadd.f32 %v2044, %v2489
        %2491 = vmatmul.bf16.gmra.mxu0 %v1423
        %v2492 = vpop.f32.mrf.mxu0
        %v2493 = vadd.f32 %v2044, %v2492
        %v2494 = vpop.f32.mrf.mxu0
        %v2495 = vadd.f32 %v2044, %v2494
        %2496 = vmatmul.bf16.gmra.mxu0 %v1424
        %v2497 = vpop.f32.mrf.mxu0
        %v2498 = vadd.f32 %v2044, %v2497
        %v2499 = vpop.f32.mrf.mxu0
        %v2500 = vadd.f32 %v2044, %v2499
        %2501 = vmatmul.bf16.gmra.mxu0 %v1425
        %v2502 = vpop.f32.mrf.mxu0
        %v2503 = vadd.f32 %v2044, %v2502
        %v2504 = vpop.f32.mrf.mxu0
        %v2505 = vadd.f32 %v2044, %v2504
        %2506 = vmatmul.bf16.gmra.mxu0 %v1426
        %v2507 = vpop.f32.mrf.mxu0
        %v2508 = vadd.f32 %v2044, %v2507
        %v2509 = vpop.f32.mrf.mxu0
        %v2510 = vadd.f32 %v2044, %v2509
        %2511 = vmatmul.bf16.gmra.mxu0 %v1427
        %v2512 = vpop.f32.mrf.mxu0
        %v2513 = vadd.f32 %v2044, %v2512
        %v2514 = vpop.f32.mrf.mxu0
        %v2515 = vadd.f32 %v2044, %v2514
        %2516 = vmatmul.bf16.gmra.mxu0 %v1428
        %v2517 = vpop.f32.mrf.mxu0
        %v2518 = vadd.f32 %v2044, %v2517
        %v2519 = vpop.f32.mrf.mxu0
        %v2520 = vadd.f32 %v2044, %v2519
        %2521 = vmatmul.bf16.gmra.mxu0 %v1429
        %v2522 = vpop.f32.mrf.mxu0
        %v2523 = vadd.f32 %v2044, %v2522
        %v2524 = vpop.f32.mrf.mxu0
        %v2525 = vadd.f32 %v2044, %v2524
        %2526 = vmatmul.bf16.gmra.mxu0 %v1430
        %v2527 = vpop.f32.mrf.mxu0
        %v2528 = vadd.f32 %v2044, %v2527
        %v2529 = vpop.f32.mrf.mxu0
        %v2530 = vadd.f32 %v2044, %v2529
        %2531 = vmatmul.bf16.gmra.mxu0 %v1431
        %v2532 = vpop.f32.mrf.mxu0
        %v2533 = vadd.f32 %v2044, %v2532
        %v2534 = vpop.f32.mrf.mxu0
        %v2535 = vadd.f32 %v2044, %v2534
        %2536 = vmatmul.bf16.gmra.mxu0 %v1432
        %v2537 = vpop.f32.mrf.mxu0
        %v2538 = vadd.f32 %v2044, %v2537
        %v2539 = vpop.f32.mrf.mxu0
        %v2540 = vadd.f32 %v2044, %v2539
        %2541 = vmatmul.bf16.gmra.mxu0 %v1433
        %v2542 = vpop.f32.mrf.mxu0
        %v2543 = vadd.f32 %v2044, %v2542
        %v2544 = vpop.f32.mrf.mxu0
        %v2545 = vadd.f32 %v2044, %v2544
        %2546 = vmatmul.bf16.gmra.mxu0 %v1434
        %v2547 = vpop.f32.mrf.mxu0
        %v2548 = vadd.f32 %v2044, %v2547
        %v2549 = vpop.f32.mrf.mxu0
        %v2550 = vadd.f32 %v2044, %v2549
        %2551 = vmatmul.bf16.gmra.mxu0 %v1435
        %v2552 = vpop.f32.mrf.mxu0
        %v2553 = vadd.f32 %v2044, %v2552
        %v2554 = vpop.f32.mrf.mxu0
        %v2555 = vadd.f32 %v2044, %v2554
        %2556 = vmatmul.bf16.gmra.mxu0 %v1436
        %v2557 = vpop.f32.mrf.mxu0
        %v2558 = vadd.f32 %v2044, %v2557
        %v2559 = vpop.f32.mrf.mxu0
        %v2560 = vadd.f32 %v2044, %v2559
        %2561 = vmatmul.bf16.gmra.mxu0 %v1437
        %v2562 = vpop.f32.mrf.mxu0
        %v2563 = vadd.f32 %v2044, %v2562
        %v2564 = vpop.f32.mrf.mxu0
        %v2565 = vadd.f32 %v2044, %v2564
        %2566 = vdwg.mxu0
        %2567 = vmatpush.bf16.msra.mxu0 %v2349
        %2568 = vmatpush.bf16.msra.mxu0 %v2348
        %2569 = vmatpush.bf16.msra.mxu0 %v2347
        %2570 = vmatpush.bf16.msra.mxu0 %v2346
        %2571 = vmatpush.bf16.msra.mxu0 %v2345
        %2572 = vmatpush.bf16.msra.mxu0 %v2344
        %2573 = vmatpush.bf16.msra.mxu0 %v2343
        %2574 = vmatpush.bf16.msra.mxu0 %v2342
        %2575 = vmatmul.bf16.gmra.mxu0 0
        %v2576 = vpop.f32.mrf.mxu0
        %v2577 = vadd.f32 %v2488, %v2576
        %v2578 = vpop.f32.mrf.mxu0
        %v2579 = vadd.f32 %v2490, %v2578
        %2580 = vmatmul.bf16.gmra.mxu0 %v979
        %v2581 = vpop.f32.mrf.mxu0
        %v2582 = vadd.f32 %v2493, %v2581
        %v2583 = vpop.f32.mrf.mxu0
        %v2584 = vadd.f32 %v2495, %v2583
        %2585 = vmatmul.bf16.gmra.mxu0 %v982
        %v2586 = vpop.f32.mrf.mxu0
        %v2587 = vadd.f32 %v2498, %v2586
        %v2588 = vpop.f32.mrf.mxu0
        %v2589 = vadd.f32 %v2500, %v2588
        %2590 = vmatmul.bf16.gmra.mxu0 %v985
        %v2591 = vpop.f32.mrf.mxu0
        %v2592 = vadd.f32 %v2503, %v2591
        %v2593 = vpop.f32.mrf.mxu0
        %v2594 = vadd.f32 %v2505, %v2593
        %2595 = vmatmul.bf16.gmra.mxu0 %v988
        %v2596 = vpop.f32.mrf.mxu0
        %v2597 = vadd.f32 %v2508, %v2596
        %v2598 = vpop.f32.mrf.mxu0
        %v2599 = vadd.f32 %v2510, %v2598
        %2600 = vmatmul.bf16.gmra.mxu0 %v991
        %v2601 = vpop.f32.mrf.mxu0
        %v2602 = vadd.f32 %v2513, %v2601
        %v2603 = vpop.f32.mrf.mxu0
        %v2604 = vadd.f32 %v2515, %v2603
        %2605 = vmatmul.bf16.gmra.mxu0 %v994
        %v2606 = vpop.f32.mrf.mxu0
        %v2607 = vadd.f32 %v2518, %v2606
        %v2608 = vpop.f32.mrf.mxu0
        %v2609 = vadd.f32 %v2520, %v2608
        %2610 = vmatmul.bf16.gmra.mxu0 %v997
        %v2611 = vpop.f32.mrf.mxu0
        %v2612 = vadd.f32 %v2523, %v2611
        %v2613 = vpop.f32.mrf.mxu0
        %v2614 = vadd.f32 %v2525, %v2613
        %2615 = vmatmul.bf16.gmra.mxu0 %v1000
        %v2616 = vpop.f32.mrf.mxu0
        %v2617 = vadd.f32 %v2528, %v2616
        %v2618 = vpop.f32.mrf.mxu0
        %v2619 = vadd.f32 %v2530, %v2618
        %2620 = vmatmul.bf16.gmra.mxu0 %v1003
        %v2621 = vpop.f32.mrf.mxu0
        %v2622 = vadd.f32 %v2533, %v2621
        %v2623 = vpop.f32.mrf.mxu0
        %v2624 = vadd.f32 %v2535, %v2623
        %2625 = vmatmul.bf16.gmra.mxu0 %v1006
        %v2626 = vpop.f32.mrf.mxu0
        %v2627 = vadd.f32 %v2538, %v2626
        %v2628 = vpop.f32.mrf.mxu0
        %v2629 = vadd.f32 %v2540, %v2628
        %2630 = vmatmul.bf16.gmra.mxu0 %v1009
        %v2631 = vpop.f32.mrf.mxu0
        %v2632 = vadd.f32 %v2543, %v2631
        %v2633 = vpop.f32.mrf.mxu0
        %v2634 = vadd.f32 %v2545, %v2633
        %2635 = vmatmul.bf16.gmra.mxu0 %v1012
        %v2636 = vpop.f32.mrf.mxu0
        %v2637 = vadd.f32 %v2548, %v2636
        %v2638 = vpop.f32.mrf.mxu0
        %v2639 = vadd.f32 %v2550, %v2638
        %2640 = vmatmul.bf16.gmra.mxu0 %v1015
        %v2641 = vpop.f32.mrf.mxu0
        %v2642 = vadd.f32 %v2553, %v2641
        %v2643 = vpop.f32.mrf.mxu0
        %v2644 = vadd.f32 %v2555, %v2643
        %2645 = vmatmul.bf16.gmra.mxu0 %v1018
        %v2646 = vpop.f32.mrf.mxu0
        %v2647 = vadd.f32 %v2558, %v2646
        %v2648 = vpop.f32.mrf.mxu0
        %v2649 = vadd.f32 %v2560, %v2648
        %2650 = vmatmul.bf16.gmra.mxu0 %v1021
        %v2651 = vpop.f32.mrf.mxu0
        %v2652 = vadd.f32 %v2563, %v2651
        %v2653 = vpop.f32.mrf.mxu0
        %v2654 = vadd.f32 %v2565, %v2653
        %2655 = vdwg.mxu0
        %2656 = vmatpush.bf16.msra.mxu0 %v2357
        %2657 = vmatpush.bf16.msra.mxu0 %v2356
        %2658 = vmatpush.bf16.msra.mxu0 %v2355
        %2659 = vmatpush.bf16.msra.mxu0 %v2354
        %2660 = vmatpush.bf16.msra.mxu0 %v2353
        %2661 = vmatpush.bf16.msra.mxu0 %v2352
        %2662 = vmatpush.bf16.msra.mxu0 %v2351
        %2663 = vmatpush.bf16.msra.mxu0 %v2350
        %2664 = vmatmul.bf16.gmra.mxu0 %v1794
        %v2665 = vpop.f32.mrf.mxu0
        %v2666 = vadd.f32 %v2577, %v2665
        %v2667 = vpop.f32.mrf.mxu0
        %v2668 = vadd.f32 %v2579, %v2667
        %2669 = vmatmul.bf16.gmra.mxu0 %v1795
        %v2670 = vpop.f32.mrf.mxu0
        %v2671 = vadd.f32 %v2582, %v2670
        %v2672 = vpop.f32.mrf.mxu0
        %v2673 = vadd.f32 %v2584, %v2672
        %2674 = vmatmul.bf16.gmra.mxu0 %v1796
        %v2675 = vpop.f32.mrf.mxu0
        %v2676 = vadd.f32 %v2587, %v2675
        %v2677 = vpop.f32.mrf.mxu0
        %v2678 = vadd.f32 %v2589, %v2677
        %2679 = vmatmul.bf16.gmra.mxu0 %v1797
        %v2680 = vpop.f32.mrf.mxu0
        %v2681 = vadd.f32 %v2592, %v2680
        %v2682 = vpop.f32.mrf.mxu0
        %v2683 = vadd.f32 %v2594, %v2682
        %2684 = vmatmul.bf16.gmra.mxu0 %v1798
        %v2685 = vpop.f32.mrf.mxu0
        %v2686 = vadd.f32 %v2597, %v2685
        %v2687 = vpop.f32.mrf.mxu0
        %v2688 = vadd.f32 %v2599, %v2687
        %2689 = vmatmul.bf16.gmra.mxu0 %v1799
        %v2690 = vpop.f32.mrf.mxu0
        %v2691 = vadd.f32 %v2602, %v2690
        %v2692 = vpop.f32.mrf.mxu0
        %v2693 = vadd.f32 %v2604, %v2692
        %2694 = vmatmul.bf16.gmra.mxu0 %v1800
        %v2695 = vpop.f32.mrf.mxu0
        %v2696 = vadd.f32 %v2607, %v2695
        %v2697 = vpop.f32.mrf.mxu0
        %v2698 = vadd.f32 %v2609, %v2697
        %2699 = vmatmul.bf16.gmra.mxu0 %v1801
        %v2700 = vpop.f32.mrf.mxu0
        %v2701 = vadd.f32 %v2612, %v2700
        %v2702 = vpop.f32.mrf.mxu0
        %v2703 = vadd.f32 %v2614, %v2702
        %2704 = vmatmul.bf16.gmra.mxu0 %v1802
        %v2705 = vpop.f32.mrf.mxu0
        %v2706 = vadd.f32 %v2617, %v2705
        %v2707 = vpop.f32.mrf.mxu0
        %v2708 = vadd.f32 %v2619, %v2707
        %2709 = vmatmul.bf16.gmra.mxu0 %v1803
        %v2710 = vpop.f32.mrf.mxu0
        %v2711 = vadd.f32 %v2622, %v2710
        %v2712 = vpop.f32.mrf.mxu0
        %v2713 = vadd.f32 %v2624, %v2712
        %2714 = vmatmul.bf16.gmra.mxu0 %v1804
        %v2715 = vpop.f32.mrf.mxu0
        %v2716 = vadd.f32 %v2627, %v2715
        %v2717 = vpop.f32.mrf.mxu0
        %v2718 = vadd.f32 %v2629, %v2717
        %2719 = vmatmul.bf16.gmra.mxu0 %v1805
        %v2720 = vpop.f32.mrf.mxu0
        %v2721 = vadd.f32 %v2632, %v2720
        %v2722 = vpop.f32.mrf.mxu0
        %v2723 = vadd.f32 %v2634, %v2722
        %2724 = vmatmul.bf16.gmra.mxu0 %v1806
        %v2725 = vpop.f32.mrf.mxu0
        %v2726 = vadd.f32 %v2637, %v2725
        %v2727 = vpop.f32.mrf.mxu0
        %v2728 = vadd.f32 %v2639, %v2727
        %2729 = vmatmul.bf16.gmra.mxu0 %v1807
        %v2730 = vpop.f32.mrf.mxu0
        %v2731 = vadd.f32 %v2642, %v2730
        %v2732 = vpop.f32.mrf.mxu0
        %v2733 = vadd.f32 %v2644, %v2732
        %2734 = vmatmul.bf16.gmra.mxu0 %v1808
        %v2735 = vpop.f32.mrf.mxu0
        %v2736 = vadd.f32 %v2647, %v2735
        %v2737 = vpop.f32.mrf.mxu0
        %v2738 = vadd.f32 %v2649, %v2737
        %2739 = vmatmul.bf16.gmra.mxu0 %v1809
        %v2740 = vpop.f32.mrf.mxu0
        %v2741 = vadd.f32 %v2652, %v2740
        %v2742 = vpop.f32.mrf.mxu0
        %v2743 = vadd.f32 %v2654, %v2742
        %2744 = vdwg.mxu0
        %2745 = vmatpush.bf16.msra.mxu0 %v2365
        %2746 = vmatpush.bf16.msra.mxu0 %v2364
        %2747 = vmatpush.bf16.msra.mxu0 %v2363
        %2748 = vmatpush.bf16.msra.mxu0 %v2362
        %2749 = vmatpush.bf16.msra.mxu0 %v2361
        %2750 = vmatpush.bf16.msra.mxu0 %v2360
        %2751 = vmatpush.bf16.msra.mxu0 %v2359
        %2752 = vmatpush.bf16.msra.mxu0 %v2358
        %2753 = vmatmul.bf16.gmra.mxu0 %v1830
        %v2754 = vpop.f32.mrf.mxu0
        %v2755 = vadd.f32 %v2666, %v2754
        %v2756 = vpop.f32.mrf.mxu0
        %v2757 = vadd.f32 %v2668, %v2756
        %2758 = vmatmul.bf16.gmra.mxu0 %v1831
        %v2759 = vpop.f32.mrf.mxu0
        %v2760 = vadd.f32 %v2671, %v2759
        %v2761 = vpop.f32.mrf.mxu0
        %v2762 = vadd.f32 %v2673, %v2761
        %2763 = vmatmul.bf16.gmra.mxu0 %v1832
        %v2764 = vpop.f32.mrf.mxu0
        %v2765 = vadd.f32 %v2676, %v2764
        %v2766 = vpop.f32.mrf.mxu0
        %v2767 = vadd.f32 %v2678, %v2766
        %2768 = vmatmul.bf16.gmra.mxu0 %v1833
        %v2769 = vpop.f32.mrf.mxu0
        %v2770 = vadd.f32 %v2681, %v2769
        %v2771 = vpop.f32.mrf.mxu0
        %v2772 = vadd.f32 %v2683, %v2771
        %2773 = vmatmul.bf16.gmra.mxu0 %v1834
        %v2774 = vpop.f32.mrf.mxu0
        %v2775 = vadd.f32 %v2686, %v2774
        %v2776 = vpop.f32.mrf.mxu0
        %v2777 = vadd.f32 %v2688, %v2776
        %2778 = vmatmul.bf16.gmra.mxu0 %v1835
        %v2779 = vpop.f32.mrf.mxu0
        %v2780 = vadd.f32 %v2691, %v2779
        %v2781 = vpop.f32.mrf.mxu0
        %v2782 = vadd.f32 %v2693, %v2781
        %2783 = vmatmul.bf16.gmra.mxu0 %v1836
        %v2784 = vpop.f32.mrf.mxu0
        %v2785 = vadd.f32 %v2696, %v2784
        %v2786 = vpop.f32.mrf.mxu0
        %v2787 = vadd.f32 %v2698, %v2786
        %2788 = vmatmul.bf16.gmra.mxu0 %v1837
        %v2789 = vpop.f32.mrf.mxu0
        %v2790 = vadd.f32 %v2701, %v2789
        %v2791 = vpop.f32.mrf.mxu0
        %v2792 = vadd.f32 %v2703, %v2791
        %2793 = vmatmul.bf16.gmra.mxu0 %v1838
        %v2794 = vpop.f32.mrf.mxu0
        %v2795 = vadd.f32 %v2706, %v2794
        %v2796 = vpop.f32.mrf.mxu0
        %v2797 = vadd.f32 %v2708, %v2796
        %2798 = vmatmul.bf16.gmra.mxu0 %v1839
        %v2799 = vpop.f32.mrf.mxu0
        %v2800 = vadd.f32 %v2711, %v2799
        %v2801 = vpop.f32.mrf.mxu0
        %v2802 = vadd.f32 %v2713, %v2801
        %2803 = vmatmul.bf16.gmra.mxu0 %v1840
        %v2804 = vpop.f32.mrf.mxu0
        %v2805 = vadd.f32 %v2716, %v2804
        %v2806 = vpop.f32.mrf.mxu0
        %v2807 = vadd.f32 %v2718, %v2806
        %2808 = vmatmul.bf16.gmra.mxu0 %v1841
        %v2809 = vpop.f32.mrf.mxu0
        %v2810 = vadd.f32 %v2721, %v2809
        %v2811 = vpop.f32.mrf.mxu0
        %v2812 = vadd.f32 %v2723, %v2811
        %2813 = vmatmul.bf16.gmra.mxu0 %v1842
        %v2814 = vpop.f32.mrf.mxu0
        %v2815 = vadd.f32 %v2726, %v2814
        %v2816 = vpop.f32.mrf.mxu0
        %v2817 = vadd.f32 %v2728, %v2816
        %2818 = vmatmul.bf16.gmra.mxu0 %v1843
        %v2819 = vpop.f32.mrf.mxu0
        %v2820 = vadd.f32 %v2731, %v2819
        %v2821 = vpop.f32.mrf.mxu0
        %v2822 = vadd.f32 %v2733, %v2821
        %2823 = vmatmul.bf16.gmra.mxu0 %v1844
        %v2824 = vpop.f32.mrf.mxu0
        %v2825 = vadd.f32 %v2736, %v2824
        %v2826 = vpop.f32.mrf.mxu0
        %v2827 = vadd.f32 %v2738, %v2826
        %2828 = vmatmul.bf16.gmra.mxu0 %v1845
        %v2829 = vpop.f32.mrf.mxu0
        %v2830 = vadd.f32 %v2741, %v2829
        %v2831 = vpop.f32.mrf.mxu0
        %v2832 = vadd.f32 %v2743, %v2831
        %2833 = vdwg.mxu0
        %2834 = vmatpush.bf16.msra.mxu0 %v2373
        %2835 = vmatpush.bf16.msra.mxu0 %v2372
        %2836 = vmatpush.bf16.msra.mxu0 %v2371
        %2837 = vmatpush.bf16.msra.mxu0 %v2370
        %2838 = vmatpush.bf16.msra.mxu0 %v2369
        %2839 = vmatpush.bf16.msra.mxu0 %v2368
        %2840 = vmatpush.bf16.msra.mxu0 %v2367
        %2841 = vmatpush.bf16.msra.mxu0 %v2366
        %2842 = vmatmul.bf16.gmra.mxu0 %v979
        %v2843 = vpop.f32.mrf.mxu0
        %v2844 = vadd.f32 %v2755, %v2843
        %v2845 = vpop.f32.mrf.mxu0
        %v2846 = vadd.f32 %v2757, %v2845
        %2847 = vmatmul.bf16.gmra.mxu0 %v982
        %v2848 = vpop.f32.mrf.mxu0
        %v2849 = vadd.f32 %v2760, %v2848
        %v2850 = vpop.f32.mrf.mxu0
        %v2851 = vadd.f32 %v2762, %v2850
        %2852 = vmatmul.bf16.gmra.mxu0 %v985
        %v2853 = vpop.f32.mrf.mxu0
        %v2854 = vadd.f32 %v2765, %v2853
        %v2855 = vpop.f32.mrf.mxu0
        %v2856 = vadd.f32 %v2767, %v2855
        %2857 = vmatmul.bf16.gmra.mxu0 %v988
        %v2858 = vpop.f32.mrf.mxu0
        %v2859 = vadd.f32 %v2770, %v2858
        %v2860 = vpop.f32.mrf.mxu0
        %v2861 = vadd.f32 %v2772, %v2860
        %2862 = vmatmul.bf16.gmra.mxu0 %v991
        %v2863 = vpop.f32.mrf.mxu0
        %v2864 = vadd.f32 %v2775, %v2863
        %v2865 = vpop.f32.mrf.mxu0
        %v2866 = vadd.f32 %v2777, %v2865
        %2867 = vmatmul.bf16.gmra.mxu0 %v994
        %v2868 = vpop.f32.mrf.mxu0
        %v2869 = vadd.f32 %v2780, %v2868
        %v2870 = vpop.f32.mrf.mxu0
        %v2871 = vadd.f32 %v2782, %v2870
        %2872 = vmatmul.bf16.gmra.mxu0 %v997
        %v2873 = vpop.f32.mrf.mxu0
        %v2874 = vadd.f32 %v2785, %v2873
        %v2875 = vpop.f32.mrf.mxu0
        %v2876 = vadd.f32 %v2787, %v2875
        %2877 = vmatmul.bf16.gmra.mxu0 %v1000
        %v2878 = vpop.f32.mrf.mxu0
        %v2879 = vadd.f32 %v2790, %v2878
        %v2880 = vpop.f32.mrf.mxu0
        %v2881 = vadd.f32 %v2792, %v2880
        %2882 = vmatmul.bf16.gmra.mxu0 %v1003
        %v2883 = vpop.f32.mrf.mxu0
        %v2884 = vadd.f32 %v2795, %v2883
        %v2885 = vpop.f32.mrf.mxu0
        %v2886 = vadd.f32 %v2797, %v2885
        %2887 = vmatmul.bf16.gmra.mxu0 %v1006
        %v2888 = vpop.f32.mrf.mxu0
        %v2889 = vadd.f32 %v2800, %v2888
        %v2890 = vpop.f32.mrf.mxu0
        %v2891 = vadd.f32 %v2802, %v2890
        %2892 = vmatmul.bf16.gmra.mxu0 %v1009
        %v2893 = vpop.f32.mrf.mxu0
        %v2894 = vadd.f32 %v2805, %v2893
        %v2895 = vpop.f32.mrf.mxu0
        %v2896 = vadd.f32 %v2807, %v2895
        %2897 = vmatmul.bf16.gmra.mxu0 %v1012
        %v2898 = vpop.f32.mrf.mxu0
        %v2899 = vadd.f32 %v2810, %v2898
        %v2900 = vpop.f32.mrf.mxu0
        %v2901 = vadd.f32 %v2812, %v2900
        %2902 = vmatmul.bf16.gmra.mxu0 %v1015
        %v2903 = vpop.f32.mrf.mxu0
        %v2904 = vadd.f32 %v2815, %v2903
        %v2905 = vpop.f32.mrf.mxu0
        %v2906 = vadd.f32 %v2817, %v2905
        %2907 = vmatmul.bf16.gmra.mxu0 %v1018
        %v2908 = vpop.f32.mrf.mxu0
        %v2909 = vadd.f32 %v2820, %v2908
        %v2910 = vpop.f32.mrf.mxu0
        %v2911 = vadd.f32 %v2822, %v2910
        %2912 = vmatmul.bf16.gmra.mxu0 %v1021
        %v2913 = vpop.f32.mrf.mxu0
        %v2914 = vadd.f32 %v2825, %v2913
        %v2915 = vpop.f32.mrf.mxu0
        %v2916 = vadd.f32 %v2827, %v2915
        %2917 = vmatmul.bf16.gmra.mxu0 %v1024
        %v2918 = vpop.f32.mrf.mxu0
        %v2919 = vadd.f32 %v2830, %v2918
        %v2920 = vpop.f32.mrf.mxu0
        %v2921 = vadd.f32 %v2832, %v2920
        %2922 = vdwg.mxu0
        %2923 = vmatpush.bf16.msra.mxu0 %v2381
        %2924 = vmatpush.bf16.msra.mxu0 %v2380
        %2925 = vmatpush.bf16.msra.mxu0 %v2379
        %2926 = vmatpush.bf16.msra.mxu0 %v2378
        %2927 = vmatpush.bf16.msra.mxu0 %v2377
        %2928 = vmatpush.bf16.msra.mxu0 %v2376
        %2929 = vmatpush.bf16.msra.mxu0 %v2375
        %2930 = vmatpush.bf16.msra.mxu0 %v2374
        %2931 = vmatmul.bf16.gmra.mxu0 %v1849
        %v2932 = vpop.f32.mrf.mxu0
        %v2933 = vadd.f32 %v2844, %v2932
        %v2934 = vpop.f32.mrf.mxu0
        %v2935 = vadd.f32 %v2846, %v2934
        %2936 = vmatmul.bf16.gmra.mxu0 %v1850
        %v2937 = vpop.f32.mrf.mxu0
        %v2938 = vadd.f32 %v2849, %v2937
        %v2939 = vpop.f32.mrf.mxu0
        %v2940 = vadd.f32 %v2851, %v2939
        %2941 = vmatmul.bf16.gmra.mxu0 %v1851
        %v2942 = vpop.f32.mrf.mxu0
        %v2943 = vadd.f32 %v2854, %v2942
        %v2944 = vpop.f32.mrf.mxu0
        %v2945 = vadd.f32 %v2856, %v2944
        %2946 = vmatmul.bf16.gmra.mxu0 %v1852
        %v2947 = vpop.f32.mrf.mxu0
        %v2948 = vadd.f32 %v2859, %v2947
        %v2949 = vpop.f32.mrf.mxu0
        %v2950 = vadd.f32 %v2861, %v2949
        %2951 = vmatmul.bf16.gmra.mxu0 %v1853
        %v2952 = vpop.f32.mrf.mxu0
        %v2953 = vadd.f32 %v2864, %v2952
        %v2954 = vpop.f32.mrf.mxu0
        %v2955 = vadd.f32 %v2866, %v2954
        %2956 = vmatmul.bf16.gmra.mxu0 %v1854
        %v2957 = vpop.f32.mrf.mxu0
        %v2958 = vadd.f32 %v2869, %v2957
        %v2959 = vpop.f32.mrf.mxu0
        %v2960 = vadd.f32 %v2871, %v2959
        %2961 = vmatmul.bf16.gmra.mxu0 %v1855
        %v2962 = vpop.f32.mrf.mxu0
        %v2963 = vadd.f32 %v2874, %v2962
        %v2964 = vpop.f32.mrf.mxu0
        %v2965 = vadd.f32 %v2876, %v2964
        %2966 = vmatmul.bf16.gmra.mxu0 %v1856
        %v2967 = vpop.f32.mrf.mxu0
        %v2968 = vadd.f32 %v2879, %v2967
        %v2969 = vpop.f32.mrf.mxu0
        %v2970 = vadd.f32 %v2881, %v2969
        %2971 = vmatmul.bf16.gmra.mxu0 %v1857
        %v2972 = vpop.f32.mrf.mxu0
        %v2973 = vadd.f32 %v2884, %v2972
        %v2974 = vpop.f32.mrf.mxu0
        %v2975 = vadd.f32 %v2886, %v2974
        %2976 = vmatmul.bf16.gmra.mxu0 %v1858
        %v2977 = vpop.f32.mrf.mxu0
        %v2978 = vadd.f32 %v2889, %v2977
        %v2979 = vpop.f32.mrf.mxu0
        %v2980 = vadd.f32 %v2891, %v2979
        %2981 = vmatmul.bf16.gmra.mxu0 %v1859
        %v2982 = vpop.f32.mrf.mxu0
        %v2983 = vadd.f32 %v2894, %v2982
        %v2984 = vpop.f32.mrf.mxu0
        %v2985 = vadd.f32 %v2896, %v2984
        %2986 = vmatmul.bf16.gmra.mxu0 %v1860
        %v2987 = vpop.f32.mrf.mxu0
        %v2988 = vadd.f32 %v2899, %v2987
        %v2989 = vpop.f32.mrf.mxu0
        %v2990 = vadd.f32 %v2901, %v2989
        %2991 = vmatmul.bf16.gmra.mxu0 %v1861
        %v2992 = vpop.f32.mrf.mxu0
        %v2993 = vadd.f32 %v2904, %v2992
        %v2994 = vpop.f32.mrf.mxu0
        %v2995 = vadd.f32 %v2906, %v2994
        %2996 = vmatmul.bf16.gmra.mxu0 %v1862
        %v2997 = vpop.f32.mrf.mxu0
        %v2998 = vadd.f32 %v2909, %v2997
        %v2999 = vpop.f32.mrf.mxu0
        %v3000 = vadd.f32 %v2911, %v2999
        %3001 = vmatmul.bf16.gmra.mxu0 %v1863
        %v3002 = vpop.f32.mrf.mxu0
        %v3003 = vadd.f32 %v2914, %v3002
        %v3004 = vpop.f32.mrf.mxu0
        %v3005 = vadd.f32 %v2916, %v3004
        %3006 = vmatmul.bf16.gmra.mxu0 %v1864
        %v3007 = vpop.f32.mrf.mxu0
        %v3008 = vadd.f32 %v2919, %v3007
        %v3009 = vpop.f32.mrf.mxu0
        %v3010 = vadd.f32 %v2921, %v3009
        %3011 = vdwg.mxu0
        %3012 = vmatpush.bf16.msra.mxu0 %v2389
        %3013 = vmatpush.bf16.msra.mxu0 %v2388
        %3014 = vmatpush.bf16.msra.mxu0 %v2387
        %3015 = vmatpush.bf16.msra.mxu0 %v2386
        %3016 = vmatpush.bf16.msra.mxu0 %v2385
        %3017 = vmatpush.bf16.msra.mxu0 %v2384
        %3018 = vmatpush.bf16.msra.mxu0 %v2383
        %3019 = vmatpush.bf16.msra.mxu0 %v2382
        %3020 = vmatmul.bf16.gmra.mxu0 %v1867
        %v3021 = vpop.f32.mrf.mxu0
        %v3022 = vadd.f32 %v2933, %v3021
        %v3023 = vpop.f32.mrf.mxu0
        %v3024 = vadd.f32 %v2935, %v3023
        %3025 = vmatmul.bf16.gmra.mxu0 %v1868
        %v3026 = vpop.f32.mrf.mxu0
        %v3027 = vadd.f32 %v2938, %v3026
        %v3028 = vpop.f32.mrf.mxu0
        %v3029 = vadd.f32 %v2940, %v3028
        %3030 = vmatmul.bf16.gmra.mxu0 %v1869
        %v3031 = vpop.f32.mrf.mxu0
        %v3032 = vadd.f32 %v2943, %v3031
        %v3033 = vpop.f32.mrf.mxu0
        %v3034 = vadd.f32 %v2945, %v3033
        %3035 = vmatmul.bf16.gmra.mxu0 %v1870
        %v3036 = vpop.f32.mrf.mxu0
        %v3037 = vadd.f32 %v2948, %v3036
        %v3038 = vpop.f32.mrf.mxu0
        %v3039 = vadd.f32 %v2950, %v3038
        %3040 = vmatmul.bf16.gmra.mxu0 %v1871
        %v3041 = vpop.f32.mrf.mxu0
        %v3042 = vadd.f32 %v2953, %v3041
        %v3043 = vpop.f32.mrf.mxu0
        %v3044 = vadd.f32 %v2955, %v3043
        %3045 = vmatmul.bf16.gmra.mxu0 %v1872
        %v3046 = vpop.f32.mrf.mxu0
        %v3047 = vadd.f32 %v2958, %v3046
        %v3048 = vpop.f32.mrf.mxu0
        %v3049 = vadd.f32 %v2960, %v3048
        %3050 = vmatmul.bf16.gmra.mxu0 %v1873
        %v3051 = vpop.f32.mrf.mxu0
        %v3052 = vadd.f32 %v2963, %v3051
        %v3053 = vpop.f32.mrf.mxu0
        %v3054 = vadd.f32 %v2965, %v3053
        %3055 = vmatmul.bf16.gmra.mxu0 %v1874
        %v3056 = vpop.f32.mrf.mxu0
        %v3057 = vadd.f32 %v2968, %v3056
        %v3058 = vpop.f32.mrf.mxu0
        %v3059 = vadd.f32 %v2970, %v3058
        %3060 = vmatmul.bf16.gmra.mxu0 %v1875
        %v3061 = vpop.f32.mrf.mxu0
        %v3062 = vadd.f32 %v2973, %v3061
        %v3063 = vpop.f32.mrf.mxu0
        %v3064 = vadd.f32 %v2975, %v3063
        %3065 = vmatmul.bf16.gmra.mxu0 %v1876
        %v3066 = vpop.f32.mrf.mxu0
        %v3067 = vadd.f32 %v2978, %v3066
        %v3068 = vpop.f32.mrf.mxu0
        %v3069 = vadd.f32 %v2980, %v3068
        %3070 = vmatmul.bf16.gmra.mxu0 %v1877
        %v3071 = vpop.f32.mrf.mxu0
        %v3072 = vadd.f32 %v2983, %v3071
        %v3073 = vpop.f32.mrf.mxu0
        %v3074 = vadd.f32 %v2985, %v3073
        %3075 = vmatmul.bf16.gmra.mxu0 %v1878
        %v3076 = vpop.f32.mrf.mxu0
        %v3077 = vadd.f32 %v2988, %v3076
        %v3078 = vpop.f32.mrf.mxu0
        %v3079 = vadd.f32 %v2990, %v3078
        %3080 = vmatmul.bf16.gmra.mxu0 %v1879
        %v3081 = vpop.f32.mrf.mxu0
        %v3082 = vadd.f32 %v2993, %v3081
        %v3083 = vpop.f32.mrf.mxu0
        %v3084 = vadd.f32 %v2995, %v3083
        %3085 = vmatmul.bf16.gmra.mxu0 %v1880
        %v3086 = vpop.f32.mrf.mxu0
        %v3087 = vadd.f32 %v2998, %v3086
        %v3088 = vpop.f32.mrf.mxu0
        %v3089 = vadd.f32 %v3000, %v3088
        %3090 = vmatmul.bf16.gmra.mxu0 %v1881
        %v3091 = vpop.f32.mrf.mxu0
        %v3092 = vadd.f32 %v3003, %v3091
        %v3093 = vpop.f32.mrf.mxu0
        %v3094 = vadd.f32 %v3005, %v3093
        %3095 = vmatmul.bf16.gmra.mxu0 %v1882
        %v3096 = vpop.f32.mrf.mxu0
        %v3097 = vadd.f32 %v3008, %v3096
        %v3098 = vpop.f32.mrf.mxu0
        %v3099 = vadd.f32 %v3010, %v3098
        %3100 = vdwg.mxu0
        %3101 = vmatpush.bf16.msra.mxu0 %v2397
        %3102 = vmatpush.bf16.msra.mxu0 %v2396
        %3103 = vmatpush.bf16.msra.mxu0 %v2395
        %3104 = vmatpush.bf16.msra.mxu0 %v2394
        %3105 = vmatpush.bf16.msra.mxu0 %v2393
        %3106 = vmatpush.bf16.msra.mxu0 %v2392
        %3107 = vmatpush.bf16.msra.mxu0 %v2391
        %3108 = vmatpush.bf16.msra.mxu0 %v2390
        %3109 = vmatmul.bf16.gmra.mxu0 %v982
        %v3110 = vpop.f32.mrf.mxu0
        %v3111 = vadd.f32 %v3022, %v3110
        %v3112 = vpop.f32.mrf.mxu0
        %v3113 = vadd.f32 %v3024, %v3112
        %3114 = vmatmul.bf16.gmra.mxu0 %v985
        %v3115 = vpop.f32.mrf.mxu0
        %v3116 = vadd.f32 %v3027, %v3115
        %v3117 = vpop.f32.mrf.mxu0
        %v3118 = vadd.f32 %v3029, %v3117
        %3119 = vmatmul.bf16.gmra.mxu0 %v988
        %v3120 = vpop.f32.mrf.mxu0
        %v3121 = vadd.f32 %v3032, %v3120
        %v3122 = vpop.f32.mrf.mxu0
        %v3123 = vadd.f32 %v3034, %v3122
        %3124 = vmatmul.bf16.gmra.mxu0 %v991
        %v3125 = vpop.f32.mrf.mxu0
        %v3126 = vadd.f32 %v3037, %v3125
        %v3127 = vpop.f32.mrf.mxu0
        %v3128 = vadd.f32 %v3039, %v3127
        %3129 = vmatmul.bf16.gmra.mxu0 %v994
        %v3130 = vpop.f32.mrf.mxu0
        %v3131 = vadd.f32 %v3042, %v3130
        %v3132 = vpop.f32.mrf.mxu0
        %v3133 = vadd.f32 %v3044, %v3132
        %3134 = vmatmul.bf16.gmra.mxu0 %v997
        %v3135 = vpop.f32.mrf.mxu0
        %v3136 = vadd.f32 %v3047, %v3135
        %v3137 = vpop.f32.mrf.mxu0
        %v3138 = vadd.f32 %v3049, %v3137
        %3139 = vmatmul.bf16.gmra.mxu0 %v1000
        %v3140 = vpop.f32.mrf.mxu0
        %v3141 = vadd.f32 %v3052, %v3140
        %v3142 = vpop.f32.mrf.mxu0
        %v3143 = vadd.f32 %v3054, %v3142
        %3144 = vmatmul.bf16.gmra.mxu0 %v1003
        %v3145 = vpop.f32.mrf.mxu0
        %v3146 = vadd.f32 %v3057, %v3145
        %v3147 = vpop.f32.mrf.mxu0
        %v3148 = vadd.f32 %v3059, %v3147
        %3149 = vmatmul.bf16.gmra.mxu0 %v1006
        %v3150 = vpop.f32.mrf.mxu0
        %v3151 = vadd.f32 %v3062, %v3150
        %v3152 = vpop.f32.mrf.mxu0
        %v3153 = vadd.f32 %v3064, %v3152
        %3154 = vmatmul.bf16.gmra.mxu0 %v1009
        %v3155 = vpop.f32.mrf.mxu0
        %v3156 = vadd.f32 %v3067, %v3155
        %v3157 = vpop.f32.mrf.mxu0
        %v3158 = vadd.f32 %v3069, %v3157
        %3159 = vmatmul.bf16.gmra.mxu0 %v1012
        %v3160 = vpop.f32.mrf.mxu0
        %v3161 = vadd.f32 %v3072, %v3160
        %v3162 = vpop.f32.mrf.mxu0
        %v3163 = vadd.f32 %v3074, %v3162
        %3164 = vmatmul.bf16.gmra.mxu0 %v1015
        %v3165 = vpop.f32.mrf.mxu0
        %v3166 = vadd.f32 %v3077, %v3165
        %v3167 = vpop.f32.mrf.mxu0
        %v3168 = vadd.f32 %v3079, %v3167
        %3169 = vmatmul.bf16.gmra.mxu0 %v1018
        %v3170 = vpop.f32.mrf.mxu0
        %v3171 = vadd.f32 %v3082, %v3170
        %v3172 = vpop.f32.mrf.mxu0
        %v3173 = vadd.f32 %v3084, %v3172
        %3174 = vmatmul.bf16.gmra.mxu0 %v1021
        %v3175 = vpop.f32.mrf.mxu0
        %v3176 = vadd.f32 %v3087, %v3175
        %v3177 = vpop.f32.mrf.mxu0
        %v3178 = vadd.f32 %v3089, %v3177
        %3179 = vmatmul.bf16.gmra.mxu0 %v1024
        %v3180 = vpop.f32.mrf.mxu0
        %v3181 = vadd.f32 %v3092, %v3180
        %v3182 = vpop.f32.mrf.mxu0
        %v3183 = vadd.f32 %v3094, %v3182
        %3184 = vmatmul.bf16.gmra.mxu0 0
        %v3185 = vpop.f32.mrf.mxu0
        %v3186 = vadd.f32 %v3097, %v3185
        %v3187 = vpop.f32.mrf.mxu0
        %v3188 = vadd.f32 %v3099, %v3187
        %3189 = vdwg.mxu0
        %3190 = vmatpush.bf16.msra.mxu0 %v2405
        %3191 = vmatpush.bf16.msra.mxu0 %v2404
        %3192 = vmatpush.bf16.msra.mxu0 %v2403
        %3193 = vmatpush.bf16.msra.mxu0 %v2402
        %3194 = vmatpush.bf16.msra.mxu0 %v2401
        %3195 = vmatpush.bf16.msra.mxu0 %v2400
        %3196 = vmatpush.bf16.msra.mxu0 %v2399
        %3197 = vmatpush.bf16.msra.mxu0 %v2398
        %3198 = vmatmul.bf16.gmra.mxu0 %v1883
        %v3199 = vpop.f32.mrf.mxu0
        %v3200 = vadd.f32 %v3111, %v3199
        %v3201 = vpop.f32.mrf.mxu0
        %v3202 = vadd.f32 %v3113, %v3201
        %3203 = vmatmul.bf16.gmra.mxu0 %v1884
        %v3204 = vpop.f32.mrf.mxu0
        %v3205 = vadd.f32 %v3116, %v3204
        %v3206 = vpop.f32.mrf.mxu0
        %v3207 = vadd.f32 %v3118, %v3206
        %3208 = vmatmul.bf16.gmra.mxu0 %v1885
        %v3209 = vpop.f32.mrf.mxu0
        %v3210 = vadd.f32 %v3121, %v3209
        %v3211 = vpop.f32.mrf.mxu0
        %v3212 = vadd.f32 %v3123, %v3211
        %3213 = vmatmul.bf16.gmra.mxu0 %v1886
        %v3214 = vpop.f32.mrf.mxu0
        %v3215 = vadd.f32 %v3126, %v3214
        %v3216 = vpop.f32.mrf.mxu0
        %v3217 = vadd.f32 %v3128, %v3216
        %3218 = vmatmul.bf16.gmra.mxu0 %v1887
        %v3219 = vpop.f32.mrf.mxu0
        %v3220 = vadd.f32 %v3131, %v3219
        %v3221 = vpop.f32.mrf.mxu0
        %v3222 = vadd.f32 %v3133, %v3221
        %3223 = vmatmul.bf16.gmra.mxu0 %v1888
        %v3224 = vpop.f32.mrf.mxu0
        %v3225 = vadd.f32 %v3136, %v3224
        %v3226 = vpop.f32.mrf.mxu0
        %v3227 = vadd.f32 %v3138, %v3226
        %3228 = vmatmul.bf16.gmra.mxu0 %v1889
        %v3229 = vpop.f32.mrf.mxu0
        %v3230 = vadd.f32 %v3141, %v3229
        %v3231 = vpop.f32.mrf.mxu0
        %v3232 = vadd.f32 %v3143, %v3231
        %3233 = vmatmul.bf16.gmra.mxu0 %v1890
        %v3234 = vpop.f32.mrf.mxu0
        %v3235 = vadd.f32 %v3146, %v3234
        %v3236 = vpop.f32.mrf.mxu0
        %v3237 = vadd.f32 %v3148, %v3236
        %3238 = vmatmul.bf16.gmra.mxu0 %v1891
        %v3239 = vpop.f32.mrf.mxu0
        %v3240 = vadd.f32 %v3151, %v3239
        %v3241 = vpop.f32.mrf.mxu0
        %v3242 = vadd.f32 %v3153, %v3241
        %3243 = vmatmul.bf16.gmra.mxu0 %v1892
        %v3244 = vpop.f32.mrf.mxu0
        %v3245 = vadd.f32 %v3156, %v3244
        %v3246 = vpop.f32.mrf.mxu0
        %v3247 = vadd.f32 %v3158, %v3246
        %3248 = vmatmul.bf16.gmra.mxu0 %v1893
        %v3249 = vpop.f32.mrf.mxu0
        %v3250 = vadd.f32 %v3161, %v3249
        %v3251 = vpop.f32.mrf.mxu0
        %v3252 = vadd.f32 %v3163, %v3251
        %3253 = vmatmul.bf16.gmra.mxu0 %v1894
        %v3254 = vpop.f32.mrf.mxu0
        %v3255 = vadd.f32 %v3166, %v3254
        %v3256 = vpop.f32.mrf.mxu0
        %v3257 = vadd.f32 %v3168, %v3256
        %3258 = vmatmul.bf16.gmra.mxu0 %v1895
        %v3259 = vpop.f32.mrf.mxu0
        %v3260 = vadd.f32 %v3171, %v3259
        %v3261 = vpop.f32.mrf.mxu0
        %v3262 = vadd.f32 %v3173, %v3261
        %3263 = vmatmul.bf16.gmra.mxu0 %v1896
        %v3264 = vpop.f32.mrf.mxu0
        %v3265 = vadd.f32 %v3176, %v3264
        %v3266 = vpop.f32.mrf.mxu0
        %v3267 = vadd.f32 %v3178, %v3266
        %3268 = vmatmul.bf16.gmra.mxu0 %v1897
        %v3269 = vpop.f32.mrf.mxu0
        %v3270 = vadd.f32 %v3181, %v3269
        %v3271 = vpop.f32.mrf.mxu0
        %v3272 = vadd.f32 %v3183, %v3271
        %3273 = vmatmul.bf16.gmra.mxu0 0
        %v3274 = vpop.f32.mrf.mxu0
        %v3275 = vadd.f32 %v3186, %v3274
        %v3276 = vpop.f32.mrf.mxu0
        %v3277 = vadd.f32 %v3188, %v3276
        %3278 = vdwg.mxu0
        %v3279 = vmax.f32 %v3200, 0.0
        %v3280 = vmax.f32 %v3202, 0.0
        %v3281 = vmax.f32 %v3205, 0.0
        %v3282 = vmax.f32 %v3207, 0.0
        %v3283 = vmax.f32 %v3210, 0.0
        %v3284 = vmax.f32 %v3212, 0.0
        %v3285 = vmax.f32 %v3215, 0.0
        %v3286 = vmax.f32 %v3217, 0.0
        %v3287 = vmax.f32 %v3220, 0.0
        %v3288 = vmax.f32 %v3222, 0.0
        %v3289 = vmax.f32 %v3225, 0.0
        %v3290 = vmax.f32 %v3227, 0.0
        %v3291 = vmax.f32 %v3230, 0.0
        %v3292 = vmax.f32 %v3232, 0.0
        %v3293 = vmax.f32 %v3235, 0.0
        %v3294 = vmax.f32 %v3237, 0.0
        %v3295 = vmax.f32 %v3240, 0.0
        %v3296 = vmax.f32 %v3242, 0.0
        %v3297 = vmax.f32 %v3245, 0.0
        %v3298 = vmax.f32 %v3247, 0.0
        %v3299 = vmax.f32 %v3250, 0.0
        %v3300 = vmax.f32 %v3252, 0.0
        %v3301 = vmax.f32 %v3255, 0.0
        %v3302 = vmax.f32 %v3257, 0.0
        %v3303 = vmax.f32 %v3260, 0.0
        %v3304 = vmax.f32 %v3262, 0.0
        %v3305 = vmax.f32 %v3265, 0.0
        %v3306 = vmax.f32 %v3267, 0.0
        %v3307 = vmax.f32 %v3270, 0.0
        %v3308 = vmax.f32 %v3272, 0.0
        %v3309 = vmax.f32 %v3275, 0.0
        %v3310 = vmax.f32 %v3277, 0.0
        %v3311 = vpack.c.bf16 %v3279, %v3279
        %v3312 = vpack.c.bf16 %v3280, %v3280
        %v3313 = vpack.c.bf16 %v3281, %v3281
        %v3314 = vpack.c.bf16 %v3282, %v3282
        %v3315 = vpack.c.bf16 %v3283, %v3283
        %v3316 = vpack.c.bf16 %v3284, %v3284
        %v3317 = vpack.c.bf16 %v3285, %v3285
        %v3318 = vpack.c.bf16 %v3286, %v3286
        %v3319 = vpack.c.bf16 %v3287, %v3287
        %v3320 = vpack.c.bf16 %v3288, %v3288
        %v3321 = vpack.c.bf16 %v3289, %v3289
        %v3322 = vpack.c.bf16 %v3290, %v3290
        %v3323 = vpack.c.bf16 %v3291, %v3291
        %v3324 = vpack.c.bf16 %v3292, %v3292
        %v3325 = vpack.c.bf16 %v3293, %v3293
        %v3326 = vpack.c.bf16 %v3294, %v3294
        %v3327 = vpack.c.bf16 %v3295, %v3295
        %v3328 = vpack.c.bf16 %v3296, %v3296
        %v3329 = vpack.c.bf16 %v3297, %v3297
        %v3330 = vpack.c.bf16 %v3298, %v3298
        %v3331 = vpack.c.bf16 %v3299, %v3299
        %v3332 = vpack.c.bf16 %v3300, %v3300
        %v3333 = vpack.c.bf16 %v3301, %v3301
        %v3334 = vpack.c.bf16 %v3302, %v3302
        %v3335 = vpack.c.bf16 %v3303, %v3303
        %v3336 = vpack.c.bf16 %v3304, %v3304
        %v3337 = vpack.c.bf16 %v3305, %v3305
        %v3338 = vpack.c.bf16 %v3306, %v3306
        %v3339 = vpack.c.bf16 %v3307, %v3307
        %v3340 = vpack.c.bf16 %v3308, %v3308
        %v3341 = vpack.c.bf16 %v3309, %v3309
        %v3342 = vpack.c.bf16 %v3310, %v3310
        %v3373 = vunpack.c.l.b16 %v3311
        %v3374 = vunpack.c.l.b16 %v3312
        %v3375 = vunpack.c.l.b16 %v3313
        %v3376 = vunpack.c.l.b16 %v3314
        %v3377 = vunpack.c.l.b16 %v3315
        %v3378 = vunpack.c.l.b16 %v3316
        %v3379 = vunpack.c.l.b16 %v3317
        %v3380 = vunpack.c.l.b16 %v3318
        %v3381 = vunpack.c.l.b16 %v3319
        %v3382 = vunpack.c.l.b16 %v3320
        %v3383 = vunpack.c.l.b16 %v3321
        %v3384 = vunpack.c.l.b16 %v3322
        %v3385 = vunpack.c.l.b16 %v3323
        %v3386 = vunpack.c.l.b16 %v3324
        %v3387 = vunpack.c.l.b16 %v3325
        %v3388 = vunpack.c.l.b16 %v3326
        %v3389 = vunpack.c.l.b16 %v3327
        %v3390 = vunpack.c.l.b16 %v3328
        %v3391 = vunpack.c.l.b16 %v3329
        %v3392 = vunpack.c.l.b16 %v3330
        %v3393 = vunpack.c.l.b16 %v3331
        %v3394 = vunpack.c.l.b16 %v3332
        %v3395 = vunpack.c.l.b16 %v3333
        %v3396 = vunpack.c.l.b16 %v3334
        %v3397 = vunpack.c.l.b16 %v3335
        %v3398 = vunpack.c.l.b16 %v3336
        %v3399 = vunpack.c.l.b16 %v3337
        %v3400 = vunpack.c.l.b16 %v3338
        %v3401 = vunpack.c.l.b16 %v3339
        %v3402 = vunpack.c.l.b16 %v3340
        %v3403 = vpack.c.b16 %v3374, %v3373
        %v3404 = vpack.c.b16 %v3376, %v3375
        %v3405 = vpack.c.b16 %v3378, %v3377
        %v3406 = vpack.c.b16 %v3380, %v3379
        %v3407 = vpack.c.b16 %v3382, %v3381
        %v3408 = vpack.c.b16 %v3384, %v3383
        %v3409 = vpack.c.b16 %v3386, %v3385
        %v3410 = vpack.c.b16 %v3388, %v3387
        %v3411 = vpack.c.b16 %v3390, %v3389
        %v3412 = vpack.c.b16 %v3392, %v3391
        %v3413 = vpack.c.b16 %v3394, %v3393
        %v3414 = vpack.c.b16 %v3396, %v3395
        %v3415 = vpack.c.b16 %v3398, %v3397
        %v3416 = vpack.c.b16 %v3400, %v3399
        %v3417 = vpack.c.b16 %v3402, %v3401
        %v3419 = vshrl.u32 %v3403, 16
        %v3421 = vrot.slane %v3419, 7
        %v3422 = vshll.u32 %v3403, 16
        %v3424 = vor.u32 %v3421, %v3422
        %v3426 = vshrl.u32 %v3404, 16
        %v3428 = vrot.slane %v3426, 7
        %v3429 = vshll.u32 %v3404, 16
        %v3431 = vor.u32 %v3428, %v3429
        %v3432 = vsel %vm1026, %v3421, %v3431
        %v3434 = vshrl.u32 %v3405, 16
        %v3436 = vrot.slane %v3434, 7
        %v3437 = vshll.u32 %v3405, 16
        %v3439 = vor.u32 %v3436, %v3437
        %v3440 = vsel %vm1026, %v3428, %v3439
        %v3442 = vshrl.u32 %v3406, 16
        %v3444 = vrot.slane %v3442, 7
        %v3445 = vshll.u32 %v3406, 16
        %v3447 = vor.u32 %v3444, %v3445
        %v3448 = vsel %vm1026, %v3436, %v3447
        %v3450 = vshrl.u32 %v3407, 16
        %v3452 = vrot.slane %v3450, 7
        %v3453 = vshll.u32 %v3407, 16
        %v3455 = vor.u32 %v3452, %v3453
        %v3456 = vsel %vm1026, %v3444, %v3455
        %v3458 = vshrl.u32 %v3408, 16
        %v3460 = vrot.slane %v3458, 7
        %v3461 = vshll.u32 %v3408, 16
        %v3463 = vor.u32 %v3460, %v3461
        %v3464 = vsel %vm1026, %v3452, %v3463
        %v3466 = vshrl.u32 %v3409, 16
        %v3468 = vrot.slane %v3466, 7
        %v3469 = vshll.u32 %v3409, 16
        %v3471 = vor.u32 %v3468, %v3469
        %v3472 = vsel %vm1026, %v3460, %v3471
        %v3474 = vshrl.u32 %v3410, 16
        %v3476 = vrot.slane %v3474, 7
        %v3477 = vshll.u32 %v3410, 16
        %v3479 = vor.u32 %v3476, %v3477
        %v3480 = vsel %vm1026, %v3468, %v3479
        %v3482 = vshrl.u32 %v3411, 16
        %v3484 = vrot.slane %v3482, 7
        %v3485 = vshll.u32 %v3411, 16
        %v3487 = vor.u32 %v3484, %v3485
        %v3488 = vsel %vm1026, %v3476, %v3487
        %v3490 = vshrl.u32 %v3412, 16
        %v3492 = vrot.slane %v3490, 7
        %v3493 = vshll.u32 %v3412, 16
        %v3495 = vor.u32 %v3492, %v3493
        %v3496 = vsel %vm1026, %v3484, %v3495
        %v3498 = vshrl.u32 %v3413, 16
        %v3500 = vrot.slane %v3498, 7
        %v3501 = vshll.u32 %v3413, 16
        %v3503 = vor.u32 %v3500, %v3501
        %v3504 = vsel %vm1026, %v3492, %v3503
        %v3506 = vshrl.u32 %v3414, 16
        %v3508 = vrot.slane %v3506, 7
        %v3509 = vshll.u32 %v3414, 16
        %v3511 = vor.u32 %v3508, %v3509
        %v3512 = vsel %vm1026, %v3500, %v3511
        %v3514 = vshrl.u32 %v3415, 16
        %v3516 = vrot.slane %v3514, 7
        %v3517 = vshll.u32 %v3415, 16
        %v3519 = vor.u32 %v3516, %v3517
        %v3520 = vsel %vm1026, %v3508, %v3519
        %v3522 = vshrl.u32 %v3416, 16
        %v3524 = vrot.slane %v3522, 7
        %v3525 = vshll.u32 %v3416, 16
        %v3527 = vor.u32 %v3524, %v3525
        %v3528 = vsel %vm1026, %v3516, %v3527
        %v3530 = vshrl.u32 %v3417, 16
        %v3532 = vrot.slane %v3530, 7
        %v3533 = vshll.u32 %v3417, 16
        %v3535 = vor.u32 %v3532, %v3533
        %v3536 = vsel %vm1026, %v3524, %v3535
        %v3552 = vsel %vm1147, 0, %v3424
        %v3553 = vsel %vm1324, %v3552, 0
        %v3554 = vsel %vm1331, %v3432, 0
        %v3555 = vsel %vm1338, %v3440, 0
        %v3556 = vsel %vm1345, %v3448, 0
        %v3557 = vsel %vm1352, %v3456, 0
        %v3558 = vsel %vm1359, %v3464, 0
        %v3559 = vsel %vm1366, %v3472, 0
        %v3560 = vsel %vm1373, %v3480, 0
        %v3561 = vsel %vm1380, %v3488, 0
        %v3562 = vsel %vm1387, %v3496, 0
        %v3563 = vsel %vm1394, %v3504, 0
        %v3564 = vsel %vm1401, %v3512, 0
        %v3565 = vsel %vm1408, %v3520, 0
        %v3566 = vsel %vm1415, %v3528, 0
        %v3567 = vsel %vm1422, %v3536, 0
        %v3584 = vunpack.c.l.b16 %v3341
        %v3585 = vpack.c.b16 %v3584, %v3584
        %v3586 = vrot.slane %v3422, 1
        %v3587 = vor.u32 %v3419, %v3586
        %v3588 = vrot.slane %v3429, 1
        %v3589 = vsel %vm1438, %v3587, %v3588
        %v3590 = vor.u32 %v3426, %v3588
        %v3591 = vrot.slane %v3437, 1
        %v3592 = vsel %vm1438, %v3590, %v3591
        %v3593 = vor.u32 %v3434, %v3591
        %v3594 = vrot.slane %v3445, 1
        %v3595 = vsel %vm1438, %v3593, %v3594
        %v3596 = vor.u32 %v3442, %v3594
        %v3597 = vrot.slane %v3453, 1
        %v3598 = vsel %vm1438, %v3596, %v3597
        %v3599 = vor.u32 %v3450, %v3597
        %v3600 = vrot.slane %v3461, 1
        %v3601 = vsel %vm1438, %v3599, %v3600
        %v3602 = vor.u32 %v3458, %v3600
        %v3603 = vrot.slane %v3469, 1
        %v3604 = vsel %vm1438, %v3602, %v3603
        %v3605 = vor.u32 %v3466, %v3603
        %v3606 = vrot.slane %v3477, 1
        %v3607 = vsel %vm1438, %v3605, %v3606
        %v3608 = vor.u32 %v3474, %v3606
        %v3609 = vrot.slane %v3485, 1
        %v3610 = vsel %vm1438, %v3608, %v3609
        %v3611 = vor.u32 %v3482, %v3609
        %v3612 = vrot.slane %v3493, 1
        %v3613 = vsel %vm1438, %v3611, %v3612
        %v3614 = vor.u32 %v3490, %v3612
        %v3615 = vrot.slane %v3501, 1
        %v3616 = vsel %vm1438, %v3614, %v3615
        %v3617 = vor.u32 %v3498, %v3615
        %v3618 = vrot.slane %v3509, 1
        %v3619 = vsel %vm1438, %v3617, %v3618
        %v3620 = vor.u32 %v3506, %v3618
        %v3621 = vrot.slane %v3517, 1
        %v3622 = vsel %vm1438, %v3620, %v3621
        %v3623 = vor.u32 %v3514, %v3621
        %v3624 = vrot.slane %v3525, 1
        %v3625 = vsel %vm1438, %v3623, %v3624
        %v3626 = vor.u32 %v3522, %v3624
        %v3627 = vrot.slane %v3533, 1
        %v3628 = vsel %vm1438, %v3626, %v3627
        %v3629 = vor.u32 %v3530, %v3627
        %v3631 = vshll.u32 %v3585, 16
        %v3633 = vrot.slane %v3631, 1
        %v3634 = vsel %vm1438, %v3629, %v3633
        %v3651 = vsel %vm1504, 0, %v3586
        %v3652 = vsel %vm1688, %v3651, 0
        %v3653 = vsel %vm1695, %v3589, 0
        %v3654 = vsel %vm1702, %v3592, 0
        %v3655 = vsel %vm1709, %v3595, 0
        %v3656 = vsel %vm1716, %v3598, 0
        %v3657 = vsel %vm1723, %v3601, 0
        %v3658 = vsel %vm1730, %v3604, 0
        %v3659 = vsel %vm1737, %v3607, 0
        %v3660 = vsel %vm1744, %v3610, 0
        %v3661 = vsel %vm1751, %v3613, 0
        %v3662 = vsel %vm1758, %v3616, 0
        %v3663 = vsel %vm1765, %v3619, 0
        %v3664 = vsel %vm1772, %v3622, 0
        %v3665 = vsel %vm1779, %v3625, 0
        %v3666 = vsel %vm1786, %v3628, 0
        %v3667 = vsel %vm1793, %v3634, 0
        %v3669 = vunpack.c.l.b16 %v3342
        %v3670 = vpack.c.b16 %v3669, %v3584
        %v3672 = vshrl.u32 %v3670, 16
        %v3674 = vrot.slane %v3672, 7
        %v3675 = vshll.u32 %v3670, 16
        %v3677 = vor.u32 %v3674, %v3675
        %v3678 = vsel %vm1026, %v3532, %v3677
        %v3680 = vsel %vm1829, %v3552, 0
        %v3681 = vsel %vm1324, %v3432, 0
        %v3682 = vsel %vm1331, %v3440, 0
        %v3683 = vsel %vm1338, %v3448, 0
        %v3684 = vsel %vm1345, %v3456, 0
        %v3685 = vsel %vm1352, %v3464, 0
        %v3686 = vsel %vm1359, %v3472, 0
        %v3687 = vsel %vm1366, %v3480, 0
        %v3688 = vsel %vm1373, %v3488, 0
        %v3689 = vsel %vm1380, %v3496, 0
        %v3690 = vsel %vm1387, %v3504, 0
        %v3691 = vsel %vm1394, %v3512, 0
        %v3692 = vsel %vm1401, %v3520, 0
        %v3693 = vsel %vm1408, %v3528, 0
        %v3694 = vsel %vm1415, %v3536, 0
        %v3695 = vsel %vm1422, %v3678, 0
        %v3696 = vrot.slane %v3675, 1
        %v3697 = vsel %vm1438, %v3629, %v3696
        %v3698 = vor.u32 %v3672, %v3696
        %v3701 = vsel %vm1504, %v3698, 0
        %v3702 = vsel %vm1688, %v3589, 0
        %v3703 = vsel %vm1695, %v3592, 0
        %v3704 = vsel %vm1702, %v3595, 0
        %v3705 = vsel %vm1709, %v3598, 0
        %v3706 = vsel %vm1716, %v3601, 0
        %v3707 = vsel %vm1723, %v3604, 0
        %v3708 = vsel %vm1730, %v3607, 0
        %v3709 = vsel %vm1737, %v3610, 0
        %v3710 = vsel %vm1744, %v3613, 0
        %v3711 = vsel %vm1751, %v3616, 0
        %v3712 = vsel %vm1758, %v3619, 0
        %v3713 = vsel %vm1765, %v3622, 0
        %v3714 = vsel %vm1772, %v3625, 0
        %v3715 = vsel %vm1779, %v3628, 0
        %v3716 = vsel %vm1786, %v3697, 0
        %v3717 = vsel %vm1793, %v3701, 0
        %v3718 = vpack.c.b16 %v3375, %v3374
        %v3719 = vpack.c.b16 %v3377, %v3376
        %v3720 = vpack.c.b16 %v3379, %v3378
        %v3721 = vpack.c.b16 %v3381, %v3380
        %v3722 = vpack.c.b16 %v3383, %v3382
        %v3723 = vpack.c.b16 %v3385, %v3384
        %v3724 = vpack.c.b16 %v3387, %v3386
        %v3725 = vpack.c.b16 %v3389, %v3388
        %v3726 = vpack.c.b16 %v3391, %v3390
        %v3727 = vpack.c.b16 %v3393, %v3392
        %v3728 = vpack.c.b16 %v3395, %v3394
        %v3729 = vpack.c.b16 %v3397, %v3396
        %v3730 = vpack.c.b16 %v3399, %v3398
        %v3731 = vpack.c.b16 %v3401, %v3400
        %v3732 = vpack.c.b16 %v3584, %v3402
        %v3733 = vpack.c.b16 %v3669, %v3669
        %vm3734 = vsmask.f32 4352
        %v3736 = vshrl.u32 %v3718, 16
        %v3738 = vrot.slane %v3736, 3
        %v3739 = vshll.u32 %v3718, 16
        %v3741 = vrot.slane %v3739, 4
        %v3742 = vor.u32 %v3738, %v3741
        %v3744 = vshrl.u32 %v3719, 16
        %v3746 = vrot.slane %v3744, 3
        %v3747 = vshll.u32 %v3719, 16
        %v3749 = vrot.slane %v3747, 4
        %v3750 = vor.u32 %v3746, %v3749
        %v3751 = vsel %vm3734, %v3742, %v3750
        %v3753 = vshrl.u32 %v3720, 16
        %v3755 = vrot.slane %v3753, 3
        %v3756 = vshll.u32 %v3720, 16
        %v3758 = vrot.slane %v3756, 4
        %v3759 = vor.u32 %v3755, %v3758
        %v3760 = vsel %vm3734, %v3750, %v3759
        %v3762 = vshrl.u32 %v3721, 16
        %v3764 = vrot.slane %v3762, 3
        %v3765 = vshll.u32 %v3721, 16
        %v3767 = vrot.slane %v3765, 4
        %v3768 = vor.u32 %v3764, %v3767
        %v3769 = vsel %vm3734, %v3759, %v3768
        %v3771 = vshrl.u32 %v3722, 16
        %v3773 = vrot.slane %v3771, 3
        %v3774 = vshll.u32 %v3722, 16
        %v3776 = vrot.slane %v3774, 4
        %v3777 = vor.u32 %v3773, %v3776
        %v3778 = vsel %vm3734, %v3768, %v3777
        %v3780 = vshrl.u32 %v3723, 16
        %v3782 = vrot.slane %v3780, 3
        %v3783 = vshll.u32 %v3723, 16
        %v3785 = vrot.slane %v3783, 4
        %v3786 = vor.u32 %v3782, %v3785
        %v3787 = vsel %vm3734, %v3777, %v3786
        %v3789 = vshrl.u32 %v3724, 16
        %v3791 = vrot.slane %v3789, 3
        %v3792 = vshll.u32 %v3724, 16
        %v3794 = vrot.slane %v3792, 4
        %v3795 = vor.u32 %v3791, %v3794
        %v3796 = vsel %vm3734, %v3786, %v3795
        %v3798 = vshrl.u32 %v3725, 16
        %v3800 = vrot.slane %v3798, 3
        %v3801 = vshll.u32 %v3725, 16
        %v3803 = vrot.slane %v3801, 4
        %v3804 = vor.u32 %v3800, %v3803
        %v3805 = vsel %vm3734, %v3795, %v3804
        %v3807 = vshrl.u32 %v3726, 16
        %v3809 = vrot.slane %v3807, 3
        %v3810 = vshll.u32 %v3726, 16
        %v3812 = vrot.slane %v3810, 4
        %v3813 = vor.u32 %v3809, %v3812
        %v3814 = vsel %vm3734, %v3804, %v3813
        %v3816 = vshrl.u32 %v3727, 16
        %v3818 = vrot.slane %v3816, 3
        %v3819 = vshll.u32 %v3727, 16
        %v3821 = vrot.slane %v3819, 4
        %v3822 = vor.u32 %v3818, %v3821
        %v3823 = vsel %vm3734, %v3813, %v3822
        %v3825 = vshrl.u32 %v3728, 16
        %v3827 = vrot.slane %v3825, 3
        %v3828 = vshll.u32 %v3728, 16
        %v3830 = vrot.slane %v3828, 4
        %v3831 = vor.u32 %v3827, %v3830
        %v3832 = vsel %vm3734, %v3822, %v3831
        %v3834 = vshrl.u32 %v3729, 16
        %v3836 = vrot.slane %v3834, 3
        %v3837 = vshll.u32 %v3729, 16
        %v3839 = vrot.slane %v3837, 4
        %v3840 = vor.u32 %v3836, %v3839
        %v3841 = vsel %vm3734, %v3831, %v3840
        %v3843 = vshrl.u32 %v3730, 16
        %v3845 = vrot.slane %v3843, 3
        %v3846 = vshll.u32 %v3730, 16
        %v3848 = vrot.slane %v3846, 4
        %v3849 = vor.u32 %v3845, %v3848
        %v3850 = vsel %vm3734, %v3840, %v3849
        %v3852 = vshrl.u32 %v3731, 16
        %v3854 = vrot.slane %v3852, 3
        %v3855 = vshll.u32 %v3731, 16
        %v3857 = vrot.slane %v3855, 4
        %v3858 = vor.u32 %v3854, %v3857
        %v3859 = vsel %vm3734, %v3849, %v3858
        %v3861 = vshrl.u32 %v3732, 16
        %v3863 = vrot.slane %v3861, 3
        %v3864 = vshll.u32 %v3732, 16
        %v3866 = vrot.slane %v3864, 4
        %v3867 = vor.u32 %v3863, %v3866
        %v3868 = vsel %vm3734, %v3858, %v3867
        %v3870 = vshrl.u32 %v3733, 16
        %v3872 = vrot.slane %v3870, 3
        %v3873 = vshll.u32 %v3733, 16
        %v3875 = vrot.slane %v3873, 4
        %v3876 = vor.u32 %v3872, %v3875
        %v3877 = vsel %vm3734, %v3867, %v3876
        %v3894 = vsel %vm1147, %v3872, 0
        %v3895 = vsel %vm1829, %v3751, 0
        %v3896 = vsel %vm1324, %v3760, 0
        %v3897 = vsel %vm1331, %v3769, 0
        %v3898 = vsel %vm1338, %v3778, 0
        %v3899 = vsel %vm1345, %v3787, 0
        %v3900 = vsel %vm1352, %v3796, 0
        %v3901 = vsel %vm1359, %v3805, 0
        %v3902 = vsel %vm1366, %v3814, 0
        %v3903 = vsel %vm1373, %v3823, 0
        %v3904 = vsel %vm1380, %v3832, 0
        %v3905 = vsel %vm1387, %v3841, 0
        %v3906 = vsel %vm1394, %v3850, 0
        %v3907 = vsel %vm1401, %v3859, 0
        %v3908 = vsel %vm1408, %v3868, 0
        %v3909 = vsel %vm1415, %v3877, 0
        %v3910 = vsel %vm1422, %v3894, 0
        %v3912 = vsel %vm1688, %v3592, 0
        %v3913 = vsel %vm1695, %v3595, 0
        %v3914 = vsel %vm1702, %v3598, 0
        %v3915 = vsel %vm1709, %v3601, 0
        %v3916 = vsel %vm1716, %v3604, 0
        %v3917 = vsel %vm1723, %v3607, 0
        %v3918 = vsel %vm1730, %v3610, 0
        %v3919 = vsel %vm1737, %v3613, 0
        %v3920 = vsel %vm1744, %v3616, 0
        %v3921 = vsel %vm1751, %v3619, 0
        %v3922 = vsel %vm1758, %v3622, 0
        %v3923 = vsel %vm1765, %v3625, 0
        %v3924 = vsel %vm1772, %v3628, 0
        %v3925 = vsel %vm1779, %v3697, 0
        %v3926 = vsel %vm1786, %v3701, 0
        %v3927 = vld [vmem:[#allocation5] sm:$0xf]
        %v3928 = vld [vmem:[#allocation5 + $0x4] sm:$0xf]
        %v3929 = vld [vmem:[#allocation5 + $0x8] sm:$0xf]
        %v3930 = vld [vmem:[#allocation5 + $0xc] sm:$0xf]
        %v3931 = vld [vmem:[#allocation5 + $0x10] sm:$0xf]
        %v3932 = vld [vmem:[#allocation5 + $0x14] sm:$0xf]
        %v3933 = vld [vmem:[#allocation5 + $0x18] sm:$0xf]
        %v3934 = vld [vmem:[#allocation5 + $0x1c] sm:$0xf]
        %v3935 = vld [vmem:[#allocation5 + $0x20] sm:$0xf]
        %v3936 = vld [vmem:[#allocation5 + $0x24] sm:$0xf]
        %v3937 = vld [vmem:[#allocation5 + $0x28] sm:$0xf]
        %v3938 = vld [vmem:[#allocation5 + $0x2c] sm:$0xf]
        %v3939 = vld [vmem:[#allocation5 + $0x30] sm:$0xf]
        %v3940 = vld [vmem:[#allocation5 + $0x34] sm:$0xf]
        %v3941 = vld [vmem:[#allocation5 + $0x38] sm:$0xf]
        %v3942 = vld [vmem:[#allocation5 + $0x3c] sm:$0xf]
        %v3943 = vld [vmem:[#allocation5 + $0x40] sm:$0xf]
        %v3944 = vld [vmem:[#allocation5 + $0x44] sm:$0xf]
        %v3945 = vld [vmem:[#allocation5 + $0x48] sm:$0xf]
        %v3946 = vld [vmem:[#allocation5 + $0x4c] sm:$0xf]
        %v3947 = vld [vmem:[#allocation5 + $0x50] sm:$0xf]
        %v3948 = vld [vmem:[#allocation5 + $0x54] sm:$0xf]
        %v3949 = vld [vmem:[#allocation5 + $0x58] sm:$0xf]
        %v3950 = vld [vmem:[#allocation5 + $0x5c] sm:$0xf]
        %v3951 = vld [vmem:[#allocation5 + $0x60] sm:$0xf]
        %v3952 = vld [vmem:[#allocation5 + $0x64] sm:$0xf]
        %v3953 = vld [vmem:[#allocation5 + $0x68] sm:$0xf]
        %v3954 = vld [vmem:[#allocation5 + $0x6c] sm:$0xf]
        %v3955 = vld [vmem:[#allocation5 + $0x70] sm:$0xf]
        %v3956 = vld [vmem:[#allocation5 + $0x74] sm:$0xf]
        %v3957 = vld [vmem:[#allocation5 + $0x78] sm:$0xf]
        %v3958 = vld [vmem:[#allocation5 + $0x7c] sm:$0xf]
        %v3959 = vld [vmem:[#allocation5 + $0x80] sm:$0xf]
        %v3960 = vld [vmem:[#allocation5 + $0x84] sm:$0xf]
        %v3961 = vld [vmem:[#allocation5 + $0x88] sm:$0xf]
        %v3962 = vld [vmem:[#allocation5 + $0x8c] sm:$0xf]
        %v3963 = vld [vmem:[#allocation5 + $0x90] sm:$0xf]
        %v3964 = vld [vmem:[#allocation5 + $0x94] sm:$0xf]
        %v3965 = vld [vmem:[#allocation5 + $0x98] sm:$0xf]
        %v3966 = vld [vmem:[#allocation5 + $0x9c] sm:$0xf]
        %v3967 = vld [vmem:[#allocation5 + $0xa0] sm:$0xf]
        %v3968 = vld [vmem:[#allocation5 + $0xa4] sm:$0xf]
        %v3969 = vld [vmem:[#allocation5 + $0xa8] sm:$0xf]
        %v3970 = vld [vmem:[#allocation5 + $0xac] sm:$0xf]
        %v3971 = vld [vmem:[#allocation5 + $0xb0] sm:$0xf]
        %v3972 = vld [vmem:[#allocation5 + $0xb4] sm:$0xf]
        %v3973 = vld [vmem:[#allocation5 + $0xb8] sm:$0xf]
        %v3974 = vld [vmem:[#allocation5 + $0xbc] sm:$0xf]
        %v3975 = vld [vmem:[#allocation5 + $0xc0] sm:$0xf]
        %v3976 = vld [vmem:[#allocation5 + $0xc4] sm:$0xf]
        %v3977 = vld [vmem:[#allocation5 + $0xc8] sm:$0xf]
        %v3978 = vld [vmem:[#allocation5 + $0xcc] sm:$0xf]
        %v3979 = vld [vmem:[#allocation5 + $0xd0] sm:$0xf]
        %v3980 = vld [vmem:[#allocation5 + $0xd4] sm:$0xf]
        %v3981 = vld [vmem:[#allocation5 + $0xd8] sm:$0xf]
        %v3982 = vld [vmem:[#allocation5 + $0xdc] sm:$0xf]
        %v3983 = vld [vmem:[#allocation5 + $0xe0] sm:$0xf]
        %v3984 = vld [vmem:[#allocation5 + $0xe4] sm:$0xf]
        %v3985 = vld [vmem:[#allocation5 + $0xe8] sm:$0xf]
        %v3986 = vld [vmem:[#allocation5 + $0xec] sm:$0xf]
        %v3987 = vld [vmem:[#allocation5 + $0xf0] sm:$0xf]
        %v3988 = vld [vmem:[#allocation5 + $0xf4] sm:$0xf]
        %v3989 = vld [vmem:[#allocation5 + $0xf8] sm:$0xf]
        %v3990 = vld [vmem:[#allocation5 + $0xfc] sm:$0xf]
        %v3991 = vld [vmem:[#allocation5 + $0x100] sm:$0xf]
        %v3992 = vld [vmem:[#allocation5 + $0x104] sm:$0xf]
        %v3993 = vld [vmem:[#allocation5 + $0x108] sm:$0xf]
        %v3994 = vld [vmem:[#allocation5 + $0x10c] sm:$0xf]
        %v3995 = vld [vmem:[#allocation5 + $0x110] sm:$0xf]
        %v3996 = vld [vmem:[#allocation5 + $0x114] sm:$0xf]
        %v3997 = vld [vmem:[#allocation5 + $0x118] sm:$0xf]
        %v3998 = vld [vmem:[#allocation5 + $0x11c] sm:$0xf]
        %v3999 = vld [vmem:[#allocation5 + $0x120] sm:$0xf]
        %v4000 = vld [vmem:[#allocation5 + $0x124] sm:$0xf]
        %v4001 = vld [vmem:[#allocation5 + $0x128] sm:$0xf]
        %v4002 = vld [vmem:[#allocation5 + $0x12c] sm:$0xf]
        %v4003 = vld [vmem:[#allocation5 + $0x130] sm:$0xf]
        %v4004 = vld [vmem:[#allocation5 + $0x134] sm:$0xf]
        %v4005 = vld [vmem:[#allocation5 + $0x138] sm:$0xf]
        %v4006 = vld [vmem:[#allocation5 + $0x13c] sm:$0xf]
        %v4007 = vld [vmem:[#allocation5 + $0x140] sm:$0xf]
        %v4008 = vld [vmem:[#allocation5 + $0x144] sm:$0xf]
        %v4009 = vld [vmem:[#allocation5 + $0x148] sm:$0xf]
        %v4010 = vld [vmem:[#allocation5 + $0x14c] sm:$0xf]
        %v4011 = vld [vmem:[#allocation5 + $0x150] sm:$0xf]
        %v4012 = vld [vmem:[#allocation5 + $0x154] sm:$0xf]
        %v4013 = vld [vmem:[#allocation5 + $0x158] sm:$0xf]
        %v4014 = vld [vmem:[#allocation5 + $0x15c] sm:$0xf]
        %v4015 = vld [vmem:[#allocation5 + $0x160] sm:$0xf]
        %v4016 = vld [vmem:[#allocation5 + $0x164] sm:$0xf]
        %v4017 = vld [vmem:[#allocation5 + $0x168] sm:$0xf]
        %v4018 = vld [vmem:[#allocation5 + $0x16c] sm:$0xf]
        %v4019 = vld [vmem:[#allocation5 + $0x170] sm:$0xf]
        %v4020 = vld [vmem:[#allocation5 + $0x174] sm:$0xf]
        %v4021 = vld [vmem:[#allocation5 + $0x178] sm:$0xf]
        %v4022 = vld [vmem:[#allocation5 + $0x17c] sm:$0xf]
        %v4023 = vld [vmem:[#allocation5 + $0x180] sm:$0xf]
        %v4024 = vld [vmem:[#allocation5 + $0x184] sm:$0xf]
        %v4025 = vld [vmem:[#allocation5 + $0x188] sm:$0xf]
        %v4026 = vld [vmem:[#allocation5 + $0x18c] sm:$0xf]
        %v4027 = vld [vmem:[#allocation5 + $0x190] sm:$0xf]
        %v4028 = vld [vmem:[#allocation5 + $0x194] sm:$0xf]
        %v4029 = vld [vmem:[#allocation5 + $0x198] sm:$0xf]
        %v4030 = vld [vmem:[#allocation5 + $0x19c] sm:$0xf]
        %v4031 = vld [vmem:[#allocation5 + $0x1a0] sm:$0xf]
        %v4032 = vld [vmem:[#allocation5 + $0x1a4] sm:$0xf]
        %v4033 = vld [vmem:[#allocation5 + $0x1a8] sm:$0xf]
        %v4034 = vld [vmem:[#allocation5 + $0x1ac] sm:$0xf]
        %v4035 = vld [vmem:[#allocation5 + $0x1b0] sm:$0xf]
        %v4036 = vld [vmem:[#allocation5 + $0x1b4] sm:$0xf]
        %v4037 = vld [vmem:[#allocation5 + $0x1b8] sm:$0xf]
        %v4038 = vld [vmem:[#allocation5 + $0x1bc] sm:$0xf]
        %v4039 = vld [vmem:[#allocation5 + $0x1c0] sm:$0xf]
        %v4040 = vld [vmem:[#allocation5 + $0x1c4] sm:$0xf]
        %v4041 = vld [vmem:[#allocation5 + $0x1c8] sm:$0xf]
        %v4042 = vld [vmem:[#allocation5 + $0x1cc] sm:$0xf]
        %v4043 = vld [vmem:[#allocation5 + $0x1d0] sm:$0xf]
        %v4044 = vld [vmem:[#allocation5 + $0x1d4] sm:$0xf]
        %v4045 = vld [vmem:[#allocation5 + $0x1d8] sm:$0xf]
        %v4046 = vld [vmem:[#allocation5 + $0x1dc] sm:$0xf]
        %v4047 = vld [vmem:[#allocation5 + $0x1e0] sm:$0xf]
        %v4048 = vld [vmem:[#allocation5 + $0x1e4] sm:$0xf]
        %v4049 = vld [vmem:[#allocation5 + $0x1e8] sm:$0xf]
        %v4050 = vld [vmem:[#allocation5 + $0x1ec] sm:$0xf]
        %v4051 = vld [vmem:[#allocation5 + $0x1f0] sm:$0xf]
        %v4052 = vld [vmem:[#allocation5 + $0x1f4] sm:$0xf]
        %v4053 = vld [vmem:[#allocation5 + $0x1f8] sm:$0xf]
        %v4054 = vld [vmem:[#allocation5 + $0x1fc] sm:$0xf]
        %v4055 = vld [vmem:[#allocation5 + $0x200] sm:$0xf]
        %v4056 = vld [vmem:[#allocation5 + $0x204] sm:$0xf]
        %v4057 = vld [vmem:[#allocation5 + $0x208] sm:$0xf]
        %v4058 = vld [vmem:[#allocation5 + $0x20c] sm:$0xf]
        %v4059 = vld [vmem:[#allocation5 + $0x210] sm:$0xf]
        %v4060 = vld [vmem:[#allocation5 + $0x214] sm:$0xf]
        %v4061 = vld [vmem:[#allocation5 + $0x218] sm:$0xf]
        %v4062 = vld [vmem:[#allocation5 + $0x21c] sm:$0xf]
        %v4063 = vld [vmem:[#allocation5 + $0x220] sm:$0xf]
        %v4064 = vld [vmem:[#allocation5 + $0x224] sm:$0xf]
        %v4065 = vld [vmem:[#allocation5 + $0x228] sm:$0xf]
        %v4066 = vld [vmem:[#allocation5 + $0x22c] sm:$0xf]
        %v4067 = vld [vmem:[#allocation5 + $0x230] sm:$0xf]
        %v4068 = vld [vmem:[#allocation5 + $0x234] sm:$0xf]
        %v4069 = vld [vmem:[#allocation5 + $0x238] sm:$0xf]
        %v4070 = vld [vmem:[#allocation5 + $0x23c] sm:$0xf]
        %v4071 = vld [vmem:[%s4] sm:$0x1]
        %v4073 = vperm.slane %v4071, 0
        %v4219 = vunpack.c.l.b16 %v3927
        %v4220 = vunpack.c.l.b16 %v3928
        %v4221 = vunpack.c.l.b16 %v3929
        %v4222 = vunpack.c.l.b16 %v3930
        %v4223 = vunpack.c.l.b16 %v3931
        %v4224 = vunpack.c.l.b16 %v3932
        %v4225 = vunpack.c.l.b16 %v3933
        %v4226 = vunpack.c.l.b16 %v3934
        %v4227 = vunpack.c.l.b16 %v3935
        %v4228 = vunpack.c.l.b16 %v3936
        %v4229 = vunpack.c.l.b16 %v3937
        %v4230 = vunpack.c.l.b16 %v3938
        %v4231 = vunpack.c.l.b16 %v3939
        %v4232 = vunpack.c.l.b16 %v3940
        %v4233 = vunpack.c.l.b16 %v3941
        %v4234 = vunpack.c.l.b16 %v3942
        %v4235 = vunpack.c.l.b16 %v3943
        %v4236 = vunpack.c.l.b16 %v3944
        %v4237 = vunpack.c.l.b16 %v3945
        %v4238 = vunpack.c.l.b16 %v3946
        %v4239 = vunpack.c.l.b16 %v3947
        %v4240 = vunpack.c.l.b16 %v3948
        %v4241 = vunpack.c.l.b16 %v3949
        %v4242 = vunpack.c.l.b16 %v3950
        %v4243 = vunpack.c.l.b16 %v3951
        %v4244 = vunpack.c.l.b16 %v3952
        %v4245 = vunpack.c.l.b16 %v3953
        %v4246 = vunpack.c.l.b16 %v3954
        %v4247 = vunpack.c.l.b16 %v3955
        %v4248 = vunpack.c.l.b16 %v3956
        %v4249 = vunpack.c.l.b16 %v3957
        %v4250 = vunpack.c.l.b16 %v3958
        %v4251 = vunpack.c.l.b16 %v3959
        %v4252 = vunpack.c.l.b16 %v3960
        %v4253 = vunpack.c.l.b16 %v3961
        %v4254 = vunpack.c.l.b16 %v3962
        %v4255 = vunpack.c.l.b16 %v3963
        %v4256 = vunpack.c.l.b16 %v3964
        %v4257 = vunpack.c.l.b16 %v3965
        %v4258 = vunpack.c.l.b16 %v3966
        %v4259 = vunpack.c.l.b16 %v3967
        %v4260 = vunpack.c.l.b16 %v3968
        %v4261 = vunpack.c.l.b16 %v3969
        %v4262 = vunpack.c.l.b16 %v3970
        %v4263 = vunpack.c.l.b16 %v3971
        %v4264 = vunpack.c.l.b16 %v3972
        %v4265 = vunpack.c.l.b16 %v3973
        %v4266 = vunpack.c.l.b16 %v3974
        %v4267 = vunpack.c.l.b16 %v3975
        %v4268 = vunpack.c.l.b16 %v3976
        %v4269 = vunpack.c.l.b16 %v3977
        %v4270 = vunpack.c.l.b16 %v3978
        %v4271 = vunpack.c.l.b16 %v3979
        %v4272 = vunpack.c.l.b16 %v3980
        %v4273 = vunpack.c.l.b16 %v3981
        %v4274 = vunpack.c.l.b16 %v3982
        %v4275 = vunpack.c.l.b16 %v3983
        %v4276 = vunpack.c.l.b16 %v3984
        %v4277 = vunpack.c.l.b16 %v3985
        %v4278 = vunpack.c.l.b16 %v3986
        %v4279 = vunpack.c.l.b16 %v3987
        %v4280 = vunpack.c.l.b16 %v3988
        %v4281 = vunpack.c.l.b16 %v3989
        %v4282 = vunpack.c.l.b16 %v3990
        %v4283 = vunpack.c.l.b16 %v3991
        %v4284 = vunpack.c.l.b16 %v3992
        %v4285 = vunpack.c.l.b16 %v3993
        %v4286 = vunpack.c.l.b16 %v3994
        %v4287 = vunpack.c.l.b16 %v3995
        %v4288 = vunpack.c.l.b16 %v3996
        %v4289 = vunpack.c.l.b16 %v3997
        %v4290 = vunpack.c.l.b16 %v3998
        %v4291 = vunpack.c.l.b16 %v3999
        %v4292 = vunpack.c.l.b16 %v4000
        %v4293 = vunpack.c.l.b16 %v4001
        %v4294 = vunpack.c.l.b16 %v4002
        %v4295 = vunpack.c.l.b16 %v4003
        %v4296 = vunpack.c.l.b16 %v4004
        %v4297 = vunpack.c.l.b16 %v4005
        %v4298 = vunpack.c.l.b16 %v4006
        %v4299 = vunpack.c.l.b16 %v4007
        %v4300 = vunpack.c.l.b16 %v4008
        %v4301 = vunpack.c.l.b16 %v4009
        %v4302 = vunpack.c.l.b16 %v4010
        %v4303 = vunpack.c.l.b16 %v4011
        %v4304 = vunpack.c.l.b16 %v4012
        %v4305 = vunpack.c.l.b16 %v4013
        %v4306 = vunpack.c.l.b16 %v4014
        %v4307 = vunpack.c.l.b16 %v4015
        %v4308 = vunpack.c.l.b16 %v4016
        %v4309 = vunpack.c.l.b16 %v4017
        %v4310 = vunpack.c.l.b16 %v4018
        %v4311 = vunpack.c.l.b16 %v4019
        %v4312 = vunpack.c.l.b16 %v4020
        %v4313 = vunpack.c.l.b16 %v4021
        %v4314 = vunpack.c.l.b16 %v4022
        %v4315 = vunpack.c.l.b16 %v4023
        %v4316 = vunpack.c.l.b16 %v4024
        %v4317 = vunpack.c.l.b16 %v4025
        %v4318 = vunpack.c.l.b16 %v4026
        %v4319 = vunpack.c.l.b16 %v4027
        %v4320 = vunpack.c.l.b16 %v4028
        %v4321 = vunpack.c.l.b16 %v4029
        %v4322 = vunpack.c.l.b16 %v4030
        %v4323 = vunpack.c.l.b16 %v4031
        %v4324 = vunpack.c.l.b16 %v4032
        %v4325 = vunpack.c.l.b16 %v4033
        %v4326 = vunpack.c.l.b16 %v4034
        %v4327 = vunpack.c.l.b16 %v4035
        %v4328 = vunpack.c.l.b16 %v4036
        %v4329 = vunpack.c.l.b16 %v4037
        %v4330 = vunpack.c.l.b16 %v4038
        %v4331 = vunpack.c.l.b16 %v4039
        %v4332 = vunpack.c.l.b16 %v4040
        %v4333 = vunpack.c.l.b16 %v4041
        %v4334 = vunpack.c.l.b16 %v4042
        %v4335 = vunpack.c.l.b16 %v4043
        %v4336 = vunpack.c.l.b16 %v4044
        %v4337 = vunpack.c.l.b16 %v4045
        %v4338 = vunpack.c.l.b16 %v4046
        %v4339 = vunpack.c.l.b16 %v4047
        %v4340 = vunpack.c.l.b16 %v4048
        %v4341 = vunpack.c.l.b16 %v4049
        %v4342 = vunpack.c.l.b16 %v4050
        %v4343 = vunpack.c.l.b16 %v4051
        %v4344 = vunpack.c.l.b16 %v4052
        %v4345 = vunpack.c.l.b16 %v4053
        %v4346 = vunpack.c.l.b16 %v4054
        %v4347 = vunpack.c.l.b16 %v4055
        %v4348 = vunpack.c.l.b16 %v4056
        %v4349 = vunpack.c.l.b16 %v4057
        %v4350 = vunpack.c.l.b16 %v4058
        %v4351 = vunpack.c.l.b16 %v4059
        %v4352 = vunpack.c.l.b16 %v4060
        %v4353 = vunpack.c.l.b16 %v4061
        %v4354 = vunpack.c.l.b16 %v4062
        %v4355 = vunpack.c.l.b16 %v4063
        %v4356 = vunpack.c.l.b16 %v4064
        %v4357 = vunpack.c.l.b16 %v4065
        %v4358 = vunpack.c.l.b16 %v4066
        %v4359 = vunpack.c.l.b16 %v4067
        %v4360 = vunpack.c.l.b16 %v4068
        %v4361 = vunpack.c.l.b16 %v4069
        %v4362 = vunpack.c.l.b16 %v4070
        %v4363 = vpack.c.b16 %v4220, %v4219
        %v4364 = vpack.c.b16 %v4222, %v4221
        %v4365 = vpack.c.b16 %v4224, %v4223
        %v4366 = vpack.c.b16 %v4226, %v4225
        %v4367 = vpack.c.b16 %v4228, %v4227
        %v4368 = vpack.c.b16 %v4230, %v4229
        %v4369 = vpack.c.b16 %v4232, %v4231
        %v4370 = vpack.c.b16 %v4234, %v4233
        %v4371 = vpack.c.b16 %v4236, %v4235
        %v4372 = vpack.c.b16 %v4238, %v4237
        %v4373 = vpack.c.b16 %v4240, %v4239
        %v4374 = vpack.c.b16 %v4242, %v4241
        %v4375 = vpack.c.b16 %v4244, %v4243
        %v4376 = vpack.c.b16 %v4246, %v4245
        %v4377 = vpack.c.b16 %v4248, %v4247
        %v4378 = vpack.c.b16 %v4250, %v4249
        %v4379 = vpack.c.b16 %v4252, %v4251
        %v4380 = vpack.c.b16 %v4254, %v4253
        %v4381 = vpack.c.b16 %v4256, %v4255
        %v4382 = vpack.c.b16 %v4258, %v4257
        %v4383 = vpack.c.b16 %v4260, %v4259
        %v4384 = vpack.c.b16 %v4262, %v4261
        %v4385 = vpack.c.b16 %v4264, %v4263
        %v4386 = vpack.c.b16 %v4266, %v4265
        %v4387 = vpack.c.b16 %v4268, %v4267
        %v4388 = vpack.c.b16 %v4270, %v4269
        %v4389 = vpack.c.b16 %v4272, %v4271
        %v4390 = vpack.c.b16 %v4274, %v4273
        %v4391 = vpack.c.b16 %v4276, %v4275
        %v4392 = vpack.c.b16 %v4278, %v4277
        %v4393 = vpack.c.b16 %v4280, %v4279
        %v4394 = vpack.c.b16 %v4282, %v4281
        %v4395 = vpack.c.b16 %v4284, %v4283
        %v4396 = vpack.c.b16 %v4286, %v4285
        %v4397 = vpack.c.b16 %v4288, %v4287
        %v4398 = vpack.c.b16 %v4290, %v4289
        %v4399 = vpack.c.b16 %v4292, %v4291
        %v4400 = vpack.c.b16 %v4294, %v4293
        %v4401 = vpack.c.b16 %v4296, %v4295
        %v4402 = vpack.c.b16 %v4298, %v4297
        %v4403 = vpack.c.b16 %v4300, %v4299
        %v4404 = vpack.c.b16 %v4302, %v4301
        %v4405 = vpack.c.b16 %v4304, %v4303
        %v4406 = vpack.c.b16 %v4306, %v4305
        %v4407 = vpack.c.b16 %v4308, %v4307
        %v4408 = vpack.c.b16 %v4310, %v4309
        %v4409 = vpack.c.b16 %v4312, %v4311
        %v4410 = vpack.c.b16 %v4314, %v4313
        %v4411 = vpack.c.b16 %v4316, %v4315
        %v4412 = vpack.c.b16 %v4318, %v4317
        %v4413 = vpack.c.b16 %v4320, %v4319
        %v4414 = vpack.c.b16 %v4322, %v4321
        %v4415 = vpack.c.b16 %v4324, %v4323
        %v4416 = vpack.c.b16 %v4326, %v4325
        %v4417 = vpack.c.b16 %v4328, %v4327
        %v4418 = vpack.c.b16 %v4330, %v4329
        %v4419 = vpack.c.b16 %v4332, %v4331
        %v4420 = vpack.c.b16 %v4334, %v4333
        %v4421 = vpack.c.b16 %v4336, %v4335
        %v4422 = vpack.c.b16 %v4338, %v4337
        %v4423 = vpack.c.b16 %v4340, %v4339
        %v4424 = vpack.c.b16 %v4342, %v4341
        %v4425 = vpack.c.b16 %v4344, %v4343
        %v4426 = vpack.c.b16 %v4346, %v4345
        %v4427 = vpack.c.b16 %v4348, %v4347
        %v4428 = vpack.c.b16 %v4350, %v4349
        %v4429 = vpack.c.b16 %v4352, %v4351
        %v4430 = vpack.c.b16 %v4354, %v4353
        %v4431 = vpack.c.b16 %v4356, %v4355
        %v4432 = vpack.c.b16 %v4358, %v4357
        %v4433 = vpack.c.b16 %v4360, %v4359
        %v4434 = vpack.c.b16 %v4362, %v4361
        %4507 = vmatpush.bf16.msra.mxu0 %v4370
        %4508 = vmatpush.bf16.msra.mxu0 %v4369
        %4509 = vmatpush.bf16.msra.mxu0 %v4368
        %4510 = vmatpush.bf16.msra.mxu0 %v4367
        %4511 = vmatpush.bf16.msra.mxu0 %v4366
        %4512 = vmatpush.bf16.msra.mxu0 %v4365
        %4513 = vmatpush.bf16.msra.mxu0 %v4364
        %4514 = vmatpush.bf16.msra.mxu0 %v4363
        %4515 = vmatmul.bf16.gmra.mxu0 0
        %v4516 = vpop.f32.mrf.mxu0
        %v4517 = vadd.f32 %v4073, %v4516
        %v4518 = vpop.f32.mrf.mxu0
        %v4519 = vadd.f32 %v4073, %v4518
        %4520 = vmatmul.bf16.gmra.mxu0 %v3553
        %v4521 = vpop.f32.mrf.mxu0
        %v4522 = vadd.f32 %v4073, %v4521
        %v4523 = vpop.f32.mrf.mxu0
        %v4524 = vadd.f32 %v4073, %v4523
        %4525 = vmatmul.bf16.gmra.mxu0 %v3554
        %v4526 = vpop.f32.mrf.mxu0
        %v4527 = vadd.f32 %v4073, %v4526
        %v4528 = vpop.f32.mrf.mxu0
        %v4529 = vadd.f32 %v4073, %v4528
        %4530 = vmatmul.bf16.gmra.mxu0 %v3555
        %v4531 = vpop.f32.mrf.mxu0
        %v4532 = vadd.f32 %v4073, %v4531
        %v4533 = vpop.f32.mrf.mxu0
        %v4534 = vadd.f32 %v4073, %v4533
        %4535 = vmatmul.bf16.gmra.mxu0 %v3556
        %v4536 = vpop.f32.mrf.mxu0
        %v4537 = vadd.f32 %v4073, %v4536
        %v4538 = vpop.f32.mrf.mxu0
        %v4539 = vadd.f32 %v4073, %v4538
        %4540 = vmatmul.bf16.gmra.mxu0 %v3557
        %v4541 = vpop.f32.mrf.mxu0
        %v4542 = vadd.f32 %v4073, %v4541
        %v4543 = vpop.f32.mrf.mxu0
        %v4544 = vadd.f32 %v4073, %v4543
        %4545 = vmatmul.bf16.gmra.mxu0 %v3558
        %v4546 = vpop.f32.mrf.mxu0
        %v4547 = vadd.f32 %v4073, %v4546
        %v4548 = vpop.f32.mrf.mxu0
        %v4549 = vadd.f32 %v4073, %v4548
        %4550 = vmatmul.bf16.gmra.mxu0 %v3559
        %v4551 = vpop.f32.mrf.mxu0
        %v4552 = vadd.f32 %v4073, %v4551
        %v4553 = vpop.f32.mrf.mxu0
        %v4554 = vadd.f32 %v4073, %v4553
        %4555 = vmatmul.bf16.gmra.mxu0 %v3560
        %v4556 = vpop.f32.mrf.mxu0
        %v4557 = vadd.f32 %v4073, %v4556
        %v4558 = vpop.f32.mrf.mxu0
        %v4559 = vadd.f32 %v4073, %v4558
        %4560 = vmatmul.bf16.gmra.mxu0 %v3561
        %v4561 = vpop.f32.mrf.mxu0
        %v4562 = vadd.f32 %v4073, %v4561
        %v4563 = vpop.f32.mrf.mxu0
        %v4564 = vadd.f32 %v4073, %v4563
        %4565 = vmatmul.bf16.gmra.mxu0 %v3562
        %v4566 = vpop.f32.mrf.mxu0
        %v4567 = vadd.f32 %v4073, %v4566
        %v4568 = vpop.f32.mrf.mxu0
        %v4569 = vadd.f32 %v4073, %v4568
        %4570 = vmatmul.bf16.gmra.mxu0 %v3563
        %v4571 = vpop.f32.mrf.mxu0
        %v4572 = vadd.f32 %v4073, %v4571
        %v4573 = vpop.f32.mrf.mxu0
        %v4574 = vadd.f32 %v4073, %v4573
        %4575 = vmatmul.bf16.gmra.mxu0 %v3564
        %v4576 = vpop.f32.mrf.mxu0
        %v4577 = vadd.f32 %v4073, %v4576
        %v4578 = vpop.f32.mrf.mxu0
        %v4579 = vadd.f32 %v4073, %v4578
        %4580 = vmatmul.bf16.gmra.mxu0 %v3565
        %v4581 = vpop.f32.mrf.mxu0
        %v4582 = vadd.f32 %v4073, %v4581
        %v4583 = vpop.f32.mrf.mxu0
        %v4584 = vadd.f32 %v4073, %v4583
        %4585 = vmatmul.bf16.gmra.mxu0 %v3566
        %v4586 = vpop.f32.mrf.mxu0
        %v4587 = vadd.f32 %v4073, %v4586
        %v4588 = vpop.f32.mrf.mxu0
        %v4589 = vadd.f32 %v4073, %v4588
        %4590 = vmatmul.bf16.gmra.mxu0 %v3567
        %v4591 = vpop.f32.mrf.mxu0
        %v4592 = vadd.f32 %v4073, %v4591
        %v4593 = vpop.f32.mrf.mxu0
        %v4594 = vadd.f32 %v4073, %v4593
        %4595 = vdwg.mxu0
        %4596 = vmatpush.bf16.msra.mxu0 %v4378
        %4597 = vmatpush.bf16.msra.mxu0 %v4377
        %4598 = vmatpush.bf16.msra.mxu0 %v4376
        %4599 = vmatpush.bf16.msra.mxu0 %v4375
        %4600 = vmatpush.bf16.msra.mxu0 %v4374
        %4601 = vmatpush.bf16.msra.mxu0 %v4373
        %4602 = vmatpush.bf16.msra.mxu0 %v4372
        %4603 = vmatpush.bf16.msra.mxu0 %v4371
        %4604 = vmatmul.bf16.gmra.mxu0 0
        %v4605 = vpop.f32.mrf.mxu0
        %v4606 = vadd.f32 %v4517, %v4605
        %v4607 = vpop.f32.mrf.mxu0
        %v4608 = vadd.f32 %v4519, %v4607
        %4609 = vmatmul.bf16.gmra.mxu0 %v3403
        %v4610 = vpop.f32.mrf.mxu0
        %v4611 = vadd.f32 %v4522, %v4610
        %v4612 = vpop.f32.mrf.mxu0
        %v4613 = vadd.f32 %v4524, %v4612
        %4614 = vmatmul.bf16.gmra.mxu0 %v3404
        %v4615 = vpop.f32.mrf.mxu0
        %v4616 = vadd.f32 %v4527, %v4615
        %v4617 = vpop.f32.mrf.mxu0
        %v4618 = vadd.f32 %v4529, %v4617
        %4619 = vmatmul.bf16.gmra.mxu0 %v3405
        %v4620 = vpop.f32.mrf.mxu0
        %v4621 = vadd.f32 %v4532, %v4620
        %v4622 = vpop.f32.mrf.mxu0
        %v4623 = vadd.f32 %v4534, %v4622
        %4624 = vmatmul.bf16.gmra.mxu0 %v3406
        %v4625 = vpop.f32.mrf.mxu0
        %v4626 = vadd.f32 %v4537, %v4625
        %v4627 = vpop.f32.mrf.mxu0
        %v4628 = vadd.f32 %v4539, %v4627
        %4629 = vmatmul.bf16.gmra.mxu0 %v3407
        %v4630 = vpop.f32.mrf.mxu0
        %v4631 = vadd.f32 %v4542, %v4630
        %v4632 = vpop.f32.mrf.mxu0
        %v4633 = vadd.f32 %v4544, %v4632
        %4634 = vmatmul.bf16.gmra.mxu0 %v3408
        %v4635 = vpop.f32.mrf.mxu0
        %v4636 = vadd.f32 %v4547, %v4635
        %v4637 = vpop.f32.mrf.mxu0
        %v4638 = vadd.f32 %v4549, %v4637
        %4639 = vmatmul.bf16.gmra.mxu0 %v3409
        %v4640 = vpop.f32.mrf.mxu0
        %v4641 = vadd.f32 %v4552, %v4640
        %v4642 = vpop.f32.mrf.mxu0
        %v4643 = vadd.f32 %v4554, %v4642
        %4644 = vmatmul.bf16.gmra.mxu0 %v3410
        %v4645 = vpop.f32.mrf.mxu0
        %v4646 = vadd.f32 %v4557, %v4645
        %v4647 = vpop.f32.mrf.mxu0
        %v4648 = vadd.f32 %v4559, %v4647
        %4649 = vmatmul.bf16.gmra.mxu0 %v3411
        %v4650 = vpop.f32.mrf.mxu0
        %v4651 = vadd.f32 %v4562, %v4650
        %v4652 = vpop.f32.mrf.mxu0
        %v4653 = vadd.f32 %v4564, %v4652
        %4654 = vmatmul.bf16.gmra.mxu0 %v3412
        %v4655 = vpop.f32.mrf.mxu0
        %v4656 = vadd.f32 %v4567, %v4655
        %v4657 = vpop.f32.mrf.mxu0
        %v4658 = vadd.f32 %v4569, %v4657
        %4659 = vmatmul.bf16.gmra.mxu0 %v3413
        %v4660 = vpop.f32.mrf.mxu0
        %v4661 = vadd.f32 %v4572, %v4660
        %v4662 = vpop.f32.mrf.mxu0
        %v4663 = vadd.f32 %v4574, %v4662
        %4664 = vmatmul.bf16.gmra.mxu0 %v3414
        %v4665 = vpop.f32.mrf.mxu0
        %v4666 = vadd.f32 %v4577, %v4665
        %v4667 = vpop.f32.mrf.mxu0
        %v4668 = vadd.f32 %v4579, %v4667
        %4669 = vmatmul.bf16.gmra.mxu0 %v3415
        %v4670 = vpop.f32.mrf.mxu0
        %v4671 = vadd.f32 %v4582, %v4670
        %v4672 = vpop.f32.mrf.mxu0
        %v4673 = vadd.f32 %v4584, %v4672
        %4674 = vmatmul.bf16.gmra.mxu0 %v3416
        %v4675 = vpop.f32.mrf.mxu0
        %v4676 = vadd.f32 %v4587, %v4675
        %v4677 = vpop.f32.mrf.mxu0
        %v4678 = vadd.f32 %v4589, %v4677
        %4679 = vmatmul.bf16.gmra.mxu0 %v3417
        %v4680 = vpop.f32.mrf.mxu0
        %v4681 = vadd.f32 %v4592, %v4680
        %v4682 = vpop.f32.mrf.mxu0
        %v4683 = vadd.f32 %v4594, %v4682
        %4684 = vdwg.mxu0
        %4685 = vmatpush.bf16.msra.mxu0 %v4386
        %4686 = vmatpush.bf16.msra.mxu0 %v4385
        %4687 = vmatpush.bf16.msra.mxu0 %v4384
        %4688 = vmatpush.bf16.msra.mxu0 %v4383
        %4689 = vmatpush.bf16.msra.mxu0 %v4382
        %4690 = vmatpush.bf16.msra.mxu0 %v4381
        %4691 = vmatpush.bf16.msra.mxu0 %v4380
        %4692 = vmatpush.bf16.msra.mxu0 %v4379
        %4693 = vmatmul.bf16.gmra.mxu0 %v3652
        %v4694 = vpop.f32.mrf.mxu0
        %v4695 = vadd.f32 %v4606, %v4694
        %v4696 = vpop.f32.mrf.mxu0
        %v4697 = vadd.f32 %v4608, %v4696
        %4698 = vmatmul.bf16.gmra.mxu0 %v3653
        %v4699 = vpop.f32.mrf.mxu0
        %v4700 = vadd.f32 %v4611, %v4699
        %v4701 = vpop.f32.mrf.mxu0
        %v4702 = vadd.f32 %v4613, %v4701
        %4703 = vmatmul.bf16.gmra.mxu0 %v3654
        %v4704 = vpop.f32.mrf.mxu0
        %v4705 = vadd.f32 %v4616, %v4704
        %v4706 = vpop.f32.mrf.mxu0
        %v4707 = vadd.f32 %v4618, %v4706
        %4708 = vmatmul.bf16.gmra.mxu0 %v3655
        %v4709 = vpop.f32.mrf.mxu0
        %v4710 = vadd.f32 %v4621, %v4709
        %v4711 = vpop.f32.mrf.mxu0
        %v4712 = vadd.f32 %v4623, %v4711
        %4713 = vmatmul.bf16.gmra.mxu0 %v3656
        %v4714 = vpop.f32.mrf.mxu0
        %v4715 = vadd.f32 %v4626, %v4714
        %v4716 = vpop.f32.mrf.mxu0
        %v4717 = vadd.f32 %v4628, %v4716
        %4718 = vmatmul.bf16.gmra.mxu0 %v3657
        %v4719 = vpop.f32.mrf.mxu0
        %v4720 = vadd.f32 %v4631, %v4719
        %v4721 = vpop.f32.mrf.mxu0
        %v4722 = vadd.f32 %v4633, %v4721
        %4723 = vmatmul.bf16.gmra.mxu0 %v3658
        %v4724 = vpop.f32.mrf.mxu0
        %v4725 = vadd.f32 %v4636, %v4724
        %v4726 = vpop.f32.mrf.mxu0
        %v4727 = vadd.f32 %v4638, %v4726
        %4728 = vmatmul.bf16.gmra.mxu0 %v3659
        %v4729 = vpop.f32.mrf.mxu0
        %v4730 = vadd.f32 %v4641, %v4729
        %v4731 = vpop.f32.mrf.mxu0
        %v4732 = vadd.f32 %v4643, %v4731
        %4733 = vmatmul.bf16.gmra.mxu0 %v3660
        %v4734 = vpop.f32.mrf.mxu0
        %v4735 = vadd.f32 %v4646, %v4734
        %v4736 = vpop.f32.mrf.mxu0
        %v4737 = vadd.f32 %v4648, %v4736
        %4738 = vmatmul.bf16.gmra.mxu0 %v3661
        %v4739 = vpop.f32.mrf.mxu0
        %v4740 = vadd.f32 %v4651, %v4739
        %v4741 = vpop.f32.mrf.mxu0
        %v4742 = vadd.f32 %v4653, %v4741
        %4743 = vmatmul.bf16.gmra.mxu0 %v3662
        %v4744 = vpop.f32.mrf.mxu0
        %v4745 = vadd.f32 %v4656, %v4744
        %v4746 = vpop.f32.mrf.mxu0
        %v4747 = vadd.f32 %v4658, %v4746
        %4748 = vmatmul.bf16.gmra.mxu0 %v3663
        %v4749 = vpop.f32.mrf.mxu0
        %v4750 = vadd.f32 %v4661, %v4749
        %v4751 = vpop.f32.mrf.mxu0
        %v4752 = vadd.f32 %v4663, %v4751
        %4753 = vmatmul.bf16.gmra.mxu0 %v3664
        %v4754 = vpop.f32.mrf.mxu0
        %v4755 = vadd.f32 %v4666, %v4754
        %v4756 = vpop.f32.mrf.mxu0
        %v4757 = vadd.f32 %v4668, %v4756
        %4758 = vmatmul.bf16.gmra.mxu0 %v3665
        %v4759 = vpop.f32.mrf.mxu0
        %v4760 = vadd.f32 %v4671, %v4759
        %v4761 = vpop.f32.mrf.mxu0
        %v4762 = vadd.f32 %v4673, %v4761
        %4763 = vmatmul.bf16.gmra.mxu0 %v3666
        %v4764 = vpop.f32.mrf.mxu0
        %v4765 = vadd.f32 %v4676, %v4764
        %v4766 = vpop.f32.mrf.mxu0
        %v4767 = vadd.f32 %v4678, %v4766
        %4768 = vmatmul.bf16.gmra.mxu0 %v3667
        %v4769 = vpop.f32.mrf.mxu0
        %v4770 = vadd.f32 %v4681, %v4769
        %v4771 = vpop.f32.mrf.mxu0
        %v4772 = vadd.f32 %v4683, %v4771
        %4773 = vdwg.mxu0
        %4774 = vmatpush.bf16.msra.mxu0 %v4394
        %4775 = vmatpush.bf16.msra.mxu0 %v4393
        %4776 = vmatpush.bf16.msra.mxu0 %v4392
        %4777 = vmatpush.bf16.msra.mxu0 %v4391
        %4778 = vmatpush.bf16.msra.mxu0 %v4390
        %4779 = vmatpush.bf16.msra.mxu0 %v4389
        %4780 = vmatpush.bf16.msra.mxu0 %v4388
        %4781 = vmatpush.bf16.msra.mxu0 %v4387
        %4782 = vmatmul.bf16.gmra.mxu0 %v3680
        %v4783 = vpop.f32.mrf.mxu0
        %v4784 = vadd.f32 %v4695, %v4783
        %v4785 = vpop.f32.mrf.mxu0
        %v4786 = vadd.f32 %v4697, %v4785
        %4787 = vmatmul.bf16.gmra.mxu0 %v3681
        %v4788 = vpop.f32.mrf.mxu0
        %v4789 = vadd.f32 %v4700, %v4788
        %v4790 = vpop.f32.mrf.mxu0
        %v4791 = vadd.f32 %v4702, %v4790
        %4792 = vmatmul.bf16.gmra.mxu0 %v3682
        %v4793 = vpop.f32.mrf.mxu0
        %v4794 = vadd.f32 %v4705, %v4793
        %v4795 = vpop.f32.mrf.mxu0
        %v4796 = vadd.f32 %v4707, %v4795
        %4797 = vmatmul.bf16.gmra.mxu0 %v3683
        %v4798 = vpop.f32.mrf.mxu0
        %v4799 = vadd.f32 %v4710, %v4798
        %v4800 = vpop.f32.mrf.mxu0
        %v4801 = vadd.f32 %v4712, %v4800
        %4802 = vmatmul.bf16.gmra.mxu0 %v3684
        %v4803 = vpop.f32.mrf.mxu0
        %v4804 = vadd.f32 %v4715, %v4803
        %v4805 = vpop.f32.mrf.mxu0
        %v4806 = vadd.f32 %v4717, %v4805
        %4807 = vmatmul.bf16.gmra.mxu0 %v3685
        %v4808 = vpop.f32.mrf.mxu0
        %v4809 = vadd.f32 %v4720, %v4808
        %v4810 = vpop.f32.mrf.mxu0
        %v4811 = vadd.f32 %v4722, %v4810
        %4812 = vmatmul.bf16.gmra.mxu0 %v3686
        %v4813 = vpop.f32.mrf.mxu0
        %v4814 = vadd.f32 %v4725, %v4813
        %v4815 = vpop.f32.mrf.mxu0
        %v4816 = vadd.f32 %v4727, %v4815
        %4817 = vmatmul.bf16.gmra.mxu0 %v3687
        %v4818 = vpop.f32.mrf.mxu0
        %v4819 = vadd.f32 %v4730, %v4818
        %v4820 = vpop.f32.mrf.mxu0
        %v4821 = vadd.f32 %v4732, %v4820
        %4822 = vmatmul.bf16.gmra.mxu0 %v3688
        %v4823 = vpop.f32.mrf.mxu0
        %v4824 = vadd.f32 %v4735, %v4823
        %v4825 = vpop.f32.mrf.mxu0
        %v4826 = vadd.f32 %v4737, %v4825
        %4827 = vmatmul.bf16.gmra.mxu0 %v3689
        %v4828 = vpop.f32.mrf.mxu0
        %v4829 = vadd.f32 %v4740, %v4828
        %v4830 = vpop.f32.mrf.mxu0
        %v4831 = vadd.f32 %v4742, %v4830
        %4832 = vmatmul.bf16.gmra.mxu0 %v3690
        %v4833 = vpop.f32.mrf.mxu0
        %v4834 = vadd.f32 %v4745, %v4833
        %v4835 = vpop.f32.mrf.mxu0
        %v4836 = vadd.f32 %v4747, %v4835
        %4837 = vmatmul.bf16.gmra.mxu0 %v3691
        %v4838 = vpop.f32.mrf.mxu0
        %v4839 = vadd.f32 %v4750, %v4838
        %v4840 = vpop.f32.mrf.mxu0
        %v4841 = vadd.f32 %v4752, %v4840
        %4842 = vmatmul.bf16.gmra.mxu0 %v3692
        %v4843 = vpop.f32.mrf.mxu0
        %v4844 = vadd.f32 %v4755, %v4843
        %v4845 = vpop.f32.mrf.mxu0
        %v4846 = vadd.f32 %v4757, %v4845
        %4847 = vmatmul.bf16.gmra.mxu0 %v3693
        %v4848 = vpop.f32.mrf.mxu0
        %v4849 = vadd.f32 %v4760, %v4848
        %v4850 = vpop.f32.mrf.mxu0
        %v4851 = vadd.f32 %v4762, %v4850
        %4852 = vmatmul.bf16.gmra.mxu0 %v3694
        %v4853 = vpop.f32.mrf.mxu0
        %v4854 = vadd.f32 %v4765, %v4853
        %v4855 = vpop.f32.mrf.mxu0
        %v4856 = vadd.f32 %v4767, %v4855
        %4857 = vmatmul.bf16.gmra.mxu0 %v3695
        %v4858 = vpop.f32.mrf.mxu0
        %v4859 = vadd.f32 %v4770, %v4858
        %v4860 = vpop.f32.mrf.mxu0
        %v4861 = vadd.f32 %v4772, %v4860
        %4862 = vdwg.mxu0
        %4863 = vmatpush.bf16.msra.mxu0 %v4402
        %4864 = vmatpush.bf16.msra.mxu0 %v4401
        %4865 = vmatpush.bf16.msra.mxu0 %v4400
        %4866 = vmatpush.bf16.msra.mxu0 %v4399
        %4867 = vmatpush.bf16.msra.mxu0 %v4398
        %4868 = vmatpush.bf16.msra.mxu0 %v4397
        %4869 = vmatpush.bf16.msra.mxu0 %v4396
        %4870 = vmatpush.bf16.msra.mxu0 %v4395
        %4871 = vmatmul.bf16.gmra.mxu0 %v3403
        %v4872 = vpop.f32.mrf.mxu0
        %v4873 = vadd.f32 %v4784, %v4872
        %v4874 = vpop.f32.mrf.mxu0
        %v4875 = vadd.f32 %v4786, %v4874
        %4876 = vmatmul.bf16.gmra.mxu0 %v3404
        %v4877 = vpop.f32.mrf.mxu0
        %v4878 = vadd.f32 %v4789, %v4877
        %v4879 = vpop.f32.mrf.mxu0
        %v4880 = vadd.f32 %v4791, %v4879
        %4881 = vmatmul.bf16.gmra.mxu0 %v3405
        %v4882 = vpop.f32.mrf.mxu0
        %v4883 = vadd.f32 %v4794, %v4882
        %v4884 = vpop.f32.mrf.mxu0
        %v4885 = vadd.f32 %v4796, %v4884
        %4886 = vmatmul.bf16.gmra.mxu0 %v3406
        %v4887 = vpop.f32.mrf.mxu0
        %v4888 = vadd.f32 %v4799, %v4887
        %v4889 = vpop.f32.mrf.mxu0
        %v4890 = vadd.f32 %v4801, %v4889
        %4891 = vmatmul.bf16.gmra.mxu0 %v3407
        %v4892 = vpop.f32.mrf.mxu0
        %v4893 = vadd.f32 %v4804, %v4892
        %v4894 = vpop.f32.mrf.mxu0
        %v4895 = vadd.f32 %v4806, %v4894
        %4896 = vmatmul.bf16.gmra.mxu0 %v3408
        %v4897 = vpop.f32.mrf.mxu0
        %v4898 = vadd.f32 %v4809, %v4897
        %v4899 = vpop.f32.mrf.mxu0
        %v4900 = vadd.f32 %v4811, %v4899
        %4901 = vmatmul.bf16.gmra.mxu0 %v3409
        %v4902 = vpop.f32.mrf.mxu0
        %v4903 = vadd.f32 %v4814, %v4902
        %v4904 = vpop.f32.mrf.mxu0
        %v4905 = vadd.f32 %v4816, %v4904
        %4906 = vmatmul.bf16.gmra.mxu0 %v3410
        %v4907 = vpop.f32.mrf.mxu0
        %v4908 = vadd.f32 %v4819, %v4907
        %v4909 = vpop.f32.mrf.mxu0
        %v4910 = vadd.f32 %v4821, %v4909
        %4911 = vmatmul.bf16.gmra.mxu0 %v3411
        %v4912 = vpop.f32.mrf.mxu0
        %v4913 = vadd.f32 %v4824, %v4912
        %v4914 = vpop.f32.mrf.mxu0
        %v4915 = vadd.f32 %v4826, %v4914
        %4916 = vmatmul.bf16.gmra.mxu0 %v3412
        %v4917 = vpop.f32.mrf.mxu0
        %v4918 = vadd.f32 %v4829, %v4917
        %v4919 = vpop.f32.mrf.mxu0
        %v4920 = vadd.f32 %v4831, %v4919
        %4921 = vmatmul.bf16.gmra.mxu0 %v3413
        %v4922 = vpop.f32.mrf.mxu0
        %v4923 = vadd.f32 %v4834, %v4922
        %v4924 = vpop.f32.mrf.mxu0
        %v4925 = vadd.f32 %v4836, %v4924
        %4926 = vmatmul.bf16.gmra.mxu0 %v3414
        %v4927 = vpop.f32.mrf.mxu0
        %v4928 = vadd.f32 %v4839, %v4927
        %v4929 = vpop.f32.mrf.mxu0
        %v4930 = vadd.f32 %v4841, %v4929
        %4931 = vmatmul.bf16.gmra.mxu0 %v3415
        %v4932 = vpop.f32.mrf.mxu0
        %v4933 = vadd.f32 %v4844, %v4932
        %v4934 = vpop.f32.mrf.mxu0
        %v4935 = vadd.f32 %v4846, %v4934
        %4936 = vmatmul.bf16.gmra.mxu0 %v3416
        %v4937 = vpop.f32.mrf.mxu0
        %v4938 = vadd.f32 %v4849, %v4937
        %v4939 = vpop.f32.mrf.mxu0
        %v4940 = vadd.f32 %v4851, %v4939
        %4941 = vmatmul.bf16.gmra.mxu0 %v3417
        %v4942 = vpop.f32.mrf.mxu0
        %v4943 = vadd.f32 %v4854, %v4942
        %v4944 = vpop.f32.mrf.mxu0
        %v4945 = vadd.f32 %v4856, %v4944
        %4946 = vmatmul.bf16.gmra.mxu0 %v3670
        %v4947 = vpop.f32.mrf.mxu0
        %v4948 = vadd.f32 %v4859, %v4947
        %v4949 = vpop.f32.mrf.mxu0
        %v4950 = vadd.f32 %v4861, %v4949
        %4951 = vdwg.mxu0
        %4952 = vmatpush.bf16.msra.mxu0 %v4410
        %4953 = vmatpush.bf16.msra.mxu0 %v4409
        %4954 = vmatpush.bf16.msra.mxu0 %v4408
        %4955 = vmatpush.bf16.msra.mxu0 %v4407
        %4956 = vmatpush.bf16.msra.mxu0 %v4406
        %4957 = vmatpush.bf16.msra.mxu0 %v4405
        %4958 = vmatpush.bf16.msra.mxu0 %v4404
        %4959 = vmatpush.bf16.msra.mxu0 %v4403
        %4960 = vmatmul.bf16.gmra.mxu0 %v3702
        %v4961 = vpop.f32.mrf.mxu0
        %v4962 = vadd.f32 %v4873, %v4961
        %v4963 = vpop.f32.mrf.mxu0
        %v4964 = vadd.f32 %v4875, %v4963
        %4965 = vmatmul.bf16.gmra.mxu0 %v3703
        %v4966 = vpop.f32.mrf.mxu0
        %v4967 = vadd.f32 %v4878, %v4966
        %v4968 = vpop.f32.mrf.mxu0
        %v4969 = vadd.f32 %v4880, %v4968
        %4970 = vmatmul.bf16.gmra.mxu0 %v3704
        %v4971 = vpop.f32.mrf.mxu0
        %v4972 = vadd.f32 %v4883, %v4971
        %v4973 = vpop.f32.mrf.mxu0
        %v4974 = vadd.f32 %v4885, %v4973
        %4975 = vmatmul.bf16.gmra.mxu0 %v3705
        %v4976 = vpop.f32.mrf.mxu0
        %v4977 = vadd.f32 %v4888, %v4976
        %v4978 = vpop.f32.mrf.mxu0
        %v4979 = vadd.f32 %v4890, %v4978
        %4980 = vmatmul.bf16.gmra.mxu0 %v3706
        %v4981 = vpop.f32.mrf.mxu0
        %v4982 = vadd.f32 %v4893, %v4981
        %v4983 = vpop.f32.mrf.mxu0
        %v4984 = vadd.f32 %v4895, %v4983
        %4985 = vmatmul.bf16.gmra.mxu0 %v3707
        %v4986 = vpop.f32.mrf.mxu0
        %v4987 = vadd.f32 %v4898, %v4986
        %v4988 = vpop.f32.mrf.mxu0
        %v4989 = vadd.f32 %v4900, %v4988
        %4990 = vmatmul.bf16.gmra.mxu0 %v3708
        %v4991 = vpop.f32.mrf.mxu0
        %v4992 = vadd.f32 %v4903, %v4991
        %v4993 = vpop.f32.mrf.mxu0
        %v4994 = vadd.f32 %v4905, %v4993
        %4995 = vmatmul.bf16.gmra.mxu0 %v3709
        %v4996 = vpop.f32.mrf.mxu0
        %v4997 = vadd.f32 %v4908, %v4996
        %v4998 = vpop.f32.mrf.mxu0
        %v4999 = vadd.f32 %v4910, %v4998
        %5000 = vmatmul.bf16.gmra.mxu0 %v3710
        %v5001 = vpop.f32.mrf.mxu0
        %v5002 = vadd.f32 %v4913, %v5001
        %v5003 = vpop.f32.mrf.mxu0
        %v5004 = vadd.f32 %v4915, %v5003
        %5005 = vmatmul.bf16.gmra.mxu0 %v3711
        %v5006 = vpop.f32.mrf.mxu0
        %v5007 = vadd.f32 %v4918, %v5006
        %v5008 = vpop.f32.mrf.mxu0
        %v5009 = vadd.f32 %v4920, %v5008
        %5010 = vmatmul.bf16.gmra.mxu0 %v3712
        %v5011 = vpop.f32.mrf.mxu0
        %v5012 = vadd.f32 %v4923, %v5011
        %v5013 = vpop.f32.mrf.mxu0
        %v5014 = vadd.f32 %v4925, %v5013
        %5015 = vmatmul.bf16.gmra.mxu0 %v3713
        %v5016 = vpop.f32.mrf.mxu0
        %v5017 = vadd.f32 %v4928, %v5016
        %v5018 = vpop.f32.mrf.mxu0
        %v5019 = vadd.f32 %v4930, %v5018
        %5020 = vmatmul.bf16.gmra.mxu0 %v3714
        %v5021 = vpop.f32.mrf.mxu0
        %v5022 = vadd.f32 %v4933, %v5021
        %v5023 = vpop.f32.mrf.mxu0
        %v5024 = vadd.f32 %v4935, %v5023
        %5025 = vmatmul.bf16.gmra.mxu0 %v3715
        %v5026 = vpop.f32.mrf.mxu0
        %v5027 = vadd.f32 %v4938, %v5026
        %v5028 = vpop.f32.mrf.mxu0
        %v5029 = vadd.f32 %v4940, %v5028
        %5030 = vmatmul.bf16.gmra.mxu0 %v3716
        %v5031 = vpop.f32.mrf.mxu0
        %v5032 = vadd.f32 %v4943, %v5031
        %v5033 = vpop.f32.mrf.mxu0
        %v5034 = vadd.f32 %v4945, %v5033
        %5035 = vmatmul.bf16.gmra.mxu0 %v3717
        %v5036 = vpop.f32.mrf.mxu0
        %v5037 = vadd.f32 %v4948, %v5036
        %v5038 = vpop.f32.mrf.mxu0
        %v5039 = vadd.f32 %v4950, %v5038
        %5040 = vdwg.mxu0
        %5041 = vmatpush.bf16.msra.mxu0 %v4418
        %5042 = vmatpush.bf16.msra.mxu0 %v4417
        %5043 = vmatpush.bf16.msra.mxu0 %v4416
        %5044 = vmatpush.bf16.msra.mxu0 %v4415
        %5045 = vmatpush.bf16.msra.mxu0 %v4414
        %5046 = vmatpush.bf16.msra.mxu0 %v4413
        %5047 = vmatpush.bf16.msra.mxu0 %v4412
        %5048 = vmatpush.bf16.msra.mxu0 %v4411
        %5049 = vmatmul.bf16.gmra.mxu0 %v3895
        %v5050 = vpop.f32.mrf.mxu0
        %v5051 = vadd.f32 %v4962, %v5050
        %v5052 = vpop.f32.mrf.mxu0
        %v5053 = vadd.f32 %v4964, %v5052
        %5054 = vmatmul.bf16.gmra.mxu0 %v3896
        %v5055 = vpop.f32.mrf.mxu0
        %v5056 = vadd.f32 %v4967, %v5055
        %v5057 = vpop.f32.mrf.mxu0
        %v5058 = vadd.f32 %v4969, %v5057
        %5059 = vmatmul.bf16.gmra.mxu0 %v3897
        %v5060 = vpop.f32.mrf.mxu0
        %v5061 = vadd.f32 %v4972, %v5060
        %v5062 = vpop.f32.mrf.mxu0
        %v5063 = vadd.f32 %v4974, %v5062
        %5064 = vmatmul.bf16.gmra.mxu0 %v3898
        %v5065 = vpop.f32.mrf.mxu0
        %v5066 = vadd.f32 %v4977, %v5065
        %v5067 = vpop.f32.mrf.mxu0
        %v5068 = vadd.f32 %v4979, %v5067
        %5069 = vmatmul.bf16.gmra.mxu0 %v3899
        %v5070 = vpop.f32.mrf.mxu0
        %v5071 = vadd.f32 %v4982, %v5070
        %v5072 = vpop.f32.mrf.mxu0
        %v5073 = vadd.f32 %v4984, %v5072
        %5074 = vmatmul.bf16.gmra.mxu0 %v3900
        %v5075 = vpop.f32.mrf.mxu0
        %v5076 = vadd.f32 %v4987, %v5075
        %v5077 = vpop.f32.mrf.mxu0
        %v5078 = vadd.f32 %v4989, %v5077
        %5079 = vmatmul.bf16.gmra.mxu0 %v3901
        %v5080 = vpop.f32.mrf.mxu0
        %v5081 = vadd.f32 %v4992, %v5080
        %v5082 = vpop.f32.mrf.mxu0
        %v5083 = vadd.f32 %v4994, %v5082
        %5084 = vmatmul.bf16.gmra.mxu0 %v3902
        %v5085 = vpop.f32.mrf.mxu0
        %v5086 = vadd.f32 %v4997, %v5085
        %v5087 = vpop.f32.mrf.mxu0
        %v5088 = vadd.f32 %v4999, %v5087
        %5089 = vmatmul.bf16.gmra.mxu0 %v3903
        %v5090 = vpop.f32.mrf.mxu0
        %v5091 = vadd.f32 %v5002, %v5090
        %v5092 = vpop.f32.mrf.mxu0
        %v5093 = vadd.f32 %v5004, %v5092
        %5094 = vmatmul.bf16.gmra.mxu0 %v3904
        %v5095 = vpop.f32.mrf.mxu0
        %v5096 = vadd.f32 %v5007, %v5095
        %v5097 = vpop.f32.mrf.mxu0
        %v5098 = vadd.f32 %v5009, %v5097
        %5099 = vmatmul.bf16.gmra.mxu0 %v3905
        %v5100 = vpop.f32.mrf.mxu0
        %v5101 = vadd.f32 %v5012, %v5100
        %v5102 = vpop.f32.mrf.mxu0
        %v5103 = vadd.f32 %v5014, %v5102
        %5104 = vmatmul.bf16.gmra.mxu0 %v3906
        %v5105 = vpop.f32.mrf.mxu0
        %v5106 = vadd.f32 %v5017, %v5105
        %v5107 = vpop.f32.mrf.mxu0
        %v5108 = vadd.f32 %v5019, %v5107
        %5109 = vmatmul.bf16.gmra.mxu0 %v3907
        %v5110 = vpop.f32.mrf.mxu0
        %v5111 = vadd.f32 %v5022, %v5110
        %v5112 = vpop.f32.mrf.mxu0
        %v5113 = vadd.f32 %v5024, %v5112
        %5114 = vmatmul.bf16.gmra.mxu0 %v3908
        %v5115 = vpop.f32.mrf.mxu0
        %v5116 = vadd.f32 %v5027, %v5115
        %v5117 = vpop.f32.mrf.mxu0
        %v5118 = vadd.f32 %v5029, %v5117
        %5119 = vmatmul.bf16.gmra.mxu0 %v3909
        %v5120 = vpop.f32.mrf.mxu0
        %v5121 = vadd.f32 %v5032, %v5120
        %v5122 = vpop.f32.mrf.mxu0
        %v5123 = vadd.f32 %v5034, %v5122
        %5124 = vmatmul.bf16.gmra.mxu0 %v3910
        %v5125 = vpop.f32.mrf.mxu0
        %v5126 = vadd.f32 %v5037, %v5125
        %v5127 = vpop.f32.mrf.mxu0
        %v5128 = vadd.f32 %v5039, %v5127
        %5129 = vdwg.mxu0
        %5130 = vmatpush.bf16.msra.mxu0 %v4426
        %5131 = vmatpush.bf16.msra.mxu0 %v4425
        %5132 = vmatpush.bf16.msra.mxu0 %v4424
        %5133 = vmatpush.bf16.msra.mxu0 %v4423
        %5134 = vmatpush.bf16.msra.mxu0 %v4422
        %5135 = vmatpush.bf16.msra.mxu0 %v4421
        %5136 = vmatpush.bf16.msra.mxu0 %v4420
        %5137 = vmatpush.bf16.msra.mxu0 %v4419
        %5138 = vmatmul.bf16.gmra.mxu0 %v3404
        %v5139 = vpop.f32.mrf.mxu0
        %v5140 = vadd.f32 %v5051, %v5139
        %v5141 = vpop.f32.mrf.mxu0
        %v5142 = vadd.f32 %v5053, %v5141
        %5143 = vmatmul.bf16.gmra.mxu0 %v3405
        %v5144 = vpop.f32.mrf.mxu0
        %v5145 = vadd.f32 %v5056, %v5144
        %v5146 = vpop.f32.mrf.mxu0
        %v5147 = vadd.f32 %v5058, %v5146
        %5148 = vmatmul.bf16.gmra.mxu0 %v3406
        %v5149 = vpop.f32.mrf.mxu0
        %v5150 = vadd.f32 %v5061, %v5149
        %v5151 = vpop.f32.mrf.mxu0
        %v5152 = vadd.f32 %v5063, %v5151
        %5153 = vmatmul.bf16.gmra.mxu0 %v3407
        %v5154 = vpop.f32.mrf.mxu0
        %v5155 = vadd.f32 %v5066, %v5154
        %v5156 = vpop.f32.mrf.mxu0
        %v5157 = vadd.f32 %v5068, %v5156
        %5158 = vmatmul.bf16.gmra.mxu0 %v3408
        %v5159 = vpop.f32.mrf.mxu0
        %v5160 = vadd.f32 %v5071, %v5159
        %v5161 = vpop.f32.mrf.mxu0
        %v5162 = vadd.f32 %v5073, %v5161
        %5163 = vmatmul.bf16.gmra.mxu0 %v3409
        %v5164 = vpop.f32.mrf.mxu0
        %v5165 = vadd.f32 %v5076, %v5164
        %v5166 = vpop.f32.mrf.mxu0
        %v5167 = vadd.f32 %v5078, %v5166
        %5168 = vmatmul.bf16.gmra.mxu0 %v3410
        %v5169 = vpop.f32.mrf.mxu0
        %v5170 = vadd.f32 %v5081, %v5169
        %v5171 = vpop.f32.mrf.mxu0
        %v5172 = vadd.f32 %v5083, %v5171
        %5173 = vmatmul.bf16.gmra.mxu0 %v3411
        %v5174 = vpop.f32.mrf.mxu0
        %v5175 = vadd.f32 %v5086, %v5174
        %v5176 = vpop.f32.mrf.mxu0
        %v5177 = vadd.f32 %v5088, %v5176
        %5178 = vmatmul.bf16.gmra.mxu0 %v3412
        %v5179 = vpop.f32.mrf.mxu0
        %v5180 = vadd.f32 %v5091, %v5179
        %v5181 = vpop.f32.mrf.mxu0
        %v5182 = vadd.f32 %v5093, %v5181
        %5183 = vmatmul.bf16.gmra.mxu0 %v3413
        %v5184 = vpop.f32.mrf.mxu0
        %v5185 = vadd.f32 %v5096, %v5184
        %v5186 = vpop.f32.mrf.mxu0
        %v5187 = vadd.f32 %v5098, %v5186
        %5188 = vmatmul.bf16.gmra.mxu0 %v3414
        %v5189 = vpop.f32.mrf.mxu0
        %v5190 = vadd.f32 %v5101, %v5189
        %v5191 = vpop.f32.mrf.mxu0
        %v5192 = vadd.f32 %v5103, %v5191
        %5193 = vmatmul.bf16.gmra.mxu0 %v3415
        %v5194 = vpop.f32.mrf.mxu0
        %v5195 = vadd.f32 %v5106, %v5194
        %v5196 = vpop.f32.mrf.mxu0
        %v5197 = vadd.f32 %v5108, %v5196
        %5198 = vmatmul.bf16.gmra.mxu0 %v3416
        %v5199 = vpop.f32.mrf.mxu0
        %v5200 = vadd.f32 %v5111, %v5199
        %v5201 = vpop.f32.mrf.mxu0
        %v5202 = vadd.f32 %v5113, %v5201
        %5203 = vmatmul.bf16.gmra.mxu0 %v3417
        %v5204 = vpop.f32.mrf.mxu0
        %v5205 = vadd.f32 %v5116, %v5204
        %v5206 = vpop.f32.mrf.mxu0
        %v5207 = vadd.f32 %v5118, %v5206
        %5208 = vmatmul.bf16.gmra.mxu0 %v3670
        %v5209 = vpop.f32.mrf.mxu0
        %v5210 = vadd.f32 %v5121, %v5209
        %v5211 = vpop.f32.mrf.mxu0
        %v5212 = vadd.f32 %v5123, %v5211
        %5213 = vmatmul.bf16.gmra.mxu0 0
        %v5214 = vpop.f32.mrf.mxu0
        %v5215 = vadd.f32 %v5126, %v5214
        %v5216 = vpop.f32.mrf.mxu0
        %v5217 = vadd.f32 %v5128, %v5216
        %5218 = vdwg.mxu0
        %5219 = vmatpush.bf16.msra.mxu0 %v4434
        %5220 = vmatpush.bf16.msra.mxu0 %v4433
        %5221 = vmatpush.bf16.msra.mxu0 %v4432
        %5222 = vmatpush.bf16.msra.mxu0 %v4431
        %5223 = vmatpush.bf16.msra.mxu0 %v4430
        %5224 = vmatpush.bf16.msra.mxu0 %v4429
        %5225 = vmatpush.bf16.msra.mxu0 %v4428
        %5226 = vmatpush.bf16.msra.mxu0 %v4427
        %5227 = vmatmul.bf16.gmra.mxu0 %v3912
        %v5228 = vpop.f32.mrf.mxu0
        %v5229 = vadd.f32 %v5140, %v5228
        %v5230 = vpop.f32.mrf.mxu0
        %v5231 = vadd.f32 %v5142, %v5230
        %5232 = vmatmul.bf16.gmra.mxu0 %v3913
        %v5233 = vpop.f32.mrf.mxu0
        %v5234 = vadd.f32 %v5145, %v5233
        %v5235 = vpop.f32.mrf.mxu0
        %v5236 = vadd.f32 %v5147, %v5235
        %5237 = vmatmul.bf16.gmra.mxu0 %v3914
        %v5238 = vpop.f32.mrf.mxu0
        %v5239 = vadd.f32 %v5150, %v5238
        %v5240 = vpop.f32.mrf.mxu0
        %v5241 = vadd.f32 %v5152, %v5240
        %5242 = vmatmul.bf16.gmra.mxu0 %v3915
        %v5243 = vpop.f32.mrf.mxu0
        %v5244 = vadd.f32 %v5155, %v5243
        %v5245 = vpop.f32.mrf.mxu0
        %v5246 = vadd.f32 %v5157, %v5245
        %5247 = vmatmul.bf16.gmra.mxu0 %v3916
        %v5248 = vpop.f32.mrf.mxu0
        %v5249 = vadd.f32 %v5160, %v5248
        %v5250 = vpop.f32.mrf.mxu0
        %v5251 = vadd.f32 %v5162, %v5250
        %5252 = vmatmul.bf16.gmra.mxu0 %v3917
        %v5253 = vpop.f32.mrf.mxu0
        %v5254 = vadd.f32 %v5165, %v5253
        %v5255 = vpop.f32.mrf.mxu0
        %v5256 = vadd.f32 %v5167, %v5255
        %5257 = vmatmul.bf16.gmra.mxu0 %v3918
        %v5258 = vpop.f32.mrf.mxu0
        %v5259 = vadd.f32 %v5170, %v5258
        %v5260 = vpop.f32.mrf.mxu0
        %v5261 = vadd.f32 %v5172, %v5260
        %5262 = vmatmul.bf16.gmra.mxu0 %v3919
        %v5263 = vpop.f32.mrf.mxu0
        %v5264 = vadd.f32 %v5175, %v5263
        %v5265 = vpop.f32.mrf.mxu0
        %v5266 = vadd.f32 %v5177, %v5265
        %5267 = vmatmul.bf16.gmra.mxu0 %v3920
        %v5268 = vpop.f32.mrf.mxu0
        %v5269 = vadd.f32 %v5180, %v5268
        %v5270 = vpop.f32.mrf.mxu0
        %v5271 = vadd.f32 %v5182, %v5270
        %5272 = vmatmul.bf16.gmra.mxu0 %v3921
        %v5273 = vpop.f32.mrf.mxu0
        %v5274 = vadd.f32 %v5185, %v5273
        %v5275 = vpop.f32.mrf.mxu0
        %v5276 = vadd.f32 %v5187, %v5275
        %5277 = vmatmul.bf16.gmra.mxu0 %v3922
        %v5278 = vpop.f32.mrf.mxu0
        %v5279 = vadd.f32 %v5190, %v5278
        %v5280 = vpop.f32.mrf.mxu0
        %v5281 = vadd.f32 %v5192, %v5280
        %5282 = vmatmul.bf16.gmra.mxu0 %v3923
        %v5283 = vpop.f32.mrf.mxu0
        %v5284 = vadd.f32 %v5195, %v5283
        %v5285 = vpop.f32.mrf.mxu0
        %v5286 = vadd.f32 %v5197, %v5285
        %5287 = vmatmul.bf16.gmra.mxu0 %v3924
        %v5288 = vpop.f32.mrf.mxu0
        %v5289 = vadd.f32 %v5200, %v5288
        %v5290 = vpop.f32.mrf.mxu0
        %v5291 = vadd.f32 %v5202, %v5290
        %5292 = vmatmul.bf16.gmra.mxu0 %v3925
        %v5293 = vpop.f32.mrf.mxu0
        %v5294 = vadd.f32 %v5205, %v5293
        %v5295 = vpop.f32.mrf.mxu0
        %v5296 = vadd.f32 %v5207, %v5295
        %5297 = vmatmul.bf16.gmra.mxu0 %v3926
        %v5298 = vpop.f32.mrf.mxu0
        %v5299 = vadd.f32 %v5210, %v5298
        %v5300 = vpop.f32.mrf.mxu0
        %v5301 = vadd.f32 %v5212, %v5300
        %5302 = vmatmul.bf16.gmra.mxu0 0
        %v5303 = vpop.f32.mrf.mxu0
        %v5304 = vadd.f32 %v5215, %v5303
        %v5305 = vpop.f32.mrf.mxu0
        %v5306 = vadd.f32 %v5217, %v5305
        %5307 = vdwg.mxu0
        %v5308 = vmax.f32 %v5229, 0.0
        %v5309 = vmax.f32 %v5231, 0.0
        %v5310 = vmax.f32 %v5234, 0.0
        %v5311 = vmax.f32 %v5236, 0.0
        %v5312 = vmax.f32 %v5239, 0.0
        %v5313 = vmax.f32 %v5241, 0.0
        %v5314 = vmax.f32 %v5244, 0.0
        %v5315 = vmax.f32 %v5246, 0.0
        %v5316 = vmax.f32 %v5249, 0.0
        %v5317 = vmax.f32 %v5251, 0.0
        %v5318 = vmax.f32 %v5254, 0.0
        %v5319 = vmax.f32 %v5256, 0.0
        %v5320 = vmax.f32 %v5259, 0.0
        %v5321 = vmax.f32 %v5261, 0.0
        %v5322 = vmax.f32 %v5264, 0.0
        %v5323 = vmax.f32 %v5266, 0.0
        %v5324 = vmax.f32 %v5269, 0.0
        %v5325 = vmax.f32 %v5271, 0.0
        %v5326 = vmax.f32 %v5274, 0.0
        %v5327 = vmax.f32 %v5276, 0.0
        %v5328 = vmax.f32 %v5279, 0.0
        %v5329 = vmax.f32 %v5281, 0.0
        %v5330 = vmax.f32 %v5284, 0.0
        %v5331 = vmax.f32 %v5286, 0.0
        %v5332 = vmax.f32 %v5289, 0.0
        %v5333 = vmax.f32 %v5291, 0.0
        %v5334 = vmax.f32 %v5294, 0.0
        %v5335 = vmax.f32 %v5296, 0.0
        %v5336 = vmax.f32 %v5299, 0.0
        %v5337 = vmax.f32 %v5301, 0.0
        %v5338 = vmax.f32 %v5304, 0.0
        %v5339 = vmax.f32 %v5306, 0.0
        %v5340 = vpack.c.bf16 %v5308, %v5308
        %v5341 = vpack.c.bf16 %v5309, %v5309
        %v5342 = vpack.c.bf16 %v5310, %v5310
        %v5343 = vpack.c.bf16 %v5311, %v5311
        %v5344 = vpack.c.bf16 %v5312, %v5312
        %v5345 = vpack.c.bf16 %v5313, %v5313
        %v5346 = vpack.c.bf16 %v5314, %v5314
        %v5347 = vpack.c.bf16 %v5315, %v5315
        %v5348 = vpack.c.bf16 %v5316, %v5316
        %v5349 = vpack.c.bf16 %v5317, %v5317
        %v5350 = vpack.c.bf16 %v5318, %v5318
        %v5351 = vpack.c.bf16 %v5319, %v5319
        %v5352 = vpack.c.bf16 %v5320, %v5320
        %v5353 = vpack.c.bf16 %v5321, %v5321
        %v5354 = vpack.c.bf16 %v5322, %v5322
        %v5355 = vpack.c.bf16 %v5323, %v5323
        %v5356 = vpack.c.bf16 %v5324, %v5324
        %v5357 = vpack.c.bf16 %v5325, %v5325
        %v5358 = vpack.c.bf16 %v5326, %v5326
        %v5359 = vpack.c.bf16 %v5327, %v5327
        %v5360 = vpack.c.bf16 %v5328, %v5328
        %v5361 = vpack.c.bf16 %v5329, %v5329
        %v5362 = vpack.c.bf16 %v5330, %v5330
        %v5363 = vpack.c.bf16 %v5331, %v5331
        %v5364 = vpack.c.bf16 %v5332, %v5332
        %v5365 = vpack.c.bf16 %v5333, %v5333
        %v5366 = vpack.c.bf16 %v5334, %v5334
        %v5367 = vpack.c.bf16 %v5335, %v5335
        %v5368 = vpack.c.bf16 %v5336, %v5336
        %v5369 = vpack.c.bf16 %v5337, %v5337
        %v5370 = vpack.c.bf16 %v5338, %v5338
        %v5371 = vpack.c.bf16 %v5339, %v5339
        %v5402 = vunpack.c.l.b16 %v5340
        %v5403 = vunpack.c.l.b16 %v5341
        %v5404 = vunpack.c.l.b16 %v5342
        %v5405 = vunpack.c.l.b16 %v5343
        %v5406 = vunpack.c.l.b16 %v5344
        %v5407 = vunpack.c.l.b16 %v5345
        %v5408 = vunpack.c.l.b16 %v5346
        %v5409 = vunpack.c.l.b16 %v5347
        %v5410 = vunpack.c.l.b16 %v5348
        %v5411 = vunpack.c.l.b16 %v5349
        %v5412 = vunpack.c.l.b16 %v5350
        %v5413 = vunpack.c.l.b16 %v5351
        %v5414 = vunpack.c.l.b16 %v5352
        %v5415 = vunpack.c.l.b16 %v5353
        %v5416 = vunpack.c.l.b16 %v5354
        %v5417 = vunpack.c.l.b16 %v5355
        %v5418 = vunpack.c.l.b16 %v5356
        %v5419 = vunpack.c.l.b16 %v5357
        %v5420 = vunpack.c.l.b16 %v5358
        %v5421 = vunpack.c.l.b16 %v5359
        %v5422 = vunpack.c.l.b16 %v5360
        %v5423 = vunpack.c.l.b16 %v5361
        %v5424 = vunpack.c.l.b16 %v5362
        %v5425 = vunpack.c.l.b16 %v5363
        %v5426 = vunpack.c.l.b16 %v5364
        %v5427 = vunpack.c.l.b16 %v5365
        %v5428 = vunpack.c.l.b16 %v5366
        %v5429 = vunpack.c.l.b16 %v5367
        %v5430 = vunpack.c.l.b16 %v5368
        %v5431 = vunpack.c.l.b16 %v5369
        %v5432 = vpack.c.b16 %v5403, %v5402
        %v5433 = vpack.c.b16 %v5405, %v5404
        %v5434 = vpack.c.b16 %v5407, %v5406
        %v5435 = vpack.c.b16 %v5409, %v5408
        %v5436 = vpack.c.b16 %v5411, %v5410
        %v5437 = vpack.c.b16 %v5413, %v5412
        %v5438 = vpack.c.b16 %v5415, %v5414
        %v5439 = vpack.c.b16 %v5417, %v5416
        %v5440 = vpack.c.b16 %v5419, %v5418
        %v5441 = vpack.c.b16 %v5421, %v5420
        %v5442 = vpack.c.b16 %v5423, %v5422
        %v5443 = vpack.c.b16 %v5425, %v5424
        %v5444 = vpack.c.b16 %v5427, %v5426
        %v5445 = vpack.c.b16 %v5429, %v5428
        %v5446 = vpack.c.b16 %v5431, %v5430
        %v5448 = vshrl.u32 %v5432, 16
        %v5450 = vrot.slane %v5448, 7
        %v5451 = vshll.u32 %v5432, 16
        %v5453 = vor.u32 %v5450, %v5451
        %v5455 = vshrl.u32 %v5433, 16
        %v5457 = vrot.slane %v5455, 7
        %v5458 = vshll.u32 %v5433, 16
        %v5460 = vor.u32 %v5457, %v5458
        %v5461 = vsel %vm1026, %v5450, %v5460
        %v5463 = vshrl.u32 %v5434, 16
        %v5465 = vrot.slane %v5463, 7
        %v5466 = vshll.u32 %v5434, 16
        %v5468 = vor.u32 %v5465, %v5466
        %v5469 = vsel %vm1026, %v5457, %v5468
        %v5471 = vshrl.u32 %v5435, 16
        %v5473 = vrot.slane %v5471, 7
        %v5474 = vshll.u32 %v5435, 16
        %v5476 = vor.u32 %v5473, %v5474
        %v5477 = vsel %vm1026, %v5465, %v5476
        %v5479 = vshrl.u32 %v5436, 16
        %v5481 = vrot.slane %v5479, 7
        %v5482 = vshll.u32 %v5436, 16
        %v5484 = vor.u32 %v5481, %v5482
        %v5485 = vsel %vm1026, %v5473, %v5484
        %v5487 = vshrl.u32 %v5437, 16
        %v5489 = vrot.slane %v5487, 7
        %v5490 = vshll.u32 %v5437, 16
        %v5492 = vor.u32 %v5489, %v5490
        %v5493 = vsel %vm1026, %v5481, %v5492
        %v5495 = vshrl.u32 %v5438, 16
        %v5497 = vrot.slane %v5495, 7
        %v5498 = vshll.u32 %v5438, 16
        %v5500 = vor.u32 %v5497, %v5498
        %v5501 = vsel %vm1026, %v5489, %v5500
        %v5503 = vshrl.u32 %v5439, 16
        %v5505 = vrot.slane %v5503, 7
        %v5506 = vshll.u32 %v5439, 16
        %v5508 = vor.u32 %v5505, %v5506
        %v5509 = vsel %vm1026, %v5497, %v5508
        %v5511 = vshrl.u32 %v5440, 16
        %v5513 = vrot.slane %v5511, 7
        %v5514 = vshll.u32 %v5440, 16
        %v5516 = vor.u32 %v5513, %v5514
        %v5517 = vsel %vm1026, %v5505, %v5516
        %v5519 = vshrl.u32 %v5441, 16
        %v5521 = vrot.slane %v5519, 7
        %v5522 = vshll.u32 %v5441, 16
        %v5524 = vor.u32 %v5521, %v5522
        %v5525 = vsel %vm1026, %v5513, %v5524
        %v5527 = vshrl.u32 %v5442, 16
        %v5529 = vrot.slane %v5527, 7
        %v5530 = vshll.u32 %v5442, 16
        %v5532 = vor.u32 %v5529, %v5530
        %v5533 = vsel %vm1026, %v5521, %v5532
        %v5535 = vshrl.u32 %v5443, 16
        %v5537 = vrot.slane %v5535, 7
        %v5538 = vshll.u32 %v5443, 16
        %v5540 = vor.u32 %v5537, %v5538
        %v5541 = vsel %vm1026, %v5529, %v5540
        %v5543 = vshrl.u32 %v5444, 16
        %v5545 = vrot.slane %v5543, 7
        %v5546 = vshll.u32 %v5444, 16
        %v5548 = vor.u32 %v5545, %v5546
        %v5549 = vsel %vm1026, %v5537, %v5548
        %v5551 = vshrl.u32 %v5445, 16
        %v5553 = vrot.slane %v5551, 7
        %v5554 = vshll.u32 %v5445, 16
        %v5556 = vor.u32 %v5553, %v5554
        %v5557 = vsel %vm1026, %v5545, %v5556
        %v5559 = vshrl.u32 %v5446, 16
        %v5561 = vrot.slane %v5559, 7
        %v5562 = vshll.u32 %v5446, 16
        %v5564 = vor.u32 %v5561, %v5562
        %v5565 = vsel %vm1026, %v5553, %v5564
        %v5581 = vsel %vm1147, 0, %v5453
        %v5582 = vsel %vm1324, %v5581, 0
        %v5583 = vsel %vm1331, %v5461, 0
        %v5584 = vsel %vm1338, %v5469, 0
        %v5585 = vsel %vm1345, %v5477, 0
        %v5586 = vsel %vm1352, %v5485, 0
        %v5587 = vsel %vm1359, %v5493, 0
        %v5588 = vsel %vm1366, %v5501, 0
        %v5589 = vsel %vm1373, %v5509, 0
        %v5590 = vsel %vm1380, %v5517, 0
        %v5591 = vsel %vm1387, %v5525, 0
        %v5592 = vsel %vm1394, %v5533, 0
        %v5593 = vsel %vm1401, %v5541, 0
        %v5594 = vsel %vm1408, %v5549, 0
        %v5595 = vsel %vm1415, %v5557, 0
        %v5596 = vsel %vm1422, %v5565, 0
        %v5613 = vunpack.c.l.b16 %v5370
        %v5614 = vpack.c.b16 %v5613, %v5613
        %v5615 = vrot.slane %v5451, 1
        %v5616 = vor.u32 %v5448, %v5615
        %v5617 = vrot.slane %v5458, 1
        %v5618 = vsel %vm1438, %v5616, %v5617
        %v5619 = vor.u32 %v5455, %v5617
        %v5620 = vrot.slane %v5466, 1
        %v5621 = vsel %vm1438, %v5619, %v5620
        %v5622 = vor.u32 %v5463, %v5620
        %v5623 = vrot.slane %v5474, 1
        %v5624 = vsel %vm1438, %v5622, %v5623
        %v5625 = vor.u32 %v5471, %v5623
        %v5626 = vrot.slane %v5482, 1
        %v5627 = vsel %vm1438, %v5625, %v5626
        %v5628 = vor.u32 %v5479, %v5626
        %v5629 = vrot.slane %v5490, 1
        %v5630 = vsel %vm1438, %v5628, %v5629
        %v5631 = vor.u32 %v5487, %v5629
        %v5632 = vrot.slane %v5498, 1
        %v5633 = vsel %vm1438, %v5631, %v5632
        %v5634 = vor.u32 %v5495, %v5632
        %v5635 = vrot.slane %v5506, 1
        %v5636 = vsel %vm1438, %v5634, %v5635
        %v5637 = vor.u32 %v5503, %v5635
        %v5638 = vrot.slane %v5514, 1
        %v5639 = vsel %vm1438, %v5637, %v5638
        %v5640 = vor.u32 %v5511, %v5638
        %v5641 = vrot.slane %v5522, 1
        %v5642 = vsel %vm1438, %v5640, %v5641
        %v5643 = vor.u32 %v5519, %v5641
        %v5644 = vrot.slane %v5530, 1
        %v5645 = vsel %vm1438, %v5643, %v5644
        %v5646 = vor.u32 %v5527, %v5644
        %v5647 = vrot.slane %v5538, 1
        %v5648 = vsel %vm1438, %v5646, %v5647
        %v5649 = vor.u32 %v5535, %v5647
        %v5650 = vrot.slane %v5546, 1
        %v5651 = vsel %vm1438, %v5649, %v5650
        %v5652 = vor.u32 %v5543, %v5650
        %v5653 = vrot.slane %v5554, 1
        %v5654 = vsel %vm1438, %v5652, %v5653
        %v5655 = vor.u32 %v5551, %v5653
        %v5656 = vrot.slane %v5562, 1
        %v5657 = vsel %vm1438, %v5655, %v5656
        %v5658 = vor.u32 %v5559, %v5656
        %v5660 = vshll.u32 %v5614, 16
        %v5662 = vrot.slane %v5660, 1
        %v5663 = vsel %vm1438, %v5658, %v5662
        %v5680 = vsel %vm1504, 0, %v5615
        %v5681 = vsel %vm1688, %v5680, 0
        %v5682 = vsel %vm1695, %v5618, 0
        %v5683 = vsel %vm1702, %v5621, 0
        %v5684 = vsel %vm1709, %v5624, 0
        %v5685 = vsel %vm1716, %v5627, 0
        %v5686 = vsel %vm1723, %v5630, 0
        %v5687 = vsel %vm1730, %v5633, 0
        %v5688 = vsel %vm1737, %v5636, 0
        %v5689 = vsel %vm1744, %v5639, 0
        %v5690 = vsel %vm1751, %v5642, 0
        %v5691 = vsel %vm1758, %v5645, 0
        %v5692 = vsel %vm1765, %v5648, 0
        %v5693 = vsel %vm1772, %v5651, 0
        %v5694 = vsel %vm1779, %v5654, 0
        %v5695 = vsel %vm1786, %v5657, 0
        %v5696 = vsel %vm1793, %v5663, 0
        %v5698 = vunpack.c.l.b16 %v5371
        %v5699 = vpack.c.b16 %v5698, %v5613
        %v5701 = vshrl.u32 %v5699, 16
        %v5703 = vrot.slane %v5701, 7
        %v5704 = vshll.u32 %v5699, 16
        %v5706 = vor.u32 %v5703, %v5704
        %v5707 = vsel %vm1026, %v5561, %v5706
        %v5709 = vsel %vm1829, %v5581, 0
        %v5710 = vsel %vm1324, %v5461, 0
        %v5711 = vsel %vm1331, %v5469, 0
        %v5712 = vsel %vm1338, %v5477, 0
        %v5713 = vsel %vm1345, %v5485, 0
        %v5714 = vsel %vm1352, %v5493, 0
        %v5715 = vsel %vm1359, %v5501, 0
        %v5716 = vsel %vm1366, %v5509, 0
        %v5717 = vsel %vm1373, %v5517, 0
        %v5718 = vsel %vm1380, %v5525, 0
        %v5719 = vsel %vm1387, %v5533, 0
        %v5720 = vsel %vm1394, %v5541, 0
        %v5721 = vsel %vm1401, %v5549, 0
        %v5722 = vsel %vm1408, %v5557, 0
        %v5723 = vsel %vm1415, %v5565, 0
        %v5724 = vsel %vm1422, %v5707, 0
        %v5725 = vrot.slane %v5704, 1
        %v5726 = vsel %vm1438, %v5658, %v5725
        %v5727 = vor.u32 %v5701, %v5725
        %v5730 = vsel %vm1504, %v5727, 0
        %v5731 = vsel %vm1688, %v5618, 0
        %v5732 = vsel %vm1695, %v5621, 0
        %v5733 = vsel %vm1702, %v5624, 0
        %v5734 = vsel %vm1709, %v5627, 0
        %v5735 = vsel %vm1716, %v5630, 0
        %v5736 = vsel %vm1723, %v5633, 0
        %v5737 = vsel %vm1730, %v5636, 0
        %v5738 = vsel %vm1737, %v5639, 0
        %v5739 = vsel %vm1744, %v5642, 0
        %v5740 = vsel %vm1751, %v5645, 0
        %v5741 = vsel %vm1758, %v5648, 0
        %v5742 = vsel %vm1765, %v5651, 0
        %v5743 = vsel %vm1772, %v5654, 0
        %v5744 = vsel %vm1779, %v5657, 0
        %v5745 = vsel %vm1786, %v5726, 0
        %v5746 = vsel %vm1793, %v5730, 0
        %v5747 = vpack.c.b16 %v5404, %v5403
        %v5748 = vpack.c.b16 %v5406, %v5405
        %v5749 = vpack.c.b16 %v5408, %v5407
        %v5750 = vpack.c.b16 %v5410, %v5409
        %v5751 = vpack.c.b16 %v5412, %v5411
        %v5752 = vpack.c.b16 %v5414, %v5413
        %v5753 = vpack.c.b16 %v5416, %v5415
        %v5754 = vpack.c.b16 %v5418, %v5417
        %v5755 = vpack.c.b16 %v5420, %v5419
        %v5756 = vpack.c.b16 %v5422, %v5421
        %v5757 = vpack.c.b16 %v5424, %v5423
        %v5758 = vpack.c.b16 %v5426, %v5425
        %v5759 = vpack.c.b16 %v5428, %v5427
        %v5760 = vpack.c.b16 %v5430, %v5429
        %v5761 = vpack.c.b16 %v5613, %v5431
        %v5762 = vpack.c.b16 %v5698, %v5698
        %v5764 = vshrl.u32 %v5747, 16
        %v5766 = vrot.slane %v5764, 3
        %v5767 = vshll.u32 %v5747, 16
        %v5769 = vrot.slane %v5767, 4
        %v5770 = vor.u32 %v5766, %v5769
        %v5772 = vshrl.u32 %v5748, 16
        %v5774 = vrot.slane %v5772, 3
        %v5775 = vshll.u32 %v5748, 16
        %v5777 = vrot.slane %v5775, 4
        %v5778 = vor.u32 %v5774, %v5777
        %v5779 = vsel %vm3734, %v5770, %v5778
        %v5781 = vshrl.u32 %v5749, 16
        %v5783 = vrot.slane %v5781, 3
        %v5784 = vshll.u32 %v5749, 16
        %v5786 = vrot.slane %v5784, 4
        %v5787 = vor.u32 %v5783, %v5786
        %v5788 = vsel %vm3734, %v5778, %v5787
        %v5790 = vshrl.u32 %v5750, 16
        %v5792 = vrot.slane %v5790, 3
        %v5793 = vshll.u32 %v5750, 16
        %v5795 = vrot.slane %v5793, 4
        %v5796 = vor.u32 %v5792, %v5795
        %v5797 = vsel %vm3734, %v5787, %v5796
        %v5799 = vshrl.u32 %v5751, 16
        %v5801 = vrot.slane %v5799, 3
        %v5802 = vshll.u32 %v5751, 16
        %v5804 = vrot.slane %v5802, 4
        %v5805 = vor.u32 %v5801, %v5804
        %v5806 = vsel %vm3734, %v5796, %v5805
        %v5808 = vshrl.u32 %v5752, 16
        %v5810 = vrot.slane %v5808, 3
        %v5811 = vshll.u32 %v5752, 16
        %v5813 = vrot.slane %v5811, 4
        %v5814 = vor.u32 %v5810, %v5813
        %v5815 = vsel %vm3734, %v5805, %v5814
        %v5817 = vshrl.u32 %v5753, 16
        %v5819 = vrot.slane %v5817, 3
        %v5820 = vshll.u32 %v5753, 16
        %v5822 = vrot.slane %v5820, 4
        %v5823 = vor.u32 %v5819, %v5822
        %v5824 = vsel %vm3734, %v5814, %v5823
        %v5826 = vshrl.u32 %v5754, 16
        %v5828 = vrot.slane %v5826, 3
        %v5829 = vshll.u32 %v5754, 16
        %v5831 = vrot.slane %v5829, 4
        %v5832 = vor.u32 %v5828, %v5831
        %v5833 = vsel %vm3734, %v5823, %v5832
        %v5835 = vshrl.u32 %v5755, 16
        %v5837 = vrot.slane %v5835, 3
        %v5838 = vshll.u32 %v5755, 16
        %v5840 = vrot.slane %v5838, 4
        %v5841 = vor.u32 %v5837, %v5840
        %v5842 = vsel %vm3734, %v5832, %v5841
        %v5844 = vshrl.u32 %v5756, 16
        %v5846 = vrot.slane %v5844, 3
        %v5847 = vshll.u32 %v5756, 16
        %v5849 = vrot.slane %v5847, 4
        %v5850 = vor.u32 %v5846, %v5849
        %v5851 = vsel %vm3734, %v5841, %v5850
        %v5853 = vshrl.u32 %v5757, 16
        %v5855 = vrot.slane %v5853, 3
        %v5856 = vshll.u32 %v5757, 16
        %v5858 = vrot.slane %v5856, 4
        %v5859 = vor.u32 %v5855, %v5858
        %v5860 = vsel %vm3734, %v5850, %v5859
        %v5862 = vshrl.u32 %v5758, 16
        %v5864 = vrot.slane %v5862, 3
        %v5865 = vshll.u32 %v5758, 16
        %v5867 = vrot.slane %v5865, 4
        %v5868 = vor.u32 %v5864, %v5867
        %v5869 = vsel %vm3734, %v5859, %v5868
        %v5871 = vshrl.u32 %v5759, 16
        %v5873 = vrot.slane %v5871, 3
        %v5874 = vshll.u32 %v5759, 16
        %v5876 = vrot.slane %v5874, 4
        %v5877 = vor.u32 %v5873, %v5876
        %v5878 = vsel %vm3734, %v5868, %v5877
        %v5880 = vshrl.u32 %v5760, 16
        %v5882 = vrot.slane %v5880, 3
        %v5883 = vshll.u32 %v5760, 16
        %v5885 = vrot.slane %v5883, 4
        %v5886 = vor.u32 %v5882, %v5885
        %v5887 = vsel %vm3734, %v5877, %v5886
        %v5889 = vshrl.u32 %v5761, 16
        %v5891 = vrot.slane %v5889, 3
        %v5892 = vshll.u32 %v5761, 16
        %v5894 = vrot.slane %v5892, 4
        %v5895 = vor.u32 %v5891, %v5894
        %v5896 = vsel %vm3734, %v5886, %v5895
        %v5898 = vshrl.u32 %v5762, 16
        %v5900 = vrot.slane %v5898, 3
        %v5901 = vshll.u32 %v5762, 16
        %v5903 = vrot.slane %v5901, 4
        %v5904 = vor.u32 %v5900, %v5903
        %v5905 = vsel %vm3734, %v5895, %v5904
        %v5922 = vsel %vm1147, %v5900, 0
        %v5923 = vsel %vm1829, %v5779, 0
        %v5924 = vsel %vm1324, %v5788, 0
        %v5925 = vsel %vm1331, %v5797, 0
        %v5926 = vsel %vm1338, %v5806, 0
        %v5927 = vsel %vm1345, %v5815, 0
        %v5928 = vsel %vm1352, %v5824, 0
        %v5929 = vsel %vm1359, %v5833, 0
        %v5930 = vsel %vm1366, %v5842, 0
        %v5931 = vsel %vm1373, %v5851, 0
        %v5932 = vsel %vm1380, %v5860, 0
        %v5933 = vsel %vm1387, %v5869, 0
        %v5934 = vsel %vm1394, %v5878, 0
        %v5935 = vsel %vm1401, %v5887, 0
        %v5936 = vsel %vm1408, %v5896, 0
        %v5937 = vsel %vm1415, %v5905, 0
        %v5938 = vsel %vm1422, %v5922, 0
        %v5940 = vsel %vm1688, %v5621, 0
        %v5941 = vsel %vm1695, %v5624, 0
        %v5942 = vsel %vm1702, %v5627, 0
        %v5943 = vsel %vm1709, %v5630, 0
        %v5944 = vsel %vm1716, %v5633, 0
        %v5945 = vsel %vm1723, %v5636, 0
        %v5946 = vsel %vm1730, %v5639, 0
        %v5947 = vsel %vm1737, %v5642, 0
        %v5948 = vsel %vm1744, %v5645, 0
        %v5949 = vsel %vm1751, %v5648, 0
        %v5950 = vsel %vm1758, %v5651, 0
        %v5951 = vsel %vm1765, %v5654, 0
        %v5952 = vsel %vm1772, %v5657, 0
        %v5953 = vsel %vm1779, %v5726, 0
        %v5954 = vsel %vm1786, %v5730, 0
        %v5955 = vld [vmem:[#allocation7] sm:$0xf]
        %v5956 = vld [vmem:[#allocation7 + $0x4] sm:$0xf]
        %v5957 = vld [vmem:[#allocation7 + $0x8] sm:$0xf]
        %v5958 = vld [vmem:[#allocation7 + $0xc] sm:$0xf]
        %v5959 = vld [vmem:[#allocation7 + $0x10] sm:$0xf]
        %v5960 = vld [vmem:[#allocation7 + $0x14] sm:$0xf]
        %v5961 = vld [vmem:[#allocation7 + $0x18] sm:$0xf]
        %v5962 = vld [vmem:[#allocation7 + $0x1c] sm:$0xf]
        %v5963 = vld [vmem:[#allocation7 + $0x20] sm:$0xf]
        %v5964 = vld [vmem:[#allocation7 + $0x24] sm:$0xf]
        %v5965 = vld [vmem:[#allocation7 + $0x28] sm:$0xf]
        %v5966 = vld [vmem:[#allocation7 + $0x2c] sm:$0xf]
        %v5967 = vld [vmem:[#allocation7 + $0x30] sm:$0xf]
        %v5968 = vld [vmem:[#allocation7 + $0x34] sm:$0xf]
        %v5969 = vld [vmem:[#allocation7 + $0x38] sm:$0xf]
        %v5970 = vld [vmem:[#allocation7 + $0x3c] sm:$0xf]
        %v5971 = vld [vmem:[#allocation7 + $0x40] sm:$0xf]
        %v5972 = vld [vmem:[#allocation7 + $0x44] sm:$0xf]
        %v5973 = vld [vmem:[#allocation7 + $0x48] sm:$0xf]
        %v5974 = vld [vmem:[#allocation7 + $0x4c] sm:$0xf]
        %v5975 = vld [vmem:[#allocation7 + $0x50] sm:$0xf]
        %v5976 = vld [vmem:[#allocation7 + $0x54] sm:$0xf]
        %v5977 = vld [vmem:[#allocation7 + $0x58] sm:$0xf]
        %v5978 = vld [vmem:[#allocation7 + $0x5c] sm:$0xf]
        %v5979 = vld [vmem:[#allocation7 + $0x60] sm:$0xf]
        %v5980 = vld [vmem:[#allocation7 + $0x64] sm:$0xf]
        %v5981 = vld [vmem:[#allocation7 + $0x68] sm:$0xf]
        %v5982 = vld [vmem:[#allocation7 + $0x6c] sm:$0xf]
        %v5983 = vld [vmem:[#allocation7 + $0x70] sm:$0xf]
        %v5984 = vld [vmem:[#allocation7 + $0x74] sm:$0xf]
        %v5985 = vld [vmem:[#allocation7 + $0x78] sm:$0xf]
        %v5986 = vld [vmem:[#allocation7 + $0x7c] sm:$0xf]
        %v5987 = vld [vmem:[#allocation7 + $0x80] sm:$0xf]
        %v5988 = vld [vmem:[#allocation7 + $0x84] sm:$0xf]
        %v5989 = vld [vmem:[#allocation7 + $0x88] sm:$0xf]
        %v5990 = vld [vmem:[#allocation7 + $0x8c] sm:$0xf]
        %v5991 = vld [vmem:[#allocation7 + $0x90] sm:$0xf]
        %v5992 = vld [vmem:[#allocation7 + $0x94] sm:$0xf]
        %v5993 = vld [vmem:[#allocation7 + $0x98] sm:$0xf]
        %v5994 = vld [vmem:[#allocation7 + $0x9c] sm:$0xf]
        %v5995 = vld [vmem:[#allocation7 + $0xa0] sm:$0xf]
        %v5996 = vld [vmem:[#allocation7 + $0xa4] sm:$0xf]
        %v5997 = vld [vmem:[#allocation7 + $0xa8] sm:$0xf]
        %v5998 = vld [vmem:[#allocation7 + $0xac] sm:$0xf]
        %v5999 = vld [vmem:[#allocation7 + $0xb0] sm:$0xf]
        %v6000 = vld [vmem:[#allocation7 + $0xb4] sm:$0xf]
        %v6001 = vld [vmem:[#allocation7 + $0xb8] sm:$0xf]
        %v6002 = vld [vmem:[#allocation7 + $0xbc] sm:$0xf]
        %v6003 = vld [vmem:[#allocation7 + $0xc0] sm:$0xf]
        %v6004 = vld [vmem:[#allocation7 + $0xc4] sm:$0xf]
        %v6005 = vld [vmem:[#allocation7 + $0xc8] sm:$0xf]
        %v6006 = vld [vmem:[#allocation7 + $0xcc] sm:$0xf]
        %v6007 = vld [vmem:[#allocation7 + $0xd0] sm:$0xf]
        %v6008 = vld [vmem:[#allocation7 + $0xd4] sm:$0xf]
        %v6009 = vld [vmem:[#allocation7 + $0xd8] sm:$0xf]
        %v6010 = vld [vmem:[#allocation7 + $0xdc] sm:$0xf]
        %v6011 = vld [vmem:[#allocation7 + $0xe0] sm:$0xf]
        %v6012 = vld [vmem:[#allocation7 + $0xe4] sm:$0xf]
        %v6013 = vld [vmem:[#allocation7 + $0xe8] sm:$0xf]
        %v6014 = vld [vmem:[#allocation7 + $0xec] sm:$0xf]
        %v6015 = vld [vmem:[#allocation7 + $0xf0] sm:$0xf]
        %v6016 = vld [vmem:[#allocation7 + $0xf4] sm:$0xf]
        %v6017 = vld [vmem:[#allocation7 + $0xf8] sm:$0xf]
        %v6018 = vld [vmem:[#allocation7 + $0xfc] sm:$0xf]
        %v6019 = vld [vmem:[#allocation7 + $0x100] sm:$0xf]
        %v6020 = vld [vmem:[#allocation7 + $0x104] sm:$0xf]
        %v6021 = vld [vmem:[#allocation7 + $0x108] sm:$0xf]
        %v6022 = vld [vmem:[#allocation7 + $0x10c] sm:$0xf]
        %v6023 = vld [vmem:[#allocation7 + $0x110] sm:$0xf]
        %v6024 = vld [vmem:[#allocation7 + $0x114] sm:$0xf]
        %v6025 = vld [vmem:[#allocation7 + $0x118] sm:$0xf]
        %v6026 = vld [vmem:[#allocation7 + $0x11c] sm:$0xf]
        %v6027 = vld [vmem:[#allocation7 + $0x120] sm:$0xf]
        %v6028 = vld [vmem:[#allocation7 + $0x124] sm:$0xf]
        %v6029 = vld [vmem:[#allocation7 + $0x128] sm:$0xf]
        %v6030 = vld [vmem:[#allocation7 + $0x12c] sm:$0xf]
        %v6031 = vld [vmem:[#allocation7 + $0x130] sm:$0xf]
        %v6032 = vld [vmem:[#allocation7 + $0x134] sm:$0xf]
        %v6033 = vld [vmem:[#allocation7 + $0x138] sm:$0xf]
        %v6034 = vld [vmem:[#allocation7 + $0x13c] sm:$0xf]
        %v6035 = vld [vmem:[#allocation7 + $0x140] sm:$0xf]
        %v6036 = vld [vmem:[#allocation7 + $0x144] sm:$0xf]
        %v6037 = vld [vmem:[#allocation7 + $0x148] sm:$0xf]
        %v6038 = vld [vmem:[#allocation7 + $0x14c] sm:$0xf]
        %v6039 = vld [vmem:[#allocation7 + $0x150] sm:$0xf]
        %v6040 = vld [vmem:[#allocation7 + $0x154] sm:$0xf]
        %v6041 = vld [vmem:[#allocation7 + $0x158] sm:$0xf]
        %v6042 = vld [vmem:[#allocation7 + $0x15c] sm:$0xf]
        %v6043 = vld [vmem:[#allocation7 + $0x160] sm:$0xf]
        %v6044 = vld [vmem:[#allocation7 + $0x164] sm:$0xf]
        %v6045 = vld [vmem:[#allocation7 + $0x168] sm:$0xf]
        %v6046 = vld [vmem:[#allocation7 + $0x16c] sm:$0xf]
        %v6047 = vld [vmem:[#allocation7 + $0x170] sm:$0xf]
        %v6048 = vld [vmem:[#allocation7 + $0x174] sm:$0xf]
        %v6049 = vld [vmem:[#allocation7 + $0x178] sm:$0xf]
        %v6050 = vld [vmem:[#allocation7 + $0x17c] sm:$0xf]
        %v6051 = vld [vmem:[#allocation7 + $0x180] sm:$0xf]
        %v6052 = vld [vmem:[#allocation7 + $0x184] sm:$0xf]
        %v6053 = vld [vmem:[#allocation7 + $0x188] sm:$0xf]
        %v6054 = vld [vmem:[#allocation7 + $0x18c] sm:$0xf]
        %v6055 = vld [vmem:[#allocation7 + $0x190] sm:$0xf]
        %v6056 = vld [vmem:[#allocation7 + $0x194] sm:$0xf]
        %v6057 = vld [vmem:[#allocation7 + $0x198] sm:$0xf]
        %v6058 = vld [vmem:[#allocation7 + $0x19c] sm:$0xf]
        %v6059 = vld [vmem:[#allocation7 + $0x1a0] sm:$0xf]
        %v6060 = vld [vmem:[#allocation7 + $0x1a4] sm:$0xf]
        %v6061 = vld [vmem:[#allocation7 + $0x1a8] sm:$0xf]
        %v6062 = vld [vmem:[#allocation7 + $0x1ac] sm:$0xf]
        %v6063 = vld [vmem:[#allocation7 + $0x1b0] sm:$0xf]
        %v6064 = vld [vmem:[#allocation7 + $0x1b4] sm:$0xf]
        %v6065 = vld [vmem:[#allocation7 + $0x1b8] sm:$0xf]
        %v6066 = vld [vmem:[#allocation7 + $0x1bc] sm:$0xf]
        %v6067 = vld [vmem:[#allocation7 + $0x1c0] sm:$0xf]
        %v6068 = vld [vmem:[#allocation7 + $0x1c4] sm:$0xf]
        %v6069 = vld [vmem:[#allocation7 + $0x1c8] sm:$0xf]
        %v6070 = vld [vmem:[#allocation7 + $0x1cc] sm:$0xf]
        %v6071 = vld [vmem:[#allocation7 + $0x1d0] sm:$0xf]
        %v6072 = vld [vmem:[#allocation7 + $0x1d4] sm:$0xf]
        %v6073 = vld [vmem:[#allocation7 + $0x1d8] sm:$0xf]
        %v6074 = vld [vmem:[#allocation7 + $0x1dc] sm:$0xf]
        %v6075 = vld [vmem:[#allocation7 + $0x1e0] sm:$0xf]
        %v6076 = vld [vmem:[#allocation7 + $0x1e4] sm:$0xf]
        %v6077 = vld [vmem:[#allocation7 + $0x1e8] sm:$0xf]
        %v6078 = vld [vmem:[#allocation7 + $0x1ec] sm:$0xf]
        %v6079 = vld [vmem:[#allocation7 + $0x1f0] sm:$0xf]
        %v6080 = vld [vmem:[#allocation7 + $0x1f4] sm:$0xf]
        %v6081 = vld [vmem:[#allocation7 + $0x1f8] sm:$0xf]
        %v6082 = vld [vmem:[#allocation7 + $0x1fc] sm:$0xf]
        %v6083 = vld [vmem:[#allocation7 + $0x200] sm:$0xf]
        %v6084 = vld [vmem:[#allocation7 + $0x204] sm:$0xf]
        %v6085 = vld [vmem:[#allocation7 + $0x208] sm:$0xf]
        %v6086 = vld [vmem:[#allocation7 + $0x20c] sm:$0xf]
        %v6087 = vld [vmem:[#allocation7 + $0x210] sm:$0xf]
        %v6088 = vld [vmem:[#allocation7 + $0x214] sm:$0xf]
        %v6089 = vld [vmem:[#allocation7 + $0x218] sm:$0xf]
        %v6090 = vld [vmem:[#allocation7 + $0x21c] sm:$0xf]
        %v6091 = vld [vmem:[#allocation7 + $0x220] sm:$0xf]
        %v6092 = vld [vmem:[#allocation7 + $0x224] sm:$0xf]
        %v6093 = vld [vmem:[#allocation7 + $0x228] sm:$0xf]
        %v6094 = vld [vmem:[#allocation7 + $0x22c] sm:$0xf]
        %v6095 = vld [vmem:[#allocation7 + $0x230] sm:$0xf]
        %v6096 = vld [vmem:[#allocation7 + $0x234] sm:$0xf]
        %v6097 = vld [vmem:[#allocation7 + $0x238] sm:$0xf]
        %v6098 = vld [vmem:[#allocation7 + $0x23c] sm:$0xf]
        %v6099 = vld [vmem:[%s6] sm:$0x1]
        %v6101 = vperm.slane %v6099, 0
        %v6247 = vunpack.c.l.b16 %v5955
        %v6248 = vunpack.c.l.b16 %v5956
        %v6249 = vunpack.c.l.b16 %v5957
        %v6250 = vunpack.c.l.b16 %v5958
        %v6251 = vunpack.c.l.b16 %v5959
        %v6252 = vunpack.c.l.b16 %v5960
        %v6253 = vunpack.c.l.b16 %v5961
        %v6254 = vunpack.c.l.b16 %v5962
        %v6255 = vunpack.c.l.b16 %v5963
        %v6256 = vunpack.c.l.b16 %v5964
        %v6257 = vunpack.c.l.b16 %v5965
        %v6258 = vunpack.c.l.b16 %v5966
        %v6259 = vunpack.c.l.b16 %v5967
        %v6260 = vunpack.c.l.b16 %v5968
        %v6261 = vunpack.c.l.b16 %v5969
        %v6262 = vunpack.c.l.b16 %v5970
        %v6263 = vunpack.c.l.b16 %v5971
        %v6264 = vunpack.c.l.b16 %v5972
        %v6265 = vunpack.c.l.b16 %v5973
        %v6266 = vunpack.c.l.b16 %v5974
        %v6267 = vunpack.c.l.b16 %v5975
        %v6268 = vunpack.c.l.b16 %v5976
        %v6269 = vunpack.c.l.b16 %v5977
        %v6270 = vunpack.c.l.b16 %v5978
        %v6271 = vunpack.c.l.b16 %v5979
        %v6272 = vunpack.c.l.b16 %v5980
        %v6273 = vunpack.c.l.b16 %v5981
        %v6274 = vunpack.c.l.b16 %v5982
        %v6275 = vunpack.c.l.b16 %v5983
        %v6276 = vunpack.c.l.b16 %v5984
        %v6277 = vunpack.c.l.b16 %v5985
        %v6278 = vunpack.c.l.b16 %v5986
        %v6279 = vunpack.c.l.b16 %v5987
        %v6280 = vunpack.c.l.b16 %v5988
        %v6281 = vunpack.c.l.b16 %v5989
        %v6282 = vunpack.c.l.b16 %v5990
        %v6283 = vunpack.c.l.b16 %v5991
        %v6284 = vunpack.c.l.b16 %v5992
        %v6285 = vunpack.c.l.b16 %v5993
        %v6286 = vunpack.c.l.b16 %v5994
        %v6287 = vunpack.c.l.b16 %v5995
        %v6288 = vunpack.c.l.b16 %v5996
        %v6289 = vunpack.c.l.b16 %v5997
        %v6290 = vunpack.c.l.b16 %v5998
        %v6291 = vunpack.c.l.b16 %v5999
        %v6292 = vunpack.c.l.b16 %v6000
        %v6293 = vunpack.c.l.b16 %v6001
        %v6294 = vunpack.c.l.b16 %v6002
        %v6295 = vunpack.c.l.b16 %v6003
        %v6296 = vunpack.c.l.b16 %v6004
        %v6297 = vunpack.c.l.b16 %v6005
        %v6298 = vunpack.c.l.b16 %v6006
        %v6299 = vunpack.c.l.b16 %v6007
        %v6300 = vunpack.c.l.b16 %v6008
        %v6301 = vunpack.c.l.b16 %v6009
        %v6302 = vunpack.c.l.b16 %v6010
        %v6303 = vunpack.c.l.b16 %v6011
        %v6304 = vunpack.c.l.b16 %v6012
        %v6305 = vunpack.c.l.b16 %v6013
        %v6306 = vunpack.c.l.b16 %v6014
        %v6307 = vunpack.c.l.b16 %v6015
        %v6308 = vunpack.c.l.b16 %v6016
        %v6309 = vunpack.c.l.b16 %v6017
        %v6310 = vunpack.c.l.b16 %v6018
        %v6311 = vunpack.c.l.b16 %v6019
        %v6312 = vunpack.c.l.b16 %v6020
        %v6313 = vunpack.c.l.b16 %v6021
        %v6314 = vunpack.c.l.b16 %v6022
        %v6315 = vunpack.c.l.b16 %v6023
        %v6316 = vunpack.c.l.b16 %v6024
        %v6317 = vunpack.c.l.b16 %v6025
        %v6318 = vunpack.c.l.b16 %v6026
        %v6319 = vunpack.c.l.b16 %v6027
        %v6320 = vunpack.c.l.b16 %v6028
        %v6321 = vunpack.c.l.b16 %v6029
        %v6322 = vunpack.c.l.b16 %v6030
        %v6323 = vunpack.c.l.b16 %v6031
        %v6324 = vunpack.c.l.b16 %v6032
        %v6325 = vunpack.c.l.b16 %v6033
        %v6326 = vunpack.c.l.b16 %v6034
        %v6327 = vunpack.c.l.b16 %v6035
        %v6328 = vunpack.c.l.b16 %v6036
        %v6329 = vunpack.c.l.b16 %v6037
        %v6330 = vunpack.c.l.b16 %v6038
        %v6331 = vunpack.c.l.b16 %v6039
        %v6332 = vunpack.c.l.b16 %v6040
        %v6333 = vunpack.c.l.b16 %v6041
        %v6334 = vunpack.c.l.b16 %v6042
        %v6335 = vunpack.c.l.b16 %v6043
        %v6336 = vunpack.c.l.b16 %v6044
        %v6337 = vunpack.c.l.b16 %v6045
        %v6338 = vunpack.c.l.b16 %v6046
        %v6339 = vunpack.c.l.b16 %v6047
        %v6340 = vunpack.c.l.b16 %v6048
        %v6341 = vunpack.c.l.b16 %v6049
        %v6342 = vunpack.c.l.b16 %v6050
        %v6343 = vunpack.c.l.b16 %v6051
        %v6344 = vunpack.c.l.b16 %v6052
        %v6345 = vunpack.c.l.b16 %v6053
        %v6346 = vunpack.c.l.b16 %v6054
        %v6347 = vunpack.c.l.b16 %v6055
        %v6348 = vunpack.c.l.b16 %v6056
        %v6349 = vunpack.c.l.b16 %v6057
        %v6350 = vunpack.c.l.b16 %v6058
        %v6351 = vunpack.c.l.b16 %v6059
        %v6352 = vunpack.c.l.b16 %v6060
        %v6353 = vunpack.c.l.b16 %v6061
        %v6354 = vunpack.c.l.b16 %v6062
        %v6355 = vunpack.c.l.b16 %v6063
        %v6356 = vunpack.c.l.b16 %v6064
        %v6357 = vunpack.c.l.b16 %v6065
        %v6358 = vunpack.c.l.b16 %v6066
        %v6359 = vunpack.c.l.b16 %v6067
        %v6360 = vunpack.c.l.b16 %v6068
        %v6361 = vunpack.c.l.b16 %v6069
        %v6362 = vunpack.c.l.b16 %v6070
        %v6363 = vunpack.c.l.b16 %v6071
        %v6364 = vunpack.c.l.b16 %v6072
        %v6365 = vunpack.c.l.b16 %v6073
        %v6366 = vunpack.c.l.b16 %v6074
        %v6367 = vunpack.c.l.b16 %v6075
        %v6368 = vunpack.c.l.b16 %v6076
        %v6369 = vunpack.c.l.b16 %v6077
        %v6370 = vunpack.c.l.b16 %v6078
        %v6371 = vunpack.c.l.b16 %v6079
        %v6372 = vunpack.c.l.b16 %v6080
        %v6373 = vunpack.c.l.b16 %v6081
        %v6374 = vunpack.c.l.b16 %v6082
        %v6375 = vunpack.c.l.b16 %v6083
        %v6376 = vunpack.c.l.b16 %v6084
        %v6377 = vunpack.c.l.b16 %v6085
        %v6378 = vunpack.c.l.b16 %v6086
        %v6379 = vunpack.c.l.b16 %v6087
        %v6380 = vunpack.c.l.b16 %v6088
        %v6381 = vunpack.c.l.b16 %v6089
        %v6382 = vunpack.c.l.b16 %v6090
        %v6383 = vunpack.c.l.b16 %v6091
        %v6384 = vunpack.c.l.b16 %v6092
        %v6385 = vunpack.c.l.b16 %v6093
        %v6386 = vunpack.c.l.b16 %v6094
        %v6387 = vunpack.c.l.b16 %v6095
        %v6388 = vunpack.c.l.b16 %v6096
        %v6389 = vunpack.c.l.b16 %v6097
        %v6390 = vunpack.c.l.b16 %v6098
        %v6391 = vpack.c.b16 %v6248, %v6247
        %v6392 = vpack.c.b16 %v6250, %v6249
        %v6393 = vpack.c.b16 %v6252, %v6251
        %v6394 = vpack.c.b16 %v6254, %v6253
        %v6395 = vpack.c.b16 %v6256, %v6255
        %v6396 = vpack.c.b16 %v6258, %v6257
        %v6397 = vpack.c.b16 %v6260, %v6259
        %v6398 = vpack.c.b16 %v6262, %v6261
        %v6399 = vpack.c.b16 %v6264, %v6263
        %v6400 = vpack.c.b16 %v6266, %v6265
        %v6401 = vpack.c.b16 %v6268, %v6267
        %v6402 = vpack.c.b16 %v6270, %v6269
        %v6403 = vpack.c.b16 %v6272, %v6271
        %v6404 = vpack.c.b16 %v6274, %v6273
        %v6405 = vpack.c.b16 %v6276, %v6275
        %v6406 = vpack.c.b16 %v6278, %v6277
        %v6407 = vpack.c.b16 %v6280, %v6279
        %v6408 = vpack.c.b16 %v6282, %v6281
        %v6409 = vpack.c.b16 %v6284, %v6283
        %v6410 = vpack.c.b16 %v6286, %v6285
        %v6411 = vpack.c.b16 %v6288, %v6287
        %v6412 = vpack.c.b16 %v6290, %v6289
        %v6413 = vpack.c.b16 %v6292, %v6291
        %v6414 = vpack.c.b16 %v6294, %v6293
        %v6415 = vpack.c.b16 %v6296, %v6295
        %v6416 = vpack.c.b16 %v6298, %v6297
        %v6417 = vpack.c.b16 %v6300, %v6299
        %v6418 = vpack.c.b16 %v6302, %v6301
        %v6419 = vpack.c.b16 %v6304, %v6303
        %v6420 = vpack.c.b16 %v6306, %v6305
        %v6421 = vpack.c.b16 %v6308, %v6307
        %v6422 = vpack.c.b16 %v6310, %v6309
        %v6423 = vpack.c.b16 %v6312, %v6311
        %v6424 = vpack.c.b16 %v6314, %v6313
        %v6425 = vpack.c.b16 %v6316, %v6315
        %v6426 = vpack.c.b16 %v6318, %v6317
        %v6427 = vpack.c.b16 %v6320, %v6319
        %v6428 = vpack.c.b16 %v6322, %v6321
        %v6429 = vpack.c.b16 %v6324, %v6323
        %v6430 = vpack.c.b16 %v6326, %v6325
        %v6431 = vpack.c.b16 %v6328, %v6327
        %v6432 = vpack.c.b16 %v6330, %v6329
        %v6433 = vpack.c.b16 %v6332, %v6331
        %v6434 = vpack.c.b16 %v6334, %v6333
        %v6435 = vpack.c.b16 %v6336, %v6335
        %v6436 = vpack.c.b16 %v6338, %v6337
        %v6437 = vpack.c.b16 %v6340, %v6339
        %v6438 = vpack.c.b16 %v6342, %v6341
        %v6439 = vpack.c.b16 %v6344, %v6343
        %v6440 = vpack.c.b16 %v6346, %v6345
        %v6441 = vpack.c.b16 %v6348, %v6347
        %v6442 = vpack.c.b16 %v6350, %v6349
        %v6443 = vpack.c.b16 %v6352, %v6351
        %v6444 = vpack.c.b16 %v6354, %v6353
        %v6445 = vpack.c.b16 %v6356, %v6355
        %v6446 = vpack.c.b16 %v6358, %v6357
        %v6447 = vpack.c.b16 %v6360, %v6359
        %v6448 = vpack.c.b16 %v6362, %v6361
        %v6449 = vpack.c.b16 %v6364, %v6363
        %v6450 = vpack.c.b16 %v6366, %v6365
        %v6451 = vpack.c.b16 %v6368, %v6367
        %v6452 = vpack.c.b16 %v6370, %v6369
        %v6453 = vpack.c.b16 %v6372, %v6371
        %v6454 = vpack.c.b16 %v6374, %v6373
        %v6455 = vpack.c.b16 %v6376, %v6375
        %v6456 = vpack.c.b16 %v6378, %v6377
        %v6457 = vpack.c.b16 %v6380, %v6379
        %v6458 = vpack.c.b16 %v6382, %v6381
        %v6459 = vpack.c.b16 %v6384, %v6383
        %v6460 = vpack.c.b16 %v6386, %v6385
        %v6461 = vpack.c.b16 %v6388, %v6387
        %v6462 = vpack.c.b16 %v6390, %v6389
        %6535 = vmatpush.bf16.msra.mxu0 %v6398
        %6536 = vmatpush.bf16.msra.mxu0 %v6397
        %6537 = vmatpush.bf16.msra.mxu0 %v6396
        %6538 = vmatpush.bf16.msra.mxu0 %v6395
        %6539 = vmatpush.bf16.msra.mxu0 %v6394
        %6540 = vmatpush.bf16.msra.mxu0 %v6393
        %6541 = vmatpush.bf16.msra.mxu0 %v6392
        %6542 = vmatpush.bf16.msra.mxu0 %v6391
        %6543 = vmatmul.bf16.gmra.mxu0 0
        %v6544 = vpop.f32.mrf.mxu0
        %v6545 = vadd.f32 %v6101, %v6544
        %v6546 = vpop.f32.mrf.mxu0
        %v6547 = vadd.f32 %v6101, %v6546
        %6548 = vmatmul.bf16.gmra.mxu0 %v5582
        %v6549 = vpop.f32.mrf.mxu0
        %v6550 = vadd.f32 %v6101, %v6549
        %v6551 = vpop.f32.mrf.mxu0
        %v6552 = vadd.f32 %v6101, %v6551
        %6553 = vmatmul.bf16.gmra.mxu0 %v5583
        %v6554 = vpop.f32.mrf.mxu0
        %v6555 = vadd.f32 %v6101, %v6554
        %v6556 = vpop.f32.mrf.mxu0
        %v6557 = vadd.f32 %v6101, %v6556
        %6558 = vmatmul.bf16.gmra.mxu0 %v5584
        %v6559 = vpop.f32.mrf.mxu0
        %v6560 = vadd.f32 %v6101, %v6559
        %v6561 = vpop.f32.mrf.mxu0
        %v6562 = vadd.f32 %v6101, %v6561
        %6563 = vmatmul.bf16.gmra.mxu0 %v5585
        %v6564 = vpop.f32.mrf.mxu0
        %v6565 = vadd.f32 %v6101, %v6564
        %v6566 = vpop.f32.mrf.mxu0
        %v6567 = vadd.f32 %v6101, %v6566
        %6568 = vmatmul.bf16.gmra.mxu0 %v5586
        %v6569 = vpop.f32.mrf.mxu0
        %v6570 = vadd.f32 %v6101, %v6569
        %v6571 = vpop.f32.mrf.mxu0
        %v6572 = vadd.f32 %v6101, %v6571
        %6573 = vmatmul.bf16.gmra.mxu0 %v5587
        %v6574 = vpop.f32.mrf.mxu0
        %v6575 = vadd.f32 %v6101, %v6574
        %v6576 = vpop.f32.mrf.mxu0
        %v6577 = vadd.f32 %v6101, %v6576
        %6578 = vmatmul.bf16.gmra.mxu0 %v5588
        %v6579 = vpop.f32.mrf.mxu0
        %v6580 = vadd.f32 %v6101, %v6579
        %v6581 = vpop.f32.mrf.mxu0
        %v6582 = vadd.f32 %v6101, %v6581
        %6583 = vmatmul.bf16.gmra.mxu0 %v5589
        %v6584 = vpop.f32.mrf.mxu0
        %v6585 = vadd.f32 %v6101, %v6584
        %v6586 = vpop.f32.mrf.mxu0
        %v6587 = vadd.f32 %v6101, %v6586
        %6588 = vmatmul.bf16.gmra.mxu0 %v5590
        %v6589 = vpop.f32.mrf.mxu0
        %v6590 = vadd.f32 %v6101, %v6589
        %v6591 = vpop.f32.mrf.mxu0
        %v6592 = vadd.f32 %v6101, %v6591
        %6593 = vmatmul.bf16.gmra.mxu0 %v5591
        %v6594 = vpop.f32.mrf.mxu0
        %v6595 = vadd.f32 %v6101, %v6594
        %v6596 = vpop.f32.mrf.mxu0
        %v6597 = vadd.f32 %v6101, %v6596
        %6598 = vmatmul.bf16.gmra.mxu0 %v5592
        %v6599 = vpop.f32.mrf.mxu0
        %v6600 = vadd.f32 %v6101, %v6599
        %v6601 = vpop.f32.mrf.mxu0
        %v6602 = vadd.f32 %v6101, %v6601
        %6603 = vmatmul.bf16.gmra.mxu0 %v5593
        %v6604 = vpop.f32.mrf.mxu0
        %v6605 = vadd.f32 %v6101, %v6604
        %v6606 = vpop.f32.mrf.mxu0
        %v6607 = vadd.f32 %v6101, %v6606
        %6608 = vmatmul.bf16.gmra.mxu0 %v5594
        %v6609 = vpop.f32.mrf.mxu0
        %v6610 = vadd.f32 %v6101, %v6609
        %v6611 = vpop.f32.mrf.mxu0
        %v6612 = vadd.f32 %v6101, %v6611
        %6613 = vmatmul.bf16.gmra.mxu0 %v5595
        %v6614 = vpop.f32.mrf.mxu0
        %v6615 = vadd.f32 %v6101, %v6614
        %v6616 = vpop.f32.mrf.mxu0
        %v6617 = vadd.f32 %v6101, %v6616
        %6618 = vmatmul.bf16.gmra.mxu0 %v5596
        %v6619 = vpop.f32.mrf.mxu0
        %v6620 = vadd.f32 %v6101, %v6619
        %v6621 = vpop.f32.mrf.mxu0
        %v6622 = vadd.f32 %v6101, %v6621
        %6623 = vdwg.mxu0
        %6624 = vmatpush.bf16.msra.mxu0 %v6406
        %6625 = vmatpush.bf16.msra.mxu0 %v6405
        %6626 = vmatpush.bf16.msra.mxu0 %v6404
        %6627 = vmatpush.bf16.msra.mxu0 %v6403
        %6628 = vmatpush.bf16.msra.mxu0 %v6402
        %6629 = vmatpush.bf16.msra.mxu0 %v6401
        %6630 = vmatpush.bf16.msra.mxu0 %v6400
        %6631 = vmatpush.bf16.msra.mxu0 %v6399
        %6632 = vmatmul.bf16.gmra.mxu0 0
        %v6633 = vpop.f32.mrf.mxu0
        %v6634 = vadd.f32 %v6545, %v6633
        %v6635 = vpop.f32.mrf.mxu0
        %v6636 = vadd.f32 %v6547, %v6635
        %6637 = vmatmul.bf16.gmra.mxu0 %v5432
        %v6638 = vpop.f32.mrf.mxu0
        %v6639 = vadd.f32 %v6550, %v6638
        %v6640 = vpop.f32.mrf.mxu0
        %v6641 = vadd.f32 %v6552, %v6640
        %6642 = vmatmul.bf16.gmra.mxu0 %v5433
        %v6643 = vpop.f32.mrf.mxu0
        %v6644 = vadd.f32 %v6555, %v6643
        %v6645 = vpop.f32.mrf.mxu0
        %v6646 = vadd.f32 %v6557, %v6645
        %6647 = vmatmul.bf16.gmra.mxu0 %v5434
        %v6648 = vpop.f32.mrf.mxu0
        %v6649 = vadd.f32 %v6560, %v6648
        %v6650 = vpop.f32.mrf.mxu0
        %v6651 = vadd.f32 %v6562, %v6650
        %6652 = vmatmul.bf16.gmra.mxu0 %v5435
        %v6653 = vpop.f32.mrf.mxu0
        %v6654 = vadd.f32 %v6565, %v6653
        %v6655 = vpop.f32.mrf.mxu0
        %v6656 = vadd.f32 %v6567, %v6655
        %6657 = vmatmul.bf16.gmra.mxu0 %v5436
        %v6658 = vpop.f32.mrf.mxu0
        %v6659 = vadd.f32 %v6570, %v6658
        %v6660 = vpop.f32.mrf.mxu0
        %v6661 = vadd.f32 %v6572, %v6660
        %6662 = vmatmul.bf16.gmra.mxu0 %v5437
        %v6663 = vpop.f32.mrf.mxu0
        %v6664 = vadd.f32 %v6575, %v6663
        %v6665 = vpop.f32.mrf.mxu0
        %v6666 = vadd.f32 %v6577, %v6665
        %6667 = vmatmul.bf16.gmra.mxu0 %v5438
        %v6668 = vpop.f32.mrf.mxu0
        %v6669 = vadd.f32 %v6580, %v6668
        %v6670 = vpop.f32.mrf.mxu0
        %v6671 = vadd.f32 %v6582, %v6670
        %6672 = vmatmul.bf16.gmra.mxu0 %v5439
        %v6673 = vpop.f32.mrf.mxu0
        %v6674 = vadd.f32 %v6585, %v6673
        %v6675 = vpop.f32.mrf.mxu0
        %v6676 = vadd.f32 %v6587, %v6675
        %6677 = vmatmul.bf16.gmra.mxu0 %v5440
        %v6678 = vpop.f32.mrf.mxu0
        %v6679 = vadd.f32 %v6590, %v6678
        %v6680 = vpop.f32.mrf.mxu0
        %v6681 = vadd.f32 %v6592, %v6680
        %6682 = vmatmul.bf16.gmra.mxu0 %v5441
        %v6683 = vpop.f32.mrf.mxu0
        %v6684 = vadd.f32 %v6595, %v6683
        %v6685 = vpop.f32.mrf.mxu0
        %v6686 = vadd.f32 %v6597, %v6685
        %6687 = vmatmul.bf16.gmra.mxu0 %v5442
        %v6688 = vpop.f32.mrf.mxu0
        %v6689 = vadd.f32 %v6600, %v6688
        %v6690 = vpop.f32.mrf.mxu0
        %v6691 = vadd.f32 %v6602, %v6690
        %6692 = vmatmul.bf16.gmra.mxu0 %v5443
        %v6693 = vpop.f32.mrf.mxu0
        %v6694 = vadd.f32 %v6605, %v6693
        %v6695 = vpop.f32.mrf.mxu0
        %v6696 = vadd.f32 %v6607, %v6695
        %6697 = vmatmul.bf16.gmra.mxu0 %v5444
        %v6698 = vpop.f32.mrf.mxu0
        %v6699 = vadd.f32 %v6610, %v6698
        %v6700 = vpop.f32.mrf.mxu0
        %v6701 = vadd.f32 %v6612, %v6700
        %6702 = vmatmul.bf16.gmra.mxu0 %v5445
        %v6703 = vpop.f32.mrf.mxu0
        %v6704 = vadd.f32 %v6615, %v6703
        %v6705 = vpop.f32.mrf.mxu0
        %v6706 = vadd.f32 %v6617, %v6705
        %6707 = vmatmul.bf16.gmra.mxu0 %v5446
        %v6708 = vpop.f32.mrf.mxu0
        %v6709 = vadd.f32 %v6620, %v6708
        %v6710 = vpop.f32.mrf.mxu0
        %v6711 = vadd.f32 %v6622, %v6710
        %6712 = vdwg.mxu0
        %6713 = vmatpush.bf16.msra.mxu0 %v6414
        %6714 = vmatpush.bf16.msra.mxu0 %v6413
        %6715 = vmatpush.bf16.msra.mxu0 %v6412
        %6716 = vmatpush.bf16.msra.mxu0 %v6411
        %6717 = vmatpush.bf16.msra.mxu0 %v6410
        %6718 = vmatpush.bf16.msra.mxu0 %v6409
        %6719 = vmatpush.bf16.msra.mxu0 %v6408
        %6720 = vmatpush.bf16.msra.mxu0 %v6407
        %6721 = vmatmul.bf16.gmra.mxu0 %v5681
        %v6722 = vpop.f32.mrf.mxu0
        %v6723 = vadd.f32 %v6634, %v6722
        %v6724 = vpop.f32.mrf.mxu0
        %v6725 = vadd.f32 %v6636, %v6724
        %6726 = vmatmul.bf16.gmra.mxu0 %v5682
        %v6727 = vpop.f32.mrf.mxu0
        %v6728 = vadd.f32 %v6639, %v6727
        %v6729 = vpop.f32.mrf.mxu0
        %v6730 = vadd.f32 %v6641, %v6729
        %6731 = vmatmul.bf16.gmra.mxu0 %v5683
        %v6732 = vpop.f32.mrf.mxu0
        %v6733 = vadd.f32 %v6644, %v6732
        %v6734 = vpop.f32.mrf.mxu0
        %v6735 = vadd.f32 %v6646, %v6734
        %6736 = vmatmul.bf16.gmra.mxu0 %v5684
        %v6737 = vpop.f32.mrf.mxu0
        %v6738 = vadd.f32 %v6649, %v6737
        %v6739 = vpop.f32.mrf.mxu0
        %v6740 = vadd.f32 %v6651, %v6739
        %6741 = vmatmul.bf16.gmra.mxu0 %v5685
        %v6742 = vpop.f32.mrf.mxu0
        %v6743 = vadd.f32 %v6654, %v6742
        %v6744 = vpop.f32.mrf.mxu0
        %v6745 = vadd.f32 %v6656, %v6744
        %6746 = vmatmul.bf16.gmra.mxu0 %v5686
        %v6747 = vpop.f32.mrf.mxu0
        %v6748 = vadd.f32 %v6659, %v6747
        %v6749 = vpop.f32.mrf.mxu0
        %v6750 = vadd.f32 %v6661, %v6749
        %6751 = vmatmul.bf16.gmra.mxu0 %v5687
        %v6752 = vpop.f32.mrf.mxu0
        %v6753 = vadd.f32 %v6664, %v6752
        %v6754 = vpop.f32.mrf.mxu0
        %v6755 = vadd.f32 %v6666, %v6754
        %6756 = vmatmul.bf16.gmra.mxu0 %v5688
        %v6757 = vpop.f32.mrf.mxu0
        %v6758 = vadd.f32 %v6669, %v6757
        %v6759 = vpop.f32.mrf.mxu0
        %v6760 = vadd.f32 %v6671, %v6759
        %6761 = vmatmul.bf16.gmra.mxu0 %v5689
        %v6762 = vpop.f32.mrf.mxu0
        %v6763 = vadd.f32 %v6674, %v6762
        %v6764 = vpop.f32.mrf.mxu0
        %v6765 = vadd.f32 %v6676, %v6764
        %6766 = vmatmul.bf16.gmra.mxu0 %v5690
        %v6767 = vpop.f32.mrf.mxu0
        %v6768 = vadd.f32 %v6679, %v6767
        %v6769 = vpop.f32.mrf.mxu0
        %v6770 = vadd.f32 %v6681, %v6769
        %6771 = vmatmul.bf16.gmra.mxu0 %v5691
        %v6772 = vpop.f32.mrf.mxu0
        %v6773 = vadd.f32 %v6684, %v6772
        %v6774 = vpop.f32.mrf.mxu0
        %v6775 = vadd.f32 %v6686, %v6774
        %6776 = vmatmul.bf16.gmra.mxu0 %v5692
        %v6777 = vpop.f32.mrf.mxu0
        %v6778 = vadd.f32 %v6689, %v6777
        %v6779 = vpop.f32.mrf.mxu0
        %v6780 = vadd.f32 %v6691, %v6779
        %6781 = vmatmul.bf16.gmra.mxu0 %v5693
        %v6782 = vpop.f32.mrf.mxu0
        %v6783 = vadd.f32 %v6694, %v6782
        %v6784 = vpop.f32.mrf.mxu0
        %v6785 = vadd.f32 %v6696, %v6784
        %6786 = vmatmul.bf16.gmra.mxu0 %v5694
        %v6787 = vpop.f32.mrf.mxu0
        %v6788 = vadd.f32 %v6699, %v6787
        %v6789 = vpop.f32.mrf.mxu0
        %v6790 = vadd.f32 %v6701, %v6789
        %6791 = vmatmul.bf16.gmra.mxu0 %v5695
        %v6792 = vpop.f32.mrf.mxu0
        %v6793 = vadd.f32 %v6704, %v6792
        %v6794 = vpop.f32.mrf.mxu0
        %v6795 = vadd.f32 %v6706, %v6794
        %6796 = vmatmul.bf16.gmra.mxu0 %v5696
        %v6797 = vpop.f32.mrf.mxu0
        %v6798 = vadd.f32 %v6709, %v6797
        %v6799 = vpop.f32.mrf.mxu0
        %v6800 = vadd.f32 %v6711, %v6799
        %6801 = vdwg.mxu0
        %6802 = vmatpush.bf16.msra.mxu0 %v6422
        %6803 = vmatpush.bf16.msra.mxu0 %v6421
        %6804 = vmatpush.bf16.msra.mxu0 %v6420
        %6805 = vmatpush.bf16.msra.mxu0 %v6419
        %6806 = vmatpush.bf16.msra.mxu0 %v6418
        %6807 = vmatpush.bf16.msra.mxu0 %v6417
        %6808 = vmatpush.bf16.msra.mxu0 %v6416
        %6809 = vmatpush.bf16.msra.mxu0 %v6415
        %6810 = vmatmul.bf16.gmra.mxu0 %v5709
        %v6811 = vpop.f32.mrf.mxu0
        %v6812 = vadd.f32 %v6723, %v6811
        %v6813 = vpop.f32.mrf.mxu0
        %v6814 = vadd.f32 %v6725, %v6813
        %6815 = vmatmul.bf16.gmra.mxu0 %v5710
        %v6816 = vpop.f32.mrf.mxu0
        %v6817 = vadd.f32 %v6728, %v6816
        %v6818 = vpop.f32.mrf.mxu0
        %v6819 = vadd.f32 %v6730, %v6818
        %6820 = vmatmul.bf16.gmra.mxu0 %v5711
        %v6821 = vpop.f32.mrf.mxu0
        %v6822 = vadd.f32 %v6733, %v6821
        %v6823 = vpop.f32.mrf.mxu0
        %v6824 = vadd.f32 %v6735, %v6823
        %6825 = vmatmul.bf16.gmra.mxu0 %v5712
        %v6826 = vpop.f32.mrf.mxu0
        %v6827 = vadd.f32 %v6738, %v6826
        %v6828 = vpop.f32.mrf.mxu0
        %v6829 = vadd.f32 %v6740, %v6828
        %6830 = vmatmul.bf16.gmra.mxu0 %v5713
        %v6831 = vpop.f32.mrf.mxu0
        %v6832 = vadd.f32 %v6743, %v6831
        %v6833 = vpop.f32.mrf.mxu0
        %v6834 = vadd.f32 %v6745, %v6833
        %6835 = vmatmul.bf16.gmra.mxu0 %v5714
        %v6836 = vpop.f32.mrf.mxu0
        %v6837 = vadd.f32 %v6748, %v6836
        %v6838 = vpop.f32.mrf.mxu0
        %v6839 = vadd.f32 %v6750, %v6838
        %6840 = vmatmul.bf16.gmra.mxu0 %v5715
        %v6841 = vpop.f32.mrf.mxu0
        %v6842 = vadd.f32 %v6753, %v6841
        %v6843 = vpop.f32.mrf.mxu0
        %v6844 = vadd.f32 %v6755, %v6843
        %6845 = vmatmul.bf16.gmra.mxu0 %v5716
        %v6846 = vpop.f32.mrf.mxu0
        %v6847 = vadd.f32 %v6758, %v6846
        %v6848 = vpop.f32.mrf.mxu0
        %v6849 = vadd.f32 %v6760, %v6848
        %6850 = vmatmul.bf16.gmra.mxu0 %v5717
        %v6851 = vpop.f32.mrf.mxu0
        %v6852 = vadd.f32 %v6763, %v6851
        %v6853 = vpop.f32.mrf.mxu0
        %v6854 = vadd.f32 %v6765, %v6853
        %6855 = vmatmul.bf16.gmra.mxu0 %v5718
        %v6856 = vpop.f32.mrf.mxu0
        %v6857 = vadd.f32 %v6768, %v6856
        %v6858 = vpop.f32.mrf.mxu0
        %v6859 = vadd.f32 %v6770, %v6858
        %6860 = vmatmul.bf16.gmra.mxu0 %v5719
        %v6861 = vpop.f32.mrf.mxu0
        %v6862 = vadd.f32 %v6773, %v6861
        %v6863 = vpop.f32.mrf.mxu0
        %v6864 = vadd.f32 %v6775, %v6863
        %6865 = vmatmul.bf16.gmra.mxu0 %v5720
        %v6866 = vpop.f32.mrf.mxu0
        %v6867 = vadd.f32 %v6778, %v6866
        %v6868 = vpop.f32.mrf.mxu0
        %v6869 = vadd.f32 %v6780, %v6868
        %6870 = vmatmul.bf16.gmra.mxu0 %v5721
        %v6871 = vpop.f32.mrf.mxu0
        %v6872 = vadd.f32 %v6783, %v6871
        %v6873 = vpop.f32.mrf.mxu0
        %v6874 = vadd.f32 %v6785, %v6873
        %6875 = vmatmul.bf16.gmra.mxu0 %v5722
        %v6876 = vpop.f32.mrf.mxu0
        %v6877 = vadd.f32 %v6788, %v6876
        %v6878 = vpop.f32.mrf.mxu0
        %v6879 = vadd.f32 %v6790, %v6878
        %6880 = vmatmul.bf16.gmra.mxu0 %v5723
        %v6881 = vpop.f32.mrf.mxu0
        %v6882 = vadd.f32 %v6793, %v6881
        %v6883 = vpop.f32.mrf.mxu0
        %v6884 = vadd.f32 %v6795, %v6883
        %6885 = vmatmul.bf16.gmra.mxu0 %v5724
        %v6886 = vpop.f32.mrf.mxu0
        %v6887 = vadd.f32 %v6798, %v6886
        %v6888 = vpop.f32.mrf.mxu0
        %v6889 = vadd.f32 %v6800, %v6888
        %6890 = vdwg.mxu0
        %6891 = vmatpush.bf16.msra.mxu0 %v6430
        %6892 = vmatpush.bf16.msra.mxu0 %v6429
        %6893 = vmatpush.bf16.msra.mxu0 %v6428
        %6894 = vmatpush.bf16.msra.mxu0 %v6427
        %6895 = vmatpush.bf16.msra.mxu0 %v6426
        %6896 = vmatpush.bf16.msra.mxu0 %v6425
        %6897 = vmatpush.bf16.msra.mxu0 %v6424
        %6898 = vmatpush.bf16.msra.mxu0 %v6423
        %6899 = vmatmul.bf16.gmra.mxu0 %v5432
        %v6900 = vpop.f32.mrf.mxu0
        %v6901 = vadd.f32 %v6812, %v6900
        %v6902 = vpop.f32.mrf.mxu0
        %v6903 = vadd.f32 %v6814, %v6902
        %6904 = vmatmul.bf16.gmra.mxu0 %v5433
        %v6905 = vpop.f32.mrf.mxu0
        %v6906 = vadd.f32 %v6817, %v6905
        %v6907 = vpop.f32.mrf.mxu0
        %v6908 = vadd.f32 %v6819, %v6907
        %6909 = vmatmul.bf16.gmra.mxu0 %v5434
        %v6910 = vpop.f32.mrf.mxu0
        %v6911 = vadd.f32 %v6822, %v6910
        %v6912 = vpop.f32.mrf.mxu0
        %v6913 = vadd.f32 %v6824, %v6912
        %6914 = vmatmul.bf16.gmra.mxu0 %v5435
        %v6915 = vpop.f32.mrf.mxu0
        %v6916 = vadd.f32 %v6827, %v6915
        %v6917 = vpop.f32.mrf.mxu0
        %v6918 = vadd.f32 %v6829, %v6917
        %6919 = vmatmul.bf16.gmra.mxu0 %v5436
        %v6920 = vpop.f32.mrf.mxu0
        %v6921 = vadd.f32 %v6832, %v6920
        %v6922 = vpop.f32.mrf.mxu0
        %v6923 = vadd.f32 %v6834, %v6922
        %6924 = vmatmul.bf16.gmra.mxu0 %v5437
        %v6925 = vpop.f32.mrf.mxu0
        %v6926 = vadd.f32 %v6837, %v6925
        %v6927 = vpop.f32.mrf.mxu0
        %v6928 = vadd.f32 %v6839, %v6927
        %6929 = vmatmul.bf16.gmra.mxu0 %v5438
        %v6930 = vpop.f32.mrf.mxu0
        %v6931 = vadd.f32 %v6842, %v6930
        %v6932 = vpop.f32.mrf.mxu0
        %v6933 = vadd.f32 %v6844, %v6932
        %6934 = vmatmul.bf16.gmra.mxu0 %v5439
        %v6935 = vpop.f32.mrf.mxu0
        %v6936 = vadd.f32 %v6847, %v6935
        %v6937 = vpop.f32.mrf.mxu0
        %v6938 = vadd.f32 %v6849, %v6937
        %6939 = vmatmul.bf16.gmra.mxu0 %v5440
        %v6940 = vpop.f32.mrf.mxu0
        %v6941 = vadd.f32 %v6852, %v6940
        %v6942 = vpop.f32.mrf.mxu0
        %v6943 = vadd.f32 %v6854, %v6942
        %6944 = vmatmul.bf16.gmra.mxu0 %v5441
        %v6945 = vpop.f32.mrf.mxu0
        %v6946 = vadd.f32 %v6857, %v6945
        %v6947 = vpop.f32.mrf.mxu0
        %v6948 = vadd.f32 %v6859, %v6947
        %6949 = vmatmul.bf16.gmra.mxu0 %v5442
        %v6950 = vpop.f32.mrf.mxu0
        %v6951 = vadd.f32 %v6862, %v6950
        %v6952 = vpop.f32.mrf.mxu0
        %v6953 = vadd.f32 %v6864, %v6952
        %6954 = vmatmul.bf16.gmra.mxu0 %v5443
        %v6955 = vpop.f32.mrf.mxu0
        %v6956 = vadd.f32 %v6867, %v6955
        %v6957 = vpop.f32.mrf.mxu0
        %v6958 = vadd.f32 %v6869, %v6957
        %6959 = vmatmul.bf16.gmra.mxu0 %v5444
        %v6960 = vpop.f32.mrf.mxu0
        %v6961 = vadd.f32 %v6872, %v6960
        %v6962 = vpop.f32.mrf.mxu0
        %v6963 = vadd.f32 %v6874, %v6962
        %6964 = vmatmul.bf16.gmra.mxu0 %v5445
        %v6965 = vpop.f32.mrf.mxu0
        %v6966 = vadd.f32 %v6877, %v6965
        %v6967 = vpop.f32.mrf.mxu0
        %v6968 = vadd.f32 %v6879, %v6967
        %6969 = vmatmul.bf16.gmra.mxu0 %v5446
        %v6970 = vpop.f32.mrf.mxu0
        %v6971 = vadd.f32 %v6882, %v6970
        %v6972 = vpop.f32.mrf.mxu0
        %v6973 = vadd.f32 %v6884, %v6972
        %6974 = vmatmul.bf16.gmra.mxu0 %v5699
        %v6975 = vpop.f32.mrf.mxu0
        %v6976 = vadd.f32 %v6887, %v6975
        %v6977 = vpop.f32.mrf.mxu0
        %v6978 = vadd.f32 %v6889, %v6977
        %6979 = vdwg.mxu0
        %6980 = vmatpush.bf16.msra.mxu0 %v6438
        %6981 = vmatpush.bf16.msra.mxu0 %v6437
        %6982 = vmatpush.bf16.msra.mxu0 %v6436
        %6983 = vmatpush.bf16.msra.mxu0 %v6435
        %6984 = vmatpush.bf16.msra.mxu0 %v6434
        %6985 = vmatpush.bf16.msra.mxu0 %v6433
        %6986 = vmatpush.bf16.msra.mxu0 %v6432
        %6987 = vmatpush.bf16.msra.mxu0 %v6431
        %6988 = vmatmul.bf16.gmra.mxu0 %v5731
        %v6989 = vpop.f32.mrf.mxu0
        %v6990 = vadd.f32 %v6901, %v6989
        %v6991 = vpop.f32.mrf.mxu0
        %v6992 = vadd.f32 %v6903, %v6991
        %6993 = vmatmul.bf16.gmra.mxu0 %v5732
        %v6994 = vpop.f32.mrf.mxu0
        %v6995 = vadd.f32 %v6906, %v6994
        %v6996 = vpop.f32.mrf.mxu0
        %v6997 = vadd.f32 %v6908, %v6996
        %6998 = vmatmul.bf16.gmra.mxu0 %v5733
        %v6999 = vpop.f32.mrf.mxu0
        %v7000 = vadd.f32 %v6911, %v6999
        %v7001 = vpop.f32.mrf.mxu0
        %v7002 = vadd.f32 %v6913, %v7001
        %7003 = vmatmul.bf16.gmra.mxu0 %v5734
        %v7004 = vpop.f32.mrf.mxu0
        %v7005 = vadd.f32 %v6916, %v7004
        %v7006 = vpop.f32.mrf.mxu0
        %v7007 = vadd.f32 %v6918, %v7006
        %7008 = vmatmul.bf16.gmra.mxu0 %v5735
        %v7009 = vpop.f32.mrf.mxu0
        %v7010 = vadd.f32 %v6921, %v7009
        %v7011 = vpop.f32.mrf.mxu0
        %v7012 = vadd.f32 %v6923, %v7011
        %7013 = vmatmul.bf16.gmra.mxu0 %v5736
        %v7014 = vpop.f32.mrf.mxu0
        %v7015 = vadd.f32 %v6926, %v7014
        %v7016 = vpop.f32.mrf.mxu0
        %v7017 = vadd.f32 %v6928, %v7016
        %7018 = vmatmul.bf16.gmra.mxu0 %v5737
        %v7019 = vpop.f32.mrf.mxu0
        %v7020 = vadd.f32 %v6931, %v7019
        %v7021 = vpop.f32.mrf.mxu0
        %v7022 = vadd.f32 %v6933, %v7021
        %7023 = vmatmul.bf16.gmra.mxu0 %v5738
        %v7024 = vpop.f32.mrf.mxu0
        %v7025 = vadd.f32 %v6936, %v7024
        %v7026 = vpop.f32.mrf.mxu0
        %v7027 = vadd.f32 %v6938, %v7026
        %7028 = vmatmul.bf16.gmra.mxu0 %v5739
        %v7029 = vpop.f32.mrf.mxu0
        %v7030 = vadd.f32 %v6941, %v7029
        %v7031 = vpop.f32.mrf.mxu0
        %v7032 = vadd.f32 %v6943, %v7031
        %7033 = vmatmul.bf16.gmra.mxu0 %v5740
        %v7034 = vpop.f32.mrf.mxu0
        %v7035 = vadd.f32 %v6946, %v7034
        %v7036 = vpop.f32.mrf.mxu0
        %v7037 = vadd.f32 %v6948, %v7036
        %7038 = vmatmul.bf16.gmra.mxu0 %v5741
        %v7039 = vpop.f32.mrf.mxu0
        %v7040 = vadd.f32 %v6951, %v7039
        %v7041 = vpop.f32.mrf.mxu0
        %v7042 = vadd.f32 %v6953, %v7041
        %7043 = vmatmul.bf16.gmra.mxu0 %v5742
        %v7044 = vpop.f32.mrf.mxu0
        %v7045 = vadd.f32 %v6956, %v7044
        %v7046 = vpop.f32.mrf.mxu0
        %v7047 = vadd.f32 %v6958, %v7046
        %7048 = vmatmul.bf16.gmra.mxu0 %v5743
        %v7049 = vpop.f32.mrf.mxu0
        %v7050 = vadd.f32 %v6961, %v7049
        %v7051 = vpop.f32.mrf.mxu0
        %v7052 = vadd.f32 %v6963, %v7051
        %7053 = vmatmul.bf16.gmra.mxu0 %v5744
        %v7054 = vpop.f32.mrf.mxu0
        %v7055 = vadd.f32 %v6966, %v7054
        %v7056 = vpop.f32.mrf.mxu0
        %v7057 = vadd.f32 %v6968, %v7056
        %7058 = vmatmul.bf16.gmra.mxu0 %v5745
        %v7059 = vpop.f32.mrf.mxu0
        %v7060 = vadd.f32 %v6971, %v7059
        %v7061 = vpop.f32.mrf.mxu0
        %v7062 = vadd.f32 %v6973, %v7061
        %7063 = vmatmul.bf16.gmra.mxu0 %v5746
        %v7064 = vpop.f32.mrf.mxu0
        %v7065 = vadd.f32 %v6976, %v7064
        %v7066 = vpop.f32.mrf.mxu0
        %v7067 = vadd.f32 %v6978, %v7066
        %7068 = vdwg.mxu0
        %7069 = vmatpush.bf16.msra.mxu0 %v6446
        %7070 = vmatpush.bf16.msra.mxu0 %v6445
        %7071 = vmatpush.bf16.msra.mxu0 %v6444
        %7072 = vmatpush.bf16.msra.mxu0 %v6443
        %7073 = vmatpush.bf16.msra.mxu0 %v6442
        %7074 = vmatpush.bf16.msra.mxu0 %v6441
        %7075 = vmatpush.bf16.msra.mxu0 %v6440
        %7076 = vmatpush.bf16.msra.mxu0 %v6439
        %7077 = vmatmul.bf16.gmra.mxu0 %v5923
        %v7078 = vpop.f32.mrf.mxu0
        %v7079 = vadd.f32 %v6990, %v7078
        %v7080 = vpop.f32.mrf.mxu0
        %v7081 = vadd.f32 %v6992, %v7080
        %7082 = vmatmul.bf16.gmra.mxu0 %v5924
        %v7083 = vpop.f32.mrf.mxu0
        %v7084 = vadd.f32 %v6995, %v7083
        %v7085 = vpop.f32.mrf.mxu0
        %v7086 = vadd.f32 %v6997, %v7085
        %7087 = vmatmul.bf16.gmra.mxu0 %v5925
        %v7088 = vpop.f32.mrf.mxu0
        %v7089 = vadd.f32 %v7000, %v7088
        %v7090 = vpop.f32.mrf.mxu0
        %v7091 = vadd.f32 %v7002, %v7090
        %7092 = vmatmul.bf16.gmra.mxu0 %v5926
        %v7093 = vpop.f32.mrf.mxu0
        %v7094 = vadd.f32 %v7005, %v7093
        %v7095 = vpop.f32.mrf.mxu0
        %v7096 = vadd.f32 %v7007, %v7095
        %7097 = vmatmul.bf16.gmra.mxu0 %v5927
        %v7098 = vpop.f32.mrf.mxu0
        %v7099 = vadd.f32 %v7010, %v7098
        %v7100 = vpop.f32.mrf.mxu0
        %v7101 = vadd.f32 %v7012, %v7100
        %7102 = vmatmul.bf16.gmra.mxu0 %v5928
        %v7103 = vpop.f32.mrf.mxu0
        %v7104 = vadd.f32 %v7015, %v7103
        %v7105 = vpop.f32.mrf.mxu0
        %v7106 = vadd.f32 %v7017, %v7105
        %7107 = vmatmul.bf16.gmra.mxu0 %v5929
        %v7108 = vpop.f32.mrf.mxu0
        %v7109 = vadd.f32 %v7020, %v7108
        %v7110 = vpop.f32.mrf.mxu0
        %v7111 = vadd.f32 %v7022, %v7110
        %7112 = vmatmul.bf16.gmra.mxu0 %v5930
        %v7113 = vpop.f32.mrf.mxu0
        %v7114 = vadd.f32 %v7025, %v7113
        %v7115 = vpop.f32.mrf.mxu0
        %v7116 = vadd.f32 %v7027, %v7115
        %7117 = vmatmul.bf16.gmra.mxu0 %v5931
        %v7118 = vpop.f32.mrf.mxu0
        %v7119 = vadd.f32 %v7030, %v7118
        %v7120 = vpop.f32.mrf.mxu0
        %v7121 = vadd.f32 %v7032, %v7120
        %7122 = vmatmul.bf16.gmra.mxu0 %v5932
        %v7123 = vpop.f32.mrf.mxu0
        %v7124 = vadd.f32 %v7035, %v7123
        %v7125 = vpop.f32.mrf.mxu0
        %v7126 = vadd.f32 %v7037, %v7125
        %7127 = vmatmul.bf16.gmra.mxu0 %v5933
        %v7128 = vpop.f32.mrf.mxu0
        %v7129 = vadd.f32 %v7040, %v7128
        %v7130 = vpop.f32.mrf.mxu0
        %v7131 = vadd.f32 %v7042, %v7130
        %7132 = vmatmul.bf16.gmra.mxu0 %v5934
        %v7133 = vpop.f32.mrf.mxu0
        %v7134 = vadd.f32 %v7045, %v7133
        %v7135 = vpop.f32.mrf.mxu0
        %v7136 = vadd.f32 %v7047, %v7135
        %7137 = vmatmul.bf16.gmra.mxu0 %v5935
        %v7138 = vpop.f32.mrf.mxu0
        %v7139 = vadd.f32 %v7050, %v7138
        %v7140 = vpop.f32.mrf.mxu0
        %v7141 = vadd.f32 %v7052, %v7140
        %7142 = vmatmul.bf16.gmra.mxu0 %v5936
        %v7143 = vpop.f32.mrf.mxu0
        %v7144 = vadd.f32 %v7055, %v7143
        %v7145 = vpop.f32.mrf.mxu0
        %v7146 = vadd.f32 %v7057, %v7145
        %7147 = vmatmul.bf16.gmra.mxu0 %v5937
        %v7148 = vpop.f32.mrf.mxu0
        %v7149 = vadd.f32 %v7060, %v7148
        %v7150 = vpop.f32.mrf.mxu0
        %v7151 = vadd.f32 %v7062, %v7150
        %7152 = vmatmul.bf16.gmra.mxu0 %v5938
        %v7153 = vpop.f32.mrf.mxu0
        %v7154 = vadd.f32 %v7065, %v7153
        %v7155 = vpop.f32.mrf.mxu0
        %v7156 = vadd.f32 %v7067, %v7155
        %7157 = vdwg.mxu0
        %7158 = vmatpush.bf16.msra.mxu0 %v6454
        %7159 = vmatpush.bf16.msra.mxu0 %v6453
        %7160 = vmatpush.bf16.msra.mxu0 %v6452
        %7161 = vmatpush.bf16.msra.mxu0 %v6451
        %7162 = vmatpush.bf16.msra.mxu0 %v6450
        %7163 = vmatpush.bf16.msra.mxu0 %v6449
        %7164 = vmatpush.bf16.msra.mxu0 %v6448
        %7165 = vmatpush.bf16.msra.mxu0 %v6447
        %7166 = vmatmul.bf16.gmra.mxu0 %v5433
        %v7167 = vpop.f32.mrf.mxu0
        %v7168 = vadd.f32 %v7079, %v7167
        %v7169 = vpop.f32.mrf.mxu0
        %v7170 = vadd.f32 %v7081, %v7169
        %7171 = vmatmul.bf16.gmra.mxu0 %v5434
        %v7172 = vpop.f32.mrf.mxu0
        %v7173 = vadd.f32 %v7084, %v7172
        %v7174 = vpop.f32.mrf.mxu0
        %v7175 = vadd.f32 %v7086, %v7174
        %7176 = vmatmul.bf16.gmra.mxu0 %v5435
        %v7177 = vpop.f32.mrf.mxu0
        %v7178 = vadd.f32 %v7089, %v7177
        %v7179 = vpop.f32.mrf.mxu0
        %v7180 = vadd.f32 %v7091, %v7179
        %7181 = vmatmul.bf16.gmra.mxu0 %v5436
        %v7182 = vpop.f32.mrf.mxu0
        %v7183 = vadd.f32 %v7094, %v7182
        %v7184 = vpop.f32.mrf.mxu0
        %v7185 = vadd.f32 %v7096, %v7184
        %7186 = vmatmul.bf16.gmra.mxu0 %v5437
        %v7187 = vpop.f32.mrf.mxu0
        %v7188 = vadd.f32 %v7099, %v7187
        %v7189 = vpop.f32.mrf.mxu0
        %v7190 = vadd.f32 %v7101, %v7189
        %7191 = vmatmul.bf16.gmra.mxu0 %v5438
        %v7192 = vpop.f32.mrf.mxu0
        %v7193 = vadd.f32 %v7104, %v7192
        %v7194 = vpop.f32.mrf.mxu0
        %v7195 = vadd.f32 %v7106, %v7194
        %7196 = vmatmul.bf16.gmra.mxu0 %v5439
        %v7197 = vpop.f32.mrf.mxu0
        %v7198 = vadd.f32 %v7109, %v7197
        %v7199 = vpop.f32.mrf.mxu0
        %v7200 = vadd.f32 %v7111, %v7199
        %7201 = vmatmul.bf16.gmra.mxu0 %v5440
        %v7202 = vpop.f32.mrf.mxu0
        %v7203 = vadd.f32 %v7114, %v7202
        %v7204 = vpop.f32.mrf.mxu0
        %v7205 = vadd.f32 %v7116, %v7204
        %7206 = vmatmul.bf16.gmra.mxu0 %v5441
        %v7207 = vpop.f32.mrf.mxu0
        %v7208 = vadd.f32 %v7119, %v7207
        %v7209 = vpop.f32.mrf.mxu0
        %v7210 = vadd.f32 %v7121, %v7209
        %7211 = vmatmul.bf16.gmra.mxu0 %v5442
        %v7212 = vpop.f32.mrf.mxu0
        %v7213 = vadd.f32 %v7124, %v7212
        %v7214 = vpop.f32.mrf.mxu0
        %v7215 = vadd.f32 %v7126, %v7214
        %7216 = vmatmul.bf16.gmra.mxu0 %v5443
        %v7217 = vpop.f32.mrf.mxu0
        %v7218 = vadd.f32 %v7129, %v7217
        %v7219 = vpop.f32.mrf.mxu0
        %v7220 = vadd.f32 %v7131, %v7219
        %7221 = vmatmul.bf16.gmra.mxu0 %v5444
        %v7222 = vpop.f32.mrf.mxu0
        %v7223 = vadd.f32 %v7134, %v7222
        %v7224 = vpop.f32.mrf.mxu0
        %v7225 = vadd.f32 %v7136, %v7224
        %7226 = vmatmul.bf16.gmra.mxu0 %v5445
        %v7227 = vpop.f32.mrf.mxu0
        %v7228 = vadd.f32 %v7139, %v7227
        %v7229 = vpop.f32.mrf.mxu0
        %v7230 = vadd.f32 %v7141, %v7229
        %7231 = vmatmul.bf16.gmra.mxu0 %v5446
        %v7232 = vpop.f32.mrf.mxu0
        %v7233 = vadd.f32 %v7144, %v7232
        %v7234 = vpop.f32.mrf.mxu0
        %v7235 = vadd.f32 %v7146, %v7234
        %7236 = vmatmul.bf16.gmra.mxu0 %v5699
        %v7237 = vpop.f32.mrf.mxu0
        %v7238 = vadd.f32 %v7149, %v7237
        %v7239 = vpop.f32.mrf.mxu0
        %v7240 = vadd.f32 %v7151, %v7239
        %7241 = vmatmul.bf16.gmra.mxu0 0
        %v7242 = vpop.f32.mrf.mxu0
        %v7243 = vadd.f32 %v7154, %v7242
        %v7244 = vpop.f32.mrf.mxu0
        %v7245 = vadd.f32 %v7156, %v7244
        %7246 = vdwg.mxu0
        %7247 = vmatpush.bf16.msra.mxu0 %v6462
        %7248 = vmatpush.bf16.msra.mxu0 %v6461
        %7249 = vmatpush.bf16.msra.mxu0 %v6460
        %7250 = vmatpush.bf16.msra.mxu0 %v6459
        %7251 = vmatpush.bf16.msra.mxu0 %v6458
        %7252 = vmatpush.bf16.msra.mxu0 %v6457
        %7253 = vmatpush.bf16.msra.mxu0 %v6456
        %7254 = vmatpush.bf16.msra.mxu0 %v6455
        %7255 = vmatmul.bf16.gmra.mxu0 %v5940
        %v7256 = vpop.f32.mrf.mxu0
        %v7257 = vadd.f32 %v7168, %v7256
        %v7258 = vpop.f32.mrf.mxu0
        %v7259 = vadd.f32 %v7170, %v7258
        %7260 = vmatmul.bf16.gmra.mxu0 %v5941
        %v7261 = vpop.f32.mrf.mxu0
        %v7262 = vadd.f32 %v7173, %v7261
        %v7263 = vpop.f32.mrf.mxu0
        %v7264 = vadd.f32 %v7175, %v7263
        %7265 = vmatmul.bf16.gmra.mxu0 %v5942
        %v7266 = vpop.f32.mrf.mxu0
        %v7267 = vadd.f32 %v7178, %v7266
        %v7268 = vpop.f32.mrf.mxu0
        %v7269 = vadd.f32 %v7180, %v7268
        %7270 = vmatmul.bf16.gmra.mxu0 %v5943
        %v7271 = vpop.f32.mrf.mxu0
        %v7272 = vadd.f32 %v7183, %v7271
        %v7273 = vpop.f32.mrf.mxu0
        %v7274 = vadd.f32 %v7185, %v7273
        %7275 = vmatmul.bf16.gmra.mxu0 %v5944
        %v7276 = vpop.f32.mrf.mxu0
        %v7277 = vadd.f32 %v7188, %v7276
        %v7278 = vpop.f32.mrf.mxu0
        %v7279 = vadd.f32 %v7190, %v7278
        %7280 = vmatmul.bf16.gmra.mxu0 %v5945
        %v7281 = vpop.f32.mrf.mxu0
        %v7282 = vadd.f32 %v7193, %v7281
        %v7283 = vpop.f32.mrf.mxu0
        %v7284 = vadd.f32 %v7195, %v7283
        %7285 = vmatmul.bf16.gmra.mxu0 %v5946
        %v7286 = vpop.f32.mrf.mxu0
        %v7287 = vadd.f32 %v7198, %v7286
        %v7288 = vpop.f32.mrf.mxu0
        %v7289 = vadd.f32 %v7200, %v7288
        %7290 = vmatmul.bf16.gmra.mxu0 %v5947
        %v7291 = vpop.f32.mrf.mxu0
        %v7292 = vadd.f32 %v7203, %v7291
        %v7293 = vpop.f32.mrf.mxu0
        %v7294 = vadd.f32 %v7205, %v7293
        %7295 = vmatmul.bf16.gmra.mxu0 %v5948
        %v7296 = vpop.f32.mrf.mxu0
        %v7297 = vadd.f32 %v7208, %v7296
        %v7298 = vpop.f32.mrf.mxu0
        %v7299 = vadd.f32 %v7210, %v7298
        %7300 = vmatmul.bf16.gmra.mxu0 %v5949
        %v7301 = vpop.f32.mrf.mxu0
        %v7302 = vadd.f32 %v7213, %v7301
        %v7303 = vpop.f32.mrf.mxu0
        %v7304 = vadd.f32 %v7215, %v7303
        %7305 = vmatmul.bf16.gmra.mxu0 %v5950
        %v7306 = vpop.f32.mrf.mxu0
        %v7307 = vadd.f32 %v7218, %v7306
        %v7308 = vpop.f32.mrf.mxu0
        %v7309 = vadd.f32 %v7220, %v7308
        %7310 = vmatmul.bf16.gmra.mxu0 %v5951
        %v7311 = vpop.f32.mrf.mxu0
        %v7312 = vadd.f32 %v7223, %v7311
        %v7313 = vpop.f32.mrf.mxu0
        %v7314 = vadd.f32 %v7225, %v7313
        %7315 = vmatmul.bf16.gmra.mxu0 %v5952
        %v7316 = vpop.f32.mrf.mxu0
        %v7317 = vadd.f32 %v7228, %v7316
        %v7318 = vpop.f32.mrf.mxu0
        %v7319 = vadd.f32 %v7230, %v7318
        %7320 = vmatmul.bf16.gmra.mxu0 %v5953
        %v7321 = vpop.f32.mrf.mxu0
        %v7322 = vadd.f32 %v7233, %v7321
        %v7323 = vpop.f32.mrf.mxu0
        %v7324 = vadd.f32 %v7235, %v7323
        %7325 = vmatmul.bf16.gmra.mxu0 %v5954
        %v7326 = vpop.f32.mrf.mxu0
        %v7327 = vadd.f32 %v7238, %v7326
        %v7328 = vpop.f32.mrf.mxu0
        %v7329 = vadd.f32 %v7240, %v7328
        %7330 = vmatmul.bf16.gmra.mxu0 0
        %v7331 = vpop.f32.mrf.mxu0
        %v7332 = vadd.f32 %v7243, %v7331
        %v7333 = vpop.f32.mrf.mxu0
        %v7334 = vadd.f32 %v7245, %v7333
        %7335 = vdwg.mxu0
        %v7336 = vunpack.c.l.bf16 %v3311
        %v7337 = vunpack.c.l.bf16 %v3312
        %v7338 = vunpack.c.l.bf16 %v3313
        %v7339 = vunpack.c.l.bf16 %v3314
        %v7340 = vunpack.c.l.bf16 %v3315
        %v7341 = vunpack.c.l.bf16 %v3316
        %v7342 = vunpack.c.l.bf16 %v3317
        %v7343 = vunpack.c.l.bf16 %v3318
        %v7344 = vunpack.c.l.bf16 %v3319
        %v7345 = vunpack.c.l.bf16 %v3320
        %v7346 = vunpack.c.l.bf16 %v3321
        %v7347 = vunpack.c.l.bf16 %v3322
        %v7348 = vunpack.c.l.bf16 %v3323
        %v7349 = vunpack.c.l.bf16 %v3324
        %v7350 = vunpack.c.l.bf16 %v3325
        %v7351 = vunpack.c.l.bf16 %v3326
        %v7352 = vunpack.c.l.bf16 %v3327
        %v7353 = vunpack.c.l.bf16 %v3328
        %v7354 = vunpack.c.l.bf16 %v3329
        %v7355 = vunpack.c.l.bf16 %v3330
        %v7356 = vunpack.c.l.bf16 %v3331
        %v7357 = vunpack.c.l.bf16 %v3332
        %v7358 = vunpack.c.l.bf16 %v3333
        %v7359 = vunpack.c.l.bf16 %v3334
        %v7360 = vunpack.c.l.bf16 %v3335
        %v7361 = vunpack.c.l.bf16 %v3336
        %v7362 = vunpack.c.l.bf16 %v3337
        %v7363 = vunpack.c.l.bf16 %v3338
        %v7364 = vunpack.c.l.bf16 %v3339
        %v7365 = vunpack.c.l.bf16 %v3340
        %v7366 = vunpack.c.l.bf16 %v3341
        %v7367 = vunpack.c.l.bf16 %v3342
        %v7368 = vadd.f32 %v7257, %v7336
        %v7369 = vadd.f32 %v7259, %v7337
        %v7370 = vadd.f32 %v7262, %v7338
        %v7371 = vadd.f32 %v7264, %v7339
        %v7372 = vadd.f32 %v7267, %v7340
        %v7373 = vadd.f32 %v7269, %v7341
        %v7374 = vadd.f32 %v7272, %v7342
        %v7375 = vadd.f32 %v7274, %v7343
        %v7376 = vadd.f32 %v7277, %v7344
        %v7377 = vadd.f32 %v7279, %v7345
        %v7378 = vadd.f32 %v7282, %v7346
        %v7379 = vadd.f32 %v7284, %v7347
        %v7380 = vadd.f32 %v7287, %v7348
        %v7381 = vadd.f32 %v7289, %v7349
        %v7382 = vadd.f32 %v7292, %v7350
        %v7383 = vadd.f32 %v7294, %v7351
        %v7384 = vadd.f32 %v7297, %v7352
        %v7385 = vadd.f32 %v7299, %v7353
        %v7386 = vadd.f32 %v7302, %v7354
        %v7387 = vadd.f32 %v7304, %v7355
        %v7388 = vadd.f32 %v7307, %v7356
        %v7389 = vadd.f32 %v7309, %v7357
        %v7390 = vadd.f32 %v7312, %v7358
        %v7391 = vadd.f32 %v7314, %v7359
        %v7392 = vadd.f32 %v7317, %v7360
        %v7393 = vadd.f32 %v7319, %v7361
        %v7394 = vadd.f32 %v7322, %v7362
        %v7395 = vadd.f32 %v7324, %v7363
        %v7396 = vadd.f32 %v7327, %v7364
        %v7397 = vadd.f32 %v7329, %v7365
        %v7398 = vadd.f32 %v7332, %v7366
        %v7399 = vadd.f32 %v7334, %v7367
        %v7400 = vmax.f32 %v7368, 0.0
        %v7401 = vmax.f32 %v7369, 0.0
        %v7402 = vmax.f32 %v7370, 0.0
        %v7403 = vmax.f32 %v7371, 0.0
        %v7404 = vmax.f32 %v7372, 0.0
        %v7405 = vmax.f32 %v7373, 0.0
        %v7406 = vmax.f32 %v7374, 0.0
        %v7407 = vmax.f32 %v7375, 0.0
        %v7408 = vmax.f32 %v7376, 0.0
        %v7409 = vmax.f32 %v7377, 0.0
        %v7410 = vmax.f32 %v7378, 0.0
        %v7411 = vmax.f32 %v7379, 0.0
        %v7412 = vmax.f32 %v7380, 0.0
        %v7413 = vmax.f32 %v7381, 0.0
        %v7414 = vmax.f32 %v7382, 0.0
        %v7415 = vmax.f32 %v7383, 0.0
        %v7416 = vmax.f32 %v7384, 0.0
        %v7417 = vmax.f32 %v7385, 0.0
        %v7418 = vmax.f32 %v7386, 0.0
        %v7419 = vmax.f32 %v7387, 0.0
        %v7420 = vmax.f32 %v7388, 0.0
        %v7421 = vmax.f32 %v7389, 0.0
        %v7422 = vmax.f32 %v7390, 0.0
        %v7423 = vmax.f32 %v7391, 0.0
        %v7424 = vmax.f32 %v7392, 0.0
        %v7425 = vmax.f32 %v7393, 0.0
        %v7426 = vmax.f32 %v7394, 0.0
        %v7427 = vmax.f32 %v7395, 0.0
        %v7428 = vmax.f32 %v7396, 0.0
        %v7429 = vmax.f32 %v7397, 0.0
        %v7430 = vmax.f32 %v7398, 0.0
        %v7431 = vmax.f32 %v7399, 0.0
        %v7432 = vadd.f32 %v7400, %v7401
        %v7433 = vadd.f32 %v7432, %v7402
        %v7434 = vadd.f32 %v7433, %v7403
        %v7435 = vadd.f32 %v7434, %v7404
        %v7436 = vadd.f32 %v7435, %v7405
        %v7437 = vadd.f32 %v7436, %v7406
        %v7438 = vadd.f32 %v7437, %v7407
        %v7439 = vadd.f32 %v7438, %v7408
        %v7440 = vadd.f32 %v7439, %v7409
        %v7441 = vadd.f32 %v7440, %v7410
        %v7442 = vadd.f32 %v7441, %v7411
        %v7443 = vadd.f32 %v7442, %v7412
        %v7444 = vadd.f32 %v7443, %v7413
        %v7445 = vadd.f32 %v7444, %v7414
        %v7446 = vadd.f32 %v7445, %v7415
        %v7447 = vadd.f32 %v7446, %v7416
        %v7448 = vadd.f32 %v7447, %v7417
        %v7449 = vadd.f32 %v7448, %v7418
        %v7450 = vadd.f32 %v7449, %v7419
        %v7451 = vadd.f32 %v7450, %v7420
        %v7452 = vadd.f32 %v7451, %v7421
        %v7453 = vadd.f32 %v7452, %v7422
        %v7454 = vadd.f32 %v7453, %v7423
        %v7455 = vadd.f32 %v7454, %v7424
        %v7456 = vadd.f32 %v7455, %v7425
        %v7457 = vadd.f32 %v7456, %v7426
        %v7458 = vadd.f32 %v7457, %v7427
        %v7459 = vadd.f32 %v7458, %v7428
        %v7460 = vadd.f32 %v7459, %v7429
        %v7461 = vadd.f32 %v7460, %v7430
        %v7462 = vadd.f32 %v7461, %v7431
        %v7463 = vrot.slane %v7462, 4
        %v7464 = vadd.f32 %v7462, %v7463
        %v7465 = vrot.slane %v7464, 2
        %v7466 = vadd.f32 %v7464, %v7465
        %v7467 = vrot.slane %v7466, 1
        %v7468 = vadd.f32 %v7466, %v7467
        %v7469 = vpack.c.bf16 %v7468, %v7468
        %v7470 = vld [vmem:[%s7] sm:$0xf]
        %v7471 = vld [vmem:[%s7 + $0x4] sm:$0xf]
        %v7472 = vld [vmem:[%s7 + $0x8] sm:$0xf]
        %v7473 = vld [vmem:[%s7 + $0xc] sm:$0xf]
        %v7474 = vld [vmem:[%s7 + $0x10] sm:$0xf]
        %v7475 = vld [vmem:[%s7 + $0x14] sm:$0xf]
        %v7476 = vld [vmem:[%s7 + $0x18] sm:$0xf]
        %v7477 = vld [vmem:[%s7 + $0x1c] sm:$0xf]
        %v7478 = vld [vmem:[%s7 + $0x20] sm:$0xf]
        %v7479 = vld [vmem:[%s7 + $0x24] sm:$0xf]
        %v7480 = vld [vmem:[%s7 + $0x28] sm:$0xf]
        %v7481 = vld [vmem:[%s7 + $0x2c] sm:$0xf]
        %v7482 = vld [vmem:[%s7 + $0x30] sm:$0xf]
        %v7483 = vld [vmem:[%s7 + $0x34] sm:$0xf]
        %v7484 = vld [vmem:[%s7 + $0x38] sm:$0xf]
        %v7485 = vld [vmem:[%s7 + $0x3c] sm:$0xf]
        %v7486 = vld [vmem:[%s8] sm:$0x1]
        %v7503 = vunpack.c.l.b16 %v7470
        %v7504 = vunpack.c.l.b16 %v7471
        %v7505 = vunpack.c.l.b16 %v7472
        %v7506 = vunpack.c.l.b16 %v7473
        %v7507 = vunpack.c.l.b16 %v7474
        %v7508 = vunpack.c.l.b16 %v7475
        %v7509 = vunpack.c.l.b16 %v7476
        %v7510 = vunpack.c.l.b16 %v7477
        %v7511 = vunpack.c.l.b16 %v7478
        %v7512 = vunpack.c.l.b16 %v7479
        %v7513 = vunpack.c.l.b16 %v7480
        %v7514 = vunpack.c.l.b16 %v7481
        %v7515 = vunpack.c.l.b16 %v7482
        %v7516 = vunpack.c.l.b16 %v7483
        %v7517 = vunpack.c.l.b16 %v7484
        %v7518 = vunpack.c.l.b16 %v7485
        %v7519 = vpack.c.b16 %v7504, %v7503
        %v7520 = vpack.c.b16 %v7506, %v7505
        %v7521 = vpack.c.b16 %v7508, %v7507
        %v7522 = vpack.c.b16 %v7510, %v7509
        %v7523 = vpack.c.b16 %v7512, %v7511
        %v7524 = vpack.c.b16 %v7514, %v7513
        %v7525 = vpack.c.b16 %v7516, %v7515
        %v7526 = vpack.c.b16 %v7518, %v7517
        %7535 = vmatpush.bf16.msra.mxu0 %v7526
        %7536 = vmatpush.bf16.msra.mxu0 %v7525
        %7537 = vmatpush.bf16.msra.mxu0 %v7524
        %7538 = vmatpush.bf16.msra.mxu0 %v7523
        %7539 = vmatpush.bf16.msra.mxu0 %v7522
        %7540 = vmatpush.bf16.msra.mxu0 %v7521
        %7541 = vmatpush.bf16.msra.mxu0 %v7520
        %7542 = vmatpush.bf16.msra.mxu0 %v7519
        %7543 = vmatmul.bf16.gmra.mxu0 %v7469
        %v7544 = vpop.f32.mrf.mxu0
        %v7545 = vadd.f32 %v7486, %v7544
        %v7546 = vpop.f32.mrf.mxu0
        %7547 = vdwg.mxu0
        %7548 = vst [vmem:[%s374] sm:$0x1] %v7545
        %s7549 = sand.u32 %s227, 1
        %s7550 = scalar_lea.sflag [#allocation4], %s7549
        %s7551 = sand.u32 %s227, 1
        %s7552 = scalar_lea.vmem [#allocation8], %s7551
        // Predicated region
        $region69: #{resnet_model_forward.1} parent=55 // pred_check
          %p7553 = pneg %p237
        $region70: #{resnet_model_forward.1} parent=55 // pred_check_branch
          %7555 = sbr.rel (%p7553) target = $region72
        $region71: #{resnet_model_forward.1} parent=55 // pred_region
          %7557 = vsyncadd %s7550, 0
          %s7558 = scalar_lea.hbm %s9, %s25
          %s7560 = sshll.u32 %s7552, 4
          %s7561 = int_to_ptr.vmem [resolvable:$true] %s7560
          %s7562 = sshll.u32 %s7558, 4
          %s7563 = int_to_ptr.hbm [resolvable:$true] %s7562
          %7565 = dma.vmem_to_hbm [thread:$0]  %s7561, 16, %s7563, %s7550
        $region72: #{resnet_model_forward.1} parent=55 // pred_fallthru
          _
      $region56: #{resnet_model_forward.1} parent=5 // pred_fallthru
        _
      %p7566 = scmp.le.s32.totalorder 2, %s20
      // Predicated region
      $region73: #{resnet_model_forward.1} parent=5 // pred_check
        %p7567 = pneg %p7566
      $region74: #{resnet_model_forward.1} parent=5 // pred_check_branch
        %7569 = sbr.rel (%p7567) target = $region76
      $region75: #{resnet_model_forward.1} parent=5 // pred_region
        %s7570 = ssub.s32 %s20, 2
        // Predicated region
        $region77: #{resnet_model_forward.1} parent=75 // pred_check
          %p7571 = pneg %p243
        $region78: #{resnet_model_forward.1} parent=75 // pred_check_branch
          %7573 = sbr.rel (%p7571) target = $region80
        $region79: #{resnet_model_forward.1} parent=75 // pred_region
          %s7574 = sand.u32 %s228, 1
          %s7575 = scalar_lea.sflag [#allocation4], %s7574
          %s7576 = sand.u32 %s228, 1
          %s7577 = scalar_lea.vmem [#allocation8], %s7576
          %7579 = dma.done %s7575, 16
        $region80: #{resnet_model_forward.1} parent=75 // pred_fallthru
          _
      $region76: #{resnet_model_forward.1} parent=5 // pred_fallthru
        _
    $region6: #{resnet_model_forward.1} parent=1 // loop_footer
      %s24 = sadd.s32 1, %s20
    $region7: #{resnet_model_forward.1} parent=1 // loop_footer_branch
      %19 = sbr.rel target = $region3
    $region8: #{resnet_model_forward.1} parent=1 // loop_exit
      _
    %7580 = vsyncpa [#allocation3], 1
    %s7581 = scalar_lea.sflag [#allocation3], 1
    %7582 = vsyncpa %s7581, 1
    %7583 = vsyncpa [#allocation6], 1
    %7584 = vsyncpa [#allocation4], 1
    %s7585 = scalar_lea.sflag [#allocation4], 1
    %7586 = vsyncpa %s7585, 1

</llo_original>
